<compile_context>
chip_gen: v7x
topology: tpu7x:2x2x1
jax: 0.10.0
libtpu: 0.0.40
codegen_flags: <defaults>
</compile_context>

<pallas_src>
import functools

import jax
import jax.numpy as jnp
from jax.experimental import pallas as pl
from jax.experimental.pallas import tpu as pltpu

EPS = 1e-5
LANE = 128


def _round_up(x, m):
    return (x + m - 1) // m * m


def _tap_decomp(k, stride):
    """3x3 tap index k in {0,1,2} -> (parity, offset) so that the input
    coordinate stride*i + (k-1) equals stride*(i + offset) + parity."""
    d = k - 1
    parity = d % stride
    offset = (d - parity) // stride
    return parity, offset


# -----------------------------------------------------------------------------
# Fused BasicBlock kernel (one grid step per image)
# -----------------------------------------------------------------------------
def _make_block_kernel(stride, Hp, Wp, cin_p, cmid_p, cout_p, has_down):
    s = stride
    n_par = s * s
    M = Hp * Wp

    def kernel(*refs):
        xpars = refs[:n_par]                                  # parity inputs (bf16)
        w1_ref, b1_ref, w2_ref, b2_ref = refs[n_par:n_par + 4]
        i = n_par + 4
        if has_down:
            wsc_ref, bsc_ref = refs[i], refs[i + 1]
            i += 2
        out_ref = refs[i]
        xpad_ref = refs[i + 1]   # (n_par, Hp+2, Wp+2, cin_p) f32 scratch
        mid_ref = refs[i + 2]    # (Hp+2, Wp+2, cmid_p)       f32 scratch

        # Zero the halo borders once (interiors are fully rewritten each step).
        @pl.when(pl.program_id(0) == 0)
        def _init():
            xpad_ref[...] = jnp.zeros(xpad_ref.shape, xpad_ref.dtype)
            mid_ref[...] = jnp.zeros(mid_ref.shape, mid_ref.dtype)

        # Stage the parity-split input into the zero-padded scratch (gives the
        # 3x3 conv its halo with contiguous slices only).
        for p in range(n_par):
            xpad_ref[p, 1:Hp + 1, 1:Wp + 1, :] = xpars[p][0].astype(jnp.float32)

        # ---- conv1 (3x3, stride s) + folded bn1 + relu : 9 shifted matmuls ----
        acc = jnp.zeros((M, cmid_p), jnp.float32)
        for ky in range(3):
            pr, dr = _tap_decomp(ky, s)
            for kx in range(3):
                pc, dc = _tap_decomp(kx, s)
                xs = xpad_ref[pr * s + pc,
                              1 + dr:1 + dr + Hp,
                              1 + dc:1 + dc + Wp, :]
                acc = acc + jnp.dot(
                    xs.reshape(M, cin_p).astype(jnp.bfloat16),
                    w1_ref[ky, kx],
                    preferred_element_type=jnp.float32)
        h1 = jnp.maximum(acc + b1_ref[...], 0.0)

        # Keep the conv1 activation resident in VMEM (no HBM round trip).
        mid_ref[1:Hp + 1, 1:Wp + 1, :] = h1.reshape(Hp, Wp, cmid_p)

        # ---- conv2 (3x3, stride 1) + folded bn2 ----
        acc2 = jnp.zeros((M, cout_p), jnp.float32)
        for ky in range(3):
            for kx in range(3):
                xs = mid_ref[ky:ky + Hp, kx:kx + Wp, :]
                acc2 = acc2 + jnp.dot(
                    xs.reshape(M, cmid_p).astype(jnp.bfloat16),
                    w2_ref[ky, kx],
                    preferred_element_type=jnp.float32)
        y = acc2 + b2_ref[...]

        # ---- shortcut: identity, or folded 1x1-conv+bn on the (0,0) parity grid ----
        x00 = xpad_ref[0, 1:Hp + 1, 1:Wp + 1, :].reshape(M, cin_p)
        if has_down:
            sc = jnp.dot(x00.astype(jnp.bfloat16), wsc_ref[...],
                         preferred_element_type=jnp.float32) + bsc_ref[...]
        else:
            sc = x00

        out_ref[0] = jnp.maximum(y + sc, 0.0).reshape(Hp, Wp, cout_p).astype(out_ref.dtype)

    return kernel


# -----------------------------------------------------------------------------
# Parameter prep: fold BN scale into bf16 weights, pad channels to 128 lanes
# -----------------------------------------------------------------------------
def _bn_fold(bn):
    scale = bn["gamma"] * jax.lax.rsqrt(bn["var"] + EPS)
    bias = bn["beta"] - bn["mean"] * scale
    return scale, bias


def _pad_last(a, target):
    pad = target - a.shape[-1]
    if pad == 0:
        return a
    return jnp.pad(a, [(0, 0)] * (a.ndim - 1) + [(0, pad)])


def _prep_conv3x3(w_torch, bn, cin_p, cout_p):
    scale, bias = _bn_fold(bn)
    w = jnp.transpose(w_torch, (2, 3, 1, 0)) * scale[None, None, None, :]
    w = jnp.pad(w, ((0, 0), (0, 0),
                    (0, cin_p - w.shape[2]), (0, cout_p - w.shape[3])))
    return w.astype(jnp.bfloat16), _pad_last(bias[None, :], cout_p).astype(jnp.float32)


def _prep_conv1x1(w_torch, bn, cin_p, cout_p):
    scale, bias = _bn_fold(bn)
    w = w_torch[:, :, 0, 0].T * scale[None, :]
    w = jnp.pad(w, ((0, cin_p - w.shape[0]), (0, cout_p - w.shape[1])))
    return w.astype(jnp.bfloat16), _pad_last(bias[None, :], cout_p).astype(jnp.float32)


# -----------------------------------------------------------------------------
# Forward
# -----------------------------------------------------------------------------
@functools.partial(jax.jit, static_argnums=(2, 3, 4))
def basic_block_forward(x_nchw, params, stride, in_planes, planes):
    N, Cin, H, W = x_nchw.shape
    s = stride
    assert Cin == in_planes and H % s == 0 and W % s == 0
    Hp, Wp = H // s, W // s
    cin_p = _round_up(in_planes, LANE)
    cmid_p = cout_p = _round_up(planes, LANE)
    has_down = (s != 1) or (in_planes != planes)
    n_par = s * s

    # NCHW -> NHWC, channels padded to lane-dense multiple of 128, bf16 I/O.
    # TODO(synk): in a full network keep activations NHWC / channel-padded
    # across blocks so these layout passes are paid once, not per block.
    x = jnp.transpose(x_nchw, (0, 2, 3, 1))
    x = _pad_last(x, cin_p).astype(jnp.bfloat16)
    # Parity split so the stride-s conv needs only contiguous in-kernel slices.
    xpars = [x[:, pr::s, pc::s, :] for pr in range(s) for pc in range(s)]

    w1, b1 = _prep_conv3x3(params["conv1_w"], params["bn1"], cin_p, cmid_p)
    w2, b2 = _prep_conv3x3(params["conv2_w"], params["bn2"], cmid_p, cout_p)
    args = list(xpars) + [w1, b1, w2, b2]
    if has_down:
        wsc, bsc = _prep_conv1x1(params["sc_w"], params["bn_sc"], cin_p, cout_p)
        args += [wsc, bsc]

    in_specs = (
        [pl.BlockSpec((1, Hp, Wp, cin_p), lambda n: (n, 0, 0, 0))] * n_par
        + [pl.BlockSpec((3, 3, cin_p, cmid_p), lambda n: (0, 0, 0, 0)),
           pl.BlockSpec((1, cmid_p), lambda n: (0, 0)),
           pl.BlockSpec((3, 3, cmid_p, cout_p), lambda n: (0, 0, 0, 0)),
           pl.BlockSpec((1, cout_p), lambda n: (0, 0))]
    )
    if has_down:
        in_specs += [pl.BlockSpec((cin_p, cout_p), lambda n: (0, 0)),
                     pl.BlockSpec((1, cout_p), lambda n: (0, 0))]

    kernel = _make_block_kernel(s, Hp, Wp, cin_p, cmid_p, cout_p, has_down)

    flops = 2 * N * Hp * Wp * (9 * cin_p * cmid_p + 9 * cmid_p * cout_p
                               + (cin_p * cout_p if has_down else 0))
    bytes_accessed = int(sum(a.size * a.dtype.itemsize for a in args)
                         + N * Hp * Wp * cout_p * 4)

    out = pl.pallas_call(
        kernel,
        out_shape=jax.ShapeDtypeStruct((N, Hp, Wp, cout_p), jnp.float32),
        grid=(N,),
        in_specs=in_specs,
        out_specs=pl.BlockSpec((1, Hp, Wp, cout_p), lambda n: (n, 0, 0, 0)),
        scratch_shapes=[
            pltpu.VMEM((n_par, Hp + 2, Wp + 2, cin_p), jnp.float32),
            pltpu.VMEM((Hp + 2, Wp + 2, cmid_p), jnp.float32),
        ],
        compiler_params=pltpu.CompilerParams(
            dimension_semantics=("parallel",)),
        cost_estimate=pl.CostEstimate(flops=flops, transcendentals=0,
                                      bytes_accessed=bytes_accessed),
    )(*args)

    out = out[..., :planes]                    # crop channel padding
    return jnp.transpose(out, (0, 3, 1, 2))    # back to NCHW


# -----------------------------------------------------------------------------
# Parameters
# -----------------------------------------------------------------------------
def _init_bn(keys, c):
    return {
        "gamma": jax.random.uniform(keys[0], (c,), jnp.float32, 0.5, 1.5),
        "beta": 0.1 * jax.random.normal(keys[1], (c,), jnp.float32),
        "mean": 0.1 * jax.random.normal(keys[2], (c,), jnp.float32),
        "var": jax.random.uniform(keys[3], (c,), jnp.float32, 0.5, 1.5),
    }


def init_basic_block(key, in_planes, planes, stride):
    ks = jax.random.split(key, 15)
    p = {
        "conv1_w": 0.1 * jax.random.normal(ks[0], (planes, in_planes, 3, 3), jnp.float32),
        "bn1": _init_bn(ks[1:5], planes),
        "conv2_w": 0.1 * jax.random.normal(ks[5], (planes, planes, 3, 3), jnp.float32),
        "bn2": _init_bn(ks[6:10], planes),
    }
    if stride != 1 or in_planes != planes:
        p["sc_w"] = 0.1 * jax.random.normal(ks[10], (planes, in_planes, 1, 1), jnp.float32)
        p["bn_sc"] = _init_bn(ks[11:15], planes)
    return p


# -----------------------------------------------------------------------------
# Pure-JAX f32 reference
# -----------------------------------------------------------------------------
def ref_basic_block(x_nchw, p, stride, in_planes, planes):
    x = jnp.transpose(x_nchw, (0, 2, 3, 1))

    def conv(x, w, s, pad):
        w_hwio = jnp.transpose(w, (2, 3, 1, 0))
        return jax.lax.conv_general_dilated(
            x, w_hwio, (s, s), [(pad, pad), (pad, pad)],
            dimension_numbers=("NHWC", "HWIO", "NHWC"))

    def bn(x, b):
        return (x - b["mean"]) / jnp.sqrt(b["var"] + EPS) * b["gamma"] + b["beta"]

    out = jax.nn.relu(bn(conv(x, p["conv1_w"], stride, 1), p["bn1"]))
    out = bn(conv(out, p["conv2_w"], 1, 1), p["bn2"])
    if stride != 1 or in_planes != planes:
        sc = bn(conv(x, p["sc_w"], stride, 0), p["bn_sc"])
    else:
        sc = x
    return jnp.transpose(jax.nn.relu(out + sc), (0, 3, 1, 2))


# -----------------------------------------------------------------------------
if __name__ == "__main__":
    key = jax.random.PRNGKey(0)
    kx, kp1, kp2 = jax.random.split(key, 3)

    N, C, H, W = 2, 8, 16, 16
    x = jax.random.normal(kx, (N, C, H, W), jnp.float32)

    # Case 1: identity shortcut (stride=1, in_planes == planes)
    params1 = init_basic_block(kp1, in_planes=8, planes=8, stride=1)
    y1 = jax.block_until_ready(basic_block_forward(x, params1, 1, 8, 8))
    r1 = ref_basic_block(x, params1, 1, 8, 8)
    assert y1.shape == (N, 8, H, W)
    assert jnp.allclose(y1, r1, atol=1e-1, rtol=1e-1), (
        "mismatch (identity shortcut), max err %f" % float(jnp.max(jnp.abs(y1 - r1))))

    # Case 2: downsample shortcut (stride=2, planes != in_planes)
    params2 = init_basic_block(kp2, in_planes=8, planes=16, stride=2)
    y2 = jax.block_until_ready(basic_block_forward(x, params2, 2, 8, 16))
    r2 = ref_basic_block(x, params2, 2, 8, 16)
    assert y2.shape == (N, 16, H // 2, W // 2)
    assert jnp.allclose(y2, r2, atol=1e-1, rtol=1e-1), (
        "mismatch (conv shortcut), max err %f" % float(jnp.max(jnp.abs(y2 - r2))))

    print("KERNEL_OK")
</pallas_src>

<mosaic_0001>
module attributes {stable_mosaic.version = 11 : i64} {
  func.func @kernel(%arg0: i32, %arg1: memref<1x16x16x128xbf16, #tpu.memory_space<vmem>>, %arg2: memref<3x3x128x128xbf16, #tpu.memory_space<vmem>>, %arg3: memref<1x128xf32, #tpu.memory_space<vmem>>, %arg4: memref<3x3x128x128xbf16, #tpu.memory_space<vmem>>, %arg5: memref<1x128xf32, #tpu.memory_space<vmem>>, %arg6: memref<1x16x16x128xf32, #tpu.memory_space<vmem>>, %arg7: memref<1x18x18x128xf32, #tpu.memory_space<vmem>>, %arg8: memref<18x18x128xf32, #tpu.memory_space<vmem>>) attributes {dimension_semantics = [#tpu.dimension_semantics<parallel>], iteration_bounds = array<i64: 2>, scalar_prefetch = 0 : i64, scratch_operands = 2 : i64, tpu.core_type = #tpu.core_type<tc>, window_params = [{transform_indices = @transform_0, window_bounds = array<i64: 1, 16, 16, 128>}, {pipeline_mode = #tpu.pipeline_mode<synchronous>, transform_indices = @transform_1, window_bounds = array<i64: 3, 3, 128, 128>}, {pipeline_mode = #tpu.pipeline_mode<synchronous>, transform_indices = @transform_2, window_bounds = array<i64: 1, 128>}, {pipeline_mode = #tpu.pipeline_mode<synchronous>, transform_indices = @transform_3, window_bounds = array<i64: 3, 3, 128, 128>}, {pipeline_mode = #tpu.pipeline_mode<synchronous>, transform_indices = @transform_4, window_bounds = array<i64: 1, 128>}, {transform_indices = @transform_5, window_bounds = array<i64: 1, 16, 16, 128>}]} {
    %c0_i32 = arith.constant 0 : i32
    %0 = arith.cmpi eq, %arg0, %c0_i32 : i32
    %1 = arith.extui %0 : i1 to i32
    %c0_i32_0 = arith.constant 0 : i32
    %2 = arith.cmpi ne, %1, %c0_i32_0 : i32
    scf.if %2 {
      %cst_177 = arith.constant 0.000000e+00 : f32
      %166 = vector.broadcast %cst_177 : f32 to vector<1x18x18x128xf32>
      %c0_178 = arith.constant 0 : index
      %c0_179 = arith.constant 0 : index
      %c0_180 = arith.constant 0 : index
      %c0_181 = arith.constant 0 : index
      %167 = vector.load %arg7[%c0_178, %c0_179, %c0_180, %c0_181] : memref<1x18x18x128xf32, #tpu.memory_space<vmem>>, vector<1x18x18x128xf32>
      tpu.vector_store %arg7[%c0_178, %c0_179, %c0_180, %c0_181], %166 {strides = array<i32>} : memref<1x18x18x128xf32, #tpu.memory_space<vmem>>, vector<1x18x18x128xf32>,
      %cst_182 = arith.constant 0.000000e+00 : f32
      %168 = vector.broadcast %cst_182 : f32 to vector<18x18x128xf32>
      %c0_183 = arith.constant 0 : index
      %c0_184 = arith.constant 0 : index
      %c0_185 = arith.constant 0 : index
      %169 = vector.load %arg8[%c0_183, %c0_184, %c0_185] : memref<18x18x128xf32, #tpu.memory_space<vmem>>, vector<18x18x128xf32>
      tpu.vector_store %arg8[%c0_183, %c0_184, %c0_185], %168 {strides = array<i32>} : memref<18x18x128xf32, #tpu.memory_space<vmem>>, vector<18x18x128xf32>,
    } else {
    }
    %c0 = arith.constant 0 : index
    %c0_1 = arith.constant 0 : index
    %c0_2 = arith.constant 0 : index
    %c0_3 = arith.constant 0 : index
    %3 = vector.load %arg1[%c0, %c0_1, %c0_2, %c0_3] : memref<1x16x16x128xbf16, #tpu.memory_space<vmem>>, vector<1x16x16x128xbf16>
    %4 = vector.shape_cast %3 : vector<1x16x16x128xbf16> to vector<16x16x128xbf16>
    %5 = arith.extf %4 : vector<16x16x128xbf16> to vector<16x16x128xf32>
    %c0_4 = arith.constant 0 : index
    %c1 = arith.constant 1 : index
    %c1_5 = arith.constant 1 : index
    %c0_6 = arith.constant 0 : index
    %6 = vector.load %arg7[%c0_4, %c1, %c1_5, %c0_6] : memref<1x18x18x128xf32, #tpu.memory_space<vmem>>, vector<1x16x16x128xf32>
    %7 = vector.shape_cast %6 : vector<1x16x16x128xf32> to vector<16x16x128xf32>
    %8 = vector.shape_cast %5 : vector<16x16x128xf32> to vector<1x16x16x128xf32>
    tpu.vector_store %arg7[%c0_4, %c1, %c1_5, %c0_6], %8 {strides = array<i32>} : memref<1x18x18x128xf32, #tpu.memory_space<vmem>>, vector<1x16x16x128xf32>,
    %cst = arith.constant 0.000000e+00 : f32
    %9 = vector.broadcast %cst : f32 to vector<256x128xf32>
    %c0_7 = arith.constant 0 : index
    %c0_8 = arith.constant 0 : index
    %c0_9 = arith.constant 0 : index
    %c0_10 = arith.constant 0 : index
    %10 = vector.load %arg7[%c0_7, %c0_8, %c0_9, %c0_10] : memref<1x18x18x128xf32, #tpu.memory_space<vmem>>, vector<1x16x16x128xf32>
    %11 = vector.shape_cast %10 : vector<1x16x16x128xf32> to vector<16x16x128xf32>
    %12 = vector.shape_cast %11 : vector<16x16x128xf32> to vector<256x128xf32>
    %13 = arith.truncf %12 : vector<256x128xf32> to vector<256x128xbf16>
    %c0_11 = arith.constant 0 : index
    %c0_12 = arith.constant 0 : index
    %c0_13 = arith.constant 0 : index
    %c0_14 = arith.constant 0 : index
    %14 = vector.load %arg2[%c0_11, %c0_12, %c0_13, %c0_14] : memref<3x3x128x128xbf16, #tpu.memory_space<vmem>>, vector<1x1x128x128xbf16>
    %15 = vector.shape_cast %14 : vector<1x1x128x128xbf16> to vector<128x128xbf16>
    %cst_15 = arith.constant dense<0.000000e+00> : vector<256x128xf32>
    %16 = tpu.matmul %13, %15, %cst_15 {dimension_numbers = #tpu.dot_dimension_numbers<[1], [0], [0], [1], [0, 0, 1, 1], [], []>} : vector<256x128xbf16>, vector<128x128xbf16>, vector<256x128xf32> -> vector<256x128xf32>
    %17 = arith.addf %9, %16 : vector<256x128xf32>
    %c0_16 = arith.constant 0 : index
    %c0_17 = arith.constant 0 : index
    %c1_18 = arith.constant 1 : index
    %c0_19 = arith.constant 0 : index
    %18 = vector.load %arg7[%c0_16, %c0_17, %c1_18, %c0_19] : memref<1x18x18x128xf32, #tpu.memory_space<vmem>>, vector<1x16x16x128xf32>
    %19 = vector.shape_cast %18 : vector<1x16x16x128xf32> to vector<16x16x128xf32>
    %20 = vector.shape_cast %19 : vector<16x16x128xf32> to vector<256x128xf32>
    %21 = arith.truncf %20 : vector<256x128xf32> to vector<256x128xbf16>
    %c0_20 = arith.constant 0 : index
    %c1_21 = arith.constant 1 : index
    %c0_22 = arith.constant 0 : index
    %c0_23 = arith.constant 0 : index
    %22 = vector.load %arg2[%c0_20, %c1_21, %c0_22, %c0_23] : memref<3x3x128x128xbf16, #tpu.memory_space<vmem>>, vector<1x1x128x128xbf16>
    %23 = vector.shape_cast %22 : vector<1x1x128x128xbf16> to vector<128x128xbf16>
    %cst_24 = arith.constant dense<0.000000e+00> : vector<256x128xf32>
    %24 = tpu.matmul %21, %23, %cst_24 {dimension_numbers = #tpu.dot_dimension_numbers<[1], [0], [0], [1], [0, 0, 1, 1], [], []>} : vector<256x128xbf16>, vector<128x128xbf16>, vector<256x128xf32> -> vector<256x128xf32>
    %25 = arith.addf %17, %24 : vector<256x128xf32>
    %c0_25 = arith.constant 0 : index
    %c0_26 = arith.constant 0 : index
    %c2 = arith.constant 2 : index
    %c0_27 = arith.constant 0 : index
    %26 = vector.load %arg7[%c0_25, %c0_26, %c2, %c0_27] : memref<1x18x18x128xf32, #tpu.memory_space<vmem>>, vector<1x16x16x128xf32>
    %27 = vector.shape_cast %26 : vector<1x16x16x128xf32> to vector<16x16x128xf32>
    %28 = vector.shape_cast %27 : vector<16x16x128xf32> to vector<256x128xf32>
    %29 = arith.truncf %28 : vector<256x128xf32> to vector<256x128xbf16>
    %c0_28 = arith.constant 0 : index
    %c2_29 = arith.constant 2 : index
    %c0_30 = arith.constant 0 : index
    %c0_31 = arith.constant 0 : index
    %30 = vector.load %arg2[%c0_28, %c2_29, %c0_30, %c0_31] : memref<3x3x128x128xbf16, #tpu.memory_space<vmem>>, vector<1x1x128x128xbf16>
    %31 = vector.shape_cast %30 : vector<1x1x128x128xbf16> to vector<128x128xbf16>
    %cst_32 = arith.constant dense<0.000000e+00> : vector<256x128xf32>
    %32 = tpu.matmul %29, %31, %cst_32 {dimension_numbers = #tpu.dot_dimension_numbers<[1], [0], [0], [1], [0, 0, 1, 1], [], []>} : vector<256x128xbf16>, vector<128x128xbf16>, vector<256x128xf32> -> vector<256x128xf32>
    %33 = arith.addf %25, %32 : vector<256x128xf32>
    %c0_33 = arith.constant 0 : index
    %c1_34 = arith.constant 1 : index
    %c0_35 = arith.constant 0 : index
    %c0_36 = arith.constant 0 : index
    %34 = vector.load %arg7[%c0_33, %c1_34, %c0_35, %c0_36] : memref<1x18x18x128xf32, #tpu.memory_space<vmem>>, vector<1x16x16x128xf32>
    %35 = vector.shape_cast %34 : vector<1x16x16x128xf32> to vector<16x16x128xf32>
    %36 = vector.shape_cast %35 : vector<16x16x128xf32> to vector<256x128xf32>
    %37 = arith.truncf %36 : vector<256x128xf32> to vector<256x128xbf16>
    %c1_37 = arith.constant 1 : index
    %c0_38 = arith.constant 0 : index
    %c0_39 = arith.constant 0 : index
    %c0_40 = arith.constant 0 : index
    %38 = vector.load %arg2[%c1_37, %c0_38, %c0_39, %c0_40] : memref<3x3x128x128xbf16, #tpu.memory_space<vmem>>, vector<1x1x128x128xbf16>
    %39 = vector.shape_cast %38 : vector<1x1x128x128xbf16> to vector<128x128xbf16>
    %cst_41 = arith.constant dense<0.000000e+00> : vector<256x128xf32>
    %40 = tpu.matmul %37, %39, %cst_41 {dimension_numbers = #tpu.dot_dimension_numbers<[1], [0], [0], [1], [0, 0, 1, 1], [], []>} : vector<256x128xbf16>, vector<128x128xbf16>, vector<256x128xf32> -> vector<256x128xf32>
    %41 = arith.addf %33, %40 : vector<256x128xf32>
    %c0_42 = arith.constant 0 : index
    %c1_43 = arith.constant 1 : index
    %c1_44 = arith.constant 1 : index
    %c0_45 = arith.constant 0 : index
    %42 = vector.load %arg7[%c0_42, %c1_43, %c1_44, %c0_45] : memref<1x18x18x128xf32, #tpu.memory_space<vmem>>, vector<1x16x16x128xf32>
    %43 = vector.shape_cast %42 : vector<1x16x16x128xf32> to vector<16x16x128xf32>
    %44 = vector.shape_cast %43 : vector<16x16x128xf32> to vector<256x128xf32>
    %45 = arith.truncf %44 : vector<256x128xf32> to vector<256x128xbf16>
    %c1_46 = arith.constant 1 : index
    %c1_47 = arith.constant 1 : index
    %c0_48 = arith.constant 0 : index
    %c0_49 = arith.constant 0 : index
    %46 = vector.load %arg2[%c1_46, %c1_47, %c0_48, %c0_49] : memref<3x3x128x128xbf16, #tpu.memory_space<vmem>>, vector<1x1x128x128xbf16>
    %47 = vector.shape_cast %46 : vector<1x1x128x128xbf16> to vector<128x128xbf16>
    %cst_50 = arith.constant dense<0.000000e+00> : vector<256x128xf32>
    %48 = tpu.matmul %45, %47, %cst_50 {dimension_numbers = #tpu.dot_dimension_numbers<[1], [0], [0], [1], [0, 0, 1, 1], [], []>} : vector<256x128xbf16>, vector<128x128xbf16>, vector<256x128xf32> -> vector<256x128xf32>
    %49 = arith.addf %41, %48 : vector<256x128xf32>
    %c0_51 = arith.constant 0 : index
    %c1_52 = arith.constant 1 : index
    %c2_53 = arith.constant 2 : index
    %c0_54 = arith.constant 0 : index
    %50 = vector.load %arg7[%c0_51, %c1_52, %c2_53, %c0_54] : memref<1x18x18x128xf32, #tpu.memory_space<vmem>>, vector<1x16x16x128xf32>
    %51 = vector.shape_cast %50 : vector<1x16x16x128xf32> to vector<16x16x128xf32>
    %52 = vector.shape_cast %51 : vector<16x16x128xf32> to vector<256x128xf32>
    %53 = arith.truncf %52 : vector<256x128xf32> to vector<256x128xbf16>
    %c1_55 = arith.constant 1 : index
    %c2_56 = arith.constant 2 : index
    %c0_57 = arith.constant 0 : index
    %c0_58 = arith.constant 0 : index
    %54 = vector.load %arg2[%c1_55, %c2_56, %c0_57, %c0_58] : memref<3x3x128x128xbf16, #tpu.memory_space<vmem>>, vector<1x1x128x128xbf16>
    %55 = vector.shape_cast %54 : vector<1x1x128x128xbf16> to vector<128x128xbf16>
    %cst_59 = arith.constant dense<0.000000e+00> : vector<256x128xf32>
    %56 = tpu.matmul %53, %55, %cst_59 {dimension_numbers = #tpu.dot_dimension_numbers<[1], [0], [0], [1], [0, 0, 1, 1], [], []>} : vector<256x128xbf16>, vector<128x128xbf16>, vector<256x128xf32> -> vector<256x128xf32>
    %57 = arith.addf %49, %56 : vector<256x128xf32>
    %c0_60 = arith.constant 0 : index
    %c2_61 = arith.constant 2 : index
    %c0_62 = arith.constant 0 : index
    %c0_63 = arith.constant 0 : index
    %58 = vector.load %arg7[%c0_60, %c2_61, %c0_62, %c0_63] : memref<1x18x18x128xf32, #tpu.memory_space<vmem>>, vector<1x16x16x128xf32>
    %59 = vector.shape_cast %58 : vector<1x16x16x128xf32> to vector<16x16x128xf32>
    %60 = vector.shape_cast %59 : vector<16x16x128xf32> to vector<256x128xf32>
    %61 = arith.truncf %60 : vector<256x128xf32> to vector<256x128xbf16>
    %c2_64 = arith.constant 2 : index
    %c0_65 = arith.constant 0 : index
    %c0_66 = arith.constant 0 : index
    %c0_67 = arith.constant 0 : index
    %62 = vector.load %arg2[%c2_64, %c0_65, %c0_66, %c0_67] : memref<3x3x128x128xbf16, #tpu.memory_space<vmem>>, vector<1x1x128x128xbf16>
    %63 = vector.shape_cast %62 : vector<1x1x128x128xbf16> to vector<128x128xbf16>
    %cst_68 = arith.constant dense<0.000000e+00> : vector<256x128xf32>
    %64 = tpu.matmul %61, %63, %cst_68 {dimension_numbers = #tpu.dot_dimension_numbers<[1], [0], [0], [1], [0, 0, 1, 1], [], []>} : vector<256x128xbf16>, vector<128x128xbf16>, vector<256x128xf32> -> vector<256x128xf32>
    %65 = arith.addf %57, %64 : vector<256x128xf32>
    %c0_69 = arith.constant 0 : index
    %c2_70 = arith.constant 2 : index
    %c1_71 = arith.constant 1 : index
    %c0_72 = arith.constant 0 : index
    %66 = vector.load %arg7[%c0_69, %c2_70, %c1_71, %c0_72] : memref<1x18x18x128xf32, #tpu.memory_space<vmem>>, vector<1x16x16x128xf32>
    %67 = vector.shape_cast %66 : vector<1x16x16x128xf32> to vector<16x16x128xf32>
    %68 = vector.shape_cast %67 : vector<16x16x128xf32> to vector<256x128xf32>
    %69 = arith.truncf %68 : vector<256x128xf32> to vector<256x128xbf16>
    %c2_73 = arith.constant 2 : index
    %c1_74 = arith.constant 1 : index
    %c0_75 = arith.constant 0 : index
    %c0_76 = arith.constant 0 : index
    %70 = vector.load %arg2[%c2_73, %c1_74, %c0_75, %c0_76] : memref<3x3x128x128xbf16, #tpu.memory_space<vmem>>, vector<1x1x128x128xbf16>
    %71 = vector.shape_cast %70 : vector<1x1x128x128xbf16> to vector<128x128xbf16>
    %cst_77 = arith.constant dense<0.000000e+00> : vector<256x128xf32>
    %72 = tpu.matmul %69, %71, %cst_77 {dimension_numbers = #tpu.dot_dimension_numbers<[1], [0], [0], [1], [0, 0, 1, 1], [], []>} : vector<256x128xbf16>, vector<128x128xbf16>, vector<256x128xf32> -> vector<256x128xf32>
    %73 = arith.addf %65, %72 : vector<256x128xf32>
    %c0_78 = arith.constant 0 : index
    %c2_79 = arith.constant 2 : index
    %c2_80 = arith.constant 2 : index
    %c0_81 = arith.constant 0 : index
    %74 = vector.load %arg7[%c0_78, %c2_79, %c2_80, %c0_81] : memref<1x18x18x128xf32, #tpu.memory_space<vmem>>, vector<1x16x16x128xf32>
    %75 = vector.shape_cast %74 : vector<1x16x16x128xf32> to vector<16x16x128xf32>
    %76 = vector.shape_cast %75 : vector<16x16x128xf32> to vector<256x128xf32>
    %77 = arith.truncf %76 : vector<256x128xf32> to vector<256x128xbf16>
    %c2_82 = arith.constant 2 : index
    %c2_83 = arith.constant 2 : index
    %c0_84 = arith.constant 0 : index
    %c0_85 = arith.constant 0 : index
    %78 = vector.load %arg2[%c2_82, %c2_83, %c0_84, %c0_85] : memref<3x3x128x128xbf16, #tpu.memory_space<vmem>>, vector<1x1x128x128xbf16>
    %79 = vector.shape_cast %78 : vector<1x1x128x128xbf16> to vector<128x128xbf16>
    %cst_86 = arith.constant dense<0.000000e+00> : vector<256x128xf32>
    %80 = tpu.matmul %77, %79, %cst_86 {dimension_numbers = #tpu.dot_dimension_numbers<[1], [0], [0], [1], [0, 0, 1, 1], [], []>} : vector<256x128xbf16>, vector<128x128xbf16>, vector<256x128xf32> -> vector<256x128xf32>
    %81 = arith.addf %73, %80 : vector<256x128xf32>
    %c0_87 = arith.constant 0 : index
    %c0_88 = arith.constant 0 : index
    %82 = vector.load %arg3[%c0_87, %c0_88] : memref<1x128xf32, #tpu.memory_space<vmem>>, vector<1x128xf32>
    %83 = vector.broadcast %82 : vector<1x128xf32> to vector<256x128xf32>
    %84 = arith.addf %81, %83 : vector<256x128xf32>
    %cst_89 = arith.constant 0.000000e+00 : f32
    %85 = vector.broadcast %cst_89 : f32 to vector<256x128xf32>
    %86 = arith.maximumf %84, %85 : vector<256x128xf32>
    %87 = vector.shape_cast %86 : vector<256x128xf32> to vector<16x16x128xf32>
    %c1_90 = arith.constant 1 : index
    %c1_91 = arith.constant 1 : index
    %c0_92 = arith.constant 0 : index
    %88 = vector.load %arg8[%c1_90, %c1_91, %c0_92] : memref<18x18x128xf32, #tpu.memory_space<vmem>>, vector<16x16x128xf32>
    tpu.vector_store %arg8[%c1_90, %c1_91, %c0_92], %87 {strides = array<i32>} : memref<18x18x128xf32, #tpu.memory_space<vmem>>, vector<16x16x128xf32>,
    %cst_93 = arith.constant 0.000000e+00 : f32
    %89 = vector.broadcast %cst_93 : f32 to vector<256x128xf32>
    %c0_94 = arith.constant 0 : index
    %c0_95 = arith.constant 0 : index
    %c0_96 = arith.constant 0 : index
    %90 = vector.load %arg8[%c0_94, %c0_95, %c0_96] : memref<18x18x128xf32, #tpu.memory_space<vmem>>, vector<16x16x128xf32>
    %91 = vector.shape_cast %90 : vector<16x16x128xf32> to vector<256x128xf32>
    %92 = arith.truncf %91 : vector<256x128xf32> to vector<256x128xbf16>
    %c0_97 = arith.constant 0 : index
    %c0_98 = arith.constant 0 : index
    %c0_99 = arith.constant 0 : index
    %c0_100 = arith.constant 0 : index
    %93 = vector.load %arg4[%c0_97, %c0_98, %c0_99, %c0_100] : memref<3x3x128x128xbf16, #tpu.memory_space<vmem>>, vector<1x1x128x128xbf16>
    %94 = vector.shape_cast %93 : vector<1x1x128x128xbf16> to vector<128x128xbf16>
    %cst_101 = arith.constant dense<0.000000e+00> : vector<256x128xf32>
    %95 = tpu.matmul %92, %94, %cst_101 {dimension_numbers = #tpu.dot_dimension_numbers<[1], [0], [0], [1], [0, 0, 1, 1], [], []>} : vector<256x128xbf16>, vector<128x128xbf16>, vector<256x128xf32> -> vector<256x128xf32>
    %96 = arith.addf %89, %95 : vector<256x128xf32>
    %c0_102 = arith.constant 0 : index
    %c1_103 = arith.constant 1 : index
    %c0_104 = arith.constant 0 : index
    %97 = vector.load %arg8[%c0_102, %c1_103, %c0_104] : memref<18x18x128xf32, #tpu.memory_space<vmem>>, vector<16x16x128xf32>
    %98 = vector.shape_cast %97 : vector<16x16x128xf32> to vector<256x128xf32>
    %99 = arith.truncf %98 : vector<256x128xf32> to vector<256x128xbf16>
    %c0_105 = arith.constant 0 : index
    %c1_106 = arith.constant 1 : index
    %c0_107 = arith.constant 0 : index
    %c0_108 = arith.constant 0 : index
    %100 = vector.load %arg4[%c0_105, %c1_106, %c0_107, %c0_108] : memref<3x3x128x128xbf16, #tpu.memory_space<vmem>>, vector<1x1x128x128xbf16>
    %101 = vector.shape_cast %100 : vector<1x1x128x128xbf16> to vector<128x128xbf16>
    %cst_109 = arith.constant dense<0.000000e+00> : vector<256x128xf32>
    %102 = tpu.matmul %99, %101, %cst_109 {dimension_numbers = #tpu.dot_dimension_numbers<[1], [0], [0], [1], [0, 0, 1, 1], [], []>} : vector<256x128xbf16>, vector<128x128xbf16>, vector<256x128xf32> -> vector<256x128xf32>
    %103 = arith.addf %96, %102 : vector<256x128xf32>
    %c0_110 = arith.constant 0 : index
    %c2_111 = arith.constant 2 : index
    %c0_112 = arith.constant 0 : index
    %104 = vector.load %arg8[%c0_110, %c2_111, %c0_112] : memref<18x18x128xf32, #tpu.memory_space<vmem>>, vector<16x16x128xf32>
    %105 = vector.shape_cast %104 : vector<16x16x128xf32> to vector<256x128xf32>
    %106 = arith.truncf %105 : vector<256x128xf32> to vector<256x128xbf16>
    %c0_113 = arith.constant 0 : index
    %c2_114 = arith.constant 2 : index
    %c0_115 = arith.constant 0 : index
    %c0_116 = arith.constant 0 : index
    %107 = vector.load %arg4[%c0_113, %c2_114, %c0_115, %c0_116] : memref<3x3x128x128xbf16, #tpu.memory_space<vmem>>, vector<1x1x128x128xbf16>
    %108 = vector.shape_cast %107 : vector<1x1x128x128xbf16> to vector<128x128xbf16>
    %cst_117 = arith.constant dense<0.000000e+00> : vector<256x128xf32>
    %109 = tpu.matmul %106, %108, %cst_117 {dimension_numbers = #tpu.dot_dimension_numbers<[1], [0], [0], [1], [0, 0, 1, 1], [], []>} : vector<256x128xbf16>, vector<128x128xbf16>, vector<256x128xf32> -> vector<256x128xf32>
    %110 = arith.addf %103, %109 : vector<256x128xf32>
    %c1_118 = arith.constant 1 : index
    %c0_119 = arith.constant 0 : index
    %c0_120 = arith.constant 0 : index
    %111 = vector.load %arg8[%c1_118, %c0_119, %c0_120] : memref<18x18x128xf32, #tpu.memory_space<vmem>>, vector<16x16x128xf32>
    %112 = vector.shape_cast %111 : vector<16x16x128xf32> to vector<256x128xf32>
    %113 = arith.truncf %112 : vector<256x128xf32> to vector<256x128xbf16>
    %c1_121 = arith.constant 1 : index
    %c0_122 = arith.constant 0 : index
    %c0_123 = arith.constant 0 : index
    %c0_124 = arith.constant 0 : index
    %114 = vector.load %arg4[%c1_121, %c0_122, %c0_123, %c0_124] : memref<3x3x128x128xbf16, #tpu.memory_space<vmem>>, vector<1x1x128x128xbf16>
    %115 = vector.shape_cast %114 : vector<1x1x128x128xbf16> to vector<128x128xbf16>
    %cst_125 = arith.constant dense<0.000000e+00> : vector<256x128xf32>
    %116 = tpu.matmul %113, %115, %cst_125 {dimension_numbers = #tpu.dot_dimension_numbers<[1], [0], [0], [1], [0, 0, 1, 1], [], []>} : vector<256x128xbf16>, vector<128x128xbf16>, vector<256x128xf32> -> vector<256x128xf32>
    %117 = arith.addf %110, %116 : vector<256x128xf32>
    %c1_126 = arith.constant 1 : index
    %c1_127 = arith.constant 1 : index
    %c0_128 = arith.constant 0 : index
    %118 = vector.load %arg8[%c1_126, %c1_127, %c0_128] : memref<18x18x128xf32, #tpu.memory_space<vmem>>, vector<16x16x128xf32>
    %119 = vector.shape_cast %118 : vector<16x16x128xf32> to vector<256x128xf32>
    %120 = arith.truncf %119 : vector<256x128xf32> to vector<256x128xbf16>
    %c1_129 = arith.constant 1 : index
    %c1_130 = arith.constant 1 : index
    %c0_131 = arith.constant 0 : index
    %c0_132 = arith.constant 0 : index
    %121 = vector.load %arg4[%c1_129, %c1_130, %c0_131, %c0_132] : memref<3x3x128x128xbf16, #tpu.memory_space<vmem>>, vector<1x1x128x128xbf16>
    %122 = vector.shape_cast %121 : vector<1x1x128x128xbf16> to vector<128x128xbf16>
    %cst_133 = arith.constant dense<0.000000e+00> : vector<256x128xf32>
    %123 = tpu.matmul %120, %122, %cst_133 {dimension_numbers = #tpu.dot_dimension_numbers<[1], [0], [0], [1], [0, 0, 1, 1], [], []>} : vector<256x128xbf16>, vector<128x128xbf16>, vector<256x128xf32> -> vector<256x128xf32>
    %124 = arith.addf %117, %123 : vector<256x128xf32>
    %c1_134 = arith.constant 1 : index
    %c2_135 = arith.constant 2 : index
    %c0_136 = arith.constant 0 : index
    %125 = vector.load %arg8[%c1_134, %c2_135, %c0_136] : memref<18x18x128xf32, #tpu.memory_space<vmem>>, vector<16x16x128xf32>
    %126 = vector.shape_cast %125 : vector<16x16x128xf32> to vector<256x128xf32>
    %127 = arith.truncf %126 : vector<256x128xf32> to vector<256x128xbf16>
    %c1_137 = arith.constant 1 : index
    %c2_138 = arith.constant 2 : index
    %c0_139 = arith.constant 0 : index
    %c0_140 = arith.constant 0 : index
    %128 = vector.load %arg4[%c1_137, %c2_138, %c0_139, %c0_140] : memref<3x3x128x128xbf16, #tpu.memory_space<vmem>>, vector<1x1x128x128xbf16>
    %129 = vector.shape_cast %128 : vector<1x1x128x128xbf16> to vector<128x128xbf16>
    %cst_141 = arith.constant dense<0.000000e+00> : vector<256x128xf32>
    %130 = tpu.matmul %127, %129, %cst_141 {dimension_numbers = #tpu.dot_dimension_numbers<[1], [0], [0], [1], [0, 0, 1, 1], [], []>} : vector<256x128xbf16>, vector<128x128xbf16>, vector<256x128xf32> -> vector<256x128xf32>
    %131 = arith.addf %124, %130 : vector<256x128xf32>
    %c2_142 = arith.constant 2 : index
    %c0_143 = arith.constant 0 : index
    %c0_144 = arith.constant 0 : index
    %132 = vector.load %arg8[%c2_142, %c0_143, %c0_144] : memref<18x18x128xf32, #tpu.memory_space<vmem>>, vector<16x16x128xf32>
    %133 = vector.shape_cast %132 : vector<16x16x128xf32> to vector<256x128xf32>
    %134 = arith.truncf %133 : vector<256x128xf32> to vector<256x128xbf16>
    %c2_145 = arith.constant 2 : index
    %c0_146 = arith.constant 0 : index
    %c0_147 = arith.constant 0 : index
    %c0_148 = arith.constant 0 : index
    %135 = vector.load %arg4[%c2_145, %c0_146, %c0_147, %c0_148] : memref<3x3x128x128xbf16, #tpu.memory_space<vmem>>, vector<1x1x128x128xbf16>
    %136 = vector.shape_cast %135 : vector<1x1x128x128xbf16> to vector<128x128xbf16>
    %cst_149 = arith.constant dense<0.000000e+00> : vector<256x128xf32>
    %137 = tpu.matmul %134, %136, %cst_149 {dimension_numbers = #tpu.dot_dimension_numbers<[1], [0], [0], [1], [0, 0, 1, 1], [], []>} : vector<256x128xbf16>, vector<128x128xbf16>, vector<256x128xf32> -> vector<256x128xf32>
    %138 = arith.addf %131, %137 : vector<256x128xf32>
    %c2_150 = arith.constant 2 : index
    %c1_151 = arith.constant 1 : index
    %c0_152 = arith.constant 0 : index
    %139 = vector.load %arg8[%c2_150, %c1_151, %c0_152] : memref<18x18x128xf32, #tpu.memory_space<vmem>>, vector<16x16x128xf32>
    %140 = vector.shape_cast %139 : vector<16x16x128xf32> to vector<256x128xf32>
    %141 = arith.truncf %140 : vector<256x128xf32> to vector<256x128xbf16>
    %c2_153 = arith.constant 2 : index
    %c1_154 = arith.constant 1 : index
    %c0_155 = arith.constant 0 : index
    %c0_156 = arith.constant 0 : index
    %142 = vector.load %arg4[%c2_153, %c1_154, %c0_155, %c0_156] : memref<3x3x128x128xbf16, #tpu.memory_space<vmem>>, vector<1x1x128x128xbf16>
    %143 = vector.shape_cast %142 : vector<1x1x128x128xbf16> to vector<128x128xbf16>
    %cst_157 = arith.constant dense<0.000000e+00> : vector<256x128xf32>
    %144 = tpu.matmul %141, %143, %cst_157 {dimension_numbers = #tpu.dot_dimension_numbers<[1], [0], [0], [1], [0, 0, 1, 1], [], []>} : vector<256x128xbf16>, vector<128x128xbf16>, vector<256x128xf32> -> vector<256x128xf32>
    %145 = arith.addf %138, %144 : vector<256x128xf32>
    %c2_158 = arith.constant 2 : index
    %c2_159 = arith.constant 2 : index
    %c0_160 = arith.constant 0 : index
    %146 = vector.load %arg8[%c2_158, %c2_159, %c0_160] : memref<18x18x128xf32, #tpu.memory_space<vmem>>, vector<16x16x128xf32>
    %147 = vector.shape_cast %146 : vector<16x16x128xf32> to vector<256x128xf32>
    %148 = arith.truncf %147 : vector<256x128xf32> to vector<256x128xbf16>
    %c2_161 = arith.constant 2 : index
    %c2_162 = arith.constant 2 : index
    %c0_163 = arith.constant 0 : index
    %c0_164 = arith.constant 0 : index
    %149 = vector.load %arg4[%c2_161, %c2_162, %c0_163, %c0_164] : memref<3x3x128x128xbf16, #tpu.memory_space<vmem>>, vector<1x1x128x128xbf16>
    %150 = vector.shape_cast %149 : vector<1x1x128x128xbf16> to vector<128x128xbf16>
    %cst_165 = arith.constant dense<0.000000e+00> : vector<256x128xf32>
    %151 = tpu.matmul %148, %150, %cst_165 {dimension_numbers = #tpu.dot_dimension_numbers<[1], [0], [0], [1], [0, 0, 1, 1], [], []>} : vector<256x128xbf16>, vector<128x128xbf16>, vector<256x128xf32> -> vector<256x128xf32>
    %152 = arith.addf %145, %151 : vector<256x128xf32>
    %c0_166 = arith.constant 0 : index
    %c0_167 = arith.constant 0 : index
    %153 = vector.load %arg5[%c0_166, %c0_167] : memref<1x128xf32, #tpu.memory_space<vmem>>, vector<1x128xf32>
    %154 = vector.broadcast %153 : vector<1x128xf32> to vector<256x128xf32>
    %155 = arith.addf %152, %154 : vector<256x128xf32>
    %c0_168 = arith.constant 0 : index
    %c1_169 = arith.constant 1 : index
    %c1_170 = arith.constant 1 : index
    %c0_171 = arith.constant 0 : index
    %156 = vector.load %arg7[%c0_168, %c1_169, %c1_170, %c0_171] : memref<1x18x18x128xf32, #tpu.memory_space<vmem>>, vector<1x16x16x128xf32>
    %157 = vector.shape_cast %156 : vector<1x16x16x128xf32> to vector<16x16x128xf32>
    %158 = vector.shape_cast %157 : vector<16x16x128xf32> to vector<256x128xf32>
    %159 = arith.addf %155, %158 : vector<256x128xf32>
    %cst_172 = arith.constant 0.000000e+00 : f32
    %160 = vector.broadcast %cst_172 : f32 to vector<256x128xf32>
    %161 = arith.maximumf %159, %160 : vector<256x128xf32>
    %162 = vector.shape_cast %161 : vector<256x128xf32> to vector<16x16x128xf32>
    %c0_173 = arith.constant 0 : index
    %c0_174 = arith.constant 0 : index
    %c0_175 = arith.constant 0 : index
    %c0_176 = arith.constant 0 : index
    %163 = vector.load %arg6[%c0_173, %c0_174, %c0_175, %c0_176] : memref<1x16x16x128xf32, #tpu.memory_space<vmem>>, vector<1x16x16x128xf32>
    %164 = vector.shape_cast %163 : vector<1x16x16x128xf32> to vector<16x16x128xf32>
    %165 = vector.shape_cast %162 : vector<16x16x128xf32> to vector<1x16x16x128xf32>
    tpu.vector_store %arg6[%c0_173, %c0_174, %c0_175, %c0_176], %165 {strides = array<i32>} : memref<1x16x16x128xf32, #tpu.memory_space<vmem>>, vector<1x16x16x128xf32>,
    return
  }
  func.func @transform_0(%arg0: i32) -> (i32, i32, i32, i32) {
    %c0_i32 = arith.constant 0 : i32
    %c0_i32_0 = arith.constant 0 : i32
    %c0_i32_1 = arith.constant 0 : i32
    %c0_i32_2 = arith.constant 0 : i32
    return %arg0, %c0_i32, %c0_i32_0, %c0_i32_1 : i32, i32, i32, i32
  }
  func.func @transform_1(%arg0: i32) -> (i32, i32, i32, i32) {
    %c0_i32 = arith.constant 0 : i32
    %c0_i32_0 = arith.constant 0 : i32
    %c0_i32_1 = arith.constant 0 : i32
    %c0_i32_2 = arith.constant 0 : i32
    %c0_i32_3 = arith.constant 0 : i32
    return %c0_i32, %c0_i32_0, %c0_i32_1, %c0_i32_2 : i32, i32, i32, i32
  }
  func.func @transform_2(%arg0: i32) -> (i32, i32) {
    %c0_i32 = arith.constant 0 : i32
    %c0_i32_0 = arith.constant 0 : i32
    %c0_i32_1 = arith.constant 0 : i32
    return %c0_i32, %c0_i32_0 : i32, i32
  }
  func.func @transform_3(%arg0: i32) -> (i32, i32, i32, i32) {
    %c0_i32 = arith.constant 0 : i32
    %c0_i32_0 = arith.constant 0 : i32
    %c0_i32_1 = arith.constant 0 : i32
    %c0_i32_2 = arith.constant 0 : i32
    %c0_i32_3 = arith.constant 0 : i32
    return %c0_i32, %c0_i32_0, %c0_i32_1, %c0_i32_2 : i32, i32, i32, i32
  }
  func.func @transform_4(%arg0: i32) -> (i32, i32) {
    %c0_i32 = arith.constant 0 : i32
    %c0_i32_0 = arith.constant 0 : i32
    %c0_i32_1 = arith.constant 0 : i32
    return %c0_i32, %c0_i32_0 : i32, i32
  }
  func.func @transform_5(%arg0: i32) -> (i32, i32, i32, i32) {
    %c0_i32 = arith.constant 0 : i32
    %c0_i32_0 = arith.constant 0 : i32
    %c0_i32_1 = arith.constant 0 : i32
    %c0_i32_2 = arith.constant 0 : i32
    return %arg0, %c0_i32, %c0_i32_0, %c0_i32_1 : i32, i32, i32, i32
  }
}

</mosaic_0001>

<llo_original>
// kernel: basic_block_forward.1
$region0: #{basic_block_forward.1}
  #allocation0 [shape = 'u32[]', space=smem, size = 0x4, offset = 0x4, fixed_abs, tag = 'smem constant byte address 0x4 - core index']
  #allocation1 [shape = 'u32[144,128]{1,0:T(1,128)}', space=vmem, size = 0x12000, scoped, tag = 'internal scratch']
  #allocation2 [shape = 'f32[1,18,18,128]{3,2,1,0:T(8,128)}', space=vmem, size = 0x36000, scoped, tag = 'scratch operand']
  #allocation3 [shape = 'f32[18,18,128]{2,1,0:T(8,128)}', space=vmem, size = 0x36000, scoped, tag = 'scratch operand']
  %s0 = inlined_call_operand.vmem [shape: bf16[2,16,16,128], index: 0, kind: input, shape index: {}]
  %s1 = inlined_call_operand.vmem [shape: bf16[3,3,128,128], index: 1, kind: input, shape index: {}]
  %s2 = inlined_call_operand.vmem [shape: f32[1,128], index: 2, kind: input, shape index: {}]
  %s3 = inlined_call_operand.vmem [shape: bf16[3,3,128,128], index: 3, kind: input, shape index: {}]
  %s4 = inlined_call_operand.vmem [shape: f32[1,128], index: 4, kind: input, shape index: {}]
  %s5 = inlined_call_operand.vmem [shape: f32[2,16,16,128], index: 5, kind: output, shape index: {}]
  %s6 = sld [smem:[#allocation0]]
  $region57: #{basic_block_forward.1} parent=0
    _
  %s8 = ssub.s32 1, %s6
  %s9 = scalar_select 0, %s8, %s6
  loop: start=0, step=1, limit=4
  $region2: #{basic_block_forward.1} parent=0 // loop_pre_header
    _
  $region3: #{basic_block_forward.1} parent=0 // loop_header
    %s11 = sphi 0, %s15
    %p12 = scmp.ge.s32.totalorder %s11, 4
    %s21 = sphi 0, %s23
    %s24 = sphi 0, %s21
    %s25 = sphi 0, %s24
    %s41 = sphi 0, %s25
    %s45 = sphi 0, %s45
    %s47 = sphi 0, %s45
    %s48 = sphi 0, %s47
    %s62 = sphi 0, %s48
    %s66 = sphi 0, %s66
    %s68 = sphi 0, %s66
    %s69 = sphi 0, %s68
    %s83 = sphi 0, %s69
    %s87 = sphi 0, %s87
    %s89 = sphi 0, %s87
    %s90 = sphi 0, %s89
    %s104 = sphi 0, %s90
    %s108 = sphi 0, %s108
    %s110 = sphi 0, %s108
    %s111 = sphi 0, %s110
    %s125 = sphi 0, %s111
    %s131 = sphi 0, %s133
    %s134 = sphi 0, %s131
    %s135 = sphi 0, %s134
    %s151 = sphi 0, %s135
  $region4: #{basic_block_forward.1} parent=0 // loop_header_branch
    %14 = sbr.rel (%p12) target = $region8
  $region5: #{basic_block_forward.1} parent=0 // loop_body
    %s16 = ssub.s32 %s11, 1
    %s17 = ssub.s32 %s11, 2
    %s18 = sadd.s32 %s11, 1
    %s19 = ssub.s32 %s11, %s18
    %p20 = scmp.eq.s32.totalorder %s19, 0
    %s22 = sadd.s32 %s21, 1
    %s23 = scalar_select %p20, %s21, %s22
    %p26 = pneg %p20
    %p27 = scmp.eq.s32.totalorder %s11, 1
    %p28 = por %p26, %p27
    %p29 = scmp.ne.s32.totalorder %s21, %s24
    %p30 = scmp.eq.s32.totalorder %s11, 0
    %p31 = por %p29, %p30
    %p32 = scmp.ne.s32.totalorder %s21, %s24
    %p33 = scmp.eq.s32.totalorder %s16, 1
    %p34 = por %p32, %p33
    %p35 = scmp.ne.s32.totalorder %s24, %s25
    %p36 = scmp.eq.s32.totalorder %s16, 0
    %p37 = por %p35, %p36
    %p38 = scmp.ne.s32.totalorder %s24, %s25
    %p39 = scmp.eq.s32.totalorder %s17, 1
    %p40 = por %p38, %p39
    %p42 = scmp.ne.s32.totalorder %s25, %s41
    %p43 = scmp.eq.s32.totalorder %s17, 0
    %p44 = por %p42, %p43
    %s46 = sadd.s32 %s45, 1
    %p49 = scmp.eq.s32.totalorder %s11, 1
    %p50 = scmp.ne.s32.totalorder %s45, %s47
    %p51 = scmp.eq.s32.totalorder %s11, 0
    %p52 = por %p50, %p51
    %p53 = scmp.ne.s32.totalorder %s45, %s47
    %p54 = scmp.eq.s32.totalorder %s16, 1
    %p55 = por %p53, %p54
    %p56 = scmp.ne.s32.totalorder %s47, %s48
    %p57 = scmp.eq.s32.totalorder %s16, 0
    %p58 = por %p56, %p57
    %p59 = scmp.ne.s32.totalorder %s47, %s48
    %p60 = scmp.eq.s32.totalorder %s17, 1
    %p61 = por %p59, %p60
    %p63 = scmp.ne.s32.totalorder %s48, %s62
    %p64 = scmp.eq.s32.totalorder %s17, 0
    %p65 = por %p63, %p64
    %s67 = sadd.s32 %s66, 1
    %p70 = scmp.eq.s32.totalorder %s11, 1
    %p71 = scmp.ne.s32.totalorder %s66, %s68
    %p72 = scmp.eq.s32.totalorder %s11, 0
    %p73 = por %p71, %p72
    %p74 = scmp.ne.s32.totalorder %s66, %s68
    %p75 = scmp.eq.s32.totalorder %s16, 1
    %p76 = por %p74, %p75
    %p77 = scmp.ne.s32.totalorder %s68, %s69
    %p78 = scmp.eq.s32.totalorder %s16, 0
    %p79 = por %p77, %p78
    %p80 = scmp.ne.s32.totalorder %s68, %s69
    %p81 = scmp.eq.s32.totalorder %s17, 1
    %p82 = por %p80, %p81
    %p84 = scmp.ne.s32.totalorder %s69, %s83
    %p85 = scmp.eq.s32.totalorder %s17, 0
    %p86 = por %p84, %p85
    %s88 = sadd.s32 %s87, 1
    %p91 = scmp.eq.s32.totalorder %s11, 1
    %p92 = scmp.ne.s32.totalorder %s87, %s89
    %p93 = scmp.eq.s32.totalorder %s11, 0
    %p94 = por %p92, %p93
    %p95 = scmp.ne.s32.totalorder %s87, %s89
    %p96 = scmp.eq.s32.totalorder %s16, 1
    %p97 = por %p95, %p96
    %p98 = scmp.ne.s32.totalorder %s89, %s90
    %p99 = scmp.eq.s32.totalorder %s16, 0
    %p100 = por %p98, %p99
    %p101 = scmp.ne.s32.totalorder %s89, %s90
    %p102 = scmp.eq.s32.totalorder %s17, 1
    %p103 = por %p101, %p102
    %p105 = scmp.ne.s32.totalorder %s90, %s104
    %p106 = scmp.eq.s32.totalorder %s17, 0
    %p107 = por %p105, %p106
    %s109 = sadd.s32 %s108, 1
    %p112 = scmp.eq.s32.totalorder %s11, 1
    %p113 = scmp.ne.s32.totalorder %s108, %s110
    %p114 = scmp.eq.s32.totalorder %s11, 0
    %p115 = por %p113, %p114
    %p116 = scmp.ne.s32.totalorder %s108, %s110
    %p117 = scmp.eq.s32.totalorder %s16, 1
    %p118 = por %p116, %p117
    %p119 = scmp.ne.s32.totalorder %s110, %s111
    %p120 = scmp.eq.s32.totalorder %s16, 0
    %p121 = por %p119, %p120
    %p122 = scmp.ne.s32.totalorder %s110, %s111
    %p123 = scmp.eq.s32.totalorder %s17, 1
    %p124 = por %p122, %p123
    %p126 = scmp.ne.s32.totalorder %s111, %s125
    %p127 = scmp.eq.s32.totalorder %s17, 0
    %p128 = por %p126, %p127
    %s129 = ssub.s32 %s11, %s18
    %p130 = scmp.eq.s32.totalorder %s129, 0
    %s132 = sadd.s32 %s131, 1
    %s133 = scalar_select %p130, %s131, %s132
    %p136 = pneg %p130
    %p137 = scmp.eq.s32.totalorder %s11, 1
    %p138 = por %p136, %p137
    %p139 = scmp.ne.s32.totalorder %s131, %s134
    %p140 = scmp.eq.s32.totalorder %s11, 0
    %p141 = por %p139, %p140
    %p142 = scmp.ne.s32.totalorder %s131, %s134
    %p143 = scmp.eq.s32.totalorder %s16, 1
    %p144 = por %p142, %p143
    %p145 = scmp.ne.s32.totalorder %s134, %s135
    %p146 = scmp.eq.s32.totalorder %s16, 0
    %p147 = por %p145, %p146
    %p148 = scmp.ne.s32.totalorder %s134, %s135
    %p149 = scmp.eq.s32.totalorder %s17, 1
    %p150 = por %p148, %p149
    %p152 = scmp.ne.s32.totalorder %s135, %s151
    %p153 = scmp.eq.s32.totalorder %s17, 0
    %p154 = por %p152, %p153
    %p155 = scmp.le.s32.totalorder 1, %s11
    %p156 = scmp.lt.s32.totalorder %s11, 3
    %p157 = pnand %p155, %p156
    %p158 = pneg %p157
    // Predicated region
    $region9: #{basic_block_forward.1} parent=5 // pred_check
      _
    $region10: #{basic_block_forward.1} parent=5 // pred_check_branch
      %160 = sbr.rel (%p157) target = $region12
    $region11: #{basic_block_forward.1} parent=5 // pred_region
      %s161 = ssub.s32 %s11, 1
      // Predicated region
      $region13: #{basic_block_forward.1} parent=11 // pred_check
        %p162 = pneg %p58
      $region14: #{basic_block_forward.1} parent=11 // pred_check_branch
        %164 = sbr.rel (%p162) target = $region16
      $region15: #{basic_block_forward.1} parent=11 // pred_region
        _
      $region16: #{basic_block_forward.1} parent=11 // pred_fallthru
        _
      // Predicated region
      $region17: #{basic_block_forward.1} parent=11 // pred_check
        %p165 = pneg %p79
      $region18: #{basic_block_forward.1} parent=11 // pred_check_branch
        %167 = sbr.rel (%p165) target = $region20
      $region19: #{basic_block_forward.1} parent=11 // pred_region
        _
      $region20: #{basic_block_forward.1} parent=11 // pred_fallthru
        _
      // Predicated region
      $region21: #{basic_block_forward.1} parent=11 // pred_check
        %p168 = pneg %p100
      $region22: #{basic_block_forward.1} parent=11 // pred_check_branch
        %170 = sbr.rel (%p168) target = $region24
      $region23: #{basic_block_forward.1} parent=11 // pred_region
        _
      $region24: #{basic_block_forward.1} parent=11 // pred_fallthru
        _
      // Predicated region
      $region25: #{basic_block_forward.1} parent=11 // pred_check
        %p171 = pneg %p121
      $region26: #{basic_block_forward.1} parent=11 // pred_check_branch
        %173 = sbr.rel (%p171) target = $region28
      $region27: #{basic_block_forward.1} parent=11 // pred_region
        _
      $region28: #{basic_block_forward.1} parent=11 // pred_fallthru
        _
    $region12: #{basic_block_forward.1} parent=5 // pred_fallthru
      _
    %p174 = scmp.lt.s32.totalorder %s11, 2
    // Predicated region
    $region29: #{basic_block_forward.1} parent=5 // pred_check
      %p175 = pneg %p174
    $region30: #{basic_block_forward.1} parent=5 // pred_check_branch
      %177 = sbr.rel (%p175) target = $region32
    $region31: #{basic_block_forward.1} parent=5 // pred_region
      // Predicated region
      $region33: #{basic_block_forward.1} parent=31 // pred_check
        %p178 = pneg %p31
      $region34: #{basic_block_forward.1} parent=31 // pred_check_branch
        %180 = sbr.rel (%p178) target = $region36
      $region35: #{basic_block_forward.1} parent=31 // pred_region
        %p181 = scmp.lt.s32.totalorder %s11, 1
        %s182 = scalar_select %p181, %s11, 1
        %s183 = smul.addr %s182, 32
        %s184 = smul.addr %s183, 4
        %s185 = scalar_lea.vmem %s0, %s184
      $region36: #{basic_block_forward.1} parent=31 // pred_fallthru
        _
    $region32: #{basic_block_forward.1} parent=5 // pred_fallthru
      _
    %p186 = scmp.le.s32.totalorder 1, %s11
    %p187 = scmp.lt.s32.totalorder %s11, 3
    %p188 = pnand %p186, %p187
    %p189 = pneg %p188
    // Predicated region
    $region37: #{basic_block_forward.1} parent=5 // pred_check
      _
    $region38: #{basic_block_forward.1} parent=5 // pred_check_branch
      %191 = sbr.rel (%p188) target = $region40
    $region39: #{basic_block_forward.1} parent=5 // pred_region
      %s192 = ssub.s32 %s11, 1
      %p193 = scmp.lt.s32.totalorder %s16, 1
      %s194 = scalar_select %p193, %s16, 1
      %s195 = smul.addr %s194, 32
      %s196 = smul.addr %s195, 4
      %s197 = scalar_lea.vmem %s0, %s196
      %p198 = pneg %p37
      %p199 = pneg %p34
      %p200 = pneg %p58
      %p201 = pneg %p55
      %p202 = pneg %p79
      %p203 = pneg %p76
      %p204 = pneg %p100
      %p205 = pneg %p97
      %p206 = pneg %p121
      %p207 = pneg %p118
      %p208 = pneg %p147
      %p209 = pneg %p144
      %p210 = scmp.lt.s32.totalorder %s16, 1
      %s211 = scalar_select %p210, %s16, 1
      %s212 = smul.addr %s211, 32
      %s213 = smul.addr %s212, 8
      %s214 = scalar_lea.vmem %s5, %s213
      %p215 = scmp.lt.s32.totalorder %s16, 1
      %s216 = scalar_select %p215, %s16, 1
      %s217 = smul.addr %s216, 32
      %s218 = smul.addr %s217, 4
      %s219 = scalar_lea.vmem %s0, %s218
      %p220 = scmp.lt.s32.totalorder %s16, 1
      %s221 = scalar_select %p220, %s16, 1
      %s222 = smul.addr %s221, 32
      %s223 = smul.addr %s222, 8
      %s224 = scalar_lea.vmem %s5, %s223
      %p226 = scmp.eq.s32.totalorder %s16, 0
      // Predicated region
      $region41: #{basic_block_forward.1} parent=39 // pred_check
        %p227 = pneg %p226
      $region42: #{basic_block_forward.1} parent=39 // pred_check_branch
        %229 = sbr.rel (%p227) target = $region44
      $region43: #{basic_block_forward.1} parent=39 // pred_region
        %230 = vst [vmem:[#allocation2] sm:$0xff] 0.0
        %231 = vst [vmem:[#allocation2 + $0x8] sm:$0xff] 0.0
        %232 = vst [vmem:[#allocation2 + $0x10] sm:$0x3] 0.0
        %233 = vst [vmem:[#allocation2 + $0x18] sm:$0xff] 0.0
        %234 = vst [vmem:[#allocation2 + $0x20] sm:$0xff] 0.0
        %235 = vst [vmem:[#allocation2 + $0x28] sm:$0x3] 0.0
        %236 = vst [vmem:[#allocation2 + $0x30] sm:$0xff] 0.0
        %237 = vst [vmem:[#allocation2 + $0x38] sm:$0xff] 0.0
        %238 = vst [vmem:[#allocation2 + $0x40] sm:$0x3] 0.0
        %239 = vst [vmem:[#allocation2 + $0x48] sm:$0xff] 0.0
        %240 = vst [vmem:[#allocation2 + $0x50] sm:$0xff] 0.0
        %241 = vst [vmem:[#allocation2 + $0x58] sm:$0x3] 0.0
        %242 = vst [vmem:[#allocation2 + $0x60] sm:$0xff] 0.0
        %243 = vst [vmem:[#allocation2 + $0x68] sm:$0xff] 0.0
        %244 = vst [vmem:[#allocation2 + $0x70] sm:$0x3] 0.0
        %245 = vst [vmem:[#allocation2 + $0x78] sm:$0xff] 0.0
        %246 = vst [vmem:[#allocation2 + $0x80] sm:$0xff] 0.0
        %247 = vst [vmem:[#allocation2 + $0x88] sm:$0x3] 0.0
        %248 = vst [vmem:[#allocation2 + $0x90] sm:$0xff] 0.0
        %249 = vst [vmem:[#allocation2 + $0x98] sm:$0xff] 0.0
        %250 = vst [vmem:[#allocation2 + $0xa0] sm:$0x3] 0.0
        %251 = vst [vmem:[#allocation2 + $0xa8] sm:$0xff] 0.0
        %252 = vst [vmem:[#allocation2 + $0xb0] sm:$0xff] 0.0
        %253 = vst [vmem:[#allocation2 + $0xb8] sm:$0x3] 0.0
        %254 = vst [vmem:[#allocation2 + $0xc0] sm:$0xff] 0.0
        %255 = vst [vmem:[#allocation2 + $0xc8] sm:$0xff] 0.0
        %256 = vst [vmem:[#allocation2 + $0xd0] sm:$0x3] 0.0
        %257 = vst [vmem:[#allocation2 + $0xd8] sm:$0xff] 0.0
        %258 = vst [vmem:[#allocation2 + $0xe0] sm:$0xff] 0.0
        %259 = vst [vmem:[#allocation2 + $0xe8] sm:$0x3] 0.0
        %260 = vst [vmem:[#allocation2 + $0xf0] sm:$0xff] 0.0
        %261 = vst [vmem:[#allocation2 + $0xf8] sm:$0xff] 0.0
        %262 = vst [vmem:[#allocation2 + $0x100] sm:$0x3] 0.0
        %263 = vst [vmem:[#allocation2 + $0x108] sm:$0xff] 0.0
        %264 = vst [vmem:[#allocation2 + $0x110] sm:$0xff] 0.0
        %265 = vst [vmem:[#allocation2 + $0x118] sm:$0x3] 0.0
        %266 = vst [vmem:[#allocation2 + $0x120] sm:$0xff] 0.0
        %267 = vst [vmem:[#allocation2 + $0x128] sm:$0xff] 0.0
        %268 = vst [vmem:[#allocation2 + $0x130] sm:$0x3] 0.0
        %269 = vst [vmem:[#allocation2 + $0x138] sm:$0xff] 0.0
        %270 = vst [vmem:[#allocation2 + $0x140] sm:$0xff] 0.0
        %271 = vst [vmem:[#allocation2 + $0x148] sm:$0x3] 0.0
        %272 = vst [vmem:[#allocation2 + $0x150] sm:$0xff] 0.0
        %273 = vst [vmem:[#allocation2 + $0x158] sm:$0xff] 0.0
        %274 = vst [vmem:[#allocation2 + $0x160] sm:$0x3] 0.0
        %275 = vst [vmem:[#allocation2 + $0x168] sm:$0xff] 0.0
        %276 = vst [vmem:[#allocation2 + $0x170] sm:$0xff] 0.0
        %277 = vst [vmem:[#allocation2 + $0x178] sm:$0x3] 0.0
        %278 = vst [vmem:[#allocation2 + $0x180] sm:$0xff] 0.0
        %279 = vst [vmem:[#allocation2 + $0x188] sm:$0xff] 0.0
        %280 = vst [vmem:[#allocation2 + $0x190] sm:$0x3] 0.0
        %281 = vst [vmem:[#allocation2 + $0x198] sm:$0xff] 0.0
        %282 = vst [vmem:[#allocation2 + $0x1a0] sm:$0xff] 0.0
        %283 = vst [vmem:[#allocation2 + $0x1a8] sm:$0x3] 0.0
        %284 = vst [vmem:[#allocation3] sm:$0xff] 0.0
        %285 = vst [vmem:[#allocation3 + $0x8] sm:$0xff] 0.0
        %286 = vst [vmem:[#allocation3 + $0x10] sm:$0x3] 0.0
        %287 = vst [vmem:[#allocation3 + $0x18] sm:$0xff] 0.0
        %288 = vst [vmem:[#allocation3 + $0x20] sm:$0xff] 0.0
        %289 = vst [vmem:[#allocation3 + $0x28] sm:$0x3] 0.0
        %290 = vst [vmem:[#allocation3 + $0x30] sm:$0xff] 0.0
        %291 = vst [vmem:[#allocation3 + $0x38] sm:$0xff] 0.0
        %292 = vst [vmem:[#allocation3 + $0x40] sm:$0x3] 0.0
        %293 = vst [vmem:[#allocation3 + $0x48] sm:$0xff] 0.0
        %294 = vst [vmem:[#allocation3 + $0x50] sm:$0xff] 0.0
        %295 = vst [vmem:[#allocation3 + $0x58] sm:$0x3] 0.0
        %296 = vst [vmem:[#allocation3 + $0x60] sm:$0xff] 0.0
        %297 = vst [vmem:[#allocation3 + $0x68] sm:$0xff] 0.0
        %298 = vst [vmem:[#allocation3 + $0x70] sm:$0x3] 0.0
        %299 = vst [vmem:[#allocation3 + $0x78] sm:$0xff] 0.0
        %300 = vst [vmem:[#allocation3 + $0x80] sm:$0xff] 0.0
        %301 = vst [vmem:[#allocation3 + $0x88] sm:$0x3] 0.0
        %302 = vst [vmem:[#allocation3 + $0x90] sm:$0xff] 0.0
        %303 = vst [vmem:[#allocation3 + $0x98] sm:$0xff] 0.0
        %304 = vst [vmem:[#allocation3 + $0xa0] sm:$0x3] 0.0
        %305 = vst [vmem:[#allocation3 + $0xa8] sm:$0xff] 0.0
        %306 = vst [vmem:[#allocation3 + $0xb0] sm:$0xff] 0.0
        %307 = vst [vmem:[#allocation3 + $0xb8] sm:$0x3] 0.0
        %308 = vst [vmem:[#allocation3 + $0xc0] sm:$0xff] 0.0
        %309 = vst [vmem:[#allocation3 + $0xc8] sm:$0xff] 0.0
        %310 = vst [vmem:[#allocation3 + $0xd0] sm:$0x3] 0.0
        %311 = vst [vmem:[#allocation3 + $0xd8] sm:$0xff] 0.0
        %312 = vst [vmem:[#allocation3 + $0xe0] sm:$0xff] 0.0
        %313 = vst [vmem:[#allocation3 + $0xe8] sm:$0x3] 0.0
        %314 = vst [vmem:[#allocation3 + $0xf0] sm:$0xff] 0.0
        %315 = vst [vmem:[#allocation3 + $0xf8] sm:$0xff] 0.0
        %316 = vst [vmem:[#allocation3 + $0x100] sm:$0x3] 0.0
        %317 = vst [vmem:[#allocation3 + $0x108] sm:$0xff] 0.0
        %318 = vst [vmem:[#allocation3 + $0x110] sm:$0xff] 0.0
        %319 = vst [vmem:[#allocation3 + $0x118] sm:$0x3] 0.0
        %320 = vst [vmem:[#allocation3 + $0x120] sm:$0xff] 0.0
        %321 = vst [vmem:[#allocation3 + $0x128] sm:$0xff] 0.0
        %322 = vst [vmem:[#allocation3 + $0x130] sm:$0x3] 0.0
        %323 = vst [vmem:[#allocation3 + $0x138] sm:$0xff] 0.0
        %324 = vst [vmem:[#allocation3 + $0x140] sm:$0xff] 0.0
        %325 = vst [vmem:[#allocation3 + $0x148] sm:$0x3] 0.0
        %326 = vst [vmem:[#allocation3 + $0x150] sm:$0xff] 0.0
        %327 = vst [vmem:[#allocation3 + $0x158] sm:$0xff] 0.0
        %328 = vst [vmem:[#allocation3 + $0x160] sm:$0x3] 0.0
        %329 = vst [vmem:[#allocation3 + $0x168] sm:$0xff] 0.0
        %330 = vst [vmem:[#allocation3 + $0x170] sm:$0xff] 0.0
        %331 = vst [vmem:[#allocation3 + $0x178] sm:$0x3] 0.0
        %332 = vst [vmem:[#allocation3 + $0x180] sm:$0xff] 0.0
        %333 = vst [vmem:[#allocation3 + $0x188] sm:$0xff] 0.0
        %334 = vst [vmem:[#allocation3 + $0x190] sm:$0x3] 0.0
        %335 = vst [vmem:[#allocation3 + $0x198] sm:$0xff] 0.0
        %336 = vst [vmem:[#allocation3 + $0x1a0] sm:$0xff] 0.0
        %337 = vst [vmem:[#allocation3 + $0x1a8] sm:$0x3] 0.0
      $region44: #{basic_block_forward.1} parent=39 // pred_fallthru
        _
      %v338 = vld [vmem:[%s219] sm:$0xf]
      %v339 = vld [vmem:[%s219 + $0x4] sm:$0xf]
      %v340 = vld [vmem:[%s219 + $0x8] sm:$0xf]
      %v341 = vld [vmem:[%s219 + $0xc] sm:$0xf]
      %v342 = vld [vmem:[%s219 + $0x10] sm:$0xf]
      %v343 = vld [vmem:[%s219 + $0x14] sm:$0xf]
      %v344 = vld [vmem:[%s219 + $0x18] sm:$0xf]
      %v345 = vld [vmem:[%s219 + $0x1c] sm:$0xf]
      %v346 = vld [vmem:[%s219 + $0x20] sm:$0xf]
      %v347 = vld [vmem:[%s219 + $0x24] sm:$0xf]
      %v348 = vld [vmem:[%s219 + $0x28] sm:$0xf]
      %v349 = vld [vmem:[%s219 + $0x2c] sm:$0xf]
      %v350 = vld [vmem:[%s219 + $0x30] sm:$0xf]
      %v351 = vld [vmem:[%s219 + $0x34] sm:$0xf]
      %v352 = vld [vmem:[%s219 + $0x38] sm:$0xf]
      %v353 = vld [vmem:[%s219 + $0x3c] sm:$0xf]
      %v354 = vld [vmem:[%s219 + $0x40] sm:$0xf]
      %v355 = vld [vmem:[%s219 + $0x44] sm:$0xf]
      %v356 = vld [vmem:[%s219 + $0x48] sm:$0xf]
      %v357 = vld [vmem:[%s219 + $0x4c] sm:$0xf]
      %v358 = vld [vmem:[%s219 + $0x50] sm:$0xf]
      %v359 = vld [vmem:[%s219 + $0x54] sm:$0xf]
      %v360 = vld [vmem:[%s219 + $0x58] sm:$0xf]
      %v361 = vld [vmem:[%s219 + $0x5c] sm:$0xf]
      %v362 = vld [vmem:[%s219 + $0x60] sm:$0xf]
      %v363 = vld [vmem:[%s219 + $0x64] sm:$0xf]
      %v364 = vld [vmem:[%s219 + $0x68] sm:$0xf]
      %v365 = vld [vmem:[%s219 + $0x6c] sm:$0xf]
      %v366 = vld [vmem:[%s219 + $0x70] sm:$0xf]
      %v367 = vld [vmem:[%s219 + $0x74] sm:$0xf]
      %v368 = vld [vmem:[%s219 + $0x78] sm:$0xf]
      %v369 = vld [vmem:[%s219 + $0x7c] sm:$0xf]
      %v370 = vunpack.c.l.bf16 %v338
      %v371 = vunpack.c.l.bf16 %v339
      %v372 = vunpack.c.l.bf16 %v340
      %v373 = vunpack.c.l.bf16 %v341
      %v374 = vunpack.c.l.bf16 %v342
      %v375 = vunpack.c.l.bf16 %v343
      %v376 = vunpack.c.l.bf16 %v344
      %v377 = vunpack.c.l.bf16 %v345
      %v378 = vunpack.c.l.bf16 %v346
      %v379 = vunpack.c.l.bf16 %v347
      %v380 = vunpack.c.l.bf16 %v348
      %v381 = vunpack.c.l.bf16 %v349
      %v382 = vunpack.c.l.bf16 %v350
      %v383 = vunpack.c.l.bf16 %v351
      %v384 = vunpack.c.l.bf16 %v352
      %v385 = vunpack.c.l.bf16 %v353
      %v386 = vunpack.c.l.bf16 %v354
      %v387 = vunpack.c.l.bf16 %v355
      %v388 = vunpack.c.l.bf16 %v356
      %v389 = vunpack.c.l.bf16 %v357
      %v390 = vunpack.c.l.bf16 %v358
      %v391 = vunpack.c.l.bf16 %v359
      %v392 = vunpack.c.l.bf16 %v360
      %v393 = vunpack.c.l.bf16 %v361
      %v394 = vunpack.c.l.bf16 %v362
      %v395 = vunpack.c.l.bf16 %v363
      %v396 = vunpack.c.l.bf16 %v364
      %v397 = vunpack.c.l.bf16 %v365
      %v398 = vunpack.c.l.bf16 %v366
      %v399 = vunpack.c.l.bf16 %v367
      %v400 = vunpack.c.l.bf16 %v368
      %v401 = vunpack.c.l.bf16 %v369
      %s402 = scalar_lea.vmem [#allocation2], 24
      %403 = vst [vmem:[%s402 + $0x1] sm:$0xff] %v370
      %404 = vst [vmem:[%s402 + $0x9] sm:$0xff] %v371
      %405 = vst [vmem:[%s402 + $0x19] sm:$0xff] %v372
      %406 = vst [vmem:[%s402 + $0x21] sm:$0xff] %v373
      %407 = vst [vmem:[%s402 + $0x31] sm:$0xff] %v374
      %408 = vst [vmem:[%s402 + $0x39] sm:$0xff] %v375
      %409 = vst [vmem:[%s402 + $0x49] sm:$0xff] %v376
      %410 = vst [vmem:[%s402 + $0x51] sm:$0xff] %v377
      %411 = vst [vmem:[%s402 + $0x61] sm:$0xff] %v378
      %412 = vst [vmem:[%s402 + $0x69] sm:$0xff] %v379
      %413 = vst [vmem:[%s402 + $0x79] sm:$0xff] %v380
      %414 = vst [vmem:[%s402 + $0x81] sm:$0xff] %v381
      %415 = vst [vmem:[%s402 + $0x91] sm:$0xff] %v382
      %416 = vst [vmem:[%s402 + $0x99] sm:$0xff] %v383
      %417 = vst [vmem:[%s402 + $0xa9] sm:$0xff] %v384
      %418 = vst [vmem:[%s402 + $0xb1] sm:$0xff] %v385
      %419 = vst [vmem:[%s402 + $0xc1] sm:$0xff] %v386
      %420 = vst [vmem:[%s402 + $0xc9] sm:$0xff] %v387
      %421 = vst [vmem:[%s402 + $0xd9] sm:$0xff] %v388
      %422 = vst [vmem:[%s402 + $0xe1] sm:$0xff] %v389
      %423 = vst [vmem:[%s402 + $0xf1] sm:$0xff] %v390
      %424 = vst [vmem:[%s402 + $0xf9] sm:$0xff] %v391
      %425 = vst [vmem:[%s402 + $0x109] sm:$0xff] %v392
      %426 = vst [vmem:[%s402 + $0x111] sm:$0xff] %v393
      %427 = vst [vmem:[%s402 + $0x121] sm:$0xff] %v394
      %428 = vst [vmem:[%s402 + $0x129] sm:$0xff] %v395
      %429 = vst [vmem:[%s402 + $0x139] sm:$0xff] %v396
      %430 = vst [vmem:[%s402 + $0x141] sm:$0xff] %v397
      %431 = vst [vmem:[%s402 + $0x151] sm:$0xff] %v398
      %432 = vst [vmem:[%s402 + $0x159] sm:$0xff] %v399
      %433 = vst [vmem:[%s402 + $0x169] sm:$0xff] %v400
      %434 = vst [vmem:[%s402 + $0x171] sm:$0xff] %v401
      %v435 = vld [vmem:[#allocation2] sm:$0xff]
      %v436 = vld [vmem:[#allocation2 + $0x8] sm:$0xff]
      %v437 = vld [vmem:[#allocation2 + $0x18] sm:$0xff]
      %v438 = vld [vmem:[#allocation2 + $0x20] sm:$0xff]
      %v439 = vld [vmem:[#allocation2 + $0x30] sm:$0xff]
      %v440 = vld [vmem:[#allocation2 + $0x38] sm:$0xff]
      %v441 = vld [vmem:[#allocation2 + $0x48] sm:$0xff]
      %v442 = vld [vmem:[#allocation2 + $0x50] sm:$0xff]
      %v443 = vld [vmem:[#allocation2 + $0x60] sm:$0xff]
      %v444 = vld [vmem:[#allocation2 + $0x68] sm:$0xff]
      %v445 = vld [vmem:[#allocation2 + $0x78] sm:$0xff]
      %v446 = vld [vmem:[#allocation2 + $0x80] sm:$0xff]
      %v447 = vld [vmem:[#allocation2 + $0x90] sm:$0xff]
      %v448 = vld [vmem:[#allocation2 + $0x98] sm:$0xff]
      %v449 = vld [vmem:[#allocation2 + $0xa8] sm:$0xff]
      %v450 = vld [vmem:[#allocation2 + $0xb0] sm:$0xff]
      %v451 = vld [vmem:[#allocation2 + $0xc0] sm:$0xff]
      %v452 = vld [vmem:[#allocation2 + $0xc8] sm:$0xff]
      %v453 = vld [vmem:[#allocation2 + $0xd8] sm:$0xff]
      %v454 = vld [vmem:[#allocation2 + $0xe0] sm:$0xff]
      %v455 = vld [vmem:[#allocation2 + $0xf0] sm:$0xff]
      %v456 = vld [vmem:[#allocation2 + $0xf8] sm:$0xff]
      %v457 = vld [vmem:[#allocation2 + $0x108] sm:$0xff]
      %v458 = vld [vmem:[#allocation2 + $0x110] sm:$0xff]
      %v459 = vld [vmem:[#allocation2 + $0x120] sm:$0xff]
      %v460 = vld [vmem:[#allocation2 + $0x128] sm:$0xff]
      %v461 = vld [vmem:[#allocation2 + $0x138] sm:$0xff]
      %v462 = vld [vmem:[#allocation2 + $0x140] sm:$0xff]
      %v463 = vld [vmem:[#allocation2 + $0x150] sm:$0xff]
      %v464 = vld [vmem:[#allocation2 + $0x158] sm:$0xff]
      %v465 = vld [vmem:[#allocation2 + $0x168] sm:$0xff]
      %v466 = vld [vmem:[#allocation2 + $0x170] sm:$0xff]
      %v467 = vpack.c.bf16 %v436, %v435
      %v468 = vpack.c.bf16 %v438, %v437
      %v469 = vpack.c.bf16 %v440, %v439
      %v470 = vpack.c.bf16 %v442, %v441
      %v471 = vpack.c.bf16 %v444, %v443
      %v472 = vpack.c.bf16 %v446, %v445
      %v473 = vpack.c.bf16 %v448, %v447
      %v474 = vpack.c.bf16 %v450, %v449
      %v475 = vpack.c.bf16 %v452, %v451
      %v476 = vpack.c.bf16 %v454, %v453
      %v477 = vpack.c.bf16 %v456, %v455
      %v478 = vpack.c.bf16 %v458, %v457
      %v479 = vpack.c.bf16 %v460, %v459
      %v480 = vpack.c.bf16 %v462, %v461
      %v481 = vpack.c.bf16 %v464, %v463
      %v482 = vpack.c.bf16 %v466, %v465
      %v483 = vld [vmem:[%s1] sm:$0xf]
      %v484 = vld [vmem:[%s1 + $0x4] sm:$0xf]
      %v485 = vld [vmem:[%s1 + $0x8] sm:$0xf]
      %v486 = vld [vmem:[%s1 + $0xc] sm:$0xf]
      %v487 = vld [vmem:[%s1 + $0x10] sm:$0xf]
      %v488 = vld [vmem:[%s1 + $0x14] sm:$0xf]
      %v489 = vld [vmem:[%s1 + $0x18] sm:$0xf]
      %v490 = vld [vmem:[%s1 + $0x1c] sm:$0xf]
      %v491 = vld [vmem:[%s1 + $0x20] sm:$0xf]
      %v492 = vld [vmem:[%s1 + $0x24] sm:$0xf]
      %v493 = vld [vmem:[%s1 + $0x28] sm:$0xf]
      %v494 = vld [vmem:[%s1 + $0x2c] sm:$0xf]
      %v495 = vld [vmem:[%s1 + $0x30] sm:$0xf]
      %v496 = vld [vmem:[%s1 + $0x34] sm:$0xf]
      %v497 = vld [vmem:[%s1 + $0x38] sm:$0xf]
      %v498 = vld [vmem:[%s1 + $0x3c] sm:$0xf]
      %v499 = vld [vmem:[#allocation2 + $0x1] sm:$0xff]
      %v500 = vld [vmem:[#allocation2 + $0x9] sm:$0xff]
      %v501 = vld [vmem:[#allocation2 + $0x19] sm:$0xff]
      %v502 = vld [vmem:[#allocation2 + $0x21] sm:$0xff]
      %v503 = vld [vmem:[#allocation2 + $0x31] sm:$0xff]
      %v504 = vld [vmem:[#allocation2 + $0x39] sm:$0xff]
      %v505 = vld [vmem:[#allocation2 + $0x49] sm:$0xff]
      %v506 = vld [vmem:[#allocation2 + $0x51] sm:$0xff]
      %v507 = vld [vmem:[#allocation2 + $0x61] sm:$0xff]
      %v508 = vld [vmem:[#allocation2 + $0x69] sm:$0xff]
      %v509 = vld [vmem:[#allocation2 + $0x79] sm:$0xff]
      %v510 = vld [vmem:[#allocation2 + $0x81] sm:$0xff]
      %v511 = vld [vmem:[#allocation2 + $0x91] sm:$0xff]
      %v512 = vld [vmem:[#allocation2 + $0x99] sm:$0xff]
      %v513 = vld [vmem:[#allocation2 + $0xa9] sm:$0xff]
      %v514 = vld [vmem:[#allocation2 + $0xb1] sm:$0xff]
      %v515 = vld [vmem:[#allocation2 + $0xc1] sm:$0xff]
      %v516 = vld [vmem:[#allocation2 + $0xc9] sm:$0xff]
      %v517 = vld [vmem:[#allocation2 + $0xd9] sm:$0xff]
      %v518 = vld [vmem:[#allocation2 + $0xe1] sm:$0xff]
      %v519 = vld [vmem:[#allocation2 + $0xf1] sm:$0xff]
      %v520 = vld [vmem:[#allocation2 + $0xf9] sm:$0xff]
      %v521 = vld [vmem:[#allocation2 + $0x109] sm:$0xff]
      %v522 = vld [vmem:[#allocation2 + $0x111] sm:$0xff]
      %v523 = vld [vmem:[#allocation2 + $0x121] sm:$0xff]
      %v524 = vld [vmem:[#allocation2 + $0x129] sm:$0xff]
      %v525 = vld [vmem:[#allocation2 + $0x139] sm:$0xff]
      %v526 = vld [vmem:[#allocation2 + $0x141] sm:$0xff]
      %v527 = vld [vmem:[#allocation2 + $0x151] sm:$0xff]
      %v528 = vld [vmem:[#allocation2 + $0x159] sm:$0xff]
      %v529 = vld [vmem:[#allocation2 + $0x169] sm:$0xff]
      %v530 = vld [vmem:[#allocation2 + $0x171] sm:$0xff]
      %v531 = vpack.c.bf16 %v500, %v499
      %v532 = vpack.c.bf16 %v502, %v501
      %v533 = vpack.c.bf16 %v504, %v503
      %v534 = vpack.c.bf16 %v506, %v505
      %v535 = vpack.c.bf16 %v508, %v507
      %v536 = vpack.c.bf16 %v510, %v509
      %v537 = vpack.c.bf16 %v512, %v511
      %v538 = vpack.c.bf16 %v514, %v513
      %v539 = vpack.c.bf16 %v516, %v515
      %v540 = vpack.c.bf16 %v518, %v517
      %v541 = vpack.c.bf16 %v520, %v519
      %v542 = vpack.c.bf16 %v522, %v521
      %v543 = vpack.c.bf16 %v524, %v523
      %v544 = vpack.c.bf16 %v526, %v525
      %v545 = vpack.c.bf16 %v528, %v527
      %v546 = vpack.c.bf16 %v530, %v529
      %s547 = scalar_lea.vmem %s1, 64
      %v548 = vld [vmem:[%s547] sm:$0xf]
      %v549 = vld [vmem:[%s547 + $0x4] sm:$0xf]
      %v550 = vld [vmem:[%s547 + $0x8] sm:$0xf]
      %v551 = vld [vmem:[%s547 + $0xc] sm:$0xf]
      %v552 = vld [vmem:[%s547 + $0x10] sm:$0xf]
      %v553 = vld [vmem:[%s547 + $0x14] sm:$0xf]
      %v554 = vld [vmem:[%s547 + $0x18] sm:$0xf]
      %v555 = vld [vmem:[%s547 + $0x1c] sm:$0xf]
      %v556 = vld [vmem:[%s547 + $0x20] sm:$0xf]
      %v557 = vld [vmem:[%s547 + $0x24] sm:$0xf]
      %v558 = vld [vmem:[%s547 + $0x28] sm:$0xf]
      %v559 = vld [vmem:[%s547 + $0x2c] sm:$0xf]
      %v560 = vld [vmem:[%s547 + $0x30] sm:$0xf]
      %v561 = vld [vmem:[%s547 + $0x34] sm:$0xf]
      %v562 = vld [vmem:[%s547 + $0x38] sm:$0xf]
      %v563 = vld [vmem:[%s547 + $0x3c] sm:$0xf]
      %v580 = vunpack.c.l.b16 %v548
      %v581 = vunpack.c.l.b16 %v549
      %v582 = vunpack.c.l.b16 %v550
      %v583 = vunpack.c.l.b16 %v551
      %v584 = vunpack.c.l.b16 %v552
      %v585 = vunpack.c.l.b16 %v553
      %v586 = vunpack.c.l.b16 %v554
      %v587 = vunpack.c.l.b16 %v555
      %v588 = vunpack.c.l.b16 %v556
      %v589 = vunpack.c.l.b16 %v557
      %v590 = vunpack.c.l.b16 %v558
      %v591 = vunpack.c.l.b16 %v559
      %v592 = vunpack.c.l.b16 %v560
      %v593 = vunpack.c.l.b16 %v561
      %v594 = vunpack.c.l.b16 %v562
      %v595 = vunpack.c.l.b16 %v563
      %v596 = vpack.c.b16 %v581, %v580
      %v597 = vpack.c.b16 %v583, %v582
      %v598 = vpack.c.b16 %v585, %v584
      %v599 = vpack.c.b16 %v587, %v586
      %v600 = vpack.c.b16 %v589, %v588
      %v601 = vpack.c.b16 %v591, %v590
      %v602 = vpack.c.b16 %v593, %v592
      %v603 = vpack.c.b16 %v595, %v594
      %612 = vmatprep.subr.bf16.mxu0 0
      %613 = vmatpush1.bf16.msra.mxu0 %v596
      %614 = vmatprep.subr.bf16.mxu0 0
      %615 = vmatpush1.bf16.msra.mxu0 %v597
      %616 = vmatprep.subr.bf16.mxu0 0
      %617 = vmatpush1.bf16.msra.mxu0 %v598
      %618 = vmatprep.subr.bf16.mxu0 0
      %619 = vmatpush1.bf16.msra.mxu0 %v599
      %620 = vmatprep.subr.bf16.mxu0 0
      %621 = vmatpush1.bf16.msra.mxu0 %v600
      %622 = vmatprep.subr.bf16.mxu0 0
      %623 = vmatpush1.bf16.msra.mxu0 %v601
      %624 = vmatprep.subr.bf16.mxu0 0
      %625 = vmatpush1.bf16.msra.mxu0 %v602
      %626 = vmatprep.subr.bf16.mxu0 0
      %627 = vmatpush1.bf16.msra.mxu0 %v603
      %628 = vmatprep.subr.bf16.mxu0 0
      %629 = vmatpush1.bf16.msra.mxu0 0
      %630 = vmatprep.subr.bf16.mxu0 0
      %631 = vmatpush1.bf16.msra.mxu0 0
      %632 = vmatprep.subr.bf16.mxu0 0
      %633 = vmatpush1.bf16.msra.mxu0 0
      %634 = vmatprep.subr.bf16.mxu0 0
      %635 = vmatpush1.bf16.msra.mxu0 0
      %636 = vmatprep.subr.bf16.mxu0 0
      %637 = vmatpush1.bf16.msra.mxu0 0
      %638 = vmatprep.subr.bf16.mxu0 0
      %639 = vmatpush1.bf16.msra.mxu0 0
      %640 = vmatprep.subr.bf16.mxu0 0
      %641 = vmatpush1.bf16.msra.mxu0 0
      %642 = vmatprep.subr.bf16.mxu0 0
      %643 = vmatpush1.bf16.msra.mxu0 0
      %644 = vmatprep.mubr.bf16.mxu0 0
      %645 = vmatmul.mubr.bf16.gmra.mrb[0].mxu0 %v531
      %v646 = vpop.f32.mrb[0].mxu0
      %v647 = vadd.f32 0.0, %v646
      %v648 = vpop.f32.mrb[0].mxu0
      %v649 = vpop.f32.mrb[0].mxu0
      %v650 = vadd.f32 0.0, %v649
      %v651 = vpop.f32.mrb[0].mxu0
      %652 = vmatprep.mubr.bf16.mxu0 0
      %653 = vmatmul.mubr.bf16.gmra.mrb[0].mxu0 %v532
      %v654 = vpop.f32.mrb[0].mxu0
      %v655 = vadd.f32 0.0, %v654
      %v656 = vpop.f32.mrb[0].mxu0
      %v657 = vpop.f32.mrb[0].mxu0
      %v658 = vadd.f32 0.0, %v657
      %v659 = vpop.f32.mrb[0].mxu0
      %660 = vmatprep.mubr.bf16.mxu0 0
      %661 = vmatmul.mubr.bf16.gmra.mrb[0].mxu0 %v533
      %v662 = vpop.f32.mrb[0].mxu0
      %v663 = vadd.f32 0.0, %v662
      %v664 = vpop.f32.mrb[0].mxu0
      %v665 = vpop.f32.mrb[0].mxu0
      %v666 = vadd.f32 0.0, %v665
      %v667 = vpop.f32.mrb[0].mxu0
      %668 = vmatprep.mubr.bf16.mxu0 0
      %669 = vmatmul.mubr.bf16.gmra.mrb[0].mxu0 %v534
      %v670 = vpop.f32.mrb[0].mxu0
      %v671 = vadd.f32 0.0, %v670
      %v672 = vpop.f32.mrb[0].mxu0
      %v673 = vpop.f32.mrb[0].mxu0
      %v674 = vadd.f32 0.0, %v673
      %v675 = vpop.f32.mrb[0].mxu0
      %676 = vmatprep.mubr.bf16.mxu0 0
      %677 = vmatmul.mubr.bf16.gmra.mrb[0].mxu0 %v535
      %v678 = vpop.f32.mrb[0].mxu0
      %v679 = vadd.f32 0.0, %v678
      %v680 = vpop.f32.mrb[0].mxu0
      %v681 = vpop.f32.mrb[0].mxu0
      %v682 = vadd.f32 0.0, %v681
      %v683 = vpop.f32.mrb[0].mxu0
      %684 = vmatprep.mubr.bf16.mxu0 0
      %685 = vmatmul.mubr.bf16.gmra.mrb[0].mxu0 %v536
      %v686 = vpop.f32.mrb[0].mxu0
      %v687 = vadd.f32 0.0, %v686
      %v688 = vpop.f32.mrb[0].mxu0
      %v689 = vpop.f32.mrb[0].mxu0
      %v690 = vadd.f32 0.0, %v689
      %v691 = vpop.f32.mrb[0].mxu0
      %692 = vmatprep.mubr.bf16.mxu0 0
      %693 = vmatmul.mubr.bf16.gmra.mrb[0].mxu0 %v537
      %v694 = vpop.f32.mrb[0].mxu0
      %v695 = vadd.f32 0.0, %v694
      %v696 = vpop.f32.mrb[0].mxu0
      %v697 = vpop.f32.mrb[0].mxu0
      %v698 = vadd.f32 0.0, %v697
      %v699 = vpop.f32.mrb[0].mxu0
      %700 = vmatprep.mubr.bf16.mxu0 0
      %701 = vmatmul.mubr.bf16.gmra.mrb[0].mxu0 %v538
      %v702 = vpop.f32.mrb[0].mxu0
      %v703 = vadd.f32 0.0, %v702
      %v704 = vpop.f32.mrb[0].mxu0
      %v705 = vpop.f32.mrb[0].mxu0
      %v706 = vadd.f32 0.0, %v705
      %v707 = vpop.f32.mrb[0].mxu0
      %708 = vmatprep.mubr.bf16.mxu0 0
      %709 = vmatmul.mubr.bf16.gmra.mrb[0].mxu0 %v539
      %v710 = vpop.f32.mrb[0].mxu0
      %v711 = vadd.f32 0.0, %v710
      %v712 = vpop.f32.mrb[0].mxu0
      %v713 = vpop.f32.mrb[0].mxu0
      %v714 = vadd.f32 0.0, %v713
      %v715 = vpop.f32.mrb[0].mxu0
      %716 = vmatprep.mubr.bf16.mxu0 0
      %717 = vmatmul.mubr.bf16.gmra.mrb[0].mxu0 %v540
      %v718 = vpop.f32.mrb[0].mxu0
      %v719 = vadd.f32 0.0, %v718
      %v720 = vpop.f32.mrb[0].mxu0
      %v721 = vpop.f32.mrb[0].mxu0
      %v722 = vadd.f32 0.0, %v721
      %v723 = vpop.f32.mrb[0].mxu0
      %724 = vmatprep.mubr.bf16.mxu0 0
      %725 = vmatmul.mubr.bf16.gmra.mrb[0].mxu0 %v541
      %v726 = vpop.f32.mrb[0].mxu0
      %v727 = vadd.f32 0.0, %v726
      %v728 = vpop.f32.mrb[0].mxu0
      %v729 = vpop.f32.mrb[0].mxu0
      %v730 = vadd.f32 0.0, %v729
      %v731 = vpop.f32.mrb[0].mxu0
      %732 = vmatprep.mubr.bf16.mxu0 0
      %733 = vmatmul.mubr.bf16.gmra.mrb[0].mxu0 %v542
      %v734 = vpop.f32.mrb[0].mxu0
      %v735 = vadd.f32 0.0, %v734
      %v736 = vpop.f32.mrb[0].mxu0
      %v737 = vpop.f32.mrb[0].mxu0
      %v738 = vadd.f32 0.0, %v737
      %v739 = vpop.f32.mrb[0].mxu0
      %740 = vmatprep.mubr.bf16.mxu0 0
      %741 = vmatmul.mubr.bf16.gmra.mrb[0].mxu0 %v543
      %v742 = vpop.f32.mrb[0].mxu0
      %v743 = vadd.f32 0.0, %v742
      %v744 = vpop.f32.mrb[0].mxu0
      %v745 = vpop.f32.mrb[0].mxu0
      %v746 = vadd.f32 0.0, %v745
      %v747 = vpop.f32.mrb[0].mxu0
      %748 = vmatprep.mubr.bf16.mxu0 0
      %749 = vmatmul.mubr.bf16.gmra.mrb[0].mxu0 %v544
      %v750 = vpop.f32.mrb[0].mxu0
      %v751 = vadd.f32 0.0, %v750
      %v752 = vpop.f32.mrb[0].mxu0
      %v753 = vpop.f32.mrb[0].mxu0
      %v754 = vadd.f32 0.0, %v753
      %v755 = vpop.f32.mrb[0].mxu0
      %756 = vmatprep.mubr.bf16.mxu0 0
      %757 = vmatmul.mubr.bf16.gmra.mrb[0].mxu0 %v545
      %v758 = vpop.f32.mrb[0].mxu0
      %v759 = vadd.f32 0.0, %v758
      %v760 = vpop.f32.mrb[0].mxu0
      %v761 = vpop.f32.mrb[0].mxu0
      %v762 = vadd.f32 0.0, %v761
      %v763 = vpop.f32.mrb[0].mxu0
      %764 = vmatprep.mubr.bf16.mxu0 0
      %765 = vmatmul.mubr.bf16.gmra.mrb[0].mxu0 %v546
      %v766 = vpop.f32.mrb[0].mxu0
      %v767 = vadd.f32 0.0, %v766
      %v768 = vpop.f32.mrb[0].mxu0
      %v769 = vpop.f32.mrb[0].mxu0
      %v770 = vadd.f32 0.0, %v769
      %v771 = vpop.f32.mrb[0].mxu0
      %772 = vdwg.mxu0
      %v789 = vunpack.c.l.b16 %v483
      %v790 = vunpack.c.l.b16 %v484
      %v791 = vunpack.c.l.b16 %v485
      %v792 = vunpack.c.l.b16 %v486
      %v793 = vunpack.c.l.b16 %v487
      %v794 = vunpack.c.l.b16 %v488
      %v795 = vunpack.c.l.b16 %v489
      %v796 = vunpack.c.l.b16 %v490
      %v797 = vunpack.c.l.b16 %v491
      %v798 = vunpack.c.l.b16 %v492
      %v799 = vunpack.c.l.b16 %v493
      %v800 = vunpack.c.l.b16 %v494
      %v801 = vunpack.c.l.b16 %v495
      %v802 = vunpack.c.l.b16 %v496
      %v803 = vunpack.c.l.b16 %v497
      %v804 = vunpack.c.l.b16 %v498
      %v805 = vpack.c.b16 %v790, %v789
      %v806 = vpack.c.b16 %v792, %v791
      %v807 = vpack.c.b16 %v794, %v793
      %v808 = vpack.c.b16 %v796, %v795
      %v809 = vpack.c.b16 %v798, %v797
      %v810 = vpack.c.b16 %v800, %v799
      %v811 = vpack.c.b16 %v802, %v801
      %v812 = vpack.c.b16 %v804, %v803
      %821 = vmatprep.subr.bf16.mxu0 0
      %822 = vmatpush1.bf16.msra.mxu0 %v805
      %823 = vmatprep.subr.bf16.mxu0 0
      %824 = vmatpush1.bf16.msra.mxu0 %v806
      %825 = vmatprep.subr.bf16.mxu0 0
      %826 = vmatpush1.bf16.msra.mxu0 %v807
      %827 = vmatprep.subr.bf16.mxu0 0
      %828 = vmatpush1.bf16.msra.mxu0 %v808
      %829 = vmatprep.subr.bf16.mxu0 0
      %830 = vmatpush1.bf16.msra.mxu0 %v809
      %831 = vmatprep.subr.bf16.mxu0 0
      %832 = vmatpush1.bf16.msra.mxu0 %v810
      %833 = vmatprep.subr.bf16.mxu0 0
      %834 = vmatpush1.bf16.msra.mxu0 %v811
      %835 = vmatprep.subr.bf16.mxu0 0
      %836 = vmatpush1.bf16.msra.mxu0 %v812
      %837 = vmatprep.subr.bf16.mxu0 0
      %838 = vmatpush1.bf16.msra.mxu0 0
      %839 = vmatprep.subr.bf16.mxu0 0
      %840 = vmatpush1.bf16.msra.mxu0 0
      %841 = vmatprep.subr.bf16.mxu0 0
      %842 = vmatpush1.bf16.msra.mxu0 0
      %843 = vmatprep.subr.bf16.mxu0 0
      %844 = vmatpush1.bf16.msra.mxu0 0
      %845 = vmatprep.subr.bf16.mxu0 0
      %846 = vmatpush1.bf16.msra.mxu0 0
      %847 = vmatprep.subr.bf16.mxu0 0
      %848 = vmatpush1.bf16.msra.mxu0 0
      %849 = vmatprep.subr.bf16.mxu0 0
      %850 = vmatpush1.bf16.msra.mxu0 0
      %851 = vmatprep.subr.bf16.mxu0 0
      %852 = vmatpush1.bf16.msra.mxu0 0
      %853 = vmatprep.mubr.bf16.mxu0 0
      %854 = vmatmul.mubr.bf16.gmra.mrb[0].mxu0 %v467
      %v855 = vpop.f32.mrb[0].mxu0
      %v856 = vadd.f32 %v647, %v855
      %v857 = vpop.f32.mrb[0].mxu0
      %v858 = vpop.f32.mrb[0].mxu0
      %v859 = vadd.f32 %v650, %v858
      %v860 = vpop.f32.mrb[0].mxu0
      %861 = vmatprep.mubr.bf16.mxu0 0
      %862 = vmatmul.mubr.bf16.gmra.mrb[0].mxu0 %v468
      %v863 = vpop.f32.mrb[0].mxu0
      %v864 = vadd.f32 %v655, %v863
      %v865 = vpop.f32.mrb[0].mxu0
      %v866 = vpop.f32.mrb[0].mxu0
      %v867 = vadd.f32 %v658, %v866
      %v868 = vpop.f32.mrb[0].mxu0
      %869 = vmatprep.mubr.bf16.mxu0 0
      %870 = vmatmul.mubr.bf16.gmra.mrb[0].mxu0 %v469
      %v871 = vpop.f32.mrb[0].mxu0
      %v872 = vadd.f32 %v663, %v871
      %v873 = vpop.f32.mrb[0].mxu0
      %v874 = vpop.f32.mrb[0].mxu0
      %v875 = vadd.f32 %v666, %v874
      %v876 = vpop.f32.mrb[0].mxu0
      %877 = vmatprep.mubr.bf16.mxu0 0
      %878 = vmatmul.mubr.bf16.gmra.mrb[0].mxu0 %v470
      %v879 = vpop.f32.mrb[0].mxu0
      %v880 = vadd.f32 %v671, %v879
      %v881 = vpop.f32.mrb[0].mxu0
      %v882 = vpop.f32.mrb[0].mxu0
      %v883 = vadd.f32 %v674, %v882
      %v884 = vpop.f32.mrb[0].mxu0
      %885 = vmatprep.mubr.bf16.mxu0 0
      %886 = vmatmul.mubr.bf16.gmra.mrb[0].mxu0 %v471
      %v887 = vpop.f32.mrb[0].mxu0
      %v888 = vadd.f32 %v679, %v887
      %v889 = vpop.f32.mrb[0].mxu0
      %v890 = vpop.f32.mrb[0].mxu0
      %v891 = vadd.f32 %v682, %v890
      %v892 = vpop.f32.mrb[0].mxu0
      %893 = vmatprep.mubr.bf16.mxu0 0
      %894 = vmatmul.mubr.bf16.gmra.mrb[0].mxu0 %v472
      %v895 = vpop.f32.mrb[0].mxu0
      %v896 = vadd.f32 %v687, %v895
      %v897 = vpop.f32.mrb[0].mxu0
      %v898 = vpop.f32.mrb[0].mxu0
      %v899 = vadd.f32 %v690, %v898
      %v900 = vpop.f32.mrb[0].mxu0
      %901 = vmatprep.mubr.bf16.mxu0 0
      %902 = vmatmul.mubr.bf16.gmra.mrb[0].mxu0 %v473
      %v903 = vpop.f32.mrb[0].mxu0
      %v904 = vadd.f32 %v695, %v903
      %v905 = vpop.f32.mrb[0].mxu0
      %v906 = vpop.f32.mrb[0].mxu0
      %v907 = vadd.f32 %v698, %v906
      %v908 = vpop.f32.mrb[0].mxu0
      %909 = vmatprep.mubr.bf16.mxu0 0
      %910 = vmatmul.mubr.bf16.gmra.mrb[0].mxu0 %v474
      %v911 = vpop.f32.mrb[0].mxu0
      %v912 = vadd.f32 %v703, %v911
      %v913 = vpop.f32.mrb[0].mxu0
      %v914 = vpop.f32.mrb[0].mxu0
      %v915 = vadd.f32 %v706, %v914
      %v916 = vpop.f32.mrb[0].mxu0
      %917 = vmatprep.mubr.bf16.mxu0 0
      %918 = vmatmul.mubr.bf16.gmra.mrb[0].mxu0 %v475
      %v919 = vpop.f32.mrb[0].mxu0
      %v920 = vadd.f32 %v711, %v919
      %v921 = vpop.f32.mrb[0].mxu0
      %v922 = vpop.f32.mrb[0].mxu0
      %v923 = vadd.f32 %v714, %v922
      %v924 = vpop.f32.mrb[0].mxu0
      %925 = vmatprep.mubr.bf16.mxu0 0
      %926 = vmatmul.mubr.bf16.gmra.mrb[0].mxu0 %v476
      %v927 = vpop.f32.mrb[0].mxu0
      %v928 = vadd.f32 %v719, %v927
      %v929 = vpop.f32.mrb[0].mxu0
      %v930 = vpop.f32.mrb[0].mxu0
      %v931 = vadd.f32 %v722, %v930
      %v932 = vpop.f32.mrb[0].mxu0
      %933 = vmatprep.mubr.bf16.mxu0 0
      %934 = vmatmul.mubr.bf16.gmra.mrb[0].mxu0 %v477
      %v935 = vpop.f32.mrb[0].mxu0
      %v936 = vadd.f32 %v727, %v935
      %v937 = vpop.f32.mrb[0].mxu0
      %v938 = vpop.f32.mrb[0].mxu0
      %v939 = vadd.f32 %v730, %v938
      %v940 = vpop.f32.mrb[0].mxu0
      %941 = vmatprep.mubr.bf16.mxu0 0
      %942 = vmatmul.mubr.bf16.gmra.mrb[0].mxu0 %v478
      %v943 = vpop.f32.mrb[0].mxu0
      %v944 = vadd.f32 %v735, %v943
      %v945 = vpop.f32.mrb[0].mxu0
      %v946 = vpop.f32.mrb[0].mxu0
      %v947 = vadd.f32 %v738, %v946
      %v948 = vpop.f32.mrb[0].mxu0
      %949 = vmatprep.mubr.bf16.mxu0 0
      %950 = vmatmul.mubr.bf16.gmra.mrb[0].mxu0 %v479
      %v951 = vpop.f32.mrb[0].mxu0
      %v952 = vadd.f32 %v743, %v951
      %v953 = vpop.f32.mrb[0].mxu0
      %v954 = vpop.f32.mrb[0].mxu0
      %v955 = vadd.f32 %v746, %v954
      %v956 = vpop.f32.mrb[0].mxu0
      %957 = vmatprep.mubr.bf16.mxu0 0
      %958 = vmatmul.mubr.bf16.gmra.mrb[0].mxu0 %v480
      %v959 = vpop.f32.mrb[0].mxu0
      %v960 = vadd.f32 %v751, %v959
      %v961 = vpop.f32.mrb[0].mxu0
      %v962 = vpop.f32.mrb[0].mxu0
      %v963 = vadd.f32 %v754, %v962
      %v964 = vpop.f32.mrb[0].mxu0
      %965 = vmatprep.mubr.bf16.mxu0 0
      %966 = vmatmul.mubr.bf16.gmra.mrb[0].mxu0 %v481
      %v967 = vpop.f32.mrb[0].mxu0
      %v968 = vadd.f32 %v759, %v967
      %v969 = vpop.f32.mrb[0].mxu0
      %v970 = vpop.f32.mrb[0].mxu0
      %v971 = vadd.f32 %v762, %v970
      %v972 = vpop.f32.mrb[0].mxu0
      %973 = vmatprep.mubr.bf16.mxu0 0
      %974 = vmatmul.mubr.bf16.gmra.mrb[0].mxu0 %v482
      %v975 = vpop.f32.mrb[0].mxu0
      %v976 = vadd.f32 %v767, %v975
      %v977 = vpop.f32.mrb[0].mxu0
      %v978 = vpop.f32.mrb[0].mxu0
      %v979 = vadd.f32 %v770, %v978
      %v980 = vpop.f32.mrb[0].mxu0
      %981 = vdwg.mxu0
      %v982 = vld [vmem:[#allocation2 + $0x2] sm:$0xff]
      %v983 = vld [vmem:[#allocation2 + $0xa] sm:$0xff]
      %v984 = vld [vmem:[#allocation2 + $0x1a] sm:$0xff]
      %v985 = vld [vmem:[#allocation2 + $0x22] sm:$0xff]
      %v986 = vld [vmem:[#allocation2 + $0x32] sm:$0xff]
      %v987 = vld [vmem:[#allocation2 + $0x3a] sm:$0xff]
      %v988 = vld [vmem:[#allocation2 + $0x4a] sm:$0xff]
      %v989 = vld [vmem:[#allocation2 + $0x52] sm:$0xff]
      %v990 = vld [vmem:[#allocation2 + $0x62] sm:$0xff]
      %v991 = vld [vmem:[#allocation2 + $0x6a] sm:$0xff]
      %v992 = vld [vmem:[#allocation2 + $0x7a] sm:$0xff]
      %v993 = vld [vmem:[#allocation2 + $0x82] sm:$0xff]
      %v994 = vld [vmem:[#allocation2 + $0x92] sm:$0xff]
      %v995 = vld [vmem:[#allocation2 + $0x9a] sm:$0xff]
      %v996 = vld [vmem:[#allocation2 + $0xaa] sm:$0xff]
      %v997 = vld [vmem:[#allocation2 + $0xb2] sm:$0xff]
      %v998 = vld [vmem:[#allocation2 + $0xc2] sm:$0xff]
      %v999 = vld [vmem:[#allocation2 + $0xca] sm:$0xff]
      %v1000 = vld [vmem:[#allocation2 + $0xda] sm:$0xff]
      %v1001 = vld [vmem:[#allocation2 + $0xe2] sm:$0xff]
      %v1002 = vld [vmem:[#allocation2 + $0xf2] sm:$0xff]
      %v1003 = vld [vmem:[#allocation2 + $0xfa] sm:$0xff]
      %v1004 = vld [vmem:[#allocation2 + $0x10a] sm:$0xff]
      %v1005 = vld [vmem:[#allocation2 + $0x112] sm:$0xff]
      %v1006 = vld [vmem:[#allocation2 + $0x122] sm:$0xff]
      %v1007 = vld [vmem:[#allocation2 + $0x12a] sm:$0xff]
      %v1008 = vld [vmem:[#allocation2 + $0x13a] sm:$0xff]
      %v1009 = vld [vmem:[#allocation2 + $0x142] sm:$0xff]
      %v1010 = vld [vmem:[#allocation2 + $0x152] sm:$0xff]
      %v1011 = vld [vmem:[#allocation2 + $0x15a] sm:$0xff]
      %v1012 = vld [vmem:[#allocation2 + $0x16a] sm:$0xff]
      %v1013 = vld [vmem:[#allocation2 + $0x172] sm:$0xff]
      %v1014 = vpack.c.bf16 %v983, %v982
      %v1015 = vpack.c.bf16 %v985, %v984
      %v1016 = vpack.c.bf16 %v987, %v986
      %v1017 = vpack.c.bf16 %v989, %v988
      %v1018 = vpack.c.bf16 %v991, %v990
      %v1019 = vpack.c.bf16 %v993, %v992
      %v1020 = vpack.c.bf16 %v995, %v994
      %v1021 = vpack.c.bf16 %v997, %v996
      %v1022 = vpack.c.bf16 %v999, %v998
      %v1023 = vpack.c.bf16 %v1001, %v1000
      %v1024 = vpack.c.bf16 %v1003, %v1002
      %v1025 = vpack.c.bf16 %v1005, %v1004
      %v1026 = vpack.c.bf16 %v1007, %v1006
      %v1027 = vpack.c.bf16 %v1009, %v1008
      %v1028 = vpack.c.bf16 %v1011, %v1010
      %v1029 = vpack.c.bf16 %v1013, %v1012
      %s1030 = scalar_lea.vmem %s1, 128
      %v1031 = vld [vmem:[%s1030] sm:$0xf]
      %v1032 = vld [vmem:[%s1030 + $0x4] sm:$0xf]
      %v1033 = vld [vmem:[%s1030 + $0x8] sm:$0xf]
      %v1034 = vld [vmem:[%s1030 + $0xc] sm:$0xf]
      %v1035 = vld [vmem:[%s1030 + $0x10] sm:$0xf]
      %v1036 = vld [vmem:[%s1030 + $0x14] sm:$0xf]
      %v1037 = vld [vmem:[%s1030 + $0x18] sm:$0xf]
      %v1038 = vld [vmem:[%s1030 + $0x1c] sm:$0xf]
      %v1039 = vld [vmem:[%s1030 + $0x20] sm:$0xf]
      %v1040 = vld [vmem:[%s1030 + $0x24] sm:$0xf]
      %v1041 = vld [vmem:[%s1030 + $0x28] sm:$0xf]
      %v1042 = vld [vmem:[%s1030 + $0x2c] sm:$0xf]
      %v1043 = vld [vmem:[%s1030 + $0x30] sm:$0xf]
      %v1044 = vld [vmem:[%s1030 + $0x34] sm:$0xf]
      %v1045 = vld [vmem:[%s1030 + $0x38] sm:$0xf]
      %v1046 = vld [vmem:[%s1030 + $0x3c] sm:$0xf]
      %v1063 = vunpack.c.l.b16 %v1031
      %v1064 = vunpack.c.l.b16 %v1032
      %v1065 = vunpack.c.l.b16 %v1033
      %v1066 = vunpack.c.l.b16 %v1034
      %v1067 = vunpack.c.l.b16 %v1035
      %v1068 = vunpack.c.l.b16 %v1036
      %v1069 = vunpack.c.l.b16 %v1037
      %v1070 = vunpack.c.l.b16 %v1038
      %v1071 = vunpack.c.l.b16 %v1039
      %v1072 = vunpack.c.l.b16 %v1040
      %v1073 = vunpack.c.l.b16 %v1041
      %v1074 = vunpack.c.l.b16 %v1042
      %v1075 = vunpack.c.l.b16 %v1043
      %v1076 = vunpack.c.l.b16 %v1044
      %v1077 = vunpack.c.l.b16 %v1045
      %v1078 = vunpack.c.l.b16 %v1046
      %v1079 = vpack.c.b16 %v1064, %v1063
      %v1080 = vpack.c.b16 %v1066, %v1065
      %v1081 = vpack.c.b16 %v1068, %v1067
      %v1082 = vpack.c.b16 %v1070, %v1069
      %v1083 = vpack.c.b16 %v1072, %v1071
      %v1084 = vpack.c.b16 %v1074, %v1073
      %v1085 = vpack.c.b16 %v1076, %v1075
      %v1086 = vpack.c.b16 %v1078, %v1077
      %1095 = vmatprep.subr.bf16.mxu0 0
      %1096 = vmatpush1.bf16.msra.mxu0 %v1079
      %1097 = vmatprep.subr.bf16.mxu0 0
      %1098 = vmatpush1.bf16.msra.mxu0 %v1080
      %1099 = vmatprep.subr.bf16.mxu0 0
      %1100 = vmatpush1.bf16.msra.mxu0 %v1081
      %1101 = vmatprep.subr.bf16.mxu0 0
      %1102 = vmatpush1.bf16.msra.mxu0 %v1082
      %1103 = vmatprep.subr.bf16.mxu0 0
      %1104 = vmatpush1.bf16.msra.mxu0 %v1083
      %1105 = vmatprep.subr.bf16.mxu0 0
      %1106 = vmatpush1.bf16.msra.mxu0 %v1084
      %1107 = vmatprep.subr.bf16.mxu0 0
      %1108 = vmatpush1.bf16.msra.mxu0 %v1085
      %1109 = vmatprep.subr.bf16.mxu0 0
      %1110 = vmatpush1.bf16.msra.mxu0 %v1086
      %1111 = vmatprep.subr.bf16.mxu0 0
      %1112 = vmatpush1.bf16.msra.mxu0 0
      %1113 = vmatprep.subr.bf16.mxu0 0
      %1114 = vmatpush1.bf16.msra.mxu0 0
      %1115 = vmatprep.subr.bf16.mxu0 0
      %1116 = vmatpush1.bf16.msra.mxu0 0
      %1117 = vmatprep.subr.bf16.mxu0 0
      %1118 = vmatpush1.bf16.msra.mxu0 0
      %1119 = vmatprep.subr.bf16.mxu0 0
      %1120 = vmatpush1.bf16.msra.mxu0 0
      %1121 = vmatprep.subr.bf16.mxu0 0
      %1122 = vmatpush1.bf16.msra.mxu0 0
      %1123 = vmatprep.subr.bf16.mxu0 0
      %1124 = vmatpush1.bf16.msra.mxu0 0
      %1125 = vmatprep.subr.bf16.mxu0 0
      %1126 = vmatpush1.bf16.msra.mxu0 0
      %1127 = vmatprep.mubr.bf16.mxu0 0
      %1128 = vmatmul.mubr.bf16.gmra.mrb[0].mxu0 %v1014
      %v1129 = vpop.f32.mrb[0].mxu0
      %v1130 = vadd.f32 0.0, %v1129
      %v1131 = vpop.f32.mrb[0].mxu0
      %v1132 = vpop.f32.mrb[0].mxu0
      %v1133 = vadd.f32 0.0, %v1132
      %v1134 = vpop.f32.mrb[0].mxu0
      %1135 = vmatprep.mubr.bf16.mxu0 0
      %1136 = vmatmul.mubr.bf16.gmra.mrb[0].mxu0 %v1015
      %v1137 = vpop.f32.mrb[0].mxu0
      %v1138 = vadd.f32 0.0, %v1137
      %v1139 = vpop.f32.mrb[0].mxu0
      %v1140 = vpop.f32.mrb[0].mxu0
      %v1141 = vadd.f32 0.0, %v1140
      %v1142 = vpop.f32.mrb[0].mxu0
      %1143 = vmatprep.mubr.bf16.mxu0 0
      %1144 = vmatmul.mubr.bf16.gmra.mrb[0].mxu0 %v1016
      %v1145 = vpop.f32.mrb[0].mxu0
      %v1146 = vadd.f32 0.0, %v1145
      %v1147 = vpop.f32.mrb[0].mxu0
      %v1148 = vpop.f32.mrb[0].mxu0
      %v1149 = vadd.f32 0.0, %v1148
      %v1150 = vpop.f32.mrb[0].mxu0
      %1151 = vmatprep.mubr.bf16.mxu0 0
      %1152 = vmatmul.mubr.bf16.gmra.mrb[0].mxu0 %v1017
      %v1153 = vpop.f32.mrb[0].mxu0
      %v1154 = vadd.f32 0.0, %v1153
      %v1155 = vpop.f32.mrb[0].mxu0
      %v1156 = vpop.f32.mrb[0].mxu0
      %v1157 = vadd.f32 0.0, %v1156
      %v1158 = vpop.f32.mrb[0].mxu0
      %1159 = vmatprep.mubr.bf16.mxu0 0
      %1160 = vmatmul.mubr.bf16.gmra.mrb[0].mxu0 %v1018
      %v1161 = vpop.f32.mrb[0].mxu0
      %v1162 = vadd.f32 0.0, %v1161
      %v1163 = vpop.f32.mrb[0].mxu0
      %v1164 = vpop.f32.mrb[0].mxu0
      %v1165 = vadd.f32 0.0, %v1164
      %v1166 = vpop.f32.mrb[0].mxu0
      %1167 = vmatprep.mubr.bf16.mxu0 0
      %1168 = vmatmul.mubr.bf16.gmra.mrb[0].mxu0 %v1019
      %v1169 = vpop.f32.mrb[0].mxu0
      %v1170 = vadd.f32 0.0, %v1169
      %v1171 = vpop.f32.mrb[0].mxu0
      %v1172 = vpop.f32.mrb[0].mxu0
      %v1173 = vadd.f32 0.0, %v1172
      %v1174 = vpop.f32.mrb[0].mxu0
      %1175 = vmatprep.mubr.bf16.mxu0 0
      %1176 = vmatmul.mubr.bf16.gmra.mrb[0].mxu0 %v1020
      %v1177 = vpop.f32.mrb[0].mxu0
      %v1178 = vadd.f32 0.0, %v1177
      %v1179 = vpop.f32.mrb[0].mxu0
      %v1180 = vpop.f32.mrb[0].mxu0
      %v1181 = vadd.f32 0.0, %v1180
      %v1182 = vpop.f32.mrb[0].mxu0
      %1183 = vmatprep.mubr.bf16.mxu0 0
      %1184 = vmatmul.mubr.bf16.gmra.mrb[0].mxu0 %v1021
      %v1185 = vpop.f32.mrb[0].mxu0
      %v1186 = vadd.f32 0.0, %v1185
      %v1187 = vpop.f32.mrb[0].mxu0
      %v1188 = vpop.f32.mrb[0].mxu0
      %v1189 = vadd.f32 0.0, %v1188
      %v1190 = vpop.f32.mrb[0].mxu0
      %1191 = vmatprep.mubr.bf16.mxu0 0
      %1192 = vmatmul.mubr.bf16.gmra.mrb[0].mxu0 %v1022
      %v1193 = vpop.f32.mrb[0].mxu0
      %v1194 = vadd.f32 0.0, %v1193
      %v1195 = vpop.f32.mrb[0].mxu0
      %v1196 = vpop.f32.mrb[0].mxu0
      %v1197 = vadd.f32 0.0, %v1196
      %v1198 = vpop.f32.mrb[0].mxu0
      %1199 = vmatprep.mubr.bf16.mxu0 0
      %1200 = vmatmul.mubr.bf16.gmra.mrb[0].mxu0 %v1023
      %v1201 = vpop.f32.mrb[0].mxu0
      %v1202 = vadd.f32 0.0, %v1201
      %v1203 = vpop.f32.mrb[0].mxu0
      %v1204 = vpop.f32.mrb[0].mxu0
      %v1205 = vadd.f32 0.0, %v1204
      %v1206 = vpop.f32.mrb[0].mxu0
      %1207 = vmatprep.mubr.bf16.mxu0 0
      %1208 = vmatmul.mubr.bf16.gmra.mrb[0].mxu0 %v1024
      %v1209 = vpop.f32.mrb[0].mxu0
      %v1210 = vadd.f32 0.0, %v1209
      %v1211 = vpop.f32.mrb[0].mxu0
      %v1212 = vpop.f32.mrb[0].mxu0
      %v1213 = vadd.f32 0.0, %v1212
      %v1214 = vpop.f32.mrb[0].mxu0
      %1215 = vmatprep.mubr.bf16.mxu0 0
      %1216 = vmatmul.mubr.bf16.gmra.mrb[0].mxu0 %v1025
      %v1217 = vpop.f32.mrb[0].mxu0
      %v1218 = vadd.f32 0.0, %v1217
      %v1219 = vpop.f32.mrb[0].mxu0
      %v1220 = vpop.f32.mrb[0].mxu0
      %v1221 = vadd.f32 0.0, %v1220
      %v1222 = vpop.f32.mrb[0].mxu0
      %1223 = vmatprep.mubr.bf16.mxu0 0
      %1224 = vmatmul.mubr.bf16.gmra.mrb[0].mxu0 %v1026
      %v1225 = vpop.f32.mrb[0].mxu0
      %v1226 = vadd.f32 0.0, %v1225
      %v1227 = vpop.f32.mrb[0].mxu0
      %v1228 = vpop.f32.mrb[0].mxu0
      %v1229 = vadd.f32 0.0, %v1228
      %v1230 = vpop.f32.mrb[0].mxu0
      %1231 = vmatprep.mubr.bf16.mxu0 0
      %1232 = vmatmul.mubr.bf16.gmra.mrb[0].mxu0 %v1027
      %v1233 = vpop.f32.mrb[0].mxu0
      %v1234 = vadd.f32 0.0, %v1233
      %v1235 = vpop.f32.mrb[0].mxu0
      %v1236 = vpop.f32.mrb[0].mxu0
      %v1237 = vadd.f32 0.0, %v1236
      %v1238 = vpop.f32.mrb[0].mxu0
      %1239 = vmatprep.mubr.bf16.mxu0 0
      %1240 = vmatmul.mubr.bf16.gmra.mrb[0].mxu0 %v1028
      %v1241 = vpop.f32.mrb[0].mxu0
      %v1242 = vadd.f32 0.0, %v1241
      %v1243 = vpop.f32.mrb[0].mxu0
      %v1244 = vpop.f32.mrb[0].mxu0
      %v1245 = vadd.f32 0.0, %v1244
      %v1246 = vpop.f32.mrb[0].mxu0
      %1247 = vmatprep.mubr.bf16.mxu0 0
      %1248 = vmatmul.mubr.bf16.gmra.mrb[0].mxu0 %v1029
      %v1249 = vpop.f32.mrb[0].mxu0
      %v1250 = vadd.f32 0.0, %v1249
      %v1251 = vpop.f32.mrb[0].mxu0
      %v1252 = vpop.f32.mrb[0].mxu0
      %v1253 = vadd.f32 0.0, %v1252
      %v1254 = vpop.f32.mrb[0].mxu0
      %1255 = vdwg.mxu0
      %v1256 = vadd.f32 %v856, %v1130
      %v1257 = vadd.f32 %v859, %v1133
      %v1258 = vadd.f32 %v864, %v1138
      %v1259 = vadd.f32 %v867, %v1141
      %v1260 = vadd.f32 %v872, %v1146
      %v1261 = vadd.f32 %v875, %v1149
      %v1262 = vadd.f32 %v880, %v1154
      %v1263 = vadd.f32 %v883, %v1157
      %v1264 = vadd.f32 %v888, %v1162
      %v1265 = vadd.f32 %v891, %v1165
      %v1266 = vadd.f32 %v896, %v1170
      %v1267 = vadd.f32 %v899, %v1173
      %v1268 = vadd.f32 %v904, %v1178
      %v1269 = vadd.f32 %v907, %v1181
      %v1270 = vadd.f32 %v912, %v1186
      %v1271 = vadd.f32 %v915, %v1189
      %v1272 = vadd.f32 %v920, %v1194
      %v1273 = vadd.f32 %v923, %v1197
      %v1274 = vadd.f32 %v928, %v1202
      %v1275 = vadd.f32 %v931, %v1205
      %v1276 = vadd.f32 %v936, %v1210
      %v1277 = vadd.f32 %v939, %v1213
      %v1278 = vadd.f32 %v944, %v1218
      %v1279 = vadd.f32 %v947, %v1221
      %v1280 = vadd.f32 %v952, %v1226
      %v1281 = vadd.f32 %v955, %v1229
      %v1282 = vadd.f32 %v960, %v1234
      %v1283 = vadd.f32 %v963, %v1237
      %v1284 = vadd.f32 %v968, %v1242
      %v1285 = vadd.f32 %v971, %v1245
      %v1286 = vadd.f32 %v976, %v1250
      %v1287 = vadd.f32 %v979, %v1253
      %v1288 = vld [vmem:[%s402] sm:$0xff]
      %v1289 = vld [vmem:[%s402 + $0x8] sm:$0xff]
      %v1290 = vld [vmem:[%s402 + $0x18] sm:$0xff]
      %v1291 = vld [vmem:[%s402 + $0x20] sm:$0xff]
      %v1292 = vld [vmem:[%s402 + $0x30] sm:$0xff]
      %v1293 = vld [vmem:[%s402 + $0x38] sm:$0xff]
      %v1294 = vld [vmem:[%s402 + $0x48] sm:$0xff]
      %v1295 = vld [vmem:[%s402 + $0x50] sm:$0xff]
      %v1296 = vld [vmem:[%s402 + $0x60] sm:$0xff]
      %v1297 = vld [vmem:[%s402 + $0x68] sm:$0xff]
      %v1298 = vld [vmem:[%s402 + $0x78] sm:$0xff]
      %v1299 = vld [vmem:[%s402 + $0x80] sm:$0xff]
      %v1300 = vld [vmem:[%s402 + $0x90] sm:$0xff]
      %v1301 = vld [vmem:[%s402 + $0x98] sm:$0xff]
      %v1302 = vld [vmem:[%s402 + $0xa8] sm:$0xff]
      %v1303 = vld [vmem:[%s402 + $0xb0] sm:$0xff]
      %v1304 = vld [vmem:[%s402 + $0xc0] sm:$0xff]
      %v1305 = vld [vmem:[%s402 + $0xc8] sm:$0xff]
      %v1306 = vld [vmem:[%s402 + $0xd8] sm:$0xff]
      %v1307 = vld [vmem:[%s402 + $0xe0] sm:$0xff]
      %v1308 = vld [vmem:[%s402 + $0xf0] sm:$0xff]
      %v1309 = vld [vmem:[%s402 + $0xf8] sm:$0xff]
      %v1310 = vld [vmem:[%s402 + $0x108] sm:$0xff]
      %v1311 = vld [vmem:[%s402 + $0x110] sm:$0xff]
      %v1312 = vld [vmem:[%s402 + $0x120] sm:$0xff]
      %v1313 = vld [vmem:[%s402 + $0x128] sm:$0xff]
      %v1314 = vld [vmem:[%s402 + $0x138] sm:$0xff]
      %v1315 = vld [vmem:[%s402 + $0x140] sm:$0xff]
      %v1316 = vld [vmem:[%s402 + $0x150] sm:$0xff]
      %v1317 = vld [vmem:[%s402 + $0x158] sm:$0xff]
      %v1318 = vld [vmem:[%s402 + $0x168] sm:$0xff]
      %v1319 = vld [vmem:[%s402 + $0x170] sm:$0xff]
      %v1320 = vpack.c.bf16 %v1289, %v1288
      %v1321 = vpack.c.bf16 %v1291, %v1290
      %v1322 = vpack.c.bf16 %v1293, %v1292
      %v1323 = vpack.c.bf16 %v1295, %v1294
      %v1324 = vpack.c.bf16 %v1297, %v1296
      %v1325 = vpack.c.bf16 %v1299, %v1298
      %v1326 = vpack.c.bf16 %v1301, %v1300
      %v1327 = vpack.c.bf16 %v1303, %v1302
      %v1328 = vpack.c.bf16 %v1305, %v1304
      %v1329 = vpack.c.bf16 %v1307, %v1306
      %v1330 = vpack.c.bf16 %v1309, %v1308
      %v1331 = vpack.c.bf16 %v1311, %v1310
      %v1332 = vpack.c.bf16 %v1313, %v1312
      %v1333 = vpack.c.bf16 %v1315, %v1314
      %v1334 = vpack.c.bf16 %v1317, %v1316
      %v1335 = vpack.c.bf16 %v1319, %v1318
      %s1336 = scalar_lea.vmem %s1, 192
      %v1337 = vld [vmem:[%s1336] sm:$0xf]
      %v1338 = vld [vmem:[%s1336 + $0x4] sm:$0xf]
      %v1339 = vld [vmem:[%s1336 + $0x8] sm:$0xf]
      %v1340 = vld [vmem:[%s1336 + $0xc] sm:$0xf]
      %v1341 = vld [vmem:[%s1336 + $0x10] sm:$0xf]
      %v1342 = vld [vmem:[%s1336 + $0x14] sm:$0xf]
      %v1343 = vld [vmem:[%s1336 + $0x18] sm:$0xf]
      %v1344 = vld [vmem:[%s1336 + $0x1c] sm:$0xf]
      %v1345 = vld [vmem:[%s1336 + $0x20] sm:$0xf]
      %v1346 = vld [vmem:[%s1336 + $0x24] sm:$0xf]
      %v1347 = vld [vmem:[%s1336 + $0x28] sm:$0xf]
      %v1348 = vld [vmem:[%s1336 + $0x2c] sm:$0xf]
      %v1349 = vld [vmem:[%s1336 + $0x30] sm:$0xf]
      %v1350 = vld [vmem:[%s1336 + $0x34] sm:$0xf]
      %v1351 = vld [vmem:[%s1336 + $0x38] sm:$0xf]
      %v1352 = vld [vmem:[%s1336 + $0x3c] sm:$0xf]
      %v1369 = vunpack.c.l.b16 %v1337
      %v1370 = vunpack.c.l.b16 %v1338
      %v1371 = vunpack.c.l.b16 %v1339
      %v1372 = vunpack.c.l.b16 %v1340
      %v1373 = vunpack.c.l.b16 %v1341
      %v1374 = vunpack.c.l.b16 %v1342
      %v1375 = vunpack.c.l.b16 %v1343
      %v1376 = vunpack.c.l.b16 %v1344
      %v1377 = vunpack.c.l.b16 %v1345
      %v1378 = vunpack.c.l.b16 %v1346
      %v1379 = vunpack.c.l.b16 %v1347
      %v1380 = vunpack.c.l.b16 %v1348
      %v1381 = vunpack.c.l.b16 %v1349
      %v1382 = vunpack.c.l.b16 %v1350
      %v1383 = vunpack.c.l.b16 %v1351
      %v1384 = vunpack.c.l.b16 %v1352
      %v1385 = vpack.c.b16 %v1370, %v1369
      %v1386 = vpack.c.b16 %v1372, %v1371
      %v1387 = vpack.c.b16 %v1374, %v1373
      %v1388 = vpack.c.b16 %v1376, %v1375
      %v1389 = vpack.c.b16 %v1378, %v1377
      %v1390 = vpack.c.b16 %v1380, %v1379
      %v1391 = vpack.c.b16 %v1382, %v1381
      %v1392 = vpack.c.b16 %v1384, %v1383
      %1401 = vmatprep.subr.bf16.mxu0 0
      %1402 = vmatpush1.bf16.msra.mxu0 %v1385
      %1403 = vmatprep.subr.bf16.mxu0 0
      %1404 = vmatpush1.bf16.msra.mxu0 %v1386
      %1405 = vmatprep.subr.bf16.mxu0 0
      %1406 = vmatpush1.bf16.msra.mxu0 %v1387
      %1407 = vmatprep.subr.bf16.mxu0 0
      %1408 = vmatpush1.bf16.msra.mxu0 %v1388
      %1409 = vmatprep.subr.bf16.mxu0 0
      %1410 = vmatpush1.bf16.msra.mxu0 %v1389
      %1411 = vmatprep.subr.bf16.mxu0 0
      %1412 = vmatpush1.bf16.msra.mxu0 %v1390
      %1413 = vmatprep.subr.bf16.mxu0 0
      %1414 = vmatpush1.bf16.msra.mxu0 %v1391
      %1415 = vmatprep.subr.bf16.mxu0 0
      %1416 = vmatpush1.bf16.msra.mxu0 %v1392
      %1417 = vmatprep.subr.bf16.mxu0 0
      %1418 = vmatpush1.bf16.msra.mxu0 0
      %1419 = vmatprep.subr.bf16.mxu0 0
      %1420 = vmatpush1.bf16.msra.mxu0 0
      %1421 = vmatprep.subr.bf16.mxu0 0
      %1422 = vmatpush1.bf16.msra.mxu0 0
      %1423 = vmatprep.subr.bf16.mxu0 0
      %1424 = vmatpush1.bf16.msra.mxu0 0
      %1425 = vmatprep.subr.bf16.mxu0 0
      %1426 = vmatpush1.bf16.msra.mxu0 0
      %1427 = vmatprep.subr.bf16.mxu0 0
      %1428 = vmatpush1.bf16.msra.mxu0 0
      %1429 = vmatprep.subr.bf16.mxu0 0
      %1430 = vmatpush1.bf16.msra.mxu0 0
      %1431 = vmatprep.subr.bf16.mxu0 0
      %1432 = vmatpush1.bf16.msra.mxu0 0
      %1433 = vmatprep.mubr.bf16.mxu0 0
      %1434 = vmatmul.mubr.bf16.gmra.mrb[0].mxu0 %v1320
      %v1435 = vpop.f32.mrb[0].mxu0
      %v1436 = vadd.f32 0.0, %v1435
      %v1437 = vpop.f32.mrb[0].mxu0
      %v1438 = vpop.f32.mrb[0].mxu0
      %v1439 = vadd.f32 0.0, %v1438
      %v1440 = vpop.f32.mrb[0].mxu0
      %1441 = vmatprep.mubr.bf16.mxu0 0
      %1442 = vmatmul.mubr.bf16.gmra.mrb[0].mxu0 %v1321
      %v1443 = vpop.f32.mrb[0].mxu0
      %v1444 = vadd.f32 0.0, %v1443
      %v1445 = vpop.f32.mrb[0].mxu0
      %v1446 = vpop.f32.mrb[0].mxu0
      %v1447 = vadd.f32 0.0, %v1446
      %v1448 = vpop.f32.mrb[0].mxu0
      %1449 = vmatprep.mubr.bf16.mxu0 0
      %1450 = vmatmul.mubr.bf16.gmra.mrb[0].mxu0 %v1322
      %v1451 = vpop.f32.mrb[0].mxu0
      %v1452 = vadd.f32 0.0, %v1451
      %v1453 = vpop.f32.mrb[0].mxu0
      %v1454 = vpop.f32.mrb[0].mxu0
      %v1455 = vadd.f32 0.0, %v1454
      %v1456 = vpop.f32.mrb[0].mxu0
      %1457 = vmatprep.mubr.bf16.mxu0 0
      %1458 = vmatmul.mubr.bf16.gmra.mrb[0].mxu0 %v1323
      %v1459 = vpop.f32.mrb[0].mxu0
      %v1460 = vadd.f32 0.0, %v1459
      %v1461 = vpop.f32.mrb[0].mxu0
      %v1462 = vpop.f32.mrb[0].mxu0
      %v1463 = vadd.f32 0.0, %v1462
      %v1464 = vpop.f32.mrb[0].mxu0
      %1465 = vmatprep.mubr.bf16.mxu0 0
      %1466 = vmatmul.mubr.bf16.gmra.mrb[0].mxu0 %v1324
      %v1467 = vpop.f32.mrb[0].mxu0
      %v1468 = vadd.f32 0.0, %v1467
      %v1469 = vpop.f32.mrb[0].mxu0
      %v1470 = vpop.f32.mrb[0].mxu0
      %v1471 = vadd.f32 0.0, %v1470
      %v1472 = vpop.f32.mrb[0].mxu0
      %1473 = vmatprep.mubr.bf16.mxu0 0
      %1474 = vmatmul.mubr.bf16.gmra.mrb[0].mxu0 %v1325
      %v1475 = vpop.f32.mrb[0].mxu0
      %v1476 = vadd.f32 0.0, %v1475
      %v1477 = vpop.f32.mrb[0].mxu0
      %v1478 = vpop.f32.mrb[0].mxu0
      %v1479 = vadd.f32 0.0, %v1478
      %v1480 = vpop.f32.mrb[0].mxu0
      %1481 = vmatprep.mubr.bf16.mxu0 0
      %1482 = vmatmul.mubr.bf16.gmra.mrb[0].mxu0 %v1326
      %v1483 = vpop.f32.mrb[0].mxu0
      %v1484 = vadd.f32 0.0, %v1483
      %v1485 = vpop.f32.mrb[0].mxu0
      %v1486 = vpop.f32.mrb[0].mxu0
      %v1487 = vadd.f32 0.0, %v1486
      %v1488 = vpop.f32.mrb[0].mxu0
      %1489 = vmatprep.mubr.bf16.mxu0 0
      %1490 = vmatmul.mubr.bf16.gmra.mrb[0].mxu0 %v1327
      %v1491 = vpop.f32.mrb[0].mxu0
      %v1492 = vadd.f32 0.0, %v1491
      %v1493 = vpop.f32.mrb[0].mxu0
      %v1494 = vpop.f32.mrb[0].mxu0
      %v1495 = vadd.f32 0.0, %v1494
      %v1496 = vpop.f32.mrb[0].mxu0
      %1497 = vmatprep.mubr.bf16.mxu0 0
      %1498 = vmatmul.mubr.bf16.gmra.mrb[0].mxu0 %v1328
      %v1499 = vpop.f32.mrb[0].mxu0
      %v1500 = vadd.f32 0.0, %v1499
      %v1501 = vpop.f32.mrb[0].mxu0
      %v1502 = vpop.f32.mrb[0].mxu0
      %v1503 = vadd.f32 0.0, %v1502
      %v1504 = vpop.f32.mrb[0].mxu0
      %1505 = vmatprep.mubr.bf16.mxu0 0
      %1506 = vmatmul.mubr.bf16.gmra.mrb[0].mxu0 %v1329
      %v1507 = vpop.f32.mrb[0].mxu0
      %v1508 = vadd.f32 0.0, %v1507
      %v1509 = vpop.f32.mrb[0].mxu0
      %v1510 = vpop.f32.mrb[0].mxu0
      %v1511 = vadd.f32 0.0, %v1510
      %v1512 = vpop.f32.mrb[0].mxu0
      %1513 = vmatprep.mubr.bf16.mxu0 0
      %1514 = vmatmul.mubr.bf16.gmra.mrb[0].mxu0 %v1330
      %v1515 = vpop.f32.mrb[0].mxu0
      %v1516 = vadd.f32 0.0, %v1515
      %v1517 = vpop.f32.mrb[0].mxu0
      %v1518 = vpop.f32.mrb[0].mxu0
      %v1519 = vadd.f32 0.0, %v1518
      %v1520 = vpop.f32.mrb[0].mxu0
      %1521 = vmatprep.mubr.bf16.mxu0 0
      %1522 = vmatmul.mubr.bf16.gmra.mrb[0].mxu0 %v1331
      %v1523 = vpop.f32.mrb[0].mxu0
      %v1524 = vadd.f32 0.0, %v1523
      %v1525 = vpop.f32.mrb[0].mxu0
      %v1526 = vpop.f32.mrb[0].mxu0
      %v1527 = vadd.f32 0.0, %v1526
      %v1528 = vpop.f32.mrb[0].mxu0
      %1529 = vmatprep.mubr.bf16.mxu0 0
      %1530 = vmatmul.mubr.bf16.gmra.mrb[0].mxu0 %v1332
      %v1531 = vpop.f32.mrb[0].mxu0
      %v1532 = vadd.f32 0.0, %v1531
      %v1533 = vpop.f32.mrb[0].mxu0
      %v1534 = vpop.f32.mrb[0].mxu0
      %v1535 = vadd.f32 0.0, %v1534
      %v1536 = vpop.f32.mrb[0].mxu0
      %1537 = vmatprep.mubr.bf16.mxu0 0
      %1538 = vmatmul.mubr.bf16.gmra.mrb[0].mxu0 %v1333
      %v1539 = vpop.f32.mrb[0].mxu0
      %v1540 = vadd.f32 0.0, %v1539
      %v1541 = vpop.f32.mrb[0].mxu0
      %v1542 = vpop.f32.mrb[0].mxu0
      %v1543 = vadd.f32 0.0, %v1542
      %v1544 = vpop.f32.mrb[0].mxu0
      %1545 = vmatprep.mubr.bf16.mxu0 0
      %1546 = vmatmul.mubr.bf16.gmra.mrb[0].mxu0 %v1334
      %v1547 = vpop.f32.mrb[0].mxu0
      %v1548 = vadd.f32 0.0, %v1547
      %v1549 = vpop.f32.mrb[0].mxu0
      %v1550 = vpop.f32.mrb[0].mxu0
      %v1551 = vadd.f32 0.0, %v1550
      %v1552 = vpop.f32.mrb[0].mxu0
      %1553 = vmatprep.mubr.bf16.mxu0 0
      %1554 = vmatmul.mubr.bf16.gmra.mrb[0].mxu0 %v1335
      %v1555 = vpop.f32.mrb[0].mxu0
      %v1556 = vadd.f32 0.0, %v1555
      %v1557 = vpop.f32.mrb[0].mxu0
      %v1558 = vpop.f32.mrb[0].mxu0
      %v1559 = vadd.f32 0.0, %v1558
      %v1560 = vpop.f32.mrb[0].mxu0
      %1561 = vdwg.mxu0
      %v1562 = vadd.f32 %v1256, %v1436
      %v1563 = vadd.f32 %v1257, %v1439
      %v1564 = vadd.f32 %v1258, %v1444
      %v1565 = vadd.f32 %v1259, %v1447
      %v1566 = vadd.f32 %v1260, %v1452
      %v1567 = vadd.f32 %v1261, %v1455
      %v1568 = vadd.f32 %v1262, %v1460
      %v1569 = vadd.f32 %v1263, %v1463
      %v1570 = vadd.f32 %v1264, %v1468
      %v1571 = vadd.f32 %v1265, %v1471
      %v1572 = vadd.f32 %v1266, %v1476
      %v1573 = vadd.f32 %v1267, %v1479
      %v1574 = vadd.f32 %v1268, %v1484
      %v1575 = vadd.f32 %v1269, %v1487
      %v1576 = vadd.f32 %v1270, %v1492
      %v1577 = vadd.f32 %v1271, %v1495
      %v1578 = vadd.f32 %v1272, %v1500
      %v1579 = vadd.f32 %v1273, %v1503
      %v1580 = vadd.f32 %v1274, %v1508
      %v1581 = vadd.f32 %v1275, %v1511
      %v1582 = vadd.f32 %v1276, %v1516
      %v1583 = vadd.f32 %v1277, %v1519
      %v1584 = vadd.f32 %v1278, %v1524
      %v1585 = vadd.f32 %v1279, %v1527
      %v1586 = vadd.f32 %v1280, %v1532
      %v1587 = vadd.f32 %v1281, %v1535
      %v1588 = vadd.f32 %v1282, %v1540
      %v1589 = vadd.f32 %v1283, %v1543
      %v1590 = vadd.f32 %v1284, %v1548
      %v1591 = vadd.f32 %v1285, %v1551
      %v1592 = vadd.f32 %v1286, %v1556
      %v1593 = vadd.f32 %v1287, %v1559
      %v1594 = vld [vmem:[%s402 + $0x1] sm:$0xff]
      %v1595 = vld [vmem:[%s402 + $0x9] sm:$0xff]
      %v1596 = vld [vmem:[%s402 + $0x19] sm:$0xff]
      %v1597 = vld [vmem:[%s402 + $0x21] sm:$0xff]
      %v1598 = vld [vmem:[%s402 + $0x31] sm:$0xff]
      %v1599 = vld [vmem:[%s402 + $0x39] sm:$0xff]
      %v1600 = vld [vmem:[%s402 + $0x49] sm:$0xff]
      %v1601 = vld [vmem:[%s402 + $0x51] sm:$0xff]
      %v1602 = vld [vmem:[%s402 + $0x61] sm:$0xff]
      %v1603 = vld [vmem:[%s402 + $0x69] sm:$0xff]
      %v1604 = vld [vmem:[%s402 + $0x79] sm:$0xff]
      %v1605 = vld [vmem:[%s402 + $0x81] sm:$0xff]
      %v1606 = vld [vmem:[%s402 + $0x91] sm:$0xff]
      %v1607 = vld [vmem:[%s402 + $0x99] sm:$0xff]
      %v1608 = vld [vmem:[%s402 + $0xa9] sm:$0xff]
      %v1609 = vld [vmem:[%s402 + $0xb1] sm:$0xff]
      %v1610 = vld [vmem:[%s402 + $0xc1] sm:$0xff]
      %v1611 = vld [vmem:[%s402 + $0xc9] sm:$0xff]
      %v1612 = vld [vmem:[%s402 + $0xd9] sm:$0xff]
      %v1613 = vld [vmem:[%s402 + $0xe1] sm:$0xff]
      %v1614 = vld [vmem:[%s402 + $0xf1] sm:$0xff]
      %v1615 = vld [vmem:[%s402 + $0xf9] sm:$0xff]
      %v1616 = vld [vmem:[%s402 + $0x109] sm:$0xff]
      %v1617 = vld [vmem:[%s402 + $0x111] sm:$0xff]
      %v1618 = vld [vmem:[%s402 + $0x121] sm:$0xff]
      %v1619 = vld [vmem:[%s402 + $0x129] sm:$0xff]
      %v1620 = vld [vmem:[%s402 + $0x139] sm:$0xff]
      %v1621 = vld [vmem:[%s402 + $0x141] sm:$0xff]
      %v1622 = vld [vmem:[%s402 + $0x151] sm:$0xff]
      %v1623 = vld [vmem:[%s402 + $0x159] sm:$0xff]
      %v1624 = vld [vmem:[%s402 + $0x169] sm:$0xff]
      %v1625 = vld [vmem:[%s402 + $0x171] sm:$0xff]
      %v1626 = vpack.c.bf16 %v1595, %v1594
      %v1627 = vpack.c.bf16 %v1597, %v1596
      %v1628 = vpack.c.bf16 %v1599, %v1598
      %v1629 = vpack.c.bf16 %v1601, %v1600
      %v1630 = vpack.c.bf16 %v1603, %v1602
      %v1631 = vpack.c.bf16 %v1605, %v1604
      %v1632 = vpack.c.bf16 %v1607, %v1606
      %v1633 = vpack.c.bf16 %v1609, %v1608
      %v1634 = vpack.c.bf16 %v1611, %v1610
      %v1635 = vpack.c.bf16 %v1613, %v1612
      %v1636 = vpack.c.bf16 %v1615, %v1614
      %v1637 = vpack.c.bf16 %v1617, %v1616
      %v1638 = vpack.c.bf16 %v1619, %v1618
      %v1639 = vpack.c.bf16 %v1621, %v1620
      %v1640 = vpack.c.bf16 %v1623, %v1622
      %v1641 = vpack.c.bf16 %v1625, %v1624
      %s1642 = scalar_lea.vmem %s1, 256
      %v1643 = vld [vmem:[%s1642] sm:$0xf]
      %v1644 = vld [vmem:[%s1642 + $0x4] sm:$0xf]
      %v1645 = vld [vmem:[%s1642 + $0x8] sm:$0xf]
      %v1646 = vld [vmem:[%s1642 + $0xc] sm:$0xf]
      %v1647 = vld [vmem:[%s1642 + $0x10] sm:$0xf]
      %v1648 = vld [vmem:[%s1642 + $0x14] sm:$0xf]
      %v1649 = vld [vmem:[%s1642 + $0x18] sm:$0xf]
      %v1650 = vld [vmem:[%s1642 + $0x1c] sm:$0xf]
      %v1651 = vld [vmem:[%s1642 + $0x20] sm:$0xf]
      %v1652 = vld [vmem:[%s1642 + $0x24] sm:$0xf]
      %v1653 = vld [vmem:[%s1642 + $0x28] sm:$0xf]
      %v1654 = vld [vmem:[%s1642 + $0x2c] sm:$0xf]
      %v1655 = vld [vmem:[%s1642 + $0x30] sm:$0xf]
      %v1656 = vld [vmem:[%s1642 + $0x34] sm:$0xf]
      %v1657 = vld [vmem:[%s1642 + $0x38] sm:$0xf]
      %v1658 = vld [vmem:[%s1642 + $0x3c] sm:$0xf]
      %v1675 = vunpack.c.l.b16 %v1643
      %v1676 = vunpack.c.l.b16 %v1644
      %v1677 = vunpack.c.l.b16 %v1645
      %v1678 = vunpack.c.l.b16 %v1646
      %v1679 = vunpack.c.l.b16 %v1647
      %v1680 = vunpack.c.l.b16 %v1648
      %v1681 = vunpack.c.l.b16 %v1649
      %v1682 = vunpack.c.l.b16 %v1650
      %v1683 = vunpack.c.l.b16 %v1651
      %v1684 = vunpack.c.l.b16 %v1652
      %v1685 = vunpack.c.l.b16 %v1653
      %v1686 = vunpack.c.l.b16 %v1654
      %v1687 = vunpack.c.l.b16 %v1655
      %v1688 = vunpack.c.l.b16 %v1656
      %v1689 = vunpack.c.l.b16 %v1657
      %v1690 = vunpack.c.l.b16 %v1658
      %v1691 = vpack.c.b16 %v1676, %v1675
      %v1692 = vpack.c.b16 %v1678, %v1677
      %v1693 = vpack.c.b16 %v1680, %v1679
      %v1694 = vpack.c.b16 %v1682, %v1681
      %v1695 = vpack.c.b16 %v1684, %v1683
      %v1696 = vpack.c.b16 %v1686, %v1685
      %v1697 = vpack.c.b16 %v1688, %v1687
      %v1698 = vpack.c.b16 %v1690, %v1689
      %1707 = vmatprep.subr.bf16.mxu0 0
      %1708 = vmatpush1.bf16.msra.mxu0 %v1691
      %1709 = vmatprep.subr.bf16.mxu0 0
      %1710 = vmatpush1.bf16.msra.mxu0 %v1692
      %1711 = vmatprep.subr.bf16.mxu0 0
      %1712 = vmatpush1.bf16.msra.mxu0 %v1693
      %1713 = vmatprep.subr.bf16.mxu0 0
      %1714 = vmatpush1.bf16.msra.mxu0 %v1694
      %1715 = vmatprep.subr.bf16.mxu0 0
      %1716 = vmatpush1.bf16.msra.mxu0 %v1695
      %1717 = vmatprep.subr.bf16.mxu0 0
      %1718 = vmatpush1.bf16.msra.mxu0 %v1696
      %1719 = vmatprep.subr.bf16.mxu0 0
      %1720 = vmatpush1.bf16.msra.mxu0 %v1697
      %1721 = vmatprep.subr.bf16.mxu0 0
      %1722 = vmatpush1.bf16.msra.mxu0 %v1698
      %1723 = vmatprep.subr.bf16.mxu0 0
      %1724 = vmatpush1.bf16.msra.mxu0 0
      %1725 = vmatprep.subr.bf16.mxu0 0
      %1726 = vmatpush1.bf16.msra.mxu0 0
      %1727 = vmatprep.subr.bf16.mxu0 0
      %1728 = vmatpush1.bf16.msra.mxu0 0
      %1729 = vmatprep.subr.bf16.mxu0 0
      %1730 = vmatpush1.bf16.msra.mxu0 0
      %1731 = vmatprep.subr.bf16.mxu0 0
      %1732 = vmatpush1.bf16.msra.mxu0 0
      %1733 = vmatprep.subr.bf16.mxu0 0
      %1734 = vmatpush1.bf16.msra.mxu0 0
      %1735 = vmatprep.subr.bf16.mxu0 0
      %1736 = vmatpush1.bf16.msra.mxu0 0
      %1737 = vmatprep.subr.bf16.mxu0 0
      %1738 = vmatpush1.bf16.msra.mxu0 0
      %1739 = vmatprep.mubr.bf16.mxu0 0
      %1740 = vmatmul.mubr.bf16.gmra.mrb[0].mxu0 %v1626
      %v1741 = vpop.f32.mrb[0].mxu0
      %v1742 = vadd.f32 0.0, %v1741
      %v1743 = vpop.f32.mrb[0].mxu0
      %v1744 = vpop.f32.mrb[0].mxu0
      %v1745 = vadd.f32 0.0, %v1744
      %v1746 = vpop.f32.mrb[0].mxu0
      %1747 = vmatprep.mubr.bf16.mxu0 0
      %1748 = vmatmul.mubr.bf16.gmra.mrb[0].mxu0 %v1627
      %v1749 = vpop.f32.mrb[0].mxu0
      %v1750 = vadd.f32 0.0, %v1749
      %v1751 = vpop.f32.mrb[0].mxu0
      %v1752 = vpop.f32.mrb[0].mxu0
      %v1753 = vadd.f32 0.0, %v1752
      %v1754 = vpop.f32.mrb[0].mxu0
      %1755 = vmatprep.mubr.bf16.mxu0 0
      %1756 = vmatmul.mubr.bf16.gmra.mrb[0].mxu0 %v1628
      %v1757 = vpop.f32.mrb[0].mxu0
      %v1758 = vadd.f32 0.0, %v1757
      %v1759 = vpop.f32.mrb[0].mxu0
      %v1760 = vpop.f32.mrb[0].mxu0
      %v1761 = vadd.f32 0.0, %v1760
      %v1762 = vpop.f32.mrb[0].mxu0
      %1763 = vmatprep.mubr.bf16.mxu0 0
      %1764 = vmatmul.mubr.bf16.gmra.mrb[0].mxu0 %v1629
      %v1765 = vpop.f32.mrb[0].mxu0
      %v1766 = vadd.f32 0.0, %v1765
      %v1767 = vpop.f32.mrb[0].mxu0
      %v1768 = vpop.f32.mrb[0].mxu0
      %v1769 = vadd.f32 0.0, %v1768
      %v1770 = vpop.f32.mrb[0].mxu0
      %1771 = vmatprep.mubr.bf16.mxu0 0
      %1772 = vmatmul.mubr.bf16.gmra.mrb[0].mxu0 %v1630
      %v1773 = vpop.f32.mrb[0].mxu0
      %v1774 = vadd.f32 0.0, %v1773
      %v1775 = vpop.f32.mrb[0].mxu0
      %v1776 = vpop.f32.mrb[0].mxu0
      %v1777 = vadd.f32 0.0, %v1776
      %v1778 = vpop.f32.mrb[0].mxu0
      %1779 = vmatprep.mubr.bf16.mxu0 0
      %1780 = vmatmul.mubr.bf16.gmra.mrb[0].mxu0 %v1631
      %v1781 = vpop.f32.mrb[0].mxu0
      %v1782 = vadd.f32 0.0, %v1781
      %v1783 = vpop.f32.mrb[0].mxu0
      %v1784 = vpop.f32.mrb[0].mxu0
      %v1785 = vadd.f32 0.0, %v1784
      %v1786 = vpop.f32.mrb[0].mxu0
      %1787 = vmatprep.mubr.bf16.mxu0 0
      %1788 = vmatmul.mubr.bf16.gmra.mrb[0].mxu0 %v1632
      %v1789 = vpop.f32.mrb[0].mxu0
      %v1790 = vadd.f32 0.0, %v1789
      %v1791 = vpop.f32.mrb[0].mxu0
      %v1792 = vpop.f32.mrb[0].mxu0
      %v1793 = vadd.f32 0.0, %v1792
      %v1794 = vpop.f32.mrb[0].mxu0
      %1795 = vmatprep.mubr.bf16.mxu0 0
      %1796 = vmatmul.mubr.bf16.gmra.mrb[0].mxu0 %v1633
      %v1797 = vpop.f32.mrb[0].mxu0
      %v1798 = vadd.f32 0.0, %v1797
      %v1799 = vpop.f32.mrb[0].mxu0
      %v1800 = vpop.f32.mrb[0].mxu0
      %v1801 = vadd.f32 0.0, %v1800
      %v1802 = vpop.f32.mrb[0].mxu0
      %1803 = vmatprep.mubr.bf16.mxu0 0
      %1804 = vmatmul.mubr.bf16.gmra.mrb[0].mxu0 %v1634
      %v1805 = vpop.f32.mrb[0].mxu0
      %v1806 = vadd.f32 0.0, %v1805
      %v1807 = vpop.f32.mrb[0].mxu0
      %v1808 = vpop.f32.mrb[0].mxu0
      %v1809 = vadd.f32 0.0, %v1808
      %v1810 = vpop.f32.mrb[0].mxu0
      %1811 = vmatprep.mubr.bf16.mxu0 0
      %1812 = vmatmul.mubr.bf16.gmra.mrb[0].mxu0 %v1635
      %v1813 = vpop.f32.mrb[0].mxu0
      %v1814 = vadd.f32 0.0, %v1813
      %v1815 = vpop.f32.mrb[0].mxu0
      %v1816 = vpop.f32.mrb[0].mxu0
      %v1817 = vadd.f32 0.0, %v1816
      %v1818 = vpop.f32.mrb[0].mxu0
      %1819 = vmatprep.mubr.bf16.mxu0 0
      %1820 = vmatmul.mubr.bf16.gmra.mrb[0].mxu0 %v1636
      %v1821 = vpop.f32.mrb[0].mxu0
      %v1822 = vadd.f32 0.0, %v1821
      %v1823 = vpop.f32.mrb[0].mxu0
      %v1824 = vpop.f32.mrb[0].mxu0
      %v1825 = vadd.f32 0.0, %v1824
      %v1826 = vpop.f32.mrb[0].mxu0
      %1827 = vmatprep.mubr.bf16.mxu0 0
      %1828 = vmatmul.mubr.bf16.gmra.mrb[0].mxu0 %v1637
      %v1829 = vpop.f32.mrb[0].mxu0
      %v1830 = vadd.f32 0.0, %v1829
      %v1831 = vpop.f32.mrb[0].mxu0
      %v1832 = vpop.f32.mrb[0].mxu0
      %v1833 = vadd.f32 0.0, %v1832
      %v1834 = vpop.f32.mrb[0].mxu0
      %1835 = vmatprep.mubr.bf16.mxu0 0
      %1836 = vmatmul.mubr.bf16.gmra.mrb[0].mxu0 %v1638
      %v1837 = vpop.f32.mrb[0].mxu0
      %v1838 = vadd.f32 0.0, %v1837
      %v1839 = vpop.f32.mrb[0].mxu0
      %v1840 = vpop.f32.mrb[0].mxu0
      %v1841 = vadd.f32 0.0, %v1840
      %v1842 = vpop.f32.mrb[0].mxu0
      %1843 = vmatprep.mubr.bf16.mxu0 0
      %1844 = vmatmul.mubr.bf16.gmra.mrb[0].mxu0 %v1639
      %v1845 = vpop.f32.mrb[0].mxu0
      %v1846 = vadd.f32 0.0, %v1845
      %v1847 = vpop.f32.mrb[0].mxu0
      %v1848 = vpop.f32.mrb[0].mxu0
      %v1849 = vadd.f32 0.0, %v1848
      %v1850 = vpop.f32.mrb[0].mxu0
      %1851 = vmatprep.mubr.bf16.mxu0 0
      %1852 = vmatmul.mubr.bf16.gmra.mrb[0].mxu0 %v1640
      %v1853 = vpop.f32.mrb[0].mxu0
      %v1854 = vadd.f32 0.0, %v1853
      %v1855 = vpop.f32.mrb[0].mxu0
      %v1856 = vpop.f32.mrb[0].mxu0
      %v1857 = vadd.f32 0.0, %v1856
      %v1858 = vpop.f32.mrb[0].mxu0
      %1859 = vmatprep.mubr.bf16.mxu0 0
      %1860 = vmatmul.mubr.bf16.gmra.mrb[0].mxu0 %v1641
      %v1861 = vpop.f32.mrb[0].mxu0
      %v1862 = vadd.f32 0.0, %v1861
      %v1863 = vpop.f32.mrb[0].mxu0
      %v1864 = vpop.f32.mrb[0].mxu0
      %v1865 = vadd.f32 0.0, %v1864
      %v1866 = vpop.f32.mrb[0].mxu0
      %1867 = vdwg.mxu0
      %v1868 = vadd.f32 %v1562, %v1742
      %v1869 = vadd.f32 %v1563, %v1745
      %v1870 = vadd.f32 %v1564, %v1750
      %v1871 = vadd.f32 %v1565, %v1753
      %v1872 = vadd.f32 %v1566, %v1758
      %v1873 = vadd.f32 %v1567, %v1761
      %v1874 = vadd.f32 %v1568, %v1766
      %v1875 = vadd.f32 %v1569, %v1769
      %v1876 = vadd.f32 %v1570, %v1774
      %v1877 = vadd.f32 %v1571, %v1777
      %v1878 = vadd.f32 %v1572, %v1782
      %v1879 = vadd.f32 %v1573, %v1785
      %v1880 = vadd.f32 %v1574, %v1790
      %v1881 = vadd.f32 %v1575, %v1793
      %v1882 = vadd.f32 %v1576, %v1798
      %v1883 = vadd.f32 %v1577, %v1801
      %v1884 = vadd.f32 %v1578, %v1806
      %v1885 = vadd.f32 %v1579, %v1809
      %v1886 = vadd.f32 %v1580, %v1814
      %v1887 = vadd.f32 %v1581, %v1817
      %v1888 = vadd.f32 %v1582, %v1822
      %v1889 = vadd.f32 %v1583, %v1825
      %v1890 = vadd.f32 %v1584, %v1830
      %v1891 = vadd.f32 %v1585, %v1833
      %v1892 = vadd.f32 %v1586, %v1838
      %v1893 = vadd.f32 %v1587, %v1841
      %v1894 = vadd.f32 %v1588, %v1846
      %v1895 = vadd.f32 %v1589, %v1849
      %v1896 = vadd.f32 %v1590, %v1854
      %v1897 = vadd.f32 %v1591, %v1857
      %v1898 = vadd.f32 %v1592, %v1862
      %v1899 = vadd.f32 %v1593, %v1865
      %v1900 = vld [vmem:[%s402 + $0x2] sm:$0xff]
      %v1901 = vld [vmem:[%s402 + $0xa] sm:$0xff]
      %v1902 = vld [vmem:[%s402 + $0x1a] sm:$0xff]
      %v1903 = vld [vmem:[%s402 + $0x22] sm:$0xff]
      %v1904 = vld [vmem:[%s402 + $0x32] sm:$0xff]
      %v1905 = vld [vmem:[%s402 + $0x3a] sm:$0xff]
      %v1906 = vld [vmem:[%s402 + $0x4a] sm:$0xff]
      %v1907 = vld [vmem:[%s402 + $0x52] sm:$0xff]
      %v1908 = vld [vmem:[%s402 + $0x62] sm:$0xff]
      %v1909 = vld [vmem:[%s402 + $0x6a] sm:$0xff]
      %v1910 = vld [vmem:[%s402 + $0x7a] sm:$0xff]
      %v1911 = vld [vmem:[%s402 + $0x82] sm:$0xff]
      %v1912 = vld [vmem:[%s402 + $0x92] sm:$0xff]
      %v1913 = vld [vmem:[%s402 + $0x9a] sm:$0xff]
      %v1914 = vld [vmem:[%s402 + $0xaa] sm:$0xff]
      %v1915 = vld [vmem:[%s402 + $0xb2] sm:$0xff]
      %v1916 = vld [vmem:[%s402 + $0xc2] sm:$0xff]
      %v1917 = vld [vmem:[%s402 + $0xca] sm:$0xff]
      %v1918 = vld [vmem:[%s402 + $0xda] sm:$0xff]
      %v1919 = vld [vmem:[%s402 + $0xe2] sm:$0xff]
      %v1920 = vld [vmem:[%s402 + $0xf2] sm:$0xff]
      %v1921 = vld [vmem:[%s402 + $0xfa] sm:$0xff]
      %v1922 = vld [vmem:[%s402 + $0x10a] sm:$0xff]
      %v1923 = vld [vmem:[%s402 + $0x112] sm:$0xff]
      %v1924 = vld [vmem:[%s402 + $0x122] sm:$0xff]
      %v1925 = vld [vmem:[%s402 + $0x12a] sm:$0xff]
      %v1926 = vld [vmem:[%s402 + $0x13a] sm:$0xff]
      %v1927 = vld [vmem:[%s402 + $0x142] sm:$0xff]
      %v1928 = vld [vmem:[%s402 + $0x152] sm:$0xff]
      %v1929 = vld [vmem:[%s402 + $0x15a] sm:$0xff]
      %v1930 = vld [vmem:[%s402 + $0x16a] sm:$0xff]
      %v1931 = vld [vmem:[%s402 + $0x172] sm:$0xff]
      %v1932 = vpack.c.bf16 %v1901, %v1900
      %v1933 = vpack.c.bf16 %v1903, %v1902
      %v1934 = vpack.c.bf16 %v1905, %v1904
      %v1935 = vpack.c.bf16 %v1907, %v1906
      %v1936 = vpack.c.bf16 %v1909, %v1908
      %v1937 = vpack.c.bf16 %v1911, %v1910
      %v1938 = vpack.c.bf16 %v1913, %v1912
      %v1939 = vpack.c.bf16 %v1915, %v1914
      %v1940 = vpack.c.bf16 %v1917, %v1916
      %v1941 = vpack.c.bf16 %v1919, %v1918
      %v1942 = vpack.c.bf16 %v1921, %v1920
      %v1943 = vpack.c.bf16 %v1923, %v1922
      %v1944 = vpack.c.bf16 %v1925, %v1924
      %v1945 = vpack.c.bf16 %v1927, %v1926
      %v1946 = vpack.c.bf16 %v1929, %v1928
      %v1947 = vpack.c.bf16 %v1931, %v1930
      %s1948 = scalar_lea.vmem %s1, 320
      %v1949 = vld [vmem:[%s1948] sm:$0xf]
      %v1950 = vld [vmem:[%s1948 + $0x4] sm:$0xf]
      %v1951 = vld [vmem:[%s1948 + $0x8] sm:$0xf]
      %v1952 = vld [vmem:[%s1948 + $0xc] sm:$0xf]
      %v1953 = vld [vmem:[%s1948 + $0x10] sm:$0xf]
      %v1954 = vld [vmem:[%s1948 + $0x14] sm:$0xf]
      %v1955 = vld [vmem:[%s1948 + $0x18] sm:$0xf]
      %v1956 = vld [vmem:[%s1948 + $0x1c] sm:$0xf]
      %v1957 = vld [vmem:[%s1948 + $0x20] sm:$0xf]
      %v1958 = vld [vmem:[%s1948 + $0x24] sm:$0xf]
      %v1959 = vld [vmem:[%s1948 + $0x28] sm:$0xf]
      %v1960 = vld [vmem:[%s1948 + $0x2c] sm:$0xf]
      %v1961 = vld [vmem:[%s1948 + $0x30] sm:$0xf]
      %v1962 = vld [vmem:[%s1948 + $0x34] sm:$0xf]
      %v1963 = vld [vmem:[%s1948 + $0x38] sm:$0xf]
      %v1964 = vld [vmem:[%s1948 + $0x3c] sm:$0xf]
      %v1981 = vunpack.c.l.b16 %v1949
      %v1982 = vunpack.c.l.b16 %v1950
      %v1983 = vunpack.c.l.b16 %v1951
      %v1984 = vunpack.c.l.b16 %v1952
      %v1985 = vunpack.c.l.b16 %v1953
      %v1986 = vunpack.c.l.b16 %v1954
      %v1987 = vunpack.c.l.b16 %v1955
      %v1988 = vunpack.c.l.b16 %v1956
      %v1989 = vunpack.c.l.b16 %v1957
      %v1990 = vunpack.c.l.b16 %v1958
      %v1991 = vunpack.c.l.b16 %v1959
      %v1992 = vunpack.c.l.b16 %v1960
      %v1993 = vunpack.c.l.b16 %v1961
      %v1994 = vunpack.c.l.b16 %v1962
      %v1995 = vunpack.c.l.b16 %v1963
      %v1996 = vunpack.c.l.b16 %v1964
      %v1997 = vpack.c.b16 %v1982, %v1981
      %v1998 = vpack.c.b16 %v1984, %v1983
      %v1999 = vpack.c.b16 %v1986, %v1985
      %v2000 = vpack.c.b16 %v1988, %v1987
      %v2001 = vpack.c.b16 %v1990, %v1989
      %v2002 = vpack.c.b16 %v1992, %v1991
      %v2003 = vpack.c.b16 %v1994, %v1993
      %v2004 = vpack.c.b16 %v1996, %v1995
      %2013 = vmatprep.subr.bf16.mxu0 0
      %2014 = vmatpush1.bf16.msra.mxu0 %v1997
      %2015 = vmatprep.subr.bf16.mxu0 0
      %2016 = vmatpush1.bf16.msra.mxu0 %v1998
      %2017 = vmatprep.subr.bf16.mxu0 0
      %2018 = vmatpush1.bf16.msra.mxu0 %v1999
      %2019 = vmatprep.subr.bf16.mxu0 0
      %2020 = vmatpush1.bf16.msra.mxu0 %v2000
      %2021 = vmatprep.subr.bf16.mxu0 0
      %2022 = vmatpush1.bf16.msra.mxu0 %v2001
      %2023 = vmatprep.subr.bf16.mxu0 0
      %2024 = vmatpush1.bf16.msra.mxu0 %v2002
      %2025 = vmatprep.subr.bf16.mxu0 0
      %2026 = vmatpush1.bf16.msra.mxu0 %v2003
      %2027 = vmatprep.subr.bf16.mxu0 0
      %2028 = vmatpush1.bf16.msra.mxu0 %v2004
      %2029 = vmatprep.subr.bf16.mxu0 0
      %2030 = vmatpush1.bf16.msra.mxu0 0
      %2031 = vmatprep.subr.bf16.mxu0 0
      %2032 = vmatpush1.bf16.msra.mxu0 0
      %2033 = vmatprep.subr.bf16.mxu0 0
      %2034 = vmatpush1.bf16.msra.mxu0 0
      %2035 = vmatprep.subr.bf16.mxu0 0
      %2036 = vmatpush1.bf16.msra.mxu0 0
      %2037 = vmatprep.subr.bf16.mxu0 0
      %2038 = vmatpush1.bf16.msra.mxu0 0
      %2039 = vmatprep.subr.bf16.mxu0 0
      %2040 = vmatpush1.bf16.msra.mxu0 0
      %2041 = vmatprep.subr.bf16.mxu0 0
      %2042 = vmatpush1.bf16.msra.mxu0 0
      %2043 = vmatprep.subr.bf16.mxu0 0
      %2044 = vmatpush1.bf16.msra.mxu0 0
      %2045 = vmatprep.mubr.bf16.mxu0 0
      %2046 = vmatmul.mubr.bf16.gmra.mrb[0].mxu0 %v1932
      %v2047 = vpop.f32.mrb[0].mxu0
      %v2048 = vadd.f32 0.0, %v2047
      %v2049 = vpop.f32.mrb[0].mxu0
      %v2050 = vpop.f32.mrb[0].mxu0
      %v2051 = vadd.f32 0.0, %v2050
      %v2052 = vpop.f32.mrb[0].mxu0
      %2053 = vmatprep.mubr.bf16.mxu0 0
      %2054 = vmatmul.mubr.bf16.gmra.mrb[0].mxu0 %v1933
      %v2055 = vpop.f32.mrb[0].mxu0
      %v2056 = vadd.f32 0.0, %v2055
      %v2057 = vpop.f32.mrb[0].mxu0
      %v2058 = vpop.f32.mrb[0].mxu0
      %v2059 = vadd.f32 0.0, %v2058
      %v2060 = vpop.f32.mrb[0].mxu0
      %2061 = vmatprep.mubr.bf16.mxu0 0
      %2062 = vmatmul.mubr.bf16.gmra.mrb[0].mxu0 %v1934
      %v2063 = vpop.f32.mrb[0].mxu0
      %v2064 = vadd.f32 0.0, %v2063
      %v2065 = vpop.f32.mrb[0].mxu0
      %v2066 = vpop.f32.mrb[0].mxu0
      %v2067 = vadd.f32 0.0, %v2066
      %v2068 = vpop.f32.mrb[0].mxu0
      %2069 = vmatprep.mubr.bf16.mxu0 0
      %2070 = vmatmul.mubr.bf16.gmra.mrb[0].mxu0 %v1935
      %v2071 = vpop.f32.mrb[0].mxu0
      %v2072 = vadd.f32 0.0, %v2071
      %v2073 = vpop.f32.mrb[0].mxu0
      %v2074 = vpop.f32.mrb[0].mxu0
      %v2075 = vadd.f32 0.0, %v2074
      %v2076 = vpop.f32.mrb[0].mxu0
      %2077 = vmatprep.mubr.bf16.mxu0 0
      %2078 = vmatmul.mubr.bf16.gmra.mrb[0].mxu0 %v1936
      %v2079 = vpop.f32.mrb[0].mxu0
      %v2080 = vadd.f32 0.0, %v2079
      %v2081 = vpop.f32.mrb[0].mxu0
      %v2082 = vpop.f32.mrb[0].mxu0
      %v2083 = vadd.f32 0.0, %v2082
      %v2084 = vpop.f32.mrb[0].mxu0
      %2085 = vmatprep.mubr.bf16.mxu0 0
      %2086 = vmatmul.mubr.bf16.gmra.mrb[0].mxu0 %v1937
      %v2087 = vpop.f32.mrb[0].mxu0
      %v2088 = vadd.f32 0.0, %v2087
      %v2089 = vpop.f32.mrb[0].mxu0
      %v2090 = vpop.f32.mrb[0].mxu0
      %v2091 = vadd.f32 0.0, %v2090
      %v2092 = vpop.f32.mrb[0].mxu0
      %2093 = vmatprep.mubr.bf16.mxu0 0
      %2094 = vmatmul.mubr.bf16.gmra.mrb[0].mxu0 %v1938
      %v2095 = vpop.f32.mrb[0].mxu0
      %v2096 = vadd.f32 0.0, %v2095
      %v2097 = vpop.f32.mrb[0].mxu0
      %v2098 = vpop.f32.mrb[0].mxu0
      %v2099 = vadd.f32 0.0, %v2098
      %v2100 = vpop.f32.mrb[0].mxu0
      %2101 = vmatprep.mubr.bf16.mxu0 0
      %2102 = vmatmul.mubr.bf16.gmra.mrb[0].mxu0 %v1939
      %v2103 = vpop.f32.mrb[0].mxu0
      %v2104 = vadd.f32 0.0, %v2103
      %v2105 = vpop.f32.mrb[0].mxu0
      %v2106 = vpop.f32.mrb[0].mxu0
      %v2107 = vadd.f32 0.0, %v2106
      %v2108 = vpop.f32.mrb[0].mxu0
      %2109 = vmatprep.mubr.bf16.mxu0 0
      %2110 = vmatmul.mubr.bf16.gmra.mrb[0].mxu0 %v1940
      %v2111 = vpop.f32.mrb[0].mxu0
      %v2112 = vadd.f32 0.0, %v2111
      %v2113 = vpop.f32.mrb[0].mxu0
      %v2114 = vpop.f32.mrb[0].mxu0
      %v2115 = vadd.f32 0.0, %v2114
      %v2116 = vpop.f32.mrb[0].mxu0
      %2117 = vmatprep.mubr.bf16.mxu0 0
      %2118 = vmatmul.mubr.bf16.gmra.mrb[0].mxu0 %v1941
      %v2119 = vpop.f32.mrb[0].mxu0
      %v2120 = vadd.f32 0.0, %v2119
      %v2121 = vpop.f32.mrb[0].mxu0
      %v2122 = vpop.f32.mrb[0].mxu0
      %v2123 = vadd.f32 0.0, %v2122
      %v2124 = vpop.f32.mrb[0].mxu0
      %2125 = vmatprep.mubr.bf16.mxu0 0
      %2126 = vmatmul.mubr.bf16.gmra.mrb[0].mxu0 %v1942
      %v2127 = vpop.f32.mrb[0].mxu0
      %v2128 = vadd.f32 0.0, %v2127
      %v2129 = vpop.f32.mrb[0].mxu0
      %v2130 = vpop.f32.mrb[0].mxu0
      %v2131 = vadd.f32 0.0, %v2130
      %v2132 = vpop.f32.mrb[0].mxu0
      %2133 = vmatprep.mubr.bf16.mxu0 0
      %2134 = vmatmul.mubr.bf16.gmra.mrb[0].mxu0 %v1943
      %v2135 = vpop.f32.mrb[0].mxu0
      %v2136 = vadd.f32 0.0, %v2135
      %v2137 = vpop.f32.mrb[0].mxu0
      %v2138 = vpop.f32.mrb[0].mxu0
      %v2139 = vadd.f32 0.0, %v2138
      %v2140 = vpop.f32.mrb[0].mxu0
      %2141 = vmatprep.mubr.bf16.mxu0 0
      %2142 = vmatmul.mubr.bf16.gmra.mrb[0].mxu0 %v1944
      %v2143 = vpop.f32.mrb[0].mxu0
      %v2144 = vadd.f32 0.0, %v2143
      %v2145 = vpop.f32.mrb[0].mxu0
      %v2146 = vpop.f32.mrb[0].mxu0
      %v2147 = vadd.f32 0.0, %v2146
      %v2148 = vpop.f32.mrb[0].mxu0
      %2149 = vmatprep.mubr.bf16.mxu0 0
      %2150 = vmatmul.mubr.bf16.gmra.mrb[0].mxu0 %v1945
      %v2151 = vpop.f32.mrb[0].mxu0
      %v2152 = vadd.f32 0.0, %v2151
      %v2153 = vpop.f32.mrb[0].mxu0
      %v2154 = vpop.f32.mrb[0].mxu0
      %v2155 = vadd.f32 0.0, %v2154
      %v2156 = vpop.f32.mrb[0].mxu0
      %2157 = vmatprep.mubr.bf16.mxu0 0
      %2158 = vmatmul.mubr.bf16.gmra.mrb[0].mxu0 %v1946
      %v2159 = vpop.f32.mrb[0].mxu0
      %v2160 = vadd.f32 0.0, %v2159
      %v2161 = vpop.f32.mrb[0].mxu0
      %v2162 = vpop.f32.mrb[0].mxu0
      %v2163 = vadd.f32 0.0, %v2162
      %v2164 = vpop.f32.mrb[0].mxu0
      %2165 = vmatprep.mubr.bf16.mxu0 0
      %2166 = vmatmul.mubr.bf16.gmra.mrb[0].mxu0 %v1947
      %v2167 = vpop.f32.mrb[0].mxu0
      %v2168 = vadd.f32 0.0, %v2167
      %v2169 = vpop.f32.mrb[0].mxu0
      %v2170 = vpop.f32.mrb[0].mxu0
      %v2171 = vadd.f32 0.0, %v2170
      %v2172 = vpop.f32.mrb[0].mxu0
      %2173 = vdwg.mxu0
      %v2174 = vadd.f32 %v1868, %v2048
      %v2175 = vadd.f32 %v1869, %v2051
      %v2176 = vadd.f32 %v1870, %v2056
      %v2177 = vadd.f32 %v1871, %v2059
      %v2178 = vadd.f32 %v1872, %v2064
      %v2179 = vadd.f32 %v1873, %v2067
      %v2180 = vadd.f32 %v1874, %v2072
      %v2181 = vadd.f32 %v1875, %v2075
      %v2182 = vadd.f32 %v1876, %v2080
      %v2183 = vadd.f32 %v1877, %v2083
      %v2184 = vadd.f32 %v1878, %v2088
      %v2185 = vadd.f32 %v1879, %v2091
      %v2186 = vadd.f32 %v1880, %v2096
      %v2187 = vadd.f32 %v1881, %v2099
      %v2188 = vadd.f32 %v1882, %v2104
      %v2189 = vadd.f32 %v1883, %v2107
      %v2190 = vadd.f32 %v1884, %v2112
      %v2191 = vadd.f32 %v1885, %v2115
      %v2192 = vadd.f32 %v1886, %v2120
      %v2193 = vadd.f32 %v1887, %v2123
      %v2194 = vadd.f32 %v1888, %v2128
      %v2195 = vadd.f32 %v1889, %v2131
      %v2196 = vadd.f32 %v1890, %v2136
      %v2197 = vadd.f32 %v1891, %v2139
      %v2198 = vadd.f32 %v1892, %v2144
      %v2199 = vadd.f32 %v1893, %v2147
      %v2200 = vadd.f32 %v1894, %v2152
      %v2201 = vadd.f32 %v1895, %v2155
      %v2202 = vadd.f32 %v1896, %v2160
      %v2203 = vadd.f32 %v1897, %v2163
      %v2204 = vadd.f32 %v1898, %v2168
      %v2205 = vadd.f32 %v1899, %v2171
      %s2206 = scalar_lea.vmem [#allocation2], 48
      %v2207 = vld [vmem:[%s2206] sm:$0xff]
      %v2208 = vld [vmem:[%s2206 + $0x8] sm:$0xff]
      %v2209 = vld [vmem:[%s2206 + $0x18] sm:$0xff]
      %v2210 = vld [vmem:[%s2206 + $0x20] sm:$0xff]
      %v2211 = vld [vmem:[%s2206 + $0x30] sm:$0xff]
      %v2212 = vld [vmem:[%s2206 + $0x38] sm:$0xff]
      %v2213 = vld [vmem:[%s2206 + $0x48] sm:$0xff]
      %v2214 = vld [vmem:[%s2206 + $0x50] sm:$0xff]
      %v2215 = vld [vmem:[%s2206 + $0x60] sm:$0xff]
      %v2216 = vld [vmem:[%s2206 + $0x68] sm:$0xff]
      %v2217 = vld [vmem:[%s2206 + $0x78] sm:$0xff]
      %v2218 = vld [vmem:[%s2206 + $0x80] sm:$0xff]
      %v2219 = vld [vmem:[%s2206 + $0x90] sm:$0xff]
      %v2220 = vld [vmem:[%s2206 + $0x98] sm:$0xff]
      %v2221 = vld [vmem:[%s2206 + $0xa8] sm:$0xff]
      %v2222 = vld [vmem:[%s2206 + $0xb0] sm:$0xff]
      %v2223 = vld [vmem:[%s2206 + $0xc0] sm:$0xff]
      %v2224 = vld [vmem:[%s2206 + $0xc8] sm:$0xff]
      %v2225 = vld [vmem:[%s2206 + $0xd8] sm:$0xff]
      %v2226 = vld [vmem:[%s2206 + $0xe0] sm:$0xff]
      %v2227 = vld [vmem:[%s2206 + $0xf0] sm:$0xff]
      %v2228 = vld [vmem:[%s2206 + $0xf8] sm:$0xff]
      %v2229 = vld [vmem:[%s2206 + $0x108] sm:$0xff]
      %v2230 = vld [vmem:[%s2206 + $0x110] sm:$0xff]
      %v2231 = vld [vmem:[%s2206 + $0x120] sm:$0xff]
      %v2232 = vld [vmem:[%s2206 + $0x128] sm:$0xff]
      %v2233 = vld [vmem:[%s2206 + $0x138] sm:$0xff]
      %v2234 = vld [vmem:[%s2206 + $0x140] sm:$0xff]
      %v2235 = vld [vmem:[%s2206 + $0x150] sm:$0xff]
      %v2236 = vld [vmem:[%s2206 + $0x158] sm:$0xff]
      %v2237 = vld [vmem:[%s2206 + $0x168] sm:$0xff]
      %v2238 = vld [vmem:[%s2206 + $0x170] sm:$0xff]
      %v2239 = vpack.c.bf16 %v2208, %v2207
      %v2240 = vpack.c.bf16 %v2210, %v2209
      %v2241 = vpack.c.bf16 %v2212, %v2211
      %v2242 = vpack.c.bf16 %v2214, %v2213
      %v2243 = vpack.c.bf16 %v2216, %v2215
      %v2244 = vpack.c.bf16 %v2218, %v2217
      %v2245 = vpack.c.bf16 %v2220, %v2219
      %v2246 = vpack.c.bf16 %v2222, %v2221
      %v2247 = vpack.c.bf16 %v2224, %v2223
      %v2248 = vpack.c.bf16 %v2226, %v2225
      %v2249 = vpack.c.bf16 %v2228, %v2227
      %v2250 = vpack.c.bf16 %v2230, %v2229
      %v2251 = vpack.c.bf16 %v2232, %v2231
      %v2252 = vpack.c.bf16 %v2234, %v2233
      %v2253 = vpack.c.bf16 %v2236, %v2235
      %v2254 = vpack.c.bf16 %v2238, %v2237
      %s2255 = scalar_lea.vmem %s1, 384
      %v2256 = vld [vmem:[%s2255] sm:$0xf]
      %v2257 = vld [vmem:[%s2255 + $0x4] sm:$0xf]
      %v2258 = vld [vmem:[%s2255 + $0x8] sm:$0xf]
      %v2259 = vld [vmem:[%s2255 + $0xc] sm:$0xf]
      %v2260 = vld [vmem:[%s2255 + $0x10] sm:$0xf]
      %v2261 = vld [vmem:[%s2255 + $0x14] sm:$0xf]
      %v2262 = vld [vmem:[%s2255 + $0x18] sm:$0xf]
      %v2263 = vld [vmem:[%s2255 + $0x1c] sm:$0xf]
      %v2264 = vld [vmem:[%s2255 + $0x20] sm:$0xf]
      %v2265 = vld [vmem:[%s2255 + $0x24] sm:$0xf]
      %v2266 = vld [vmem:[%s2255 + $0x28] sm:$0xf]
      %v2267 = vld [vmem:[%s2255 + $0x2c] sm:$0xf]
      %v2268 = vld [vmem:[%s2255 + $0x30] sm:$0xf]
      %v2269 = vld [vmem:[%s2255 + $0x34] sm:$0xf]
      %v2270 = vld [vmem:[%s2255 + $0x38] sm:$0xf]
      %v2271 = vld [vmem:[%s2255 + $0x3c] sm:$0xf]
      %v2288 = vunpack.c.l.b16 %v2256
      %v2289 = vunpack.c.l.b16 %v2257
      %v2290 = vunpack.c.l.b16 %v2258
      %v2291 = vunpack.c.l.b16 %v2259
      %v2292 = vunpack.c.l.b16 %v2260
      %v2293 = vunpack.c.l.b16 %v2261
      %v2294 = vunpack.c.l.b16 %v2262
      %v2295 = vunpack.c.l.b16 %v2263
      %v2296 = vunpack.c.l.b16 %v2264
      %v2297 = vunpack.c.l.b16 %v2265
      %v2298 = vunpack.c.l.b16 %v2266
      %v2299 = vunpack.c.l.b16 %v2267
      %v2300 = vunpack.c.l.b16 %v2268
      %v2301 = vunpack.c.l.b16 %v2269
      %v2302 = vunpack.c.l.b16 %v2270
      %v2303 = vunpack.c.l.b16 %v2271
      %v2304 = vpack.c.b16 %v2289, %v2288
      %v2305 = vpack.c.b16 %v2291, %v2290
      %v2306 = vpack.c.b16 %v2293, %v2292
      %v2307 = vpack.c.b16 %v2295, %v2294
      %v2308 = vpack.c.b16 %v2297, %v2296
      %v2309 = vpack.c.b16 %v2299, %v2298
      %v2310 = vpack.c.b16 %v2301, %v2300
      %v2311 = vpack.c.b16 %v2303, %v2302
      %2320 = vmatprep.subr.bf16.mxu0 0
      %2321 = vmatpush1.bf16.msra.mxu0 %v2304
      %2322 = vmatprep.subr.bf16.mxu0 0
      %2323 = vmatpush1.bf16.msra.mxu0 %v2305
      %2324 = vmatprep.subr.bf16.mxu0 0
      %2325 = vmatpush1.bf16.msra.mxu0 %v2306
      %2326 = vmatprep.subr.bf16.mxu0 0
      %2327 = vmatpush1.bf16.msra.mxu0 %v2307
      %2328 = vmatprep.subr.bf16.mxu0 0
      %2329 = vmatpush1.bf16.msra.mxu0 %v2308
      %2330 = vmatprep.subr.bf16.mxu0 0
      %2331 = vmatpush1.bf16.msra.mxu0 %v2309
      %2332 = vmatprep.subr.bf16.mxu0 0
      %2333 = vmatpush1.bf16.msra.mxu0 %v2310
      %2334 = vmatprep.subr.bf16.mxu0 0
      %2335 = vmatpush1.bf16.msra.mxu0 %v2311
      %2336 = vmatprep.subr.bf16.mxu0 0
      %2337 = vmatpush1.bf16.msra.mxu0 0
      %2338 = vmatprep.subr.bf16.mxu0 0
      %2339 = vmatpush1.bf16.msra.mxu0 0
      %2340 = vmatprep.subr.bf16.mxu0 0
      %2341 = vmatpush1.bf16.msra.mxu0 0
      %2342 = vmatprep.subr.bf16.mxu0 0
      %2343 = vmatpush1.bf16.msra.mxu0 0
      %2344 = vmatprep.subr.bf16.mxu0 0
      %2345 = vmatpush1.bf16.msra.mxu0 0
      %2346 = vmatprep.subr.bf16.mxu0 0
      %2347 = vmatpush1.bf16.msra.mxu0 0
      %2348 = vmatprep.subr.bf16.mxu0 0
      %2349 = vmatpush1.bf16.msra.mxu0 0
      %2350 = vmatprep.subr.bf16.mxu0 0
      %2351 = vmatpush1.bf16.msra.mxu0 0
      %2352 = vmatprep.mubr.bf16.mxu0 0
      %2353 = vmatmul.mubr.bf16.gmra.mrb[0].mxu0 %v2239
      %v2354 = vpop.f32.mrb[0].mxu0
      %v2355 = vadd.f32 0.0, %v2354
      %v2356 = vpop.f32.mrb[0].mxu0
      %v2357 = vpop.f32.mrb[0].mxu0
      %v2358 = vadd.f32 0.0, %v2357
      %v2359 = vpop.f32.mrb[0].mxu0
      %2360 = vmatprep.mubr.bf16.mxu0 0
      %2361 = vmatmul.mubr.bf16.gmra.mrb[0].mxu0 %v2240
      %v2362 = vpop.f32.mrb[0].mxu0
      %v2363 = vadd.f32 0.0, %v2362
      %v2364 = vpop.f32.mrb[0].mxu0
      %v2365 = vpop.f32.mrb[0].mxu0
      %v2366 = vadd.f32 0.0, %v2365
      %v2367 = vpop.f32.mrb[0].mxu0
      %2368 = vmatprep.mubr.bf16.mxu0 0
      %2369 = vmatmul.mubr.bf16.gmra.mrb[0].mxu0 %v2241
      %v2370 = vpop.f32.mrb[0].mxu0
      %v2371 = vadd.f32 0.0, %v2370
      %v2372 = vpop.f32.mrb[0].mxu0
      %v2373 = vpop.f32.mrb[0].mxu0
      %v2374 = vadd.f32 0.0, %v2373
      %v2375 = vpop.f32.mrb[0].mxu0
      %2376 = vmatprep.mubr.bf16.mxu0 0
      %2377 = vmatmul.mubr.bf16.gmra.mrb[0].mxu0 %v2242
      %v2378 = vpop.f32.mrb[0].mxu0
      %v2379 = vadd.f32 0.0, %v2378
      %v2380 = vpop.f32.mrb[0].mxu0
      %v2381 = vpop.f32.mrb[0].mxu0
      %v2382 = vadd.f32 0.0, %v2381
      %v2383 = vpop.f32.mrb[0].mxu0
      %2384 = vmatprep.mubr.bf16.mxu0 0
      %2385 = vmatmul.mubr.bf16.gmra.mrb[0].mxu0 %v2243
      %v2386 = vpop.f32.mrb[0].mxu0
      %v2387 = vadd.f32 0.0, %v2386
      %v2388 = vpop.f32.mrb[0].mxu0
      %v2389 = vpop.f32.mrb[0].mxu0
      %v2390 = vadd.f32 0.0, %v2389
      %v2391 = vpop.f32.mrb[0].mxu0
      %2392 = vmatprep.mubr.bf16.mxu0 0
      %2393 = vmatmul.mubr.bf16.gmra.mrb[0].mxu0 %v2244
      %v2394 = vpop.f32.mrb[0].mxu0
      %v2395 = vadd.f32 0.0, %v2394
      %v2396 = vpop.f32.mrb[0].mxu0
      %v2397 = vpop.f32.mrb[0].mxu0
      %v2398 = vadd.f32 0.0, %v2397
      %v2399 = vpop.f32.mrb[0].mxu0
      %2400 = vmatprep.mubr.bf16.mxu0 0
      %2401 = vmatmul.mubr.bf16.gmra.mrb[0].mxu0 %v2245
      %v2402 = vpop.f32.mrb[0].mxu0
      %v2403 = vadd.f32 0.0, %v2402
      %v2404 = vpop.f32.mrb[0].mxu0
      %v2405 = vpop.f32.mrb[0].mxu0
      %v2406 = vadd.f32 0.0, %v2405
      %v2407 = vpop.f32.mrb[0].mxu0
      %2408 = vmatprep.mubr.bf16.mxu0 0
      %2409 = vmatmul.mubr.bf16.gmra.mrb[0].mxu0 %v2246
      %v2410 = vpop.f32.mrb[0].mxu0
      %v2411 = vadd.f32 0.0, %v2410
      %v2412 = vpop.f32.mrb[0].mxu0
      %v2413 = vpop.f32.mrb[0].mxu0
      %v2414 = vadd.f32 0.0, %v2413
      %v2415 = vpop.f32.mrb[0].mxu0
      %2416 = vmatprep.mubr.bf16.mxu0 0
      %2417 = vmatmul.mubr.bf16.gmra.mrb[0].mxu0 %v2247
      %v2418 = vpop.f32.mrb[0].mxu0
      %v2419 = vadd.f32 0.0, %v2418
      %v2420 = vpop.f32.mrb[0].mxu0
      %v2421 = vpop.f32.mrb[0].mxu0
      %v2422 = vadd.f32 0.0, %v2421
      %v2423 = vpop.f32.mrb[0].mxu0
      %2424 = vmatprep.mubr.bf16.mxu0 0
      %2425 = vmatmul.mubr.bf16.gmra.mrb[0].mxu0 %v2248
      %v2426 = vpop.f32.mrb[0].mxu0
      %v2427 = vadd.f32 0.0, %v2426
      %v2428 = vpop.f32.mrb[0].mxu0
      %v2429 = vpop.f32.mrb[0].mxu0
      %v2430 = vadd.f32 0.0, %v2429
      %v2431 = vpop.f32.mrb[0].mxu0
      %2432 = vmatprep.mubr.bf16.mxu0 0
      %2433 = vmatmul.mubr.bf16.gmra.mrb[0].mxu0 %v2249
      %v2434 = vpop.f32.mrb[0].mxu0
      %v2435 = vadd.f32 0.0, %v2434
      %v2436 = vpop.f32.mrb[0].mxu0
      %v2437 = vpop.f32.mrb[0].mxu0
      %v2438 = vadd.f32 0.0, %v2437
      %v2439 = vpop.f32.mrb[0].mxu0
      %2440 = vmatprep.mubr.bf16.mxu0 0
      %2441 = vmatmul.mubr.bf16.gmra.mrb[0].mxu0 %v2250
      %v2442 = vpop.f32.mrb[0].mxu0
      %v2443 = vadd.f32 0.0, %v2442
      %v2444 = vpop.f32.mrb[0].mxu0
      %v2445 = vpop.f32.mrb[0].mxu0
      %v2446 = vadd.f32 0.0, %v2445
      %v2447 = vpop.f32.mrb[0].mxu0
      %2448 = vmatprep.mubr.bf16.mxu0 0
      %2449 = vmatmul.mubr.bf16.gmra.mrb[0].mxu0 %v2251
      %v2450 = vpop.f32.mrb[0].mxu0
      %v2451 = vadd.f32 0.0, %v2450
      %v2452 = vpop.f32.mrb[0].mxu0
      %v2453 = vpop.f32.mrb[0].mxu0
      %v2454 = vadd.f32 0.0, %v2453
      %v2455 = vpop.f32.mrb[0].mxu0
      %2456 = vmatprep.mubr.bf16.mxu0 0
      %2457 = vmatmul.mubr.bf16.gmra.mrb[0].mxu0 %v2252
      %v2458 = vpop.f32.mrb[0].mxu0
      %v2459 = vadd.f32 0.0, %v2458
      %v2460 = vpop.f32.mrb[0].mxu0
      %v2461 = vpop.f32.mrb[0].mxu0
      %v2462 = vadd.f32 0.0, %v2461
      %v2463 = vpop.f32.mrb[0].mxu0
      %2464 = vmatprep.mubr.bf16.mxu0 0
      %2465 = vmatmul.mubr.bf16.gmra.mrb[0].mxu0 %v2253
      %v2466 = vpop.f32.mrb[0].mxu0
      %v2467 = vadd.f32 0.0, %v2466
      %v2468 = vpop.f32.mrb[0].mxu0
      %v2469 = vpop.f32.mrb[0].mxu0
      %v2470 = vadd.f32 0.0, %v2469
      %v2471 = vpop.f32.mrb[0].mxu0
      %2472 = vmatprep.mubr.bf16.mxu0 0
      %2473 = vmatmul.mubr.bf16.gmra.mrb[0].mxu0 %v2254
      %v2474 = vpop.f32.mrb[0].mxu0
      %v2475 = vadd.f32 0.0, %v2474
      %v2476 = vpop.f32.mrb[0].mxu0
      %v2477 = vpop.f32.mrb[0].mxu0
      %v2478 = vadd.f32 0.0, %v2477
      %v2479 = vpop.f32.mrb[0].mxu0
      %2480 = vdwg.mxu0
      %v2481 = vadd.f32 %v2174, %v2355
      %v2482 = vadd.f32 %v2175, %v2358
      %v2483 = vadd.f32 %v2176, %v2363
      %v2484 = vadd.f32 %v2177, %v2366
      %v2485 = vadd.f32 %v2178, %v2371
      %v2486 = vadd.f32 %v2179, %v2374
      %v2487 = vadd.f32 %v2180, %v2379
      %v2488 = vadd.f32 %v2181, %v2382
      %v2489 = vadd.f32 %v2182, %v2387
      %v2490 = vadd.f32 %v2183, %v2390
      %v2491 = vadd.f32 %v2184, %v2395
      %v2492 = vadd.f32 %v2185, %v2398
      %v2493 = vadd.f32 %v2186, %v2403
      %v2494 = vadd.f32 %v2187, %v2406
      %v2495 = vadd.f32 %v2188, %v2411
      %v2496 = vadd.f32 %v2189, %v2414
      %v2497 = vadd.f32 %v2190, %v2419
      %v2498 = vadd.f32 %v2191, %v2422
      %v2499 = vadd.f32 %v2192, %v2427
      %v2500 = vadd.f32 %v2193, %v2430
      %v2501 = vadd.f32 %v2194, %v2435
      %v2502 = vadd.f32 %v2195, %v2438
      %v2503 = vadd.f32 %v2196, %v2443
      %v2504 = vadd.f32 %v2197, %v2446
      %v2505 = vadd.f32 %v2198, %v2451
      %v2506 = vadd.f32 %v2199, %v2454
      %v2507 = vadd.f32 %v2200, %v2459
      %v2508 = vadd.f32 %v2201, %v2462
      %v2509 = vadd.f32 %v2202, %v2467
      %v2510 = vadd.f32 %v2203, %v2470
      %v2511 = vadd.f32 %v2204, %v2475
      %v2512 = vadd.f32 %v2205, %v2478
      %v2513 = vld [vmem:[%s2206 + $0x1] sm:$0xff]
      %v2514 = vld [vmem:[%s2206 + $0x9] sm:$0xff]
      %v2515 = vld [vmem:[%s2206 + $0x19] sm:$0xff]
      %v2516 = vld [vmem:[%s2206 + $0x21] sm:$0xff]
      %v2517 = vld [vmem:[%s2206 + $0x31] sm:$0xff]
      %v2518 = vld [vmem:[%s2206 + $0x39] sm:$0xff]
      %v2519 = vld [vmem:[%s2206 + $0x49] sm:$0xff]
      %v2520 = vld [vmem:[%s2206 + $0x51] sm:$0xff]
      %v2521 = vld [vmem:[%s2206 + $0x61] sm:$0xff]
      %v2522 = vld [vmem:[%s2206 + $0x69] sm:$0xff]
      %v2523 = vld [vmem:[%s2206 + $0x79] sm:$0xff]
      %v2524 = vld [vmem:[%s2206 + $0x81] sm:$0xff]
      %v2525 = vld [vmem:[%s2206 + $0x91] sm:$0xff]
      %v2526 = vld [vmem:[%s2206 + $0x99] sm:$0xff]
      %v2527 = vld [vmem:[%s2206 + $0xa9] sm:$0xff]
      %v2528 = vld [vmem:[%s2206 + $0xb1] sm:$0xff]
      %v2529 = vld [vmem:[%s2206 + $0xc1] sm:$0xff]
      %v2530 = vld [vmem:[%s2206 + $0xc9] sm:$0xff]
      %v2531 = vld [vmem:[%s2206 + $0xd9] sm:$0xff]
      %v2532 = vld [vmem:[%s2206 + $0xe1] sm:$0xff]
      %v2533 = vld [vmem:[%s2206 + $0xf1] sm:$0xff]
      %v2534 = vld [vmem:[%s2206 + $0xf9] sm:$0xff]
      %v2535 = vld [vmem:[%s2206 + $0x109] sm:$0xff]
      %v2536 = vld [vmem:[%s2206 + $0x111] sm:$0xff]
      %v2537 = vld [vmem:[%s2206 + $0x121] sm:$0xff]
      %v2538 = vld [vmem:[%s2206 + $0x129] sm:$0xff]
      %v2539 = vld [vmem:[%s2206 + $0x139] sm:$0xff]
      %v2540 = vld [vmem:[%s2206 + $0x141] sm:$0xff]
      %v2541 = vld [vmem:[%s2206 + $0x151] sm:$0xff]
      %v2542 = vld [vmem:[%s2206 + $0x159] sm:$0xff]
      %v2543 = vld [vmem:[%s2206 + $0x169] sm:$0xff]
      %v2544 = vld [vmem:[%s2206 + $0x171] sm:$0xff]
      %v2545 = vpack.c.bf16 %v2514, %v2513
      %v2546 = vpack.c.bf16 %v2516, %v2515
      %v2547 = vpack.c.bf16 %v2518, %v2517
      %v2548 = vpack.c.bf16 %v2520, %v2519
      %v2549 = vpack.c.bf16 %v2522, %v2521
      %v2550 = vpack.c.bf16 %v2524, %v2523
      %v2551 = vpack.c.bf16 %v2526, %v2525
      %v2552 = vpack.c.bf16 %v2528, %v2527
      %v2553 = vpack.c.bf16 %v2530, %v2529
      %v2554 = vpack.c.bf16 %v2532, %v2531
      %v2555 = vpack.c.bf16 %v2534, %v2533
      %v2556 = vpack.c.bf16 %v2536, %v2535
      %v2557 = vpack.c.bf16 %v2538, %v2537
      %v2558 = vpack.c.bf16 %v2540, %v2539
      %v2559 = vpack.c.bf16 %v2542, %v2541
      %v2560 = vpack.c.bf16 %v2544, %v2543
      %s2561 = scalar_lea.vmem %s1, 448
      %v2562 = vld [vmem:[%s2561] sm:$0xf]
      %v2563 = vld [vmem:[%s2561 + $0x4] sm:$0xf]
      %v2564 = vld [vmem:[%s2561 + $0x8] sm:$0xf]
      %v2565 = vld [vmem:[%s2561 + $0xc] sm:$0xf]
      %v2566 = vld [vmem:[%s2561 + $0x10] sm:$0xf]
      %v2567 = vld [vmem:[%s2561 + $0x14] sm:$0xf]
      %v2568 = vld [vmem:[%s2561 + $0x18] sm:$0xf]
      %v2569 = vld [vmem:[%s2561 + $0x1c] sm:$0xf]
      %v2570 = vld [vmem:[%s2561 + $0x20] sm:$0xf]
      %v2571 = vld [vmem:[%s2561 + $0x24] sm:$0xf]
      %v2572 = vld [vmem:[%s2561 + $0x28] sm:$0xf]
      %v2573 = vld [vmem:[%s2561 + $0x2c] sm:$0xf]
      %v2574 = vld [vmem:[%s2561 + $0x30] sm:$0xf]
      %v2575 = vld [vmem:[%s2561 + $0x34] sm:$0xf]
      %v2576 = vld [vmem:[%s2561 + $0x38] sm:$0xf]
      %v2577 = vld [vmem:[%s2561 + $0x3c] sm:$0xf]
      %v2594 = vunpack.c.l.b16 %v2562
      %v2595 = vunpack.c.l.b16 %v2563
      %v2596 = vunpack.c.l.b16 %v2564
      %v2597 = vunpack.c.l.b16 %v2565
      %v2598 = vunpack.c.l.b16 %v2566
      %v2599 = vunpack.c.l.b16 %v2567
      %v2600 = vunpack.c.l.b16 %v2568
      %v2601 = vunpack.c.l.b16 %v2569
      %v2602 = vunpack.c.l.b16 %v2570
      %v2603 = vunpack.c.l.b16 %v2571
      %v2604 = vunpack.c.l.b16 %v2572
      %v2605 = vunpack.c.l.b16 %v2573
      %v2606 = vunpack.c.l.b16 %v2574
      %v2607 = vunpack.c.l.b16 %v2575
      %v2608 = vunpack.c.l.b16 %v2576
      %v2609 = vunpack.c.l.b16 %v2577
      %v2610 = vpack.c.b16 %v2595, %v2594
      %v2611 = vpack.c.b16 %v2597, %v2596
      %v2612 = vpack.c.b16 %v2599, %v2598
      %v2613 = vpack.c.b16 %v2601, %v2600
      %v2614 = vpack.c.b16 %v2603, %v2602
      %v2615 = vpack.c.b16 %v2605, %v2604
      %v2616 = vpack.c.b16 %v2607, %v2606
      %v2617 = vpack.c.b16 %v2609, %v2608
      %2626 = vmatprep.subr.bf16.mxu0 0
      %2627 = vmatpush1.bf16.msra.mxu0 %v2610
      %2628 = vmatprep.subr.bf16.mxu0 0
      %2629 = vmatpush1.bf16.msra.mxu0 %v2611
      %2630 = vmatprep.subr.bf16.mxu0 0
      %2631 = vmatpush1.bf16.msra.mxu0 %v2612
      %2632 = vmatprep.subr.bf16.mxu0 0
      %2633 = vmatpush1.bf16.msra.mxu0 %v2613
      %2634 = vmatprep.subr.bf16.mxu0 0
      %2635 = vmatpush1.bf16.msra.mxu0 %v2614
      %2636 = vmatprep.subr.bf16.mxu0 0
      %2637 = vmatpush1.bf16.msra.mxu0 %v2615
      %2638 = vmatprep.subr.bf16.mxu0 0
      %2639 = vmatpush1.bf16.msra.mxu0 %v2616
      %2640 = vmatprep.subr.bf16.mxu0 0
      %2641 = vmatpush1.bf16.msra.mxu0 %v2617
      %2642 = vmatprep.subr.bf16.mxu0 0
      %2643 = vmatpush1.bf16.msra.mxu0 0
      %2644 = vmatprep.subr.bf16.mxu0 0
      %2645 = vmatpush1.bf16.msra.mxu0 0
      %2646 = vmatprep.subr.bf16.mxu0 0
      %2647 = vmatpush1.bf16.msra.mxu0 0
      %2648 = vmatprep.subr.bf16.mxu0 0
      %2649 = vmatpush1.bf16.msra.mxu0 0
      %2650 = vmatprep.subr.bf16.mxu0 0
      %2651 = vmatpush1.bf16.msra.mxu0 0
      %2652 = vmatprep.subr.bf16.mxu0 0
      %2653 = vmatpush1.bf16.msra.mxu0 0
      %2654 = vmatprep.subr.bf16.mxu0 0
      %2655 = vmatpush1.bf16.msra.mxu0 0
      %2656 = vmatprep.subr.bf16.mxu0 0
      %2657 = vmatpush1.bf16.msra.mxu0 0
      %2658 = vmatprep.mubr.bf16.mxu0 0
      %2659 = vmatmul.mubr.bf16.gmra.mrb[0].mxu0 %v2545
      %v2660 = vpop.f32.mrb[0].mxu0
      %v2661 = vadd.f32 0.0, %v2660
      %v2662 = vpop.f32.mrb[0].mxu0
      %v2663 = vpop.f32.mrb[0].mxu0
      %v2664 = vadd.f32 0.0, %v2663
      %v2665 = vpop.f32.mrb[0].mxu0
      %2666 = vmatprep.mubr.bf16.mxu0 0
      %2667 = vmatmul.mubr.bf16.gmra.mrb[0].mxu0 %v2546
      %v2668 = vpop.f32.mrb[0].mxu0
      %v2669 = vadd.f32 0.0, %v2668
      %v2670 = vpop.f32.mrb[0].mxu0
      %v2671 = vpop.f32.mrb[0].mxu0
      %v2672 = vadd.f32 0.0, %v2671
      %v2673 = vpop.f32.mrb[0].mxu0
      %2674 = vmatprep.mubr.bf16.mxu0 0
      %2675 = vmatmul.mubr.bf16.gmra.mrb[0].mxu0 %v2547
      %v2676 = vpop.f32.mrb[0].mxu0
      %v2677 = vadd.f32 0.0, %v2676
      %v2678 = vpop.f32.mrb[0].mxu0
      %v2679 = vpop.f32.mrb[0].mxu0
      %v2680 = vadd.f32 0.0, %v2679
      %v2681 = vpop.f32.mrb[0].mxu0
      %2682 = vmatprep.mubr.bf16.mxu0 0
      %2683 = vmatmul.mubr.bf16.gmra.mrb[0].mxu0 %v2548
      %v2684 = vpop.f32.mrb[0].mxu0
      %v2685 = vadd.f32 0.0, %v2684
      %v2686 = vpop.f32.mrb[0].mxu0
      %v2687 = vpop.f32.mrb[0].mxu0
      %v2688 = vadd.f32 0.0, %v2687
      %v2689 = vpop.f32.mrb[0].mxu0
      %2690 = vmatprep.mubr.bf16.mxu0 0
      %2691 = vmatmul.mubr.bf16.gmra.mrb[0].mxu0 %v2549
      %v2692 = vpop.f32.mrb[0].mxu0
      %v2693 = vadd.f32 0.0, %v2692
      %v2694 = vpop.f32.mrb[0].mxu0
      %v2695 = vpop.f32.mrb[0].mxu0
      %v2696 = vadd.f32 0.0, %v2695
      %v2697 = vpop.f32.mrb[0].mxu0
      %2698 = vmatprep.mubr.bf16.mxu0 0
      %2699 = vmatmul.mubr.bf16.gmra.mrb[0].mxu0 %v2550
      %v2700 = vpop.f32.mrb[0].mxu0
      %v2701 = vadd.f32 0.0, %v2700
      %v2702 = vpop.f32.mrb[0].mxu0
      %v2703 = vpop.f32.mrb[0].mxu0
      %v2704 = vadd.f32 0.0, %v2703
      %v2705 = vpop.f32.mrb[0].mxu0
      %2706 = vmatprep.mubr.bf16.mxu0 0
      %2707 = vmatmul.mubr.bf16.gmra.mrb[0].mxu0 %v2551
      %v2708 = vpop.f32.mrb[0].mxu0
      %v2709 = vadd.f32 0.0, %v2708
      %v2710 = vpop.f32.mrb[0].mxu0
      %v2711 = vpop.f32.mrb[0].mxu0
      %v2712 = vadd.f32 0.0, %v2711
      %v2713 = vpop.f32.mrb[0].mxu0
      %2714 = vmatprep.mubr.bf16.mxu0 0
      %2715 = vmatmul.mubr.bf16.gmra.mrb[0].mxu0 %v2552
      %v2716 = vpop.f32.mrb[0].mxu0
      %v2717 = vadd.f32 0.0, %v2716
      %v2718 = vpop.f32.mrb[0].mxu0
      %v2719 = vpop.f32.mrb[0].mxu0
      %v2720 = vadd.f32 0.0, %v2719
      %v2721 = vpop.f32.mrb[0].mxu0
      %2722 = vmatprep.mubr.bf16.mxu0 0
      %2723 = vmatmul.mubr.bf16.gmra.mrb[0].mxu0 %v2553
      %v2724 = vpop.f32.mrb[0].mxu0
      %v2725 = vadd.f32 0.0, %v2724
      %v2726 = vpop.f32.mrb[0].mxu0
      %v2727 = vpop.f32.mrb[0].mxu0
      %v2728 = vadd.f32 0.0, %v2727
      %v2729 = vpop.f32.mrb[0].mxu0
      %2730 = vmatprep.mubr.bf16.mxu0 0
      %2731 = vmatmul.mubr.bf16.gmra.mrb[0].mxu0 %v2554
      %v2732 = vpop.f32.mrb[0].mxu0
      %v2733 = vadd.f32 0.0, %v2732
      %v2734 = vpop.f32.mrb[0].mxu0
      %v2735 = vpop.f32.mrb[0].mxu0
      %v2736 = vadd.f32 0.0, %v2735
      %v2737 = vpop.f32.mrb[0].mxu0
      %2738 = vmatprep.mubr.bf16.mxu0 0
      %2739 = vmatmul.mubr.bf16.gmra.mrb[0].mxu0 %v2555
      %v2740 = vpop.f32.mrb[0].mxu0
      %v2741 = vadd.f32 0.0, %v2740
      %v2742 = vpop.f32.mrb[0].mxu0
      %v2743 = vpop.f32.mrb[0].mxu0
      %v2744 = vadd.f32 0.0, %v2743
      %v2745 = vpop.f32.mrb[0].mxu0
      %2746 = vmatprep.mubr.bf16.mxu0 0
      %2747 = vmatmul.mubr.bf16.gmra.mrb[0].mxu0 %v2556
      %v2748 = vpop.f32.mrb[0].mxu0
      %v2749 = vadd.f32 0.0, %v2748
      %v2750 = vpop.f32.mrb[0].mxu0
      %v2751 = vpop.f32.mrb[0].mxu0
      %v2752 = vadd.f32 0.0, %v2751
      %v2753 = vpop.f32.mrb[0].mxu0
      %2754 = vmatprep.mubr.bf16.mxu0 0
      %2755 = vmatmul.mubr.bf16.gmra.mrb[0].mxu0 %v2557
      %v2756 = vpop.f32.mrb[0].mxu0
      %v2757 = vadd.f32 0.0, %v2756
      %v2758 = vpop.f32.mrb[0].mxu0
      %v2759 = vpop.f32.mrb[0].mxu0
      %v2760 = vadd.f32 0.0, %v2759
      %v2761 = vpop.f32.mrb[0].mxu0
      %2762 = vmatprep.mubr.bf16.mxu0 0
      %2763 = vmatmul.mubr.bf16.gmra.mrb[0].mxu0 %v2558
      %v2764 = vpop.f32.mrb[0].mxu0
      %v2765 = vadd.f32 0.0, %v2764
      %v2766 = vpop.f32.mrb[0].mxu0
      %v2767 = vpop.f32.mrb[0].mxu0
      %v2768 = vadd.f32 0.0, %v2767
      %v2769 = vpop.f32.mrb[0].mxu0
      %2770 = vmatprep.mubr.bf16.mxu0 0
      %2771 = vmatmul.mubr.bf16.gmra.mrb[0].mxu0 %v2559
      %v2772 = vpop.f32.mrb[0].mxu0
      %v2773 = vadd.f32 0.0, %v2772
      %v2774 = vpop.f32.mrb[0].mxu0
      %v2775 = vpop.f32.mrb[0].mxu0
      %v2776 = vadd.f32 0.0, %v2775
      %v2777 = vpop.f32.mrb[0].mxu0
      %2778 = vmatprep.mubr.bf16.mxu0 0
      %2779 = vmatmul.mubr.bf16.gmra.mrb[0].mxu0 %v2560
      %v2780 = vpop.f32.mrb[0].mxu0
      %v2781 = vadd.f32 0.0, %v2780
      %v2782 = vpop.f32.mrb[0].mxu0
      %v2783 = vpop.f32.mrb[0].mxu0
      %v2784 = vadd.f32 0.0, %v2783
      %v2785 = vpop.f32.mrb[0].mxu0
      %2786 = vdwg.mxu0
      %v2787 = vadd.f32 %v2481, %v2661
      %v2788 = vadd.f32 %v2482, %v2664
      %v2789 = vadd.f32 %v2483, %v2669
      %v2790 = vadd.f32 %v2484, %v2672
      %v2791 = vadd.f32 %v2485, %v2677
      %v2792 = vadd.f32 %v2486, %v2680
      %v2793 = vadd.f32 %v2487, %v2685
      %v2794 = vadd.f32 %v2488, %v2688
      %v2795 = vadd.f32 %v2489, %v2693
      %v2796 = vadd.f32 %v2490, %v2696
      %v2797 = vadd.f32 %v2491, %v2701
      %v2798 = vadd.f32 %v2492, %v2704
      %v2799 = vadd.f32 %v2493, %v2709
      %v2800 = vadd.f32 %v2494, %v2712
      %v2801 = vadd.f32 %v2495, %v2717
      %v2802 = vadd.f32 %v2496, %v2720
      %v2803 = vadd.f32 %v2497, %v2725
      %v2804 = vadd.f32 %v2498, %v2728
      %v2805 = vadd.f32 %v2499, %v2733
      %v2806 = vadd.f32 %v2500, %v2736
      %v2807 = vadd.f32 %v2501, %v2741
      %v2808 = vadd.f32 %v2502, %v2744
      %v2809 = vadd.f32 %v2503, %v2749
      %v2810 = vadd.f32 %v2504, %v2752
      %v2811 = vadd.f32 %v2505, %v2757
      %v2812 = vadd.f32 %v2506, %v2760
      %v2813 = vadd.f32 %v2507, %v2765
      %v2814 = vadd.f32 %v2508, %v2768
      %v2815 = vadd.f32 %v2509, %v2773
      %v2816 = vadd.f32 %v2510, %v2776
      %v2817 = vadd.f32 %v2511, %v2781
      %v2818 = vadd.f32 %v2512, %v2784
      %v2819 = vld [vmem:[%s2206 + $0x2] sm:$0xff]
      %v2820 = vld [vmem:[%s2206 + $0xa] sm:$0xff]
      %v2821 = vld [vmem:[%s2206 + $0x1a] sm:$0xff]
      %v2822 = vld [vmem:[%s2206 + $0x22] sm:$0xff]
      %v2823 = vld [vmem:[%s2206 + $0x32] sm:$0xff]
      %v2824 = vld [vmem:[%s2206 + $0x3a] sm:$0xff]
      %v2825 = vld [vmem:[%s2206 + $0x4a] sm:$0xff]
      %v2826 = vld [vmem:[%s2206 + $0x52] sm:$0xff]
      %v2827 = vld [vmem:[%s2206 + $0x62] sm:$0xff]
      %v2828 = vld [vmem:[%s2206 + $0x6a] sm:$0xff]
      %v2829 = vld [vmem:[%s2206 + $0x7a] sm:$0xff]
      %v2830 = vld [vmem:[%s2206 + $0x82] sm:$0xff]
      %v2831 = vld [vmem:[%s2206 + $0x92] sm:$0xff]
      %v2832 = vld [vmem:[%s2206 + $0x9a] sm:$0xff]
      %v2833 = vld [vmem:[%s2206 + $0xaa] sm:$0xff]
      %v2834 = vld [vmem:[%s2206 + $0xb2] sm:$0xff]
      %v2835 = vld [vmem:[%s2206 + $0xc2] sm:$0xff]
      %v2836 = vld [vmem:[%s2206 + $0xca] sm:$0xff]
      %v2837 = vld [vmem:[%s2206 + $0xda] sm:$0xff]
      %v2838 = vld [vmem:[%s2206 + $0xe2] sm:$0xff]
      %v2839 = vld [vmem:[%s2206 + $0xf2] sm:$0xff]
      %v2840 = vld [vmem:[%s2206 + $0xfa] sm:$0xff]
      %v2841 = vld [vmem:[%s2206 + $0x10a] sm:$0xff]
      %v2842 = vld [vmem:[%s2206 + $0x112] sm:$0xff]
      %v2843 = vld [vmem:[%s2206 + $0x122] sm:$0xff]
      %v2844 = vld [vmem:[%s2206 + $0x12a] sm:$0xff]
      %v2845 = vld [vmem:[%s2206 + $0x13a] sm:$0xff]
      %v2846 = vld [vmem:[%s2206 + $0x142] sm:$0xff]
      %v2847 = vld [vmem:[%s2206 + $0x152] sm:$0xff]
      %v2848 = vld [vmem:[%s2206 + $0x15a] sm:$0xff]
      %v2849 = vld [vmem:[%s2206 + $0x16a] sm:$0xff]
      %v2850 = vld [vmem:[%s2206 + $0x172] sm:$0xff]
      %v2851 = vpack.c.bf16 %v2820, %v2819
      %v2852 = vpack.c.bf16 %v2822, %v2821
      %v2853 = vpack.c.bf16 %v2824, %v2823
      %v2854 = vpack.c.bf16 %v2826, %v2825
      %v2855 = vpack.c.bf16 %v2828, %v2827
      %v2856 = vpack.c.bf16 %v2830, %v2829
      %v2857 = vpack.c.bf16 %v2832, %v2831
      %v2858 = vpack.c.bf16 %v2834, %v2833
      %v2859 = vpack.c.bf16 %v2836, %v2835
      %v2860 = vpack.c.bf16 %v2838, %v2837
      %v2861 = vpack.c.bf16 %v2840, %v2839
      %v2862 = vpack.c.bf16 %v2842, %v2841
      %v2863 = vpack.c.bf16 %v2844, %v2843
      %v2864 = vpack.c.bf16 %v2846, %v2845
      %v2865 = vpack.c.bf16 %v2848, %v2847
      %v2866 = vpack.c.bf16 %v2850, %v2849
      %s2867 = scalar_lea.vmem %s1, 512
      %v2868 = vld [vmem:[%s2867] sm:$0xf]
      %v2869 = vld [vmem:[%s2867 + $0x4] sm:$0xf]
      %v2870 = vld [vmem:[%s2867 + $0x8] sm:$0xf]
      %v2871 = vld [vmem:[%s2867 + $0xc] sm:$0xf]
      %v2872 = vld [vmem:[%s2867 + $0x10] sm:$0xf]
      %v2873 = vld [vmem:[%s2867 + $0x14] sm:$0xf]
      %v2874 = vld [vmem:[%s2867 + $0x18] sm:$0xf]
      %v2875 = vld [vmem:[%s2867 + $0x1c] sm:$0xf]
      %v2876 = vld [vmem:[%s2867 + $0x20] sm:$0xf]
      %v2877 = vld [vmem:[%s2867 + $0x24] sm:$0xf]
      %v2878 = vld [vmem:[%s2867 + $0x28] sm:$0xf]
      %v2879 = vld [vmem:[%s2867 + $0x2c] sm:$0xf]
      %v2880 = vld [vmem:[%s2867 + $0x30] sm:$0xf]
      %v2881 = vld [vmem:[%s2867 + $0x34] sm:$0xf]
      %v2882 = vld [vmem:[%s2867 + $0x38] sm:$0xf]
      %v2883 = vld [vmem:[%s2867 + $0x3c] sm:$0xf]
      %v2900 = vunpack.c.l.b16 %v2868
      %v2901 = vunpack.c.l.b16 %v2869
      %v2902 = vunpack.c.l.b16 %v2870
      %v2903 = vunpack.c.l.b16 %v2871
      %v2904 = vunpack.c.l.b16 %v2872
      %v2905 = vunpack.c.l.b16 %v2873
      %v2906 = vunpack.c.l.b16 %v2874
      %v2907 = vunpack.c.l.b16 %v2875
      %v2908 = vunpack.c.l.b16 %v2876
      %v2909 = vunpack.c.l.b16 %v2877
      %v2910 = vunpack.c.l.b16 %v2878
      %v2911 = vunpack.c.l.b16 %v2879
      %v2912 = vunpack.c.l.b16 %v2880
      %v2913 = vunpack.c.l.b16 %v2881
      %v2914 = vunpack.c.l.b16 %v2882
      %v2915 = vunpack.c.l.b16 %v2883
      %v2916 = vpack.c.b16 %v2901, %v2900
      %v2917 = vpack.c.b16 %v2903, %v2902
      %v2918 = vpack.c.b16 %v2905, %v2904
      %v2919 = vpack.c.b16 %v2907, %v2906
      %v2920 = vpack.c.b16 %v2909, %v2908
      %v2921 = vpack.c.b16 %v2911, %v2910
      %v2922 = vpack.c.b16 %v2913, %v2912
      %v2923 = vpack.c.b16 %v2915, %v2914
      %2932 = vmatprep.subr.bf16.mxu0 0
      %2933 = vmatpush1.bf16.msra.mxu0 %v2916
      %2934 = vmatprep.subr.bf16.mxu0 0
      %2935 = vmatpush1.bf16.msra.mxu0 %v2917
      %2936 = vmatprep.subr.bf16.mxu0 0
      %2937 = vmatpush1.bf16.msra.mxu0 %v2918
      %2938 = vmatprep.subr.bf16.mxu0 0
      %2939 = vmatpush1.bf16.msra.mxu0 %v2919
      %2940 = vmatprep.subr.bf16.mxu0 0
      %2941 = vmatpush1.bf16.msra.mxu0 %v2920
      %2942 = vmatprep.subr.bf16.mxu0 0
      %2943 = vmatpush1.bf16.msra.mxu0 %v2921
      %2944 = vmatprep.subr.bf16.mxu0 0
      %2945 = vmatpush1.bf16.msra.mxu0 %v2922
      %2946 = vmatprep.subr.bf16.mxu0 0
      %2947 = vmatpush1.bf16.msra.mxu0 %v2923
      %2948 = vmatprep.subr.bf16.mxu0 0
      %2949 = vmatpush1.bf16.msra.mxu0 0
      %2950 = vmatprep.subr.bf16.mxu0 0
      %2951 = vmatpush1.bf16.msra.mxu0 0
      %2952 = vmatprep.subr.bf16.mxu0 0
      %2953 = vmatpush1.bf16.msra.mxu0 0
      %2954 = vmatprep.subr.bf16.mxu0 0
      %2955 = vmatpush1.bf16.msra.mxu0 0
      %2956 = vmatprep.subr.bf16.mxu0 0
      %2957 = vmatpush1.bf16.msra.mxu0 0
      %2958 = vmatprep.subr.bf16.mxu0 0
      %2959 = vmatpush1.bf16.msra.mxu0 0
      %2960 = vmatprep.subr.bf16.mxu0 0
      %2961 = vmatpush1.bf16.msra.mxu0 0
      %2962 = vmatprep.subr.bf16.mxu0 0
      %2963 = vmatpush1.bf16.msra.mxu0 0
      %2964 = vmatprep.mubr.bf16.mxu0 0
      %2965 = vmatmul.mubr.bf16.gmra.mrb[0].mxu0 %v2851
      %v2966 = vpop.f32.mrb[0].mxu0
      %v2967 = vadd.f32 0.0, %v2966
      %v2968 = vpop.f32.mrb[0].mxu0
      %v2969 = vpop.f32.mrb[0].mxu0
      %v2970 = vadd.f32 0.0, %v2969
      %v2971 = vpop.f32.mrb[0].mxu0
      %2972 = vmatprep.mubr.bf16.mxu0 0
      %2973 = vmatmul.mubr.bf16.gmra.mrb[0].mxu0 %v2852
      %v2974 = vpop.f32.mrb[0].mxu0
      %v2975 = vadd.f32 0.0, %v2974
      %v2976 = vpop.f32.mrb[0].mxu0
      %v2977 = vpop.f32.mrb[0].mxu0
      %v2978 = vadd.f32 0.0, %v2977
      %v2979 = vpop.f32.mrb[0].mxu0
      %2980 = vmatprep.mubr.bf16.mxu0 0
      %2981 = vmatmul.mubr.bf16.gmra.mrb[0].mxu0 %v2853
      %v2982 = vpop.f32.mrb[0].mxu0
      %v2983 = vadd.f32 0.0, %v2982
      %v2984 = vpop.f32.mrb[0].mxu0
      %v2985 = vpop.f32.mrb[0].mxu0
      %v2986 = vadd.f32 0.0, %v2985
      %v2987 = vpop.f32.mrb[0].mxu0
      %2988 = vmatprep.mubr.bf16.mxu0 0
      %2989 = vmatmul.mubr.bf16.gmra.mrb[0].mxu0 %v2854
      %v2990 = vpop.f32.mrb[0].mxu0
      %v2991 = vadd.f32 0.0, %v2990
      %v2992 = vpop.f32.mrb[0].mxu0
      %v2993 = vpop.f32.mrb[0].mxu0
      %v2994 = vadd.f32 0.0, %v2993
      %v2995 = vpop.f32.mrb[0].mxu0
      %2996 = vmatprep.mubr.bf16.mxu0 0
      %2997 = vmatmul.mubr.bf16.gmra.mrb[0].mxu0 %v2855
      %v2998 = vpop.f32.mrb[0].mxu0
      %v2999 = vadd.f32 0.0, %v2998
      %v3000 = vpop.f32.mrb[0].mxu0
      %v3001 = vpop.f32.mrb[0].mxu0
      %v3002 = vadd.f32 0.0, %v3001
      %v3003 = vpop.f32.mrb[0].mxu0
      %3004 = vmatprep.mubr.bf16.mxu0 0
      %3005 = vmatmul.mubr.bf16.gmra.mrb[0].mxu0 %v2856
      %v3006 = vpop.f32.mrb[0].mxu0
      %v3007 = vadd.f32 0.0, %v3006
      %v3008 = vpop.f32.mrb[0].mxu0
      %v3009 = vpop.f32.mrb[0].mxu0
      %v3010 = vadd.f32 0.0, %v3009
      %v3011 = vpop.f32.mrb[0].mxu0
      %3012 = vmatprep.mubr.bf16.mxu0 0
      %3013 = vmatmul.mubr.bf16.gmra.mrb[0].mxu0 %v2857
      %v3014 = vpop.f32.mrb[0].mxu0
      %v3015 = vadd.f32 0.0, %v3014
      %v3016 = vpop.f32.mrb[0].mxu0
      %v3017 = vpop.f32.mrb[0].mxu0
      %v3018 = vadd.f32 0.0, %v3017
      %v3019 = vpop.f32.mrb[0].mxu0
      %3020 = vmatprep.mubr.bf16.mxu0 0
      %3021 = vmatmul.mubr.bf16.gmra.mrb[0].mxu0 %v2858
      %v3022 = vpop.f32.mrb[0].mxu0
      %v3023 = vadd.f32 0.0, %v3022
      %v3024 = vpop.f32.mrb[0].mxu0
      %v3025 = vpop.f32.mrb[0].mxu0
      %v3026 = vadd.f32 0.0, %v3025
      %v3027 = vpop.f32.mrb[0].mxu0
      %3028 = vmatprep.mubr.bf16.mxu0 0
      %3029 = vmatmul.mubr.bf16.gmra.mrb[0].mxu0 %v2859
      %v3030 = vpop.f32.mrb[0].mxu0
      %v3031 = vadd.f32 0.0, %v3030
      %v3032 = vpop.f32.mrb[0].mxu0
      %v3033 = vpop.f32.mrb[0].mxu0
      %v3034 = vadd.f32 0.0, %v3033
      %v3035 = vpop.f32.mrb[0].mxu0
      %3036 = vmatprep.mubr.bf16.mxu0 0
      %3037 = vmatmul.mubr.bf16.gmra.mrb[0].mxu0 %v2860
      %v3038 = vpop.f32.mrb[0].mxu0
      %v3039 = vadd.f32 0.0, %v3038
      %v3040 = vpop.f32.mrb[0].mxu0
      %v3041 = vpop.f32.mrb[0].mxu0
      %v3042 = vadd.f32 0.0, %v3041
      %v3043 = vpop.f32.mrb[0].mxu0
      %3044 = vmatprep.mubr.bf16.mxu0 0
      %3045 = vmatmul.mubr.bf16.gmra.mrb[0].mxu0 %v2861
      %v3046 = vpop.f32.mrb[0].mxu0
      %v3047 = vadd.f32 0.0, %v3046
      %v3048 = vpop.f32.mrb[0].mxu0
      %v3049 = vpop.f32.mrb[0].mxu0
      %v3050 = vadd.f32 0.0, %v3049
      %v3051 = vpop.f32.mrb[0].mxu0
      %3052 = vmatprep.mubr.bf16.mxu0 0
      %3053 = vmatmul.mubr.bf16.gmra.mrb[0].mxu0 %v2862
      %v3054 = vpop.f32.mrb[0].mxu0
      %v3055 = vadd.f32 0.0, %v3054
      %v3056 = vpop.f32.mrb[0].mxu0
      %v3057 = vpop.f32.mrb[0].mxu0
      %v3058 = vadd.f32 0.0, %v3057
      %v3059 = vpop.f32.mrb[0].mxu0
      %3060 = vmatprep.mubr.bf16.mxu0 0
      %3061 = vmatmul.mubr.bf16.gmra.mrb[0].mxu0 %v2863
      %v3062 = vpop.f32.mrb[0].mxu0
      %v3063 = vadd.f32 0.0, %v3062
      %v3064 = vpop.f32.mrb[0].mxu0
      %v3065 = vpop.f32.mrb[0].mxu0
      %v3066 = vadd.f32 0.0, %v3065
      %v3067 = vpop.f32.mrb[0].mxu0
      %3068 = vmatprep.mubr.bf16.mxu0 0
      %3069 = vmatmul.mubr.bf16.gmra.mrb[0].mxu0 %v2864
      %v3070 = vpop.f32.mrb[0].mxu0
      %v3071 = vadd.f32 0.0, %v3070
      %v3072 = vpop.f32.mrb[0].mxu0
      %v3073 = vpop.f32.mrb[0].mxu0
      %v3074 = vadd.f32 0.0, %v3073
      %v3075 = vpop.f32.mrb[0].mxu0
      %3076 = vmatprep.mubr.bf16.mxu0 0
      %3077 = vmatmul.mubr.bf16.gmra.mrb[0].mxu0 %v2865
      %v3078 = vpop.f32.mrb[0].mxu0
      %v3079 = vadd.f32 0.0, %v3078
      %v3080 = vpop.f32.mrb[0].mxu0
      %v3081 = vpop.f32.mrb[0].mxu0
      %v3082 = vadd.f32 0.0, %v3081
      %v3083 = vpop.f32.mrb[0].mxu0
      %3084 = vmatprep.mubr.bf16.mxu0 0
      %3085 = vmatmul.mubr.bf16.gmra.mrb[0].mxu0 %v2866
      %v3086 = vpop.f32.mrb[0].mxu0
      %v3087 = vadd.f32 0.0, %v3086
      %v3088 = vpop.f32.mrb[0].mxu0
      %v3089 = vpop.f32.mrb[0].mxu0
      %v3090 = vadd.f32 0.0, %v3089
      %v3091 = vpop.f32.mrb[0].mxu0
      %3092 = vdwg.mxu0
      %v3093 = vadd.f32 %v2787, %v2967
      %v3094 = vadd.f32 %v2788, %v2970
      %v3095 = vadd.f32 %v2789, %v2975
      %v3096 = vadd.f32 %v2790, %v2978
      %v3097 = vadd.f32 %v2791, %v2983
      %v3098 = vadd.f32 %v2792, %v2986
      %v3099 = vadd.f32 %v2793, %v2991
      %v3100 = vadd.f32 %v2794, %v2994
      %v3101 = vadd.f32 %v2795, %v2999
      %v3102 = vadd.f32 %v2796, %v3002
      %v3103 = vadd.f32 %v2797, %v3007
      %v3104 = vadd.f32 %v2798, %v3010
      %v3105 = vadd.f32 %v2799, %v3015
      %v3106 = vadd.f32 %v2800, %v3018
      %v3107 = vadd.f32 %v2801, %v3023
      %v3108 = vadd.f32 %v2802, %v3026
      %v3109 = vadd.f32 %v2803, %v3031
      %v3110 = vadd.f32 %v2804, %v3034
      %v3111 = vadd.f32 %v2805, %v3039
      %v3112 = vadd.f32 %v2806, %v3042
      %v3113 = vadd.f32 %v2807, %v3047
      %v3114 = vadd.f32 %v2808, %v3050
      %v3115 = vadd.f32 %v2809, %v3055
      %v3116 = vadd.f32 %v2810, %v3058
      %v3117 = vadd.f32 %v2811, %v3063
      %v3118 = vadd.f32 %v2812, %v3066
      %v3119 = vadd.f32 %v2813, %v3071
      %v3120 = vadd.f32 %v2814, %v3074
      %v3121 = vadd.f32 %v2815, %v3079
      %v3122 = vadd.f32 %v2816, %v3082
      %v3123 = vadd.f32 %v2817, %v3087
      %v3124 = vadd.f32 %v2818, %v3090
      %v3125 = vld [vmem:[%s2] sm:$0x1]
      %v3127 = vlaneseq
      %v3128 = vshrl.u32 %v3127, 7
      %v3129 = vsub.s32 0, %v3128
      %v3130 = vrot.slane %v3125, %v3129
      %v3132 = vadd.f32 %v3093, %v3130
      %v3133 = vadd.f32 %v3094, %v3130
      %v3134 = vadd.f32 %v3095, %v3130
      %v3135 = vadd.f32 %v3096, %v3130
      %v3136 = vadd.f32 %v3097, %v3130
      %v3137 = vadd.f32 %v3098, %v3130
      %v3138 = vadd.f32 %v3099, %v3130
      %v3139 = vadd.f32 %v3100, %v3130
      %v3140 = vadd.f32 %v3101, %v3130
      %v3141 = vadd.f32 %v3102, %v3130
      %v3142 = vadd.f32 %v3103, %v3130
      %v3143 = vadd.f32 %v3104, %v3130
      %v3144 = vadd.f32 %v3105, %v3130
      %v3145 = vadd.f32 %v3106, %v3130
      %v3146 = vadd.f32 %v3107, %v3130
      %v3147 = vadd.f32 %v3108, %v3130
      %v3148 = vadd.f32 %v3109, %v3130
      %v3149 = vadd.f32 %v3110, %v3130
      %v3150 = vadd.f32 %v3111, %v3130
      %v3151 = vadd.f32 %v3112, %v3130
      %v3152 = vadd.f32 %v3113, %v3130
      %v3153 = vadd.f32 %v3114, %v3130
      %v3154 = vadd.f32 %v3115, %v3130
      %v3155 = vadd.f32 %v3116, %v3130
      %v3156 = vadd.f32 %v3117, %v3130
      %v3157 = vadd.f32 %v3118, %v3130
      %v3158 = vadd.f32 %v3119, %v3130
      %v3159 = vadd.f32 %v3120, %v3130
      %v3160 = vadd.f32 %v3121, %v3130
      %v3161 = vadd.f32 %v3122, %v3130
      %v3162 = vadd.f32 %v3123, %v3130
      %v3163 = vadd.f32 %v3124, %v3130
      %v3164 = vmax.f32 %v3132, 0.0
      %v3165 = vmax.f32 %v3133, 0.0
      %v3166 = vmax.f32 %v3134, 0.0
      %v3167 = vmax.f32 %v3135, 0.0
      %v3168 = vmax.f32 %v3136, 0.0
      %v3169 = vmax.f32 %v3137, 0.0
      %v3170 = vmax.f32 %v3138, 0.0
      %v3171 = vmax.f32 %v3139, 0.0
      %v3172 = vmax.f32 %v3140, 0.0
      %v3173 = vmax.f32 %v3141, 0.0
      %v3174 = vmax.f32 %v3142, 0.0
      %v3175 = vmax.f32 %v3143, 0.0
      %v3176 = vmax.f32 %v3144, 0.0
      %v3177 = vmax.f32 %v3145, 0.0
      %v3178 = vmax.f32 %v3146, 0.0
      %v3179 = vmax.f32 %v3147, 0.0
      %v3180 = vmax.f32 %v3148, 0.0
      %v3181 = vmax.f32 %v3149, 0.0
      %v3182 = vmax.f32 %v3150, 0.0
      %v3183 = vmax.f32 %v3151, 0.0
      %v3184 = vmax.f32 %v3152, 0.0
      %v3185 = vmax.f32 %v3153, 0.0
      %v3186 = vmax.f32 %v3154, 0.0
      %v3187 = vmax.f32 %v3155, 0.0
      %v3188 = vmax.f32 %v3156, 0.0
      %v3189 = vmax.f32 %v3157, 0.0
      %v3190 = vmax.f32 %v3158, 0.0
      %v3191 = vmax.f32 %v3159, 0.0
      %v3192 = vmax.f32 %v3160, 0.0
      %v3193 = vmax.f32 %v3161, 0.0
      %v3194 = vmax.f32 %v3162, 0.0
      %v3195 = vmax.f32 %v3163, 0.0
      %s3196 = scalar_lea.vmem [#allocation3], 24
      %3197 = vst [vmem:[%s3196 + $0x1] sm:$0xff] %v3164
      %3198 = vst [vmem:[%s3196 + $0x9] sm:$0xff] %v3165
      %3199 = vst [vmem:[%s3196 + $0x19] sm:$0xff] %v3166
      %3200 = vst [vmem:[%s3196 + $0x21] sm:$0xff] %v3167
      %3201 = vst [vmem:[%s3196 + $0x31] sm:$0xff] %v3168
      %3202 = vst [vmem:[%s3196 + $0x39] sm:$0xff] %v3169
      %3203 = vst [vmem:[%s3196 + $0x49] sm:$0xff] %v3170
      %3204 = vst [vmem:[%s3196 + $0x51] sm:$0xff] %v3171
      %3205 = vst [vmem:[%s3196 + $0x61] sm:$0xff] %v3172
      %3206 = vst [vmem:[%s3196 + $0x69] sm:$0xff] %v3173
      %3207 = vst [vmem:[%s3196 + $0x79] sm:$0xff] %v3174
      %3208 = vst [vmem:[%s3196 + $0x81] sm:$0xff] %v3175
      %3209 = vst [vmem:[%s3196 + $0x91] sm:$0xff] %v3176
      %3210 = vst [vmem:[%s3196 + $0x99] sm:$0xff] %v3177
      %3211 = vst [vmem:[%s3196 + $0xa9] sm:$0xff] %v3178
      %3212 = vst [vmem:[%s3196 + $0xb1] sm:$0xff] %v3179
      %3213 = vst [vmem:[%s3196 + $0xc1] sm:$0xff] %v3180
      %3214 = vst [vmem:[%s3196 + $0xc9] sm:$0xff] %v3181
      %3215 = vst [vmem:[%s3196 + $0xd9] sm:$0xff] %v3182
      %3216 = vst [vmem:[%s3196 + $0xe1] sm:$0xff] %v3183
      %3217 = vst [vmem:[%s3196 + $0xf1] sm:$0xff] %v3184
      %3218 = vst [vmem:[%s3196 + $0xf9] sm:$0xff] %v3185
      %3219 = vst [vmem:[%s3196 + $0x109] sm:$0xff] %v3186
      %3220 = vst [vmem:[%s3196 + $0x111] sm:$0xff] %v3187
      %3221 = vst [vmem:[%s3196 + $0x121] sm:$0xff] %v3188
      %3222 = vst [vmem:[%s3196 + $0x129] sm:$0xff] %v3189
      %3223 = vst [vmem:[%s3196 + $0x139] sm:$0xff] %v3190
      %3224 = vst [vmem:[%s3196 + $0x141] sm:$0xff] %v3191
      %3225 = vst [vmem:[%s3196 + $0x151] sm:$0xff] %v3192
      %3226 = vst [vmem:[%s3196 + $0x159] sm:$0xff] %v3193
      %3227 = vst [vmem:[%s3196 + $0x169] sm:$0xff] %v3194
      %3228 = vst [vmem:[%s3196 + $0x171] sm:$0xff] %v3195
      %v3229 = vld [vmem:[#allocation3] sm:$0xff]
      %v3230 = vld [vmem:[#allocation3 + $0x8] sm:$0xff]
      %v3231 = vld [vmem:[#allocation3 + $0x18] sm:$0xff]
      %v3232 = vld [vmem:[#allocation3 + $0x20] sm:$0xff]
      %v3233 = vld [vmem:[#allocation3 + $0x30] sm:$0xff]
      %v3234 = vld [vmem:[#allocation3 + $0x38] sm:$0xff]
      %v3235 = vld [vmem:[#allocation3 + $0x48] sm:$0xff]
      %v3236 = vld [vmem:[#allocation3 + $0x50] sm:$0xff]
      %v3237 = vld [vmem:[#allocation3 + $0x60] sm:$0xff]
      %v3238 = vld [vmem:[#allocation3 + $0x68] sm:$0xff]
      %v3239 = vld [vmem:[#allocation3 + $0x78] sm:$0xff]
      %v3240 = vld [vmem:[#allocation3 + $0x80] sm:$0xff]
      %v3241 = vld [vmem:[#allocation3 + $0x90] sm:$0xff]
      %v3242 = vld [vmem:[#allocation3 + $0x98] sm:$0xff]
      %v3243 = vld [vmem:[#allocation3 + $0xa8] sm:$0xff]
      %v3244 = vld [vmem:[#allocation3 + $0xb0] sm:$0xff]
      %v3245 = vld [vmem:[#allocation3 + $0xc0] sm:$0xff]
      %v3246 = vld [vmem:[#allocation3 + $0xc8] sm:$0xff]
      %v3247 = vld [vmem:[#allocation3 + $0xd8] sm:$0xff]
      %v3248 = vld [vmem:[#allocation3 + $0xe0] sm:$0xff]
      %v3249 = vld [vmem:[#allocation3 + $0xf0] sm:$0xff]
      %v3250 = vld [vmem:[#allocation3 + $0xf8] sm:$0xff]
      %v3251 = vld [vmem:[#allocation3 + $0x108] sm:$0xff]
      %v3252 = vld [vmem:[#allocation3 + $0x110] sm:$0xff]
      %v3253 = vld [vmem:[#allocation3 + $0x120] sm:$0xff]
      %v3254 = vld [vmem:[#allocation3 + $0x128] sm:$0xff]
      %v3255 = vld [vmem:[#allocation3 + $0x138] sm:$0xff]
      %v3256 = vld [vmem:[#allocation3 + $0x140] sm:$0xff]
      %v3257 = vld [vmem:[#allocation3 + $0x150] sm:$0xff]
      %v3258 = vld [vmem:[#allocation3 + $0x158] sm:$0xff]
      %v3259 = vld [vmem:[#allocation3 + $0x168] sm:$0xff]
      %v3260 = vld [vmem:[#allocation3 + $0x170] sm:$0xff]
      %v3261 = vpack.c.bf16 %v3230, %v3229
      %v3262 = vpack.c.bf16 %v3232, %v3231
      %v3263 = vpack.c.bf16 %v3234, %v3233
      %v3264 = vpack.c.bf16 %v3236, %v3235
      %v3265 = vpack.c.bf16 %v3238, %v3237
      %v3266 = vpack.c.bf16 %v3240, %v3239
      %v3267 = vpack.c.bf16 %v3242, %v3241
      %v3268 = vpack.c.bf16 %v3244, %v3243
      %v3269 = vpack.c.bf16 %v3246, %v3245
      %v3270 = vpack.c.bf16 %v3248, %v3247
      %v3271 = vpack.c.bf16 %v3250, %v3249
      %v3272 = vpack.c.bf16 %v3252, %v3251
      %v3273 = vpack.c.bf16 %v3254, %v3253
      %v3274 = vpack.c.bf16 %v3256, %v3255
      %v3275 = vpack.c.bf16 %v3258, %v3257
      %v3276 = vpack.c.bf16 %v3260, %v3259
      %v3277 = vld [vmem:[%s3] sm:$0xf]
      %v3278 = vld [vmem:[%s3 + $0x4] sm:$0xf]
      %v3279 = vld [vmem:[%s3 + $0x8] sm:$0xf]
      %v3280 = vld [vmem:[%s3 + $0xc] sm:$0xf]
      %v3281 = vld [vmem:[%s3 + $0x10] sm:$0xf]
      %v3282 = vld [vmem:[%s3 + $0x14] sm:$0xf]
      %v3283 = vld [vmem:[%s3 + $0x18] sm:$0xf]
      %v3284 = vld [vmem:[%s3 + $0x1c] sm:$0xf]
      %v3285 = vld [vmem:[%s3 + $0x20] sm:$0xf]
      %v3286 = vld [vmem:[%s3 + $0x24] sm:$0xf]
      %v3287 = vld [vmem:[%s3 + $0x28] sm:$0xf]
      %v3288 = vld [vmem:[%s3 + $0x2c] sm:$0xf]
      %v3289 = vld [vmem:[%s3 + $0x30] sm:$0xf]
      %v3290 = vld [vmem:[%s3 + $0x34] sm:$0xf]
      %v3291 = vld [vmem:[%s3 + $0x38] sm:$0xf]
      %v3292 = vld [vmem:[%s3 + $0x3c] sm:$0xf]
      %v3293 = vld [vmem:[#allocation3 + $0x1] sm:$0xff]
      %v3294 = vld [vmem:[#allocation3 + $0x9] sm:$0xff]
      %v3295 = vld [vmem:[#allocation3 + $0x19] sm:$0xff]
      %v3296 = vld [vmem:[#allocation3 + $0x21] sm:$0xff]
      %v3297 = vld [vmem:[#allocation3 + $0x31] sm:$0xff]
      %v3298 = vld [vmem:[#allocation3 + $0x39] sm:$0xff]
      %v3299 = vld [vmem:[#allocation3 + $0x49] sm:$0xff]
      %v3300 = vld [vmem:[#allocation3 + $0x51] sm:$0xff]
      %v3301 = vld [vmem:[#allocation3 + $0x61] sm:$0xff]
      %v3302 = vld [vmem:[#allocation3 + $0x69] sm:$0xff]
      %v3303 = vld [vmem:[#allocation3 + $0x79] sm:$0xff]
      %v3304 = vld [vmem:[#allocation3 + $0x81] sm:$0xff]
      %v3305 = vld [vmem:[#allocation3 + $0x91] sm:$0xff]
      %v3306 = vld [vmem:[#allocation3 + $0x99] sm:$0xff]
      %v3307 = vld [vmem:[#allocation3 + $0xa9] sm:$0xff]
      %v3308 = vld [vmem:[#allocation3 + $0xb1] sm:$0xff]
      %v3309 = vld [vmem:[#allocation3 + $0xc1] sm:$0xff]
      %v3310 = vld [vmem:[#allocation3 + $0xc9] sm:$0xff]
      %v3311 = vld [vmem:[#allocation3 + $0xd9] sm:$0xff]
      %v3312 = vld [vmem:[#allocation3 + $0xe1] sm:$0xff]
      %v3313 = vld [vmem:[#allocation3 + $0xf1] sm:$0xff]
      %v3314 = vld [vmem:[#allocation3 + $0xf9] sm:$0xff]
      %v3315 = vld [vmem:[#allocation3 + $0x109] sm:$0xff]
      %v3316 = vld [vmem:[#allocation3 + $0x111] sm:$0xff]
      %v3317 = vld [vmem:[#allocation3 + $0x121] sm:$0xff]
      %v3318 = vld [vmem:[#allocation3 + $0x129] sm:$0xff]
      %v3319 = vld [vmem:[#allocation3 + $0x139] sm:$0xff]
      %v3320 = vld [vmem:[#allocation3 + $0x141] sm:$0xff]
      %v3321 = vld [vmem:[#allocation3 + $0x151] sm:$0xff]
      %v3322 = vld [vmem:[#allocation3 + $0x159] sm:$0xff]
      %v3323 = vld [vmem:[#allocation3 + $0x169] sm:$0xff]
      %v3324 = vld [vmem:[#allocation3 + $0x171] sm:$0xff]
      %v3325 = vpack.c.bf16 %v3294, %v3293
      %v3326 = vpack.c.bf16 %v3296, %v3295
      %v3327 = vpack.c.bf16 %v3298, %v3297
      %v3328 = vpack.c.bf16 %v3300, %v3299
      %v3329 = vpack.c.bf16 %v3302, %v3301
      %v3330 = vpack.c.bf16 %v3304, %v3303
      %v3331 = vpack.c.bf16 %v3306, %v3305
      %v3332 = vpack.c.bf16 %v3308, %v3307
      %v3333 = vpack.c.bf16 %v3310, %v3309
      %v3334 = vpack.c.bf16 %v3312, %v3311
      %v3335 = vpack.c.bf16 %v3314, %v3313
      %v3336 = vpack.c.bf16 %v3316, %v3315
      %v3337 = vpack.c.bf16 %v3318, %v3317
      %v3338 = vpack.c.bf16 %v3320, %v3319
      %v3339 = vpack.c.bf16 %v3322, %v3321
      %v3340 = vpack.c.bf16 %v3324, %v3323
      %s3341 = scalar_lea.vmem %s3, 64
      %v3342 = vld [vmem:[%s3341] sm:$0xf]
      %v3343 = vld [vmem:[%s3341 + $0x4] sm:$0xf]
      %v3344 = vld [vmem:[%s3341 + $0x8] sm:$0xf]
      %v3345 = vld [vmem:[%s3341 + $0xc] sm:$0xf]
      %v3346 = vld [vmem:[%s3341 + $0x10] sm:$0xf]
      %v3347 = vld [vmem:[%s3341 + $0x14] sm:$0xf]
      %v3348 = vld [vmem:[%s3341 + $0x18] sm:$0xf]
      %v3349 = vld [vmem:[%s3341 + $0x1c] sm:$0xf]
      %v3350 = vld [vmem:[%s3341 + $0x20] sm:$0xf]
      %v3351 = vld [vmem:[%s3341 + $0x24] sm:$0xf]
      %v3352 = vld [vmem:[%s3341 + $0x28] sm:$0xf]
      %v3353 = vld [vmem:[%s3341 + $0x2c] sm:$0xf]
      %v3354 = vld [vmem:[%s3341 + $0x30] sm:$0xf]
      %v3355 = vld [vmem:[%s3341 + $0x34] sm:$0xf]
      %v3356 = vld [vmem:[%s3341 + $0x38] sm:$0xf]
      %v3357 = vld [vmem:[%s3341 + $0x3c] sm:$0xf]
      %v3374 = vunpack.c.l.b16 %v3342
      %v3375 = vunpack.c.l.b16 %v3343
      %v3376 = vunpack.c.l.b16 %v3344
      %v3377 = vunpack.c.l.b16 %v3345
      %v3378 = vunpack.c.l.b16 %v3346
      %v3379 = vunpack.c.l.b16 %v3347
      %v3380 = vunpack.c.l.b16 %v3348
      %v3381 = vunpack.c.l.b16 %v3349
      %v3382 = vunpack.c.l.b16 %v3350
      %v3383 = vunpack.c.l.b16 %v3351
      %v3384 = vunpack.c.l.b16 %v3352
      %v3385 = vunpack.c.l.b16 %v3353
      %v3386 = vunpack.c.l.b16 %v3354
      %v3387 = vunpack.c.l.b16 %v3355
      %v3388 = vunpack.c.l.b16 %v3356
      %v3389 = vunpack.c.l.b16 %v3357
      %v3390 = vpack.c.b16 %v3375, %v3374
      %v3391 = vpack.c.b16 %v3377, %v3376
      %v3392 = vpack.c.b16 %v3379, %v3378
      %v3393 = vpack.c.b16 %v3381, %v3380
      %v3394 = vpack.c.b16 %v3383, %v3382
      %v3395 = vpack.c.b16 %v3385, %v3384
      %v3396 = vpack.c.b16 %v3387, %v3386
      %v3397 = vpack.c.b16 %v3389, %v3388
      %3406 = vmatprep.subr.bf16.mxu0 0
      %3407 = vmatpush1.bf16.msra.mxu0 %v3390
      %3408 = vmatprep.subr.bf16.mxu0 0
      %3409 = vmatpush1.bf16.msra.mxu0 %v3391
      %3410 = vmatprep.subr.bf16.mxu0 0
      %3411 = vmatpush1.bf16.msra.mxu0 %v3392
      %3412 = vmatprep.subr.bf16.mxu0 0
      %3413 = vmatpush1.bf16.msra.mxu0 %v3393
      %3414 = vmatprep.subr.bf16.mxu0 0
      %3415 = vmatpush1.bf16.msra.mxu0 %v3394
      %3416 = vmatprep.subr.bf16.mxu0 0
      %3417 = vmatpush1.bf16.msra.mxu0 %v3395
      %3418 = vmatprep.subr.bf16.mxu0 0
      %3419 = vmatpush1.bf16.msra.mxu0 %v3396
      %3420 = vmatprep.subr.bf16.mxu0 0
      %3421 = vmatpush1.bf16.msra.mxu0 %v3397
      %3422 = vmatprep.subr.bf16.mxu0 0
      %3423 = vmatpush1.bf16.msra.mxu0 0
      %3424 = vmatprep.subr.bf16.mxu0 0
      %3425 = vmatpush1.bf16.msra.mxu0 0
      %3426 = vmatprep.subr.bf16.mxu0 0
      %3427 = vmatpush1.bf16.msra.mxu0 0
      %3428 = vmatprep.subr.bf16.mxu0 0
      %3429 = vmatpush1.bf16.msra.mxu0 0
      %3430 = vmatprep.subr.bf16.mxu0 0
      %3431 = vmatpush1.bf16.msra.mxu0 0
      %3432 = vmatprep.subr.bf16.mxu0 0
      %3433 = vmatpush1.bf16.msra.mxu0 0
      %3434 = vmatprep.subr.bf16.mxu0 0
      %3435 = vmatpush1.bf16.msra.mxu0 0
      %3436 = vmatprep.subr.bf16.mxu0 0
      %3437 = vmatpush1.bf16.msra.mxu0 0
      %3438 = vmatprep.mubr.bf16.mxu0 0
      %3439 = vmatmul.mubr.bf16.gmra.mrb[0].mxu0 %v3325
      %v3440 = vpop.f32.mrb[0].mxu0
      %v3441 = vadd.f32 0.0, %v3440
      %v3442 = vpop.f32.mrb[0].mxu0
      %v3443 = vpop.f32.mrb[0].mxu0
      %v3444 = vadd.f32 0.0, %v3443
      %v3445 = vpop.f32.mrb[0].mxu0
      %3446 = vmatprep.mubr.bf16.mxu0 0
      %3447 = vmatmul.mubr.bf16.gmra.mrb[0].mxu0 %v3326
      %v3448 = vpop.f32.mrb[0].mxu0
      %v3449 = vadd.f32 0.0, %v3448
      %v3450 = vpop.f32.mrb[0].mxu0
      %v3451 = vpop.f32.mrb[0].mxu0
      %v3452 = vadd.f32 0.0, %v3451
      %v3453 = vpop.f32.mrb[0].mxu0
      %3454 = vmatprep.mubr.bf16.mxu0 0
      %3455 = vmatmul.mubr.bf16.gmra.mrb[0].mxu0 %v3327
      %v3456 = vpop.f32.mrb[0].mxu0
      %v3457 = vadd.f32 0.0, %v3456
      %v3458 = vpop.f32.mrb[0].mxu0
      %v3459 = vpop.f32.mrb[0].mxu0
      %v3460 = vadd.f32 0.0, %v3459
      %v3461 = vpop.f32.mrb[0].mxu0
      %3462 = vmatprep.mubr.bf16.mxu0 0
      %3463 = vmatmul.mubr.bf16.gmra.mrb[0].mxu0 %v3328
      %v3464 = vpop.f32.mrb[0].mxu0
      %v3465 = vadd.f32 0.0, %v3464
      %v3466 = vpop.f32.mrb[0].mxu0
      %v3467 = vpop.f32.mrb[0].mxu0
      %v3468 = vadd.f32 0.0, %v3467
      %v3469 = vpop.f32.mrb[0].mxu0
      %3470 = vmatprep.mubr.bf16.mxu0 0
      %3471 = vmatmul.mubr.bf16.gmra.mrb[0].mxu0 %v3329
      %v3472 = vpop.f32.mrb[0].mxu0
      %v3473 = vadd.f32 0.0, %v3472
      %v3474 = vpop.f32.mrb[0].mxu0
      %v3475 = vpop.f32.mrb[0].mxu0
      %v3476 = vadd.f32 0.0, %v3475
      %v3477 = vpop.f32.mrb[0].mxu0
      %3478 = vmatprep.mubr.bf16.mxu0 0
      %3479 = vmatmul.mubr.bf16.gmra.mrb[0].mxu0 %v3330
      %v3480 = vpop.f32.mrb[0].mxu0
      %v3481 = vadd.f32 0.0, %v3480
      %v3482 = vpop.f32.mrb[0].mxu0
      %v3483 = vpop.f32.mrb[0].mxu0
      %v3484 = vadd.f32 0.0, %v3483
      %v3485 = vpop.f32.mrb[0].mxu0
      %3486 = vmatprep.mubr.bf16.mxu0 0
      %3487 = vmatmul.mubr.bf16.gmra.mrb[0].mxu0 %v3331
      %v3488 = vpop.f32.mrb[0].mxu0
      %v3489 = vadd.f32 0.0, %v3488
      %v3490 = vpop.f32.mrb[0].mxu0
      %v3491 = vpop.f32.mrb[0].mxu0
      %v3492 = vadd.f32 0.0, %v3491
      %v3493 = vpop.f32.mrb[0].mxu0
      %3494 = vmatprep.mubr.bf16.mxu0 0
      %3495 = vmatmul.mubr.bf16.gmra.mrb[0].mxu0 %v3332
      %v3496 = vpop.f32.mrb[0].mxu0
      %v3497 = vadd.f32 0.0, %v3496
      %v3498 = vpop.f32.mrb[0].mxu0
      %v3499 = vpop.f32.mrb[0].mxu0
      %v3500 = vadd.f32 0.0, %v3499
      %v3501 = vpop.f32.mrb[0].mxu0
      %3502 = vmatprep.mubr.bf16.mxu0 0
      %3503 = vmatmul.mubr.bf16.gmra.mrb[0].mxu0 %v3333
      %v3504 = vpop.f32.mrb[0].mxu0
      %v3505 = vadd.f32 0.0, %v3504
      %v3506 = vpop.f32.mrb[0].mxu0
      %v3507 = vpop.f32.mrb[0].mxu0
      %v3508 = vadd.f32 0.0, %v3507
      %v3509 = vpop.f32.mrb[0].mxu0
      %3510 = vmatprep.mubr.bf16.mxu0 0
      %3511 = vmatmul.mubr.bf16.gmra.mrb[0].mxu0 %v3334
      %v3512 = vpop.f32.mrb[0].mxu0
      %v3513 = vadd.f32 0.0, %v3512
      %v3514 = vpop.f32.mrb[0].mxu0
      %v3515 = vpop.f32.mrb[0].mxu0
      %v3516 = vadd.f32 0.0, %v3515
      %v3517 = vpop.f32.mrb[0].mxu0
      %3518 = vmatprep.mubr.bf16.mxu0 0
      %3519 = vmatmul.mubr.bf16.gmra.mrb[0].mxu0 %v3335
      %v3520 = vpop.f32.mrb[0].mxu0
      %v3521 = vadd.f32 0.0, %v3520
      %v3522 = vpop.f32.mrb[0].mxu0
      %v3523 = vpop.f32.mrb[0].mxu0
      %v3524 = vadd.f32 0.0, %v3523
      %v3525 = vpop.f32.mrb[0].mxu0
      %3526 = vmatprep.mubr.bf16.mxu0 0
      %3527 = vmatmul.mubr.bf16.gmra.mrb[0].mxu0 %v3336
      %v3528 = vpop.f32.mrb[0].mxu0
      %v3529 = vadd.f32 0.0, %v3528
      %v3530 = vpop.f32.mrb[0].mxu0
      %v3531 = vpop.f32.mrb[0].mxu0
      %v3532 = vadd.f32 0.0, %v3531
      %v3533 = vpop.f32.mrb[0].mxu0
      %3534 = vmatprep.mubr.bf16.mxu0 0
      %3535 = vmatmul.mubr.bf16.gmra.mrb[0].mxu0 %v3337
      %v3536 = vpop.f32.mrb[0].mxu0
      %v3537 = vadd.f32 0.0, %v3536
      %v3538 = vpop.f32.mrb[0].mxu0
      %v3539 = vpop.f32.mrb[0].mxu0
      %v3540 = vadd.f32 0.0, %v3539
      %v3541 = vpop.f32.mrb[0].mxu0
      %3542 = vmatprep.mubr.bf16.mxu0 0
      %3543 = vmatmul.mubr.bf16.gmra.mrb[0].mxu0 %v3338
      %v3544 = vpop.f32.mrb[0].mxu0
      %v3545 = vadd.f32 0.0, %v3544
      %v3546 = vpop.f32.mrb[0].mxu0
      %v3547 = vpop.f32.mrb[0].mxu0
      %v3548 = vadd.f32 0.0, %v3547
      %v3549 = vpop.f32.mrb[0].mxu0
      %3550 = vmatprep.mubr.bf16.mxu0 0
      %3551 = vmatmul.mubr.bf16.gmra.mrb[0].mxu0 %v3339
      %v3552 = vpop.f32.mrb[0].mxu0
      %v3553 = vadd.f32 0.0, %v3552
      %v3554 = vpop.f32.mrb[0].mxu0
      %v3555 = vpop.f32.mrb[0].mxu0
      %v3556 = vadd.f32 0.0, %v3555
      %v3557 = vpop.f32.mrb[0].mxu0
      %3558 = vmatprep.mubr.bf16.mxu0 0
      %3559 = vmatmul.mubr.bf16.gmra.mrb[0].mxu0 %v3340
      %v3560 = vpop.f32.mrb[0].mxu0
      %v3561 = vadd.f32 0.0, %v3560
      %v3562 = vpop.f32.mrb[0].mxu0
      %v3563 = vpop.f32.mrb[0].mxu0
      %v3564 = vadd.f32 0.0, %v3563
      %v3565 = vpop.f32.mrb[0].mxu0
      %3566 = vdwg.mxu0
      %v3583 = vunpack.c.l.b16 %v3277
      %v3584 = vunpack.c.l.b16 %v3278
      %v3585 = vunpack.c.l.b16 %v3279
      %v3586 = vunpack.c.l.b16 %v3280
      %v3587 = vunpack.c.l.b16 %v3281
      %v3588 = vunpack.c.l.b16 %v3282
      %v3589 = vunpack.c.l.b16 %v3283
      %v3590 = vunpack.c.l.b16 %v3284
      %v3591 = vunpack.c.l.b16 %v3285
      %v3592 = vunpack.c.l.b16 %v3286
      %v3593 = vunpack.c.l.b16 %v3287
      %v3594 = vunpack.c.l.b16 %v3288
      %v3595 = vunpack.c.l.b16 %v3289
      %v3596 = vunpack.c.l.b16 %v3290
      %v3597 = vunpack.c.l.b16 %v3291
      %v3598 = vunpack.c.l.b16 %v3292
      %v3599 = vpack.c.b16 %v3584, %v3583
      %v3600 = vpack.c.b16 %v3586, %v3585
      %v3601 = vpack.c.b16 %v3588, %v3587
      %v3602 = vpack.c.b16 %v3590, %v3589
      %v3603 = vpack.c.b16 %v3592, %v3591
      %v3604 = vpack.c.b16 %v3594, %v3593
      %v3605 = vpack.c.b16 %v3596, %v3595
      %v3606 = vpack.c.b16 %v3598, %v3597
      %3615 = vmatprep.subr.bf16.mxu0 0
      %3616 = vmatpush1.bf16.msra.mxu0 %v3599
      %3617 = vmatprep.subr.bf16.mxu0 0
      %3618 = vmatpush1.bf16.msra.mxu0 %v3600
      %3619 = vmatprep.subr.bf16.mxu0 0
      %3620 = vmatpush1.bf16.msra.mxu0 %v3601
      %3621 = vmatprep.subr.bf16.mxu0 0
      %3622 = vmatpush1.bf16.msra.mxu0 %v3602
      %3623 = vmatprep.subr.bf16.mxu0 0
      %3624 = vmatpush1.bf16.msra.mxu0 %v3603
      %3625 = vmatprep.subr.bf16.mxu0 0
      %3626 = vmatpush1.bf16.msra.mxu0 %v3604
      %3627 = vmatprep.subr.bf16.mxu0 0
      %3628 = vmatpush1.bf16.msra.mxu0 %v3605
      %3629 = vmatprep.subr.bf16.mxu0 0
      %3630 = vmatpush1.bf16.msra.mxu0 %v3606
      %3631 = vmatprep.subr.bf16.mxu0 0
      %3632 = vmatpush1.bf16.msra.mxu0 0
      %3633 = vmatprep.subr.bf16.mxu0 0
      %3634 = vmatpush1.bf16.msra.mxu0 0
      %3635 = vmatprep.subr.bf16.mxu0 0
      %3636 = vmatpush1.bf16.msra.mxu0 0
      %3637 = vmatprep.subr.bf16.mxu0 0
      %3638 = vmatpush1.bf16.msra.mxu0 0
      %3639 = vmatprep.subr.bf16.mxu0 0
      %3640 = vmatpush1.bf16.msra.mxu0 0
      %3641 = vmatprep.subr.bf16.mxu0 0
      %3642 = vmatpush1.bf16.msra.mxu0 0
      %3643 = vmatprep.subr.bf16.mxu0 0
      %3644 = vmatpush1.bf16.msra.mxu0 0
      %3645 = vmatprep.subr.bf16.mxu0 0
      %3646 = vmatpush1.bf16.msra.mxu0 0
      %3647 = vmatprep.mubr.bf16.mxu0 0
      %3648 = vmatmul.mubr.bf16.gmra.mrb[0].mxu0 %v3261
      %v3649 = vpop.f32.mrb[0].mxu0
      %v3650 = vadd.f32 %v3441, %v3649
      %v3651 = vpop.f32.mrb[0].mxu0
      %v3652 = vpop.f32.mrb[0].mxu0
      %v3653 = vadd.f32 %v3444, %v3652
      %v3654 = vpop.f32.mrb[0].mxu0
      %3655 = vmatprep.mubr.bf16.mxu0 0
      %3656 = vmatmul.mubr.bf16.gmra.mrb[0].mxu0 %v3262
      %v3657 = vpop.f32.mrb[0].mxu0
      %v3658 = vadd.f32 %v3449, %v3657
      %v3659 = vpop.f32.mrb[0].mxu0
      %v3660 = vpop.f32.mrb[0].mxu0
      %v3661 = vadd.f32 %v3452, %v3660
      %v3662 = vpop.f32.mrb[0].mxu0
      %3663 = vmatprep.mubr.bf16.mxu0 0
      %3664 = vmatmul.mubr.bf16.gmra.mrb[0].mxu0 %v3263
      %v3665 = vpop.f32.mrb[0].mxu0
      %v3666 = vadd.f32 %v3457, %v3665
      %v3667 = vpop.f32.mrb[0].mxu0
      %v3668 = vpop.f32.mrb[0].mxu0
      %v3669 = vadd.f32 %v3460, %v3668
      %v3670 = vpop.f32.mrb[0].mxu0
      %3671 = vmatprep.mubr.bf16.mxu0 0
      %3672 = vmatmul.mubr.bf16.gmra.mrb[0].mxu0 %v3264
      %v3673 = vpop.f32.mrb[0].mxu0
      %v3674 = vadd.f32 %v3465, %v3673
      %v3675 = vpop.f32.mrb[0].mxu0
      %v3676 = vpop.f32.mrb[0].mxu0
      %v3677 = vadd.f32 %v3468, %v3676
      %v3678 = vpop.f32.mrb[0].mxu0
      %3679 = vmatprep.mubr.bf16.mxu0 0
      %3680 = vmatmul.mubr.bf16.gmra.mrb[0].mxu0 %v3265
      %v3681 = vpop.f32.mrb[0].mxu0
      %v3682 = vadd.f32 %v3473, %v3681
      %v3683 = vpop.f32.mrb[0].mxu0
      %v3684 = vpop.f32.mrb[0].mxu0
      %v3685 = vadd.f32 %v3476, %v3684
      %v3686 = vpop.f32.mrb[0].mxu0
      %3687 = vmatprep.mubr.bf16.mxu0 0
      %3688 = vmatmul.mubr.bf16.gmra.mrb[0].mxu0 %v3266
      %v3689 = vpop.f32.mrb[0].mxu0
      %v3690 = vadd.f32 %v3481, %v3689
      %v3691 = vpop.f32.mrb[0].mxu0
      %v3692 = vpop.f32.mrb[0].mxu0
      %v3693 = vadd.f32 %v3484, %v3692
      %v3694 = vpop.f32.mrb[0].mxu0
      %3695 = vmatprep.mubr.bf16.mxu0 0
      %3696 = vmatmul.mubr.bf16.gmra.mrb[0].mxu0 %v3267
      %v3697 = vpop.f32.mrb[0].mxu0
      %v3698 = vadd.f32 %v3489, %v3697
      %v3699 = vpop.f32.mrb[0].mxu0
      %v3700 = vpop.f32.mrb[0].mxu0
      %v3701 = vadd.f32 %v3492, %v3700
      %v3702 = vpop.f32.mrb[0].mxu0
      %3703 = vmatprep.mubr.bf16.mxu0 0
      %3704 = vmatmul.mubr.bf16.gmra.mrb[0].mxu0 %v3268
      %v3705 = vpop.f32.mrb[0].mxu0
      %v3706 = vadd.f32 %v3497, %v3705
      %v3707 = vpop.f32.mrb[0].mxu0
      %v3708 = vpop.f32.mrb[0].mxu0
      %v3709 = vadd.f32 %v3500, %v3708
      %v3710 = vpop.f32.mrb[0].mxu0
      %3711 = vmatprep.mubr.bf16.mxu0 0
      %3712 = vmatmul.mubr.bf16.gmra.mrb[0].mxu0 %v3269
      %v3713 = vpop.f32.mrb[0].mxu0
      %v3714 = vadd.f32 %v3505, %v3713
      %v3715 = vpop.f32.mrb[0].mxu0
      %v3716 = vpop.f32.mrb[0].mxu0
      %v3717 = vadd.f32 %v3508, %v3716
      %v3718 = vpop.f32.mrb[0].mxu0
      %3719 = vmatprep.mubr.bf16.mxu0 0
      %3720 = vmatmul.mubr.bf16.gmra.mrb[0].mxu0 %v3270
      %v3721 = vpop.f32.mrb[0].mxu0
      %v3722 = vadd.f32 %v3513, %v3721
      %v3723 = vpop.f32.mrb[0].mxu0
      %v3724 = vpop.f32.mrb[0].mxu0
      %v3725 = vadd.f32 %v3516, %v3724
      %v3726 = vpop.f32.mrb[0].mxu0
      %3727 = vmatprep.mubr.bf16.mxu0 0
      %3728 = vmatmul.mubr.bf16.gmra.mrb[0].mxu0 %v3271
      %v3729 = vpop.f32.mrb[0].mxu0
      %v3730 = vadd.f32 %v3521, %v3729
      %v3731 = vpop.f32.mrb[0].mxu0
      %v3732 = vpop.f32.mrb[0].mxu0
      %v3733 = vadd.f32 %v3524, %v3732
      %v3734 = vpop.f32.mrb[0].mxu0
      %3735 = vmatprep.mubr.bf16.mxu0 0
      %3736 = vmatmul.mubr.bf16.gmra.mrb[0].mxu0 %v3272
      %v3737 = vpop.f32.mrb[0].mxu0
      %v3738 = vadd.f32 %v3529, %v3737
      %v3739 = vpop.f32.mrb[0].mxu0
      %v3740 = vpop.f32.mrb[0].mxu0
      %v3741 = vadd.f32 %v3532, %v3740
      %v3742 = vpop.f32.mrb[0].mxu0
      %3743 = vmatprep.mubr.bf16.mxu0 0
      %3744 = vmatmul.mubr.bf16.gmra.mrb[0].mxu0 %v3273
      %v3745 = vpop.f32.mrb[0].mxu0
      %v3746 = vadd.f32 %v3537, %v3745
      %v3747 = vpop.f32.mrb[0].mxu0
      %v3748 = vpop.f32.mrb[0].mxu0
      %v3749 = vadd.f32 %v3540, %v3748
      %v3750 = vpop.f32.mrb[0].mxu0
      %3751 = vmatprep.mubr.bf16.mxu0 0
      %3752 = vmatmul.mubr.bf16.gmra.mrb[0].mxu0 %v3274
      %v3753 = vpop.f32.mrb[0].mxu0
      %v3754 = vadd.f32 %v3545, %v3753
      %v3755 = vpop.f32.mrb[0].mxu0
      %v3756 = vpop.f32.mrb[0].mxu0
      %v3757 = vadd.f32 %v3548, %v3756
      %v3758 = vpop.f32.mrb[0].mxu0
      %3759 = vmatprep.mubr.bf16.mxu0 0
      %3760 = vmatmul.mubr.bf16.gmra.mrb[0].mxu0 %v3275
      %v3761 = vpop.f32.mrb[0].mxu0
      %v3762 = vadd.f32 %v3553, %v3761
      %v3763 = vpop.f32.mrb[0].mxu0
      %v3764 = vpop.f32.mrb[0].mxu0
      %v3765 = vadd.f32 %v3556, %v3764
      %v3766 = vpop.f32.mrb[0].mxu0
      %3767 = vmatprep.mubr.bf16.mxu0 0
      %3768 = vmatmul.mubr.bf16.gmra.mrb[0].mxu0 %v3276
      %v3769 = vpop.f32.mrb[0].mxu0
      %v3770 = vadd.f32 %v3561, %v3769
      %v3771 = vpop.f32.mrb[0].mxu0
      %v3772 = vpop.f32.mrb[0].mxu0
      %v3773 = vadd.f32 %v3564, %v3772
      %v3774 = vpop.f32.mrb[0].mxu0
      %3775 = vdwg.mxu0
      %v3776 = vld [vmem:[#allocation3 + $0x2] sm:$0xff]
      %v3777 = vld [vmem:[#allocation3 + $0xa] sm:$0xff]
      %v3778 = vld [vmem:[#allocation3 + $0x1a] sm:$0xff]
      %v3779 = vld [vmem:[#allocation3 + $0x22] sm:$0xff]
      %v3780 = vld [vmem:[#allocation3 + $0x32] sm:$0xff]
      %v3781 = vld [vmem:[#allocation3 + $0x3a] sm:$0xff]
      %v3782 = vld [vmem:[#allocation3 + $0x4a] sm:$0xff]
      %v3783 = vld [vmem:[#allocation3 + $0x52] sm:$0xff]
      %v3784 = vld [vmem:[#allocation3 + $0x62] sm:$0xff]
      %v3785 = vld [vmem:[#allocation3 + $0x6a] sm:$0xff]
      %v3786 = vld [vmem:[#allocation3 + $0x7a] sm:$0xff]
      %v3787 = vld [vmem:[#allocation3 + $0x82] sm:$0xff]
      %v3788 = vld [vmem:[#allocation3 + $0x92] sm:$0xff]
      %v3789 = vld [vmem:[#allocation3 + $0x9a] sm:$0xff]
      %v3790 = vld [vmem:[#allocation3 + $0xaa] sm:$0xff]
      %v3791 = vld [vmem:[#allocation3 + $0xb2] sm:$0xff]
      %v3792 = vld [vmem:[#allocation3 + $0xc2] sm:$0xff]
      %v3793 = vld [vmem:[#allocation3 + $0xca] sm:$0xff]
      %v3794 = vld [vmem:[#allocation3 + $0xda] sm:$0xff]
      %v3795 = vld [vmem:[#allocation3 + $0xe2] sm:$0xff]
      %v3796 = vld [vmem:[#allocation3 + $0xf2] sm:$0xff]
      %v3797 = vld [vmem:[#allocation3 + $0xfa] sm:$0xff]
      %v3798 = vld [vmem:[#allocation3 + $0x10a] sm:$0xff]
      %v3799 = vld [vmem:[#allocation3 + $0x112] sm:$0xff]
      %v3800 = vld [vmem:[#allocation3 + $0x122] sm:$0xff]
      %v3801 = vld [vmem:[#allocation3 + $0x12a] sm:$0xff]
      %v3802 = vld [vmem:[#allocation3 + $0x13a] sm:$0xff]
      %v3803 = vld [vmem:[#allocation3 + $0x142] sm:$0xff]
      %v3804 = vld [vmem:[#allocation3 + $0x152] sm:$0xff]
      %v3805 = vld [vmem:[#allocation3 + $0x15a] sm:$0xff]
      %v3806 = vld [vmem:[#allocation3 + $0x16a] sm:$0xff]
      %v3807 = vld [vmem:[#allocation3 + $0x172] sm:$0xff]
      %v3808 = vpack.c.bf16 %v3777, %v3776
      %v3809 = vpack.c.bf16 %v3779, %v3778
      %v3810 = vpack.c.bf16 %v3781, %v3780
      %v3811 = vpack.c.bf16 %v3783, %v3782
      %v3812 = vpack.c.bf16 %v3785, %v3784
      %v3813 = vpack.c.bf16 %v3787, %v3786
      %v3814 = vpack.c.bf16 %v3789, %v3788
      %v3815 = vpack.c.bf16 %v3791, %v3790
      %v3816 = vpack.c.bf16 %v3793, %v3792
      %v3817 = vpack.c.bf16 %v3795, %v3794
      %v3818 = vpack.c.bf16 %v3797, %v3796
      %v3819 = vpack.c.bf16 %v3799, %v3798
      %v3820 = vpack.c.bf16 %v3801, %v3800
      %v3821 = vpack.c.bf16 %v3803, %v3802
      %v3822 = vpack.c.bf16 %v3805, %v3804
      %v3823 = vpack.c.bf16 %v3807, %v3806
      %s3824 = scalar_lea.vmem %s3, 128
      %v3825 = vld [vmem:[%s3824] sm:$0xf]
      %v3826 = vld [vmem:[%s3824 + $0x4] sm:$0xf]
      %v3827 = vld [vmem:[%s3824 + $0x8] sm:$0xf]
      %v3828 = vld [vmem:[%s3824 + $0xc] sm:$0xf]
      %v3829 = vld [vmem:[%s3824 + $0x10] sm:$0xf]
      %v3830 = vld [vmem:[%s3824 + $0x14] sm:$0xf]
      %v3831 = vld [vmem:[%s3824 + $0x18] sm:$0xf]
      %v3832 = vld [vmem:[%s3824 + $0x1c] sm:$0xf]
      %v3833 = vld [vmem:[%s3824 + $0x20] sm:$0xf]
      %v3834 = vld [vmem:[%s3824 + $0x24] sm:$0xf]
      %v3835 = vld [vmem:[%s3824 + $0x28] sm:$0xf]
      %v3836 = vld [vmem:[%s3824 + $0x2c] sm:$0xf]
      %v3837 = vld [vmem:[%s3824 + $0x30] sm:$0xf]
      %v3838 = vld [vmem:[%s3824 + $0x34] sm:$0xf]
      %v3839 = vld [vmem:[%s3824 + $0x38] sm:$0xf]
      %v3840 = vld [vmem:[%s3824 + $0x3c] sm:$0xf]
      %v3857 = vunpack.c.l.b16 %v3825
      %v3858 = vunpack.c.l.b16 %v3826
      %v3859 = vunpack.c.l.b16 %v3827
      %v3860 = vunpack.c.l.b16 %v3828
      %v3861 = vunpack.c.l.b16 %v3829
      %v3862 = vunpack.c.l.b16 %v3830
      %v3863 = vunpack.c.l.b16 %v3831
      %v3864 = vunpack.c.l.b16 %v3832
      %v3865 = vunpack.c.l.b16 %v3833
      %v3866 = vunpack.c.l.b16 %v3834
      %v3867 = vunpack.c.l.b16 %v3835
      %v3868 = vunpack.c.l.b16 %v3836
      %v3869 = vunpack.c.l.b16 %v3837
      %v3870 = vunpack.c.l.b16 %v3838
      %v3871 = vunpack.c.l.b16 %v3839
      %v3872 = vunpack.c.l.b16 %v3840
      %v3873 = vpack.c.b16 %v3858, %v3857
      %v3874 = vpack.c.b16 %v3860, %v3859
      %v3875 = vpack.c.b16 %v3862, %v3861
      %v3876 = vpack.c.b16 %v3864, %v3863
      %v3877 = vpack.c.b16 %v3866, %v3865
      %v3878 = vpack.c.b16 %v3868, %v3867
      %v3879 = vpack.c.b16 %v3870, %v3869
      %v3880 = vpack.c.b16 %v3872, %v3871
      %3889 = vmatprep.subr.bf16.mxu0 0
      %3890 = vmatpush1.bf16.msra.mxu0 %v3873
      %3891 = vmatprep.subr.bf16.mxu0 0
      %3892 = vmatpush1.bf16.msra.mxu0 %v3874
      %3893 = vmatprep.subr.bf16.mxu0 0
      %3894 = vmatpush1.bf16.msra.mxu0 %v3875
      %3895 = vmatprep.subr.bf16.mxu0 0
      %3896 = vmatpush1.bf16.msra.mxu0 %v3876
      %3897 = vmatprep.subr.bf16.mxu0 0
      %3898 = vmatpush1.bf16.msra.mxu0 %v3877
      %3899 = vmatprep.subr.bf16.mxu0 0
      %3900 = vmatpush1.bf16.msra.mxu0 %v3878
      %3901 = vmatprep.subr.bf16.mxu0 0
      %3902 = vmatpush1.bf16.msra.mxu0 %v3879
      %3903 = vmatprep.subr.bf16.mxu0 0
      %3904 = vmatpush1.bf16.msra.mxu0 %v3880
      %3905 = vmatprep.subr.bf16.mxu0 0
      %3906 = vmatpush1.bf16.msra.mxu0 0
      %3907 = vmatprep.subr.bf16.mxu0 0
      %3908 = vmatpush1.bf16.msra.mxu0 0
      %3909 = vmatprep.subr.bf16.mxu0 0
      %3910 = vmatpush1.bf16.msra.mxu0 0
      %3911 = vmatprep.subr.bf16.mxu0 0
      %3912 = vmatpush1.bf16.msra.mxu0 0
      %3913 = vmatprep.subr.bf16.mxu0 0
      %3914 = vmatpush1.bf16.msra.mxu0 0
      %3915 = vmatprep.subr.bf16.mxu0 0
      %3916 = vmatpush1.bf16.msra.mxu0 0
      %3917 = vmatprep.subr.bf16.mxu0 0
      %3918 = vmatpush1.bf16.msra.mxu0 0
      %3919 = vmatprep.subr.bf16.mxu0 0
      %3920 = vmatpush1.bf16.msra.mxu0 0
      %3921 = vmatprep.mubr.bf16.mxu0 0
      %3922 = vmatmul.mubr.bf16.gmra.mrb[0].mxu0 %v3808
      %v3923 = vpop.f32.mrb[0].mxu0
      %v3924 = vadd.f32 0.0, %v3923
      %v3925 = vpop.f32.mrb[0].mxu0
      %v3926 = vpop.f32.mrb[0].mxu0
      %v3927 = vadd.f32 0.0, %v3926
      %v3928 = vpop.f32.mrb[0].mxu0
      %3929 = vmatprep.mubr.bf16.mxu0 0
      %3930 = vmatmul.mubr.bf16.gmra.mrb[0].mxu0 %v3809
      %v3931 = vpop.f32.mrb[0].mxu0
      %v3932 = vadd.f32 0.0, %v3931
      %v3933 = vpop.f32.mrb[0].mxu0
      %v3934 = vpop.f32.mrb[0].mxu0
      %v3935 = vadd.f32 0.0, %v3934
      %v3936 = vpop.f32.mrb[0].mxu0
      %3937 = vmatprep.mubr.bf16.mxu0 0
      %3938 = vmatmul.mubr.bf16.gmra.mrb[0].mxu0 %v3810
      %v3939 = vpop.f32.mrb[0].mxu0
      %v3940 = vadd.f32 0.0, %v3939
      %v3941 = vpop.f32.mrb[0].mxu0
      %v3942 = vpop.f32.mrb[0].mxu0
      %v3943 = vadd.f32 0.0, %v3942
      %v3944 = vpop.f32.mrb[0].mxu0
      %3945 = vmatprep.mubr.bf16.mxu0 0
      %3946 = vmatmul.mubr.bf16.gmra.mrb[0].mxu0 %v3811
      %v3947 = vpop.f32.mrb[0].mxu0
      %v3948 = vadd.f32 0.0, %v3947
      %v3949 = vpop.f32.mrb[0].mxu0
      %v3950 = vpop.f32.mrb[0].mxu0
      %v3951 = vadd.f32 0.0, %v3950
      %v3952 = vpop.f32.mrb[0].mxu0
      %3953 = vmatprep.mubr.bf16.mxu0 0
      %3954 = vmatmul.mubr.bf16.gmra.mrb[0].mxu0 %v3812
      %v3955 = vpop.f32.mrb[0].mxu0
      %v3956 = vadd.f32 0.0, %v3955
      %v3957 = vpop.f32.mrb[0].mxu0
      %v3958 = vpop.f32.mrb[0].mxu0
      %v3959 = vadd.f32 0.0, %v3958
      %v3960 = vpop.f32.mrb[0].mxu0
      %3961 = vmatprep.mubr.bf16.mxu0 0
      %3962 = vmatmul.mubr.bf16.gmra.mrb[0].mxu0 %v3813
      %v3963 = vpop.f32.mrb[0].mxu0
      %v3964 = vadd.f32 0.0, %v3963
      %v3965 = vpop.f32.mrb[0].mxu0
      %v3966 = vpop.f32.mrb[0].mxu0
      %v3967 = vadd.f32 0.0, %v3966
      %v3968 = vpop.f32.mrb[0].mxu0
      %3969 = vmatprep.mubr.bf16.mxu0 0
      %3970 = vmatmul.mubr.bf16.gmra.mrb[0].mxu0 %v3814
      %v3971 = vpop.f32.mrb[0].mxu0
      %v3972 = vadd.f32 0.0, %v3971
      %v3973 = vpop.f32.mrb[0].mxu0
      %v3974 = vpop.f32.mrb[0].mxu0
      %v3975 = vadd.f32 0.0, %v3974
      %v3976 = vpop.f32.mrb[0].mxu0
      %3977 = vmatprep.mubr.bf16.mxu0 0
      %3978 = vmatmul.mubr.bf16.gmra.mrb[0].mxu0 %v3815
      %v3979 = vpop.f32.mrb[0].mxu0
      %v3980 = vadd.f32 0.0, %v3979
      %v3981 = vpop.f32.mrb[0].mxu0
      %v3982 = vpop.f32.mrb[0].mxu0
      %v3983 = vadd.f32 0.0, %v3982
      %v3984 = vpop.f32.mrb[0].mxu0
      %3985 = vmatprep.mubr.bf16.mxu0 0
      %3986 = vmatmul.mubr.bf16.gmra.mrb[0].mxu0 %v3816
      %v3987 = vpop.f32.mrb[0].mxu0
      %v3988 = vadd.f32 0.0, %v3987
      %v3989 = vpop.f32.mrb[0].mxu0
      %v3990 = vpop.f32.mrb[0].mxu0
      %v3991 = vadd.f32 0.0, %v3990
      %v3992 = vpop.f32.mrb[0].mxu0
      %3993 = vmatprep.mubr.bf16.mxu0 0
      %3994 = vmatmul.mubr.bf16.gmra.mrb[0].mxu0 %v3817
      %v3995 = vpop.f32.mrb[0].mxu0
      %v3996 = vadd.f32 0.0, %v3995
      %v3997 = vpop.f32.mrb[0].mxu0
      %v3998 = vpop.f32.mrb[0].mxu0
      %v3999 = vadd.f32 0.0, %v3998
      %v4000 = vpop.f32.mrb[0].mxu0
      %4001 = vmatprep.mubr.bf16.mxu0 0
      %4002 = vmatmul.mubr.bf16.gmra.mrb[0].mxu0 %v3818
      %v4003 = vpop.f32.mrb[0].mxu0
      %v4004 = vadd.f32 0.0, %v4003
      %v4005 = vpop.f32.mrb[0].mxu0
      %v4006 = vpop.f32.mrb[0].mxu0
      %v4007 = vadd.f32 0.0, %v4006
      %v4008 = vpop.f32.mrb[0].mxu0
      %4009 = vmatprep.mubr.bf16.mxu0 0
      %4010 = vmatmul.mubr.bf16.gmra.mrb[0].mxu0 %v3819
      %v4011 = vpop.f32.mrb[0].mxu0
      %v4012 = vadd.f32 0.0, %v4011
      %v4013 = vpop.f32.mrb[0].mxu0
      %v4014 = vpop.f32.mrb[0].mxu0
      %v4015 = vadd.f32 0.0, %v4014
      %v4016 = vpop.f32.mrb[0].mxu0
      %4017 = vmatprep.mubr.bf16.mxu0 0
      %4018 = vmatmul.mubr.bf16.gmra.mrb[0].mxu0 %v3820
      %v4019 = vpop.f32.mrb[0].mxu0
      %v4020 = vadd.f32 0.0, %v4019
      %v4021 = vpop.f32.mrb[0].mxu0
      %v4022 = vpop.f32.mrb[0].mxu0
      %v4023 = vadd.f32 0.0, %v4022
      %v4024 = vpop.f32.mrb[0].mxu0
      %4025 = vmatprep.mubr.bf16.mxu0 0
      %4026 = vmatmul.mubr.bf16.gmra.mrb[0].mxu0 %v3821
      %v4027 = vpop.f32.mrb[0].mxu0
      %v4028 = vadd.f32 0.0, %v4027
      %v4029 = vpop.f32.mrb[0].mxu0
      %v4030 = vpop.f32.mrb[0].mxu0
      %v4031 = vadd.f32 0.0, %v4030
      %v4032 = vpop.f32.mrb[0].mxu0
      %4033 = vmatprep.mubr.bf16.mxu0 0
      %4034 = vmatmul.mubr.bf16.gmra.mrb[0].mxu0 %v3822
      %v4035 = vpop.f32.mrb[0].mxu0
      %v4036 = vadd.f32 0.0, %v4035
      %v4037 = vpop.f32.mrb[0].mxu0
      %v4038 = vpop.f32.mrb[0].mxu0
      %v4039 = vadd.f32 0.0, %v4038
      %v4040 = vpop.f32.mrb[0].mxu0
      %4041 = vmatprep.mubr.bf16.mxu0 0
      %4042 = vmatmul.mubr.bf16.gmra.mrb[0].mxu0 %v3823
      %v4043 = vpop.f32.mrb[0].mxu0
      %v4044 = vadd.f32 0.0, %v4043
      %v4045 = vpop.f32.mrb[0].mxu0
      %v4046 = vpop.f32.mrb[0].mxu0
      %v4047 = vadd.f32 0.0, %v4046
      %v4048 = vpop.f32.mrb[0].mxu0
      %4049 = vdwg.mxu0
      %v4050 = vadd.f32 %v3650, %v3924
      %v4051 = vadd.f32 %v3653, %v3927
      %v4052 = vadd.f32 %v3658, %v3932
      %v4053 = vadd.f32 %v3661, %v3935
      %v4054 = vadd.f32 %v3666, %v3940
      %v4055 = vadd.f32 %v3669, %v3943
      %v4056 = vadd.f32 %v3674, %v3948
      %v4057 = vadd.f32 %v3677, %v3951
      %v4058 = vadd.f32 %v3682, %v3956
      %v4059 = vadd.f32 %v3685, %v3959
      %v4060 = vadd.f32 %v3690, %v3964
      %v4061 = vadd.f32 %v3693, %v3967
      %v4062 = vadd.f32 %v3698, %v3972
      %v4063 = vadd.f32 %v3701, %v3975
      %v4064 = vadd.f32 %v3706, %v3980
      %v4065 = vadd.f32 %v3709, %v3983
      %v4066 = vadd.f32 %v3714, %v3988
      %v4067 = vadd.f32 %v3717, %v3991
      %v4068 = vadd.f32 %v3722, %v3996
      %v4069 = vadd.f32 %v3725, %v3999
      %v4070 = vadd.f32 %v3730, %v4004
      %v4071 = vadd.f32 %v3733, %v4007
      %v4072 = vadd.f32 %v3738, %v4012
      %v4073 = vadd.f32 %v3741, %v4015
      %v4074 = vadd.f32 %v3746, %v4020
      %v4075 = vadd.f32 %v3749, %v4023
      %v4076 = vadd.f32 %v3754, %v4028
      %v4077 = vadd.f32 %v3757, %v4031
      %v4078 = vadd.f32 %v3762, %v4036
      %v4079 = vadd.f32 %v3765, %v4039
      %v4080 = vadd.f32 %v3770, %v4044
      %v4081 = vadd.f32 %v3773, %v4047
      %v4082 = vld [vmem:[%s3196] sm:$0xff]
      %v4083 = vld [vmem:[%s3196 + $0x8] sm:$0xff]
      %v4084 = vld [vmem:[%s3196 + $0x18] sm:$0xff]
      %v4085 = vld [vmem:[%s3196 + $0x20] sm:$0xff]
      %v4086 = vld [vmem:[%s3196 + $0x30] sm:$0xff]
      %v4087 = vld [vmem:[%s3196 + $0x38] sm:$0xff]
      %v4088 = vld [vmem:[%s3196 + $0x48] sm:$0xff]
      %v4089 = vld [vmem:[%s3196 + $0x50] sm:$0xff]
      %v4090 = vld [vmem:[%s3196 + $0x60] sm:$0xff]
      %v4091 = vld [vmem:[%s3196 + $0x68] sm:$0xff]
      %v4092 = vld [vmem:[%s3196 + $0x78] sm:$0xff]
      %v4093 = vld [vmem:[%s3196 + $0x80] sm:$0xff]
      %v4094 = vld [vmem:[%s3196 + $0x90] sm:$0xff]
      %v4095 = vld [vmem:[%s3196 + $0x98] sm:$0xff]
      %v4096 = vld [vmem:[%s3196 + $0xa8] sm:$0xff]
      %v4097 = vld [vmem:[%s3196 + $0xb0] sm:$0xff]
      %v4098 = vld [vmem:[%s3196 + $0xc0] sm:$0xff]
      %v4099 = vld [vmem:[%s3196 + $0xc8] sm:$0xff]
      %v4100 = vld [vmem:[%s3196 + $0xd8] sm:$0xff]
      %v4101 = vld [vmem:[%s3196 + $0xe0] sm:$0xff]
      %v4102 = vld [vmem:[%s3196 + $0xf0] sm:$0xff]
      %v4103 = vld [vmem:[%s3196 + $0xf8] sm:$0xff]
      %v4104 = vld [vmem:[%s3196 + $0x108] sm:$0xff]
      %v4105 = vld [vmem:[%s3196 + $0x110] sm:$0xff]
      %v4106 = vld [vmem:[%s3196 + $0x120] sm:$0xff]
      %v4107 = vld [vmem:[%s3196 + $0x128] sm:$0xff]
      %v4108 = vld [vmem:[%s3196 + $0x138] sm:$0xff]
      %v4109 = vld [vmem:[%s3196 + $0x140] sm:$0xff]
      %v4110 = vld [vmem:[%s3196 + $0x150] sm:$0xff]
      %v4111 = vld [vmem:[%s3196 + $0x158] sm:$0xff]
      %v4112 = vld [vmem:[%s3196 + $0x168] sm:$0xff]
      %v4113 = vld [vmem:[%s3196 + $0x170] sm:$0xff]
      %v4114 = vpack.c.bf16 %v4083, %v4082
      %v4115 = vpack.c.bf16 %v4085, %v4084
      %v4116 = vpack.c.bf16 %v4087, %v4086
      %v4117 = vpack.c.bf16 %v4089, %v4088
      %v4118 = vpack.c.bf16 %v4091, %v4090
      %v4119 = vpack.c.bf16 %v4093, %v4092
      %v4120 = vpack.c.bf16 %v4095, %v4094
      %v4121 = vpack.c.bf16 %v4097, %v4096
      %v4122 = vpack.c.bf16 %v4099, %v4098
      %v4123 = vpack.c.bf16 %v4101, %v4100
      %v4124 = vpack.c.bf16 %v4103, %v4102
      %v4125 = vpack.c.bf16 %v4105, %v4104
      %v4126 = vpack.c.bf16 %v4107, %v4106
      %v4127 = vpack.c.bf16 %v4109, %v4108
      %v4128 = vpack.c.bf16 %v4111, %v4110
      %v4129 = vpack.c.bf16 %v4113, %v4112
      %s4130 = scalar_lea.vmem %s3, 192
      %v4131 = vld [vmem:[%s4130] sm:$0xf]
      %v4132 = vld [vmem:[%s4130 + $0x4] sm:$0xf]
      %v4133 = vld [vmem:[%s4130 + $0x8] sm:$0xf]
      %v4134 = vld [vmem:[%s4130 + $0xc] sm:$0xf]
      %v4135 = vld [vmem:[%s4130 + $0x10] sm:$0xf]
      %v4136 = vld [vmem:[%s4130 + $0x14] sm:$0xf]
      %v4137 = vld [vmem:[%s4130 + $0x18] sm:$0xf]
      %v4138 = vld [vmem:[%s4130 + $0x1c] sm:$0xf]
      %v4139 = vld [vmem:[%s4130 + $0x20] sm:$0xf]
      %v4140 = vld [vmem:[%s4130 + $0x24] sm:$0xf]
      %v4141 = vld [vmem:[%s4130 + $0x28] sm:$0xf]
      %v4142 = vld [vmem:[%s4130 + $0x2c] sm:$0xf]
      %v4143 = vld [vmem:[%s4130 + $0x30] sm:$0xf]
      %v4144 = vld [vmem:[%s4130 + $0x34] sm:$0xf]
      %v4145 = vld [vmem:[%s4130 + $0x38] sm:$0xf]
      %v4146 = vld [vmem:[%s4130 + $0x3c] sm:$0xf]
      %v4163 = vunpack.c.l.b16 %v4131
      %v4164 = vunpack.c.l.b16 %v4132
      %v4165 = vunpack.c.l.b16 %v4133
      %v4166 = vunpack.c.l.b16 %v4134
      %v4167 = vunpack.c.l.b16 %v4135
      %v4168 = vunpack.c.l.b16 %v4136
      %v4169 = vunpack.c.l.b16 %v4137
      %v4170 = vunpack.c.l.b16 %v4138
      %v4171 = vunpack.c.l.b16 %v4139
      %v4172 = vunpack.c.l.b16 %v4140
      %v4173 = vunpack.c.l.b16 %v4141
      %v4174 = vunpack.c.l.b16 %v4142
      %v4175 = vunpack.c.l.b16 %v4143
      %v4176 = vunpack.c.l.b16 %v4144
      %v4177 = vunpack.c.l.b16 %v4145
      %v4178 = vunpack.c.l.b16 %v4146
      %v4179 = vpack.c.b16 %v4164, %v4163
      %v4180 = vpack.c.b16 %v4166, %v4165
      %v4181 = vpack.c.b16 %v4168, %v4167
      %v4182 = vpack.c.b16 %v4170, %v4169
      %v4183 = vpack.c.b16 %v4172, %v4171
      %v4184 = vpack.c.b16 %v4174, %v4173
      %v4185 = vpack.c.b16 %v4176, %v4175
      %v4186 = vpack.c.b16 %v4178, %v4177
      %4195 = vmatprep.subr.bf16.mxu0 0
      %4196 = vmatpush1.bf16.msra.mxu0 %v4179
      %4197 = vmatprep.subr.bf16.mxu0 0
      %4198 = vmatpush1.bf16.msra.mxu0 %v4180
      %4199 = vmatprep.subr.bf16.mxu0 0
      %4200 = vmatpush1.bf16.msra.mxu0 %v4181
      %4201 = vmatprep.subr.bf16.mxu0 0
      %4202 = vmatpush1.bf16.msra.mxu0 %v4182
      %4203 = vmatprep.subr.bf16.mxu0 0
      %4204 = vmatpush1.bf16.msra.mxu0 %v4183
      %4205 = vmatprep.subr.bf16.mxu0 0
      %4206 = vmatpush1.bf16.msra.mxu0 %v4184
      %4207 = vmatprep.subr.bf16.mxu0 0
      %4208 = vmatpush1.bf16.msra.mxu0 %v4185
      %4209 = vmatprep.subr.bf16.mxu0 0
      %4210 = vmatpush1.bf16.msra.mxu0 %v4186
      %4211 = vmatprep.subr.bf16.mxu0 0
      %4212 = vmatpush1.bf16.msra.mxu0 0
      %4213 = vmatprep.subr.bf16.mxu0 0
      %4214 = vmatpush1.bf16.msra.mxu0 0
      %4215 = vmatprep.subr.bf16.mxu0 0
      %4216 = vmatpush1.bf16.msra.mxu0 0
      %4217 = vmatprep.subr.bf16.mxu0 0
      %4218 = vmatpush1.bf16.msra.mxu0 0
      %4219 = vmatprep.subr.bf16.mxu0 0
      %4220 = vmatpush1.bf16.msra.mxu0 0
      %4221 = vmatprep.subr.bf16.mxu0 0
      %4222 = vmatpush1.bf16.msra.mxu0 0
      %4223 = vmatprep.subr.bf16.mxu0 0
      %4224 = vmatpush1.bf16.msra.mxu0 0
      %4225 = vmatprep.subr.bf16.mxu0 0
      %4226 = vmatpush1.bf16.msra.mxu0 0
      %4227 = vmatprep.mubr.bf16.mxu0 0
      %4228 = vmatmul.mubr.bf16.gmra.mrb[0].mxu0 %v4114
      %v4229 = vpop.f32.mrb[0].mxu0
      %v4230 = vadd.f32 0.0, %v4229
      %v4231 = vpop.f32.mrb[0].mxu0
      %v4232 = vpop.f32.mrb[0].mxu0
      %v4233 = vadd.f32 0.0, %v4232
      %v4234 = vpop.f32.mrb[0].mxu0
      %4235 = vmatprep.mubr.bf16.mxu0 0
      %4236 = vmatmul.mubr.bf16.gmra.mrb[0].mxu0 %v4115
      %v4237 = vpop.f32.mrb[0].mxu0
      %v4238 = vadd.f32 0.0, %v4237
      %v4239 = vpop.f32.mrb[0].mxu0
      %v4240 = vpop.f32.mrb[0].mxu0
      %v4241 = vadd.f32 0.0, %v4240
      %v4242 = vpop.f32.mrb[0].mxu0
      %4243 = vmatprep.mubr.bf16.mxu0 0
      %4244 = vmatmul.mubr.bf16.gmra.mrb[0].mxu0 %v4116
      %v4245 = vpop.f32.mrb[0].mxu0
      %v4246 = vadd.f32 0.0, %v4245
      %v4247 = vpop.f32.mrb[0].mxu0
      %v4248 = vpop.f32.mrb[0].mxu0
      %v4249 = vadd.f32 0.0, %v4248
      %v4250 = vpop.f32.mrb[0].mxu0
      %4251 = vmatprep.mubr.bf16.mxu0 0
      %4252 = vmatmul.mubr.bf16.gmra.mrb[0].mxu0 %v4117
      %v4253 = vpop.f32.mrb[0].mxu0
      %v4254 = vadd.f32 0.0, %v4253
      %v4255 = vpop.f32.mrb[0].mxu0
      %v4256 = vpop.f32.mrb[0].mxu0
      %v4257 = vadd.f32 0.0, %v4256
      %v4258 = vpop.f32.mrb[0].mxu0
      %4259 = vmatprep.mubr.bf16.mxu0 0
      %4260 = vmatmul.mubr.bf16.gmra.mrb[0].mxu0 %v4118
      %v4261 = vpop.f32.mrb[0].mxu0
      %v4262 = vadd.f32 0.0, %v4261
      %v4263 = vpop.f32.mrb[0].mxu0
      %v4264 = vpop.f32.mrb[0].mxu0
      %v4265 = vadd.f32 0.0, %v4264
      %v4266 = vpop.f32.mrb[0].mxu0
      %4267 = vmatprep.mubr.bf16.mxu0 0
      %4268 = vmatmul.mubr.bf16.gmra.mrb[0].mxu0 %v4119
      %v4269 = vpop.f32.mrb[0].mxu0
      %v4270 = vadd.f32 0.0, %v4269
      %v4271 = vpop.f32.mrb[0].mxu0
      %v4272 = vpop.f32.mrb[0].mxu0
      %v4273 = vadd.f32 0.0, %v4272
      %v4274 = vpop.f32.mrb[0].mxu0
      %4275 = vmatprep.mubr.bf16.mxu0 0
      %4276 = vmatmul.mubr.bf16.gmra.mrb[0].mxu0 %v4120
      %v4277 = vpop.f32.mrb[0].mxu0
      %v4278 = vadd.f32 0.0, %v4277
      %v4279 = vpop.f32.mrb[0].mxu0
      %v4280 = vpop.f32.mrb[0].mxu0
      %v4281 = vadd.f32 0.0, %v4280
      %v4282 = vpop.f32.mrb[0].mxu0
      %4283 = vmatprep.mubr.bf16.mxu0 0
      %4284 = vmatmul.mubr.bf16.gmra.mrb[0].mxu0 %v4121
      %v4285 = vpop.f32.mrb[0].mxu0
      %v4286 = vadd.f32 0.0, %v4285
      %v4287 = vpop.f32.mrb[0].mxu0
      %v4288 = vpop.f32.mrb[0].mxu0
      %v4289 = vadd.f32 0.0, %v4288
      %v4290 = vpop.f32.mrb[0].mxu0
      %4291 = vmatprep.mubr.bf16.mxu0 0
      %4292 = vmatmul.mubr.bf16.gmra.mrb[0].mxu0 %v4122
      %v4293 = vpop.f32.mrb[0].mxu0
      %v4294 = vadd.f32 0.0, %v4293
      %v4295 = vpop.f32.mrb[0].mxu0
      %v4296 = vpop.f32.mrb[0].mxu0
      %v4297 = vadd.f32 0.0, %v4296
      %v4298 = vpop.f32.mrb[0].mxu0
      %4299 = vmatprep.mubr.bf16.mxu0 0
      %4300 = vmatmul.mubr.bf16.gmra.mrb[0].mxu0 %v4123
      %v4301 = vpop.f32.mrb[0].mxu0
      %v4302 = vadd.f32 0.0, %v4301
      %v4303 = vpop.f32.mrb[0].mxu0
      %v4304 = vpop.f32.mrb[0].mxu0
      %v4305 = vadd.f32 0.0, %v4304
      %v4306 = vpop.f32.mrb[0].mxu0
      %4307 = vmatprep.mubr.bf16.mxu0 0
      %4308 = vmatmul.mubr.bf16.gmra.mrb[0].mxu0 %v4124
      %v4309 = vpop.f32.mrb[0].mxu0
      %v4310 = vadd.f32 0.0, %v4309
      %v4311 = vpop.f32.mrb[0].mxu0
      %v4312 = vpop.f32.mrb[0].mxu0
      %v4313 = vadd.f32 0.0, %v4312
      %v4314 = vpop.f32.mrb[0].mxu0
      %4315 = vmatprep.mubr.bf16.mxu0 0
      %4316 = vmatmul.mubr.bf16.gmra.mrb[0].mxu0 %v4125
      %v4317 = vpop.f32.mrb[0].mxu0
      %v4318 = vadd.f32 0.0, %v4317
      %v4319 = vpop.f32.mrb[0].mxu0
      %v4320 = vpop.f32.mrb[0].mxu0
      %v4321 = vadd.f32 0.0, %v4320
      %v4322 = vpop.f32.mrb[0].mxu0
      %4323 = vmatprep.mubr.bf16.mxu0 0
      %4324 = vmatmul.mubr.bf16.gmra.mrb[0].mxu0 %v4126
      %v4325 = vpop.f32.mrb[0].mxu0
      %v4326 = vadd.f32 0.0, %v4325
      %v4327 = vpop.f32.mrb[0].mxu0
      %v4328 = vpop.f32.mrb[0].mxu0
      %v4329 = vadd.f32 0.0, %v4328
      %v4330 = vpop.f32.mrb[0].mxu0
      %4331 = vmatprep.mubr.bf16.mxu0 0
      %4332 = vmatmul.mubr.bf16.gmra.mrb[0].mxu0 %v4127
      %v4333 = vpop.f32.mrb[0].mxu0
      %v4334 = vadd.f32 0.0, %v4333
      %v4335 = vpop.f32.mrb[0].mxu0
      %v4336 = vpop.f32.mrb[0].mxu0
      %v4337 = vadd.f32 0.0, %v4336
      %v4338 = vpop.f32.mrb[0].mxu0
      %4339 = vmatprep.mubr.bf16.mxu0 0
      %4340 = vmatmul.mubr.bf16.gmra.mrb[0].mxu0 %v4128
      %v4341 = vpop.f32.mrb[0].mxu0
      %v4342 = vadd.f32 0.0, %v4341
      %v4343 = vpop.f32.mrb[0].mxu0
      %v4344 = vpop.f32.mrb[0].mxu0
      %v4345 = vadd.f32 0.0, %v4344
      %v4346 = vpop.f32.mrb[0].mxu0
      %4347 = vmatprep.mubr.bf16.mxu0 0
      %4348 = vmatmul.mubr.bf16.gmra.mrb[0].mxu0 %v4129
      %v4349 = vpop.f32.mrb[0].mxu0
      %v4350 = vadd.f32 0.0, %v4349
      %v4351 = vpop.f32.mrb[0].mxu0
      %v4352 = vpop.f32.mrb[0].mxu0
      %v4353 = vadd.f32 0.0, %v4352
      %v4354 = vpop.f32.mrb[0].mxu0
      %4355 = vdwg.mxu0
      %v4356 = vadd.f32 %v4050, %v4230
      %v4357 = vadd.f32 %v4051, %v4233
      %v4358 = vadd.f32 %v4052, %v4238
      %v4359 = vadd.f32 %v4053, %v4241
      %v4360 = vadd.f32 %v4054, %v4246
      %v4361 = vadd.f32 %v4055, %v4249
      %v4362 = vadd.f32 %v4056, %v4254
      %v4363 = vadd.f32 %v4057, %v4257
      %v4364 = vadd.f32 %v4058, %v4262
      %v4365 = vadd.f32 %v4059, %v4265
      %v4366 = vadd.f32 %v4060, %v4270
      %v4367 = vadd.f32 %v4061, %v4273
      %v4368 = vadd.f32 %v4062, %v4278
      %v4369 = vadd.f32 %v4063, %v4281
      %v4370 = vadd.f32 %v4064, %v4286
      %v4371 = vadd.f32 %v4065, %v4289
      %v4372 = vadd.f32 %v4066, %v4294
      %v4373 = vadd.f32 %v4067, %v4297
      %v4374 = vadd.f32 %v4068, %v4302
      %v4375 = vadd.f32 %v4069, %v4305
      %v4376 = vadd.f32 %v4070, %v4310
      %v4377 = vadd.f32 %v4071, %v4313
      %v4378 = vadd.f32 %v4072, %v4318
      %v4379 = vadd.f32 %v4073, %v4321
      %v4380 = vadd.f32 %v4074, %v4326
      %v4381 = vadd.f32 %v4075, %v4329
      %v4382 = vadd.f32 %v4076, %v4334
      %v4383 = vadd.f32 %v4077, %v4337
      %v4384 = vadd.f32 %v4078, %v4342
      %v4385 = vadd.f32 %v4079, %v4345
      %v4386 = vadd.f32 %v4080, %v4350
      %v4387 = vadd.f32 %v4081, %v4353
      %v4388 = vld [vmem:[%s3196 + $0x1] sm:$0xff]
      %v4389 = vld [vmem:[%s3196 + $0x9] sm:$0xff]
      %v4390 = vld [vmem:[%s3196 + $0x19] sm:$0xff]
      %v4391 = vld [vmem:[%s3196 + $0x21] sm:$0xff]
      %v4392 = vld [vmem:[%s3196 + $0x31] sm:$0xff]
      %v4393 = vld [vmem:[%s3196 + $0x39] sm:$0xff]
      %v4394 = vld [vmem:[%s3196 + $0x49] sm:$0xff]
      %v4395 = vld [vmem:[%s3196 + $0x51] sm:$0xff]
      %v4396 = vld [vmem:[%s3196 + $0x61] sm:$0xff]
      %v4397 = vld [vmem:[%s3196 + $0x69] sm:$0xff]
      %v4398 = vld [vmem:[%s3196 + $0x79] sm:$0xff]
      %v4399 = vld [vmem:[%s3196 + $0x81] sm:$0xff]
      %v4400 = vld [vmem:[%s3196 + $0x91] sm:$0xff]
      %v4401 = vld [vmem:[%s3196 + $0x99] sm:$0xff]
      %v4402 = vld [vmem:[%s3196 + $0xa9] sm:$0xff]
      %v4403 = vld [vmem:[%s3196 + $0xb1] sm:$0xff]
      %v4404 = vld [vmem:[%s3196 + $0xc1] sm:$0xff]
      %v4405 = vld [vmem:[%s3196 + $0xc9] sm:$0xff]
      %v4406 = vld [vmem:[%s3196 + $0xd9] sm:$0xff]
      %v4407 = vld [vmem:[%s3196 + $0xe1] sm:$0xff]
      %v4408 = vld [vmem:[%s3196 + $0xf1] sm:$0xff]
      %v4409 = vld [vmem:[%s3196 + $0xf9] sm:$0xff]
      %v4410 = vld [vmem:[%s3196 + $0x109] sm:$0xff]
      %v4411 = vld [vmem:[%s3196 + $0x111] sm:$0xff]
      %v4412 = vld [vmem:[%s3196 + $0x121] sm:$0xff]
      %v4413 = vld [vmem:[%s3196 + $0x129] sm:$0xff]
      %v4414 = vld [vmem:[%s3196 + $0x139] sm:$0xff]
      %v4415 = vld [vmem:[%s3196 + $0x141] sm:$0xff]
      %v4416 = vld [vmem:[%s3196 + $0x151] sm:$0xff]
      %v4417 = vld [vmem:[%s3196 + $0x159] sm:$0xff]
      %v4418 = vld [vmem:[%s3196 + $0x169] sm:$0xff]
      %v4419 = vld [vmem:[%s3196 + $0x171] sm:$0xff]
      %v4420 = vpack.c.bf16 %v4389, %v4388
      %v4421 = vpack.c.bf16 %v4391, %v4390
      %v4422 = vpack.c.bf16 %v4393, %v4392
      %v4423 = vpack.c.bf16 %v4395, %v4394
      %v4424 = vpack.c.bf16 %v4397, %v4396
      %v4425 = vpack.c.bf16 %v4399, %v4398
      %v4426 = vpack.c.bf16 %v4401, %v4400
      %v4427 = vpack.c.bf16 %v4403, %v4402
      %v4428 = vpack.c.bf16 %v4405, %v4404
      %v4429 = vpack.c.bf16 %v4407, %v4406
      %v4430 = vpack.c.bf16 %v4409, %v4408
      %v4431 = vpack.c.bf16 %v4411, %v4410
      %v4432 = vpack.c.bf16 %v4413, %v4412
      %v4433 = vpack.c.bf16 %v4415, %v4414
      %v4434 = vpack.c.bf16 %v4417, %v4416
      %v4435 = vpack.c.bf16 %v4419, %v4418
      %s4436 = scalar_lea.vmem %s3, 256
      %v4437 = vld [vmem:[%s4436] sm:$0xf]
      %v4438 = vld [vmem:[%s4436 + $0x4] sm:$0xf]
      %v4439 = vld [vmem:[%s4436 + $0x8] sm:$0xf]
      %v4440 = vld [vmem:[%s4436 + $0xc] sm:$0xf]
      %v4441 = vld [vmem:[%s4436 + $0x10] sm:$0xf]
      %v4442 = vld [vmem:[%s4436 + $0x14] sm:$0xf]
      %v4443 = vld [vmem:[%s4436 + $0x18] sm:$0xf]
      %v4444 = vld [vmem:[%s4436 + $0x1c] sm:$0xf]
      %v4445 = vld [vmem:[%s4436 + $0x20] sm:$0xf]
      %v4446 = vld [vmem:[%s4436 + $0x24] sm:$0xf]
      %v4447 = vld [vmem:[%s4436 + $0x28] sm:$0xf]
      %v4448 = vld [vmem:[%s4436 + $0x2c] sm:$0xf]
      %v4449 = vld [vmem:[%s4436 + $0x30] sm:$0xf]
      %v4450 = vld [vmem:[%s4436 + $0x34] sm:$0xf]
      %v4451 = vld [vmem:[%s4436 + $0x38] sm:$0xf]
      %v4452 = vld [vmem:[%s4436 + $0x3c] sm:$0xf]
      %v4469 = vunpack.c.l.b16 %v4437
      %v4470 = vunpack.c.l.b16 %v4438
      %v4471 = vunpack.c.l.b16 %v4439
      %v4472 = vunpack.c.l.b16 %v4440
      %v4473 = vunpack.c.l.b16 %v4441
      %v4474 = vunpack.c.l.b16 %v4442
      %v4475 = vunpack.c.l.b16 %v4443
      %v4476 = vunpack.c.l.b16 %v4444
      %v4477 = vunpack.c.l.b16 %v4445
      %v4478 = vunpack.c.l.b16 %v4446
      %v4479 = vunpack.c.l.b16 %v4447
      %v4480 = vunpack.c.l.b16 %v4448
      %v4481 = vunpack.c.l.b16 %v4449
      %v4482 = vunpack.c.l.b16 %v4450
      %v4483 = vunpack.c.l.b16 %v4451
      %v4484 = vunpack.c.l.b16 %v4452
      %v4485 = vpack.c.b16 %v4470, %v4469
      %v4486 = vpack.c.b16 %v4472, %v4471
      %v4487 = vpack.c.b16 %v4474, %v4473
      %v4488 = vpack.c.b16 %v4476, %v4475
      %v4489 = vpack.c.b16 %v4478, %v4477
      %v4490 = vpack.c.b16 %v4480, %v4479
      %v4491 = vpack.c.b16 %v4482, %v4481
      %v4492 = vpack.c.b16 %v4484, %v4483
      %4501 = vmatprep.subr.bf16.mxu0 0
      %4502 = vmatpush1.bf16.msra.mxu0 %v4485
      %4503 = vmatprep.subr.bf16.mxu0 0
      %4504 = vmatpush1.bf16.msra.mxu0 %v4486
      %4505 = vmatprep.subr.bf16.mxu0 0
      %4506 = vmatpush1.bf16.msra.mxu0 %v4487
      %4507 = vmatprep.subr.bf16.mxu0 0
      %4508 = vmatpush1.bf16.msra.mxu0 %v4488
      %4509 = vmatprep.subr.bf16.mxu0 0
      %4510 = vmatpush1.bf16.msra.mxu0 %v4489
      %4511 = vmatprep.subr.bf16.mxu0 0
      %4512 = vmatpush1.bf16.msra.mxu0 %v4490
      %4513 = vmatprep.subr.bf16.mxu0 0
      %4514 = vmatpush1.bf16.msra.mxu0 %v4491
      %4515 = vmatprep.subr.bf16.mxu0 0
      %4516 = vmatpush1.bf16.msra.mxu0 %v4492
      %4517 = vmatprep.subr.bf16.mxu0 0
      %4518 = vmatpush1.bf16.msra.mxu0 0
      %4519 = vmatprep.subr.bf16.mxu0 0
      %4520 = vmatpush1.bf16.msra.mxu0 0
      %4521 = vmatprep.subr.bf16.mxu0 0
      %4522 = vmatpush1.bf16.msra.mxu0 0
      %4523 = vmatprep.subr.bf16.mxu0 0
      %4524 = vmatpush1.bf16.msra.mxu0 0
      %4525 = vmatprep.subr.bf16.mxu0 0
      %4526 = vmatpush1.bf16.msra.mxu0 0
      %4527 = vmatprep.subr.bf16.mxu0 0
      %4528 = vmatpush1.bf16.msra.mxu0 0
      %4529 = vmatprep.subr.bf16.mxu0 0
      %4530 = vmatpush1.bf16.msra.mxu0 0
      %4531 = vmatprep.subr.bf16.mxu0 0
      %4532 = vmatpush1.bf16.msra.mxu0 0
      %4533 = vmatprep.mubr.bf16.mxu0 0
      %4534 = vmatmul.mubr.bf16.gmra.mrb[0].mxu0 %v4420
      %v4535 = vpop.f32.mrb[0].mxu0
      %v4536 = vadd.f32 0.0, %v4535
      %v4537 = vpop.f32.mrb[0].mxu0
      %v4538 = vpop.f32.mrb[0].mxu0
      %v4539 = vadd.f32 0.0, %v4538
      %v4540 = vpop.f32.mrb[0].mxu0
      %4541 = vmatprep.mubr.bf16.mxu0 0
      %4542 = vmatmul.mubr.bf16.gmra.mrb[0].mxu0 %v4421
      %v4543 = vpop.f32.mrb[0].mxu0
      %v4544 = vadd.f32 0.0, %v4543
      %v4545 = vpop.f32.mrb[0].mxu0
      %v4546 = vpop.f32.mrb[0].mxu0
      %v4547 = vadd.f32 0.0, %v4546
      %v4548 = vpop.f32.mrb[0].mxu0
      %4549 = vmatprep.mubr.bf16.mxu0 0
      %4550 = vmatmul.mubr.bf16.gmra.mrb[0].mxu0 %v4422
      %v4551 = vpop.f32.mrb[0].mxu0
      %v4552 = vadd.f32 0.0, %v4551
      %v4553 = vpop.f32.mrb[0].mxu0
      %v4554 = vpop.f32.mrb[0].mxu0
      %v4555 = vadd.f32 0.0, %v4554
      %v4556 = vpop.f32.mrb[0].mxu0
      %4557 = vmatprep.mubr.bf16.mxu0 0
      %4558 = vmatmul.mubr.bf16.gmra.mrb[0].mxu0 %v4423
      %v4559 = vpop.f32.mrb[0].mxu0
      %v4560 = vadd.f32 0.0, %v4559
      %v4561 = vpop.f32.mrb[0].mxu0
      %v4562 = vpop.f32.mrb[0].mxu0
      %v4563 = vadd.f32 0.0, %v4562
      %v4564 = vpop.f32.mrb[0].mxu0
      %4565 = vmatprep.mubr.bf16.mxu0 0
      %4566 = vmatmul.mubr.bf16.gmra.mrb[0].mxu0 %v4424
      %v4567 = vpop.f32.mrb[0].mxu0
      %v4568 = vadd.f32 0.0, %v4567
      %v4569 = vpop.f32.mrb[0].mxu0
      %v4570 = vpop.f32.mrb[0].mxu0
      %v4571 = vadd.f32 0.0, %v4570
      %v4572 = vpop.f32.mrb[0].mxu0
      %4573 = vmatprep.mubr.bf16.mxu0 0
      %4574 = vmatmul.mubr.bf16.gmra.mrb[0].mxu0 %v4425
      %v4575 = vpop.f32.mrb[0].mxu0
      %v4576 = vadd.f32 0.0, %v4575
      %v4577 = vpop.f32.mrb[0].mxu0
      %v4578 = vpop.f32.mrb[0].mxu0
      %v4579 = vadd.f32 0.0, %v4578
      %v4580 = vpop.f32.mrb[0].mxu0
      %4581 = vmatprep.mubr.bf16.mxu0 0
      %4582 = vmatmul.mubr.bf16.gmra.mrb[0].mxu0 %v4426
      %v4583 = vpop.f32.mrb[0].mxu0
      %v4584 = vadd.f32 0.0, %v4583
      %v4585 = vpop.f32.mrb[0].mxu0
      %v4586 = vpop.f32.mrb[0].mxu0
      %v4587 = vadd.f32 0.0, %v4586
      %v4588 = vpop.f32.mrb[0].mxu0
      %4589 = vmatprep.mubr.bf16.mxu0 0
      %4590 = vmatmul.mubr.bf16.gmra.mrb[0].mxu0 %v4427
      %v4591 = vpop.f32.mrb[0].mxu0
      %v4592 = vadd.f32 0.0, %v4591
      %v4593 = vpop.f32.mrb[0].mxu0
      %v4594 = vpop.f32.mrb[0].mxu0
      %v4595 = vadd.f32 0.0, %v4594
      %v4596 = vpop.f32.mrb[0].mxu0
      %4597 = vmatprep.mubr.bf16.mxu0 0
      %4598 = vmatmul.mubr.bf16.gmra.mrb[0].mxu0 %v4428
      %v4599 = vpop.f32.mrb[0].mxu0
      %v4600 = vadd.f32 0.0, %v4599
      %v4601 = vpop.f32.mrb[0].mxu0
      %v4602 = vpop.f32.mrb[0].mxu0
      %v4603 = vadd.f32 0.0, %v4602
      %v4604 = vpop.f32.mrb[0].mxu0
      %4605 = vmatprep.mubr.bf16.mxu0 0
      %4606 = vmatmul.mubr.bf16.gmra.mrb[0].mxu0 %v4429
      %v4607 = vpop.f32.mrb[0].mxu0
      %v4608 = vadd.f32 0.0, %v4607
      %v4609 = vpop.f32.mrb[0].mxu0
      %v4610 = vpop.f32.mrb[0].mxu0
      %v4611 = vadd.f32 0.0, %v4610
      %v4612 = vpop.f32.mrb[0].mxu0
      %4613 = vmatprep.mubr.bf16.mxu0 0
      %4614 = vmatmul.mubr.bf16.gmra.mrb[0].mxu0 %v4430
      %v4615 = vpop.f32.mrb[0].mxu0
      %v4616 = vadd.f32 0.0, %v4615
      %v4617 = vpop.f32.mrb[0].mxu0
      %v4618 = vpop.f32.mrb[0].mxu0
      %v4619 = vadd.f32 0.0, %v4618
      %v4620 = vpop.f32.mrb[0].mxu0
      %4621 = vmatprep.mubr.bf16.mxu0 0
      %4622 = vmatmul.mubr.bf16.gmra.mrb[0].mxu0 %v4431
      %v4623 = vpop.f32.mrb[0].mxu0
      %v4624 = vadd.f32 0.0, %v4623
      %v4625 = vpop.f32.mrb[0].mxu0
      %v4626 = vpop.f32.mrb[0].mxu0
      %v4627 = vadd.f32 0.0, %v4626
      %v4628 = vpop.f32.mrb[0].mxu0
      %4629 = vmatprep.mubr.bf16.mxu0 0
      %4630 = vmatmul.mubr.bf16.gmra.mrb[0].mxu0 %v4432
      %v4631 = vpop.f32.mrb[0].mxu0
      %v4632 = vadd.f32 0.0, %v4631
      %v4633 = vpop.f32.mrb[0].mxu0
      %v4634 = vpop.f32.mrb[0].mxu0
      %v4635 = vadd.f32 0.0, %v4634
      %v4636 = vpop.f32.mrb[0].mxu0
      %4637 = vmatprep.mubr.bf16.mxu0 0
      %4638 = vmatmul.mubr.bf16.gmra.mrb[0].mxu0 %v4433
      %v4639 = vpop.f32.mrb[0].mxu0
      %v4640 = vadd.f32 0.0, %v4639
      %v4641 = vpop.f32.mrb[0].mxu0
      %v4642 = vpop.f32.mrb[0].mxu0
      %v4643 = vadd.f32 0.0, %v4642
      %v4644 = vpop.f32.mrb[0].mxu0
      %4645 = vmatprep.mubr.bf16.mxu0 0
      %4646 = vmatmul.mubr.bf16.gmra.mrb[0].mxu0 %v4434
      %v4647 = vpop.f32.mrb[0].mxu0
      %v4648 = vadd.f32 0.0, %v4647
      %v4649 = vpop.f32.mrb[0].mxu0
      %v4650 = vpop.f32.mrb[0].mxu0
      %v4651 = vadd.f32 0.0, %v4650
      %v4652 = vpop.f32.mrb[0].mxu0
      %4653 = vmatprep.mubr.bf16.mxu0 0
      %4654 = vmatmul.mubr.bf16.gmra.mrb[0].mxu0 %v4435
      %v4655 = vpop.f32.mrb[0].mxu0
      %v4656 = vadd.f32 0.0, %v4655
      %v4657 = vpop.f32.mrb[0].mxu0
      %v4658 = vpop.f32.mrb[0].mxu0
      %v4659 = vadd.f32 0.0, %v4658
      %v4660 = vpop.f32.mrb[0].mxu0
      %4661 = vdwg.mxu0
      %v4662 = vadd.f32 %v4356, %v4536
      %v4663 = vadd.f32 %v4357, %v4539
      %v4664 = vadd.f32 %v4358, %v4544
      %v4665 = vadd.f32 %v4359, %v4547
      %v4666 = vadd.f32 %v4360, %v4552
      %v4667 = vadd.f32 %v4361, %v4555
      %v4668 = vadd.f32 %v4362, %v4560
      %v4669 = vadd.f32 %v4363, %v4563
      %v4670 = vadd.f32 %v4364, %v4568
      %v4671 = vadd.f32 %v4365, %v4571
      %v4672 = vadd.f32 %v4366, %v4576
      %v4673 = vadd.f32 %v4367, %v4579
      %v4674 = vadd.f32 %v4368, %v4584
      %v4675 = vadd.f32 %v4369, %v4587
      %v4676 = vadd.f32 %v4370, %v4592
      %v4677 = vadd.f32 %v4371, %v4595
      %v4678 = vadd.f32 %v4372, %v4600
      %v4679 = vadd.f32 %v4373, %v4603
      %v4680 = vadd.f32 %v4374, %v4608
      %v4681 = vadd.f32 %v4375, %v4611
      %v4682 = vadd.f32 %v4376, %v4616
      %v4683 = vadd.f32 %v4377, %v4619
      %v4684 = vadd.f32 %v4378, %v4624
      %v4685 = vadd.f32 %v4379, %v4627
      %v4686 = vadd.f32 %v4380, %v4632
      %v4687 = vadd.f32 %v4381, %v4635
      %v4688 = vadd.f32 %v4382, %v4640
      %v4689 = vadd.f32 %v4383, %v4643
      %v4690 = vadd.f32 %v4384, %v4648
      %v4691 = vadd.f32 %v4385, %v4651
      %v4692 = vadd.f32 %v4386, %v4656
      %v4693 = vadd.f32 %v4387, %v4659
      %v4694 = vld [vmem:[%s3196 + $0x2] sm:$0xff]
      %v4695 = vld [vmem:[%s3196 + $0xa] sm:$0xff]
      %v4696 = vld [vmem:[%s3196 + $0x1a] sm:$0xff]
      %v4697 = vld [vmem:[%s3196 + $0x22] sm:$0xff]
      %v4698 = vld [vmem:[%s3196 + $0x32] sm:$0xff]
      %v4699 = vld [vmem:[%s3196 + $0x3a] sm:$0xff]
      %v4700 = vld [vmem:[%s3196 + $0x4a] sm:$0xff]
      %v4701 = vld [vmem:[%s3196 + $0x52] sm:$0xff]
      %v4702 = vld [vmem:[%s3196 + $0x62] sm:$0xff]
      %v4703 = vld [vmem:[%s3196 + $0x6a] sm:$0xff]
      %v4704 = vld [vmem:[%s3196 + $0x7a] sm:$0xff]
      %v4705 = vld [vmem:[%s3196 + $0x82] sm:$0xff]
      %v4706 = vld [vmem:[%s3196 + $0x92] sm:$0xff]
      %v4707 = vld [vmem:[%s3196 + $0x9a] sm:$0xff]
      %v4708 = vld [vmem:[%s3196 + $0xaa] sm:$0xff]
      %v4709 = vld [vmem:[%s3196 + $0xb2] sm:$0xff]
      %v4710 = vld [vmem:[%s3196 + $0xc2] sm:$0xff]
      %v4711 = vld [vmem:[%s3196 + $0xca] sm:$0xff]
      %v4712 = vld [vmem:[%s3196 + $0xda] sm:$0xff]
      %v4713 = vld [vmem:[%s3196 + $0xe2] sm:$0xff]
      %v4714 = vld [vmem:[%s3196 + $0xf2] sm:$0xff]
      %v4715 = vld [vmem:[%s3196 + $0xfa] sm:$0xff]
      %v4716 = vld [vmem:[%s3196 + $0x10a] sm:$0xff]
      %v4717 = vld [vmem:[%s3196 + $0x112] sm:$0xff]
      %v4718 = vld [vmem:[%s3196 + $0x122] sm:$0xff]
      %v4719 = vld [vmem:[%s3196 + $0x12a] sm:$0xff]
      %v4720 = vld [vmem:[%s3196 + $0x13a] sm:$0xff]
      %v4721 = vld [vmem:[%s3196 + $0x142] sm:$0xff]
      %v4722 = vld [vmem:[%s3196 + $0x152] sm:$0xff]
      %v4723 = vld [vmem:[%s3196 + $0x15a] sm:$0xff]
      %v4724 = vld [vmem:[%s3196 + $0x16a] sm:$0xff]
      %v4725 = vld [vmem:[%s3196 + $0x172] sm:$0xff]
      %v4726 = vpack.c.bf16 %v4695, %v4694
      %v4727 = vpack.c.bf16 %v4697, %v4696
      %v4728 = vpack.c.bf16 %v4699, %v4698
      %v4729 = vpack.c.bf16 %v4701, %v4700
      %v4730 = vpack.c.bf16 %v4703, %v4702
      %v4731 = vpack.c.bf16 %v4705, %v4704
      %v4732 = vpack.c.bf16 %v4707, %v4706
      %v4733 = vpack.c.bf16 %v4709, %v4708
      %v4734 = vpack.c.bf16 %v4711, %v4710
      %v4735 = vpack.c.bf16 %v4713, %v4712
      %v4736 = vpack.c.bf16 %v4715, %v4714
      %v4737 = vpack.c.bf16 %v4717, %v4716
      %v4738 = vpack.c.bf16 %v4719, %v4718
      %v4739 = vpack.c.bf16 %v4721, %v4720
      %v4740 = vpack.c.bf16 %v4723, %v4722
      %v4741 = vpack.c.bf16 %v4725, %v4724
      %s4742 = scalar_lea.vmem %s3, 320
      %v4743 = vld [vmem:[%s4742] sm:$0xf]
      %v4744 = vld [vmem:[%s4742 + $0x4] sm:$0xf]
      %v4745 = vld [vmem:[%s4742 + $0x8] sm:$0xf]
      %v4746 = vld [vmem:[%s4742 + $0xc] sm:$0xf]
      %v4747 = vld [vmem:[%s4742 + $0x10] sm:$0xf]
      %v4748 = vld [vmem:[%s4742 + $0x14] sm:$0xf]
      %v4749 = vld [vmem:[%s4742 + $0x18] sm:$0xf]
      %v4750 = vld [vmem:[%s4742 + $0x1c] sm:$0xf]
      %v4751 = vld [vmem:[%s4742 + $0x20] sm:$0xf]
      %v4752 = vld [vmem:[%s4742 + $0x24] sm:$0xf]
      %v4753 = vld [vmem:[%s4742 + $0x28] sm:$0xf]
      %v4754 = vld [vmem:[%s4742 + $0x2c] sm:$0xf]
      %v4755 = vld [vmem:[%s4742 + $0x30] sm:$0xf]
      %v4756 = vld [vmem:[%s4742 + $0x34] sm:$0xf]
      %v4757 = vld [vmem:[%s4742 + $0x38] sm:$0xf]
      %v4758 = vld [vmem:[%s4742 + $0x3c] sm:$0xf]
      %v4775 = vunpack.c.l.b16 %v4743
      %v4776 = vunpack.c.l.b16 %v4744
      %v4777 = vunpack.c.l.b16 %v4745
      %v4778 = vunpack.c.l.b16 %v4746
      %v4779 = vunpack.c.l.b16 %v4747
      %v4780 = vunpack.c.l.b16 %v4748
      %v4781 = vunpack.c.l.b16 %v4749
      %v4782 = vunpack.c.l.b16 %v4750
      %v4783 = vunpack.c.l.b16 %v4751
      %v4784 = vunpack.c.l.b16 %v4752
      %v4785 = vunpack.c.l.b16 %v4753
      %v4786 = vunpack.c.l.b16 %v4754
      %v4787 = vunpack.c.l.b16 %v4755
      %v4788 = vunpack.c.l.b16 %v4756
      %v4789 = vunpack.c.l.b16 %v4757
      %v4790 = vunpack.c.l.b16 %v4758
      %v4791 = vpack.c.b16 %v4776, %v4775
      %v4792 = vpack.c.b16 %v4778, %v4777
      %v4793 = vpack.c.b16 %v4780, %v4779
      %v4794 = vpack.c.b16 %v4782, %v4781
      %v4795 = vpack.c.b16 %v4784, %v4783
      %v4796 = vpack.c.b16 %v4786, %v4785
      %v4797 = vpack.c.b16 %v4788, %v4787
      %v4798 = vpack.c.b16 %v4790, %v4789
      %4807 = vmatprep.subr.bf16.mxu0 0
      %4808 = vmatpush1.bf16.msra.mxu0 %v4791
      %4809 = vmatprep.subr.bf16.mxu0 0
      %4810 = vmatpush1.bf16.msra.mxu0 %v4792
      %4811 = vmatprep.subr.bf16.mxu0 0
      %4812 = vmatpush1.bf16.msra.mxu0 %v4793
      %4813 = vmatprep.subr.bf16.mxu0 0
      %4814 = vmatpush1.bf16.msra.mxu0 %v4794
      %4815 = vmatprep.subr.bf16.mxu0 0
      %4816 = vmatpush1.bf16.msra.mxu0 %v4795
      %4817 = vmatprep.subr.bf16.mxu0 0
      %4818 = vmatpush1.bf16.msra.mxu0 %v4796
      %4819 = vmatprep.subr.bf16.mxu0 0
      %4820 = vmatpush1.bf16.msra.mxu0 %v4797
      %4821 = vmatprep.subr.bf16.mxu0 0
      %4822 = vmatpush1.bf16.msra.mxu0 %v4798
      %4823 = vmatprep.subr.bf16.mxu0 0
      %4824 = vmatpush1.bf16.msra.mxu0 0
      %4825 = vmatprep.subr.bf16.mxu0 0
      %4826 = vmatpush1.bf16.msra.mxu0 0
      %4827 = vmatprep.subr.bf16.mxu0 0
      %4828 = vmatpush1.bf16.msra.mxu0 0
      %4829 = vmatprep.subr.bf16.mxu0 0
      %4830 = vmatpush1.bf16.msra.mxu0 0
      %4831 = vmatprep.subr.bf16.mxu0 0
      %4832 = vmatpush1.bf16.msra.mxu0 0
      %4833 = vmatprep.subr.bf16.mxu0 0
      %4834 = vmatpush1.bf16.msra.mxu0 0
      %4835 = vmatprep.subr.bf16.mxu0 0
      %4836 = vmatpush1.bf16.msra.mxu0 0
      %4837 = vmatprep.subr.bf16.mxu0 0
      %4838 = vmatpush1.bf16.msra.mxu0 0
      %4839 = vmatprep.mubr.bf16.mxu0 0
      %4840 = vmatmul.mubr.bf16.gmra.mrb[0].mxu0 %v4726
      %v4841 = vpop.f32.mrb[0].mxu0
      %v4842 = vadd.f32 0.0, %v4841
      %v4843 = vpop.f32.mrb[0].mxu0
      %v4844 = vpop.f32.mrb[0].mxu0
      %v4845 = vadd.f32 0.0, %v4844
      %v4846 = vpop.f32.mrb[0].mxu0
      %4847 = vmatprep.mubr.bf16.mxu0 0
      %4848 = vmatmul.mubr.bf16.gmra.mrb[0].mxu0 %v4727
      %v4849 = vpop.f32.mrb[0].mxu0
      %v4850 = vadd.f32 0.0, %v4849
      %v4851 = vpop.f32.mrb[0].mxu0
      %v4852 = vpop.f32.mrb[0].mxu0
      %v4853 = vadd.f32 0.0, %v4852
      %v4854 = vpop.f32.mrb[0].mxu0
      %4855 = vmatprep.mubr.bf16.mxu0 0
      %4856 = vmatmul.mubr.bf16.gmra.mrb[0].mxu0 %v4728
      %v4857 = vpop.f32.mrb[0].mxu0
      %v4858 = vadd.f32 0.0, %v4857
      %v4859 = vpop.f32.mrb[0].mxu0
      %v4860 = vpop.f32.mrb[0].mxu0
      %v4861 = vadd.f32 0.0, %v4860
      %v4862 = vpop.f32.mrb[0].mxu0
      %4863 = vmatprep.mubr.bf16.mxu0 0
      %4864 = vmatmul.mubr.bf16.gmra.mrb[0].mxu0 %v4729
      %v4865 = vpop.f32.mrb[0].mxu0
      %v4866 = vadd.f32 0.0, %v4865
      %v4867 = vpop.f32.mrb[0].mxu0
      %v4868 = vpop.f32.mrb[0].mxu0
      %v4869 = vadd.f32 0.0, %v4868
      %v4870 = vpop.f32.mrb[0].mxu0
      %4871 = vmatprep.mubr.bf16.mxu0 0
      %4872 = vmatmul.mubr.bf16.gmra.mrb[0].mxu0 %v4730
      %v4873 = vpop.f32.mrb[0].mxu0
      %v4874 = vadd.f32 0.0, %v4873
      %v4875 = vpop.f32.mrb[0].mxu0
      %v4876 = vpop.f32.mrb[0].mxu0
      %v4877 = vadd.f32 0.0, %v4876
      %v4878 = vpop.f32.mrb[0].mxu0
      %4879 = vmatprep.mubr.bf16.mxu0 0
      %4880 = vmatmul.mubr.bf16.gmra.mrb[0].mxu0 %v4731
      %v4881 = vpop.f32.mrb[0].mxu0
      %v4882 = vadd.f32 0.0, %v4881
      %v4883 = vpop.f32.mrb[0].mxu0
      %v4884 = vpop.f32.mrb[0].mxu0
      %v4885 = vadd.f32 0.0, %v4884
      %v4886 = vpop.f32.mrb[0].mxu0
      %4887 = vmatprep.mubr.bf16.mxu0 0
      %4888 = vmatmul.mubr.bf16.gmra.mrb[0].mxu0 %v4732
      %v4889 = vpop.f32.mrb[0].mxu0
      %v4890 = vadd.f32 0.0, %v4889
      %v4891 = vpop.f32.mrb[0].mxu0
      %v4892 = vpop.f32.mrb[0].mxu0
      %v4893 = vadd.f32 0.0, %v4892
      %v4894 = vpop.f32.mrb[0].mxu0
      %4895 = vmatprep.mubr.bf16.mxu0 0
      %4896 = vmatmul.mubr.bf16.gmra.mrb[0].mxu0 %v4733
      %v4897 = vpop.f32.mrb[0].mxu0
      %v4898 = vadd.f32 0.0, %v4897
      %v4899 = vpop.f32.mrb[0].mxu0
      %v4900 = vpop.f32.mrb[0].mxu0
      %v4901 = vadd.f32 0.0, %v4900
      %v4902 = vpop.f32.mrb[0].mxu0
      %4903 = vmatprep.mubr.bf16.mxu0 0
      %4904 = vmatmul.mubr.bf16.gmra.mrb[0].mxu0 %v4734
      %v4905 = vpop.f32.mrb[0].mxu0
      %v4906 = vadd.f32 0.0, %v4905
      %v4907 = vpop.f32.mrb[0].mxu0
      %v4908 = vpop.f32.mrb[0].mxu0
      %v4909 = vadd.f32 0.0, %v4908
      %v4910 = vpop.f32.mrb[0].mxu0
      %4911 = vmatprep.mubr.bf16.mxu0 0
      %4912 = vmatmul.mubr.bf16.gmra.mrb[0].mxu0 %v4735
      %v4913 = vpop.f32.mrb[0].mxu0
      %v4914 = vadd.f32 0.0, %v4913
      %v4915 = vpop.f32.mrb[0].mxu0
      %v4916 = vpop.f32.mrb[0].mxu0
      %v4917 = vadd.f32 0.0, %v4916
      %v4918 = vpop.f32.mrb[0].mxu0
      %4919 = vmatprep.mubr.bf16.mxu0 0
      %4920 = vmatmul.mubr.bf16.gmra.mrb[0].mxu0 %v4736
      %v4921 = vpop.f32.mrb[0].mxu0
      %v4922 = vadd.f32 0.0, %v4921
      %v4923 = vpop.f32.mrb[0].mxu0
      %v4924 = vpop.f32.mrb[0].mxu0
      %v4925 = vadd.f32 0.0, %v4924
      %v4926 = vpop.f32.mrb[0].mxu0
      %4927 = vmatprep.mubr.bf16.mxu0 0
      %4928 = vmatmul.mubr.bf16.gmra.mrb[0].mxu0 %v4737
      %v4929 = vpop.f32.mrb[0].mxu0
      %v4930 = vadd.f32 0.0, %v4929
      %v4931 = vpop.f32.mrb[0].mxu0
      %v4932 = vpop.f32.mrb[0].mxu0
      %v4933 = vadd.f32 0.0, %v4932
      %v4934 = vpop.f32.mrb[0].mxu0
      %4935 = vmatprep.mubr.bf16.mxu0 0
      %4936 = vmatmul.mubr.bf16.gmra.mrb[0].mxu0 %v4738
      %v4937 = vpop.f32.mrb[0].mxu0
      %v4938 = vadd.f32 0.0, %v4937
      %v4939 = vpop.f32.mrb[0].mxu0
      %v4940 = vpop.f32.mrb[0].mxu0
      %v4941 = vadd.f32 0.0, %v4940
      %v4942 = vpop.f32.mrb[0].mxu0
      %4943 = vmatprep.mubr.bf16.mxu0 0
      %4944 = vmatmul.mubr.bf16.gmra.mrb[0].mxu0 %v4739
      %v4945 = vpop.f32.mrb[0].mxu0
      %v4946 = vadd.f32 0.0, %v4945
      %v4947 = vpop.f32.mrb[0].mxu0
      %v4948 = vpop.f32.mrb[0].mxu0
      %v4949 = vadd.f32 0.0, %v4948
      %v4950 = vpop.f32.mrb[0].mxu0
      %4951 = vmatprep.mubr.bf16.mxu0 0
      %4952 = vmatmul.mubr.bf16.gmra.mrb[0].mxu0 %v4740
      %v4953 = vpop.f32.mrb[0].mxu0
      %v4954 = vadd.f32 0.0, %v4953
      %v4955 = vpop.f32.mrb[0].mxu0
      %v4956 = vpop.f32.mrb[0].mxu0
      %v4957 = vadd.f32 0.0, %v4956
      %v4958 = vpop.f32.mrb[0].mxu0
      %4959 = vmatprep.mubr.bf16.mxu0 0
      %4960 = vmatmul.mubr.bf16.gmra.mrb[0].mxu0 %v4741
      %v4961 = vpop.f32.mrb[0].mxu0
      %v4962 = vadd.f32 0.0, %v4961
      %v4963 = vpop.f32.mrb[0].mxu0
      %v4964 = vpop.f32.mrb[0].mxu0
      %v4965 = vadd.f32 0.0, %v4964
      %v4966 = vpop.f32.mrb[0].mxu0
      %4967 = vdwg.mxu0
      %v4968 = vadd.f32 %v4662, %v4842
      %v4969 = vadd.f32 %v4663, %v4845
      %v4970 = vadd.f32 %v4664, %v4850
      %v4971 = vadd.f32 %v4665, %v4853
      %v4972 = vadd.f32 %v4666, %v4858
      %v4973 = vadd.f32 %v4667, %v4861
      %v4974 = vadd.f32 %v4668, %v4866
      %v4975 = vadd.f32 %v4669, %v4869
      %v4976 = vadd.f32 %v4670, %v4874
      %v4977 = vadd.f32 %v4671, %v4877
      %v4978 = vadd.f32 %v4672, %v4882
      %v4979 = vadd.f32 %v4673, %v4885
      %v4980 = vadd.f32 %v4674, %v4890
      %v4981 = vadd.f32 %v4675, %v4893
      %v4982 = vadd.f32 %v4676, %v4898
      %v4983 = vadd.f32 %v4677, %v4901
      %v4984 = vadd.f32 %v4678, %v4906
      %v4985 = vadd.f32 %v4679, %v4909
      %v4986 = vadd.f32 %v4680, %v4914
      %v4987 = vadd.f32 %v4681, %v4917
      %v4988 = vadd.f32 %v4682, %v4922
      %v4989 = vadd.f32 %v4683, %v4925
      %v4990 = vadd.f32 %v4684, %v4930
      %v4991 = vadd.f32 %v4685, %v4933
      %v4992 = vadd.f32 %v4686, %v4938
      %v4993 = vadd.f32 %v4687, %v4941
      %v4994 = vadd.f32 %v4688, %v4946
      %v4995 = vadd.f32 %v4689, %v4949
      %v4996 = vadd.f32 %v4690, %v4954
      %v4997 = vadd.f32 %v4691, %v4957
      %v4998 = vadd.f32 %v4692, %v4962
      %v4999 = vadd.f32 %v4693, %v4965
      %s5000 = scalar_lea.vmem [#allocation3], 48
      %v5001 = vld [vmem:[%s5000] sm:$0xff]
      %v5002 = vld [vmem:[%s5000 + $0x8] sm:$0xff]
      %v5003 = vld [vmem:[%s5000 + $0x18] sm:$0xff]
      %v5004 = vld [vmem:[%s5000 + $0x20] sm:$0xff]
      %v5005 = vld [vmem:[%s5000 + $0x30] sm:$0xff]
      %v5006 = vld [vmem:[%s5000 + $0x38] sm:$0xff]
      %v5007 = vld [vmem:[%s5000 + $0x48] sm:$0xff]
      %v5008 = vld [vmem:[%s5000 + $0x50] sm:$0xff]
      %v5009 = vld [vmem:[%s5000 + $0x60] sm:$0xff]
      %v5010 = vld [vmem:[%s5000 + $0x68] sm:$0xff]
      %v5011 = vld [vmem:[%s5000 + $0x78] sm:$0xff]
      %v5012 = vld [vmem:[%s5000 + $0x80] sm:$0xff]
      %v5013 = vld [vmem:[%s5000 + $0x90] sm:$0xff]
      %v5014 = vld [vmem:[%s5000 + $0x98] sm:$0xff]
      %v5015 = vld [vmem:[%s5000 + $0xa8] sm:$0xff]
      %v5016 = vld [vmem:[%s5000 + $0xb0] sm:$0xff]
      %v5017 = vld [vmem:[%s5000 + $0xc0] sm:$0xff]
      %v5018 = vld [vmem:[%s5000 + $0xc8] sm:$0xff]
      %v5019 = vld [vmem:[%s5000 + $0xd8] sm:$0xff]
      %v5020 = vld [vmem:[%s5000 + $0xe0] sm:$0xff]
      %v5021 = vld [vmem:[%s5000 + $0xf0] sm:$0xff]
      %v5022 = vld [vmem:[%s5000 + $0xf8] sm:$0xff]
      %v5023 = vld [vmem:[%s5000 + $0x108] sm:$0xff]
      %v5024 = vld [vmem:[%s5000 + $0x110] sm:$0xff]
      %v5025 = vld [vmem:[%s5000 + $0x120] sm:$0xff]
      %v5026 = vld [vmem:[%s5000 + $0x128] sm:$0xff]
      %v5027 = vld [vmem:[%s5000 + $0x138] sm:$0xff]
      %v5028 = vld [vmem:[%s5000 + $0x140] sm:$0xff]
      %v5029 = vld [vmem:[%s5000 + $0x150] sm:$0xff]
      %v5030 = vld [vmem:[%s5000 + $0x158] sm:$0xff]
      %v5031 = vld [vmem:[%s5000 + $0x168] sm:$0xff]
      %v5032 = vld [vmem:[%s5000 + $0x170] sm:$0xff]
      %v5033 = vpack.c.bf16 %v5002, %v5001
      %v5034 = vpack.c.bf16 %v5004, %v5003
      %v5035 = vpack.c.bf16 %v5006, %v5005
      %v5036 = vpack.c.bf16 %v5008, %v5007
      %v5037 = vpack.c.bf16 %v5010, %v5009
      %v5038 = vpack.c.bf16 %v5012, %v5011
      %v5039 = vpack.c.bf16 %v5014, %v5013
      %v5040 = vpack.c.bf16 %v5016, %v5015
      %v5041 = vpack.c.bf16 %v5018, %v5017
      %v5042 = vpack.c.bf16 %v5020, %v5019
      %v5043 = vpack.c.bf16 %v5022, %v5021
      %v5044 = vpack.c.bf16 %v5024, %v5023
      %v5045 = vpack.c.bf16 %v5026, %v5025
      %v5046 = vpack.c.bf16 %v5028, %v5027
      %v5047 = vpack.c.bf16 %v5030, %v5029
      %v5048 = vpack.c.bf16 %v5032, %v5031
      %s5049 = scalar_lea.vmem %s3, 384
      %v5050 = vld [vmem:[%s5049] sm:$0xf]
      %v5051 = vld [vmem:[%s5049 + $0x4] sm:$0xf]
      %v5052 = vld [vmem:[%s5049 + $0x8] sm:$0xf]
      %v5053 = vld [vmem:[%s5049 + $0xc] sm:$0xf]
      %v5054 = vld [vmem:[%s5049 + $0x10] sm:$0xf]
      %v5055 = vld [vmem:[%s5049 + $0x14] sm:$0xf]
      %v5056 = vld [vmem:[%s5049 + $0x18] sm:$0xf]
      %v5057 = vld [vmem:[%s5049 + $0x1c] sm:$0xf]
      %v5058 = vld [vmem:[%s5049 + $0x20] sm:$0xf]
      %v5059 = vld [vmem:[%s5049 + $0x24] sm:$0xf]
      %v5060 = vld [vmem:[%s5049 + $0x28] sm:$0xf]
      %v5061 = vld [vmem:[%s5049 + $0x2c] sm:$0xf]
      %v5062 = vld [vmem:[%s5049 + $0x30] sm:$0xf]
      %v5063 = vld [vmem:[%s5049 + $0x34] sm:$0xf]
      %v5064 = vld [vmem:[%s5049 + $0x38] sm:$0xf]
      %v5065 = vld [vmem:[%s5049 + $0x3c] sm:$0xf]
      %v5082 = vunpack.c.l.b16 %v5050
      %v5083 = vunpack.c.l.b16 %v5051
      %v5084 = vunpack.c.l.b16 %v5052
      %v5085 = vunpack.c.l.b16 %v5053
      %v5086 = vunpack.c.l.b16 %v5054
      %v5087 = vunpack.c.l.b16 %v5055
      %v5088 = vunpack.c.l.b16 %v5056
      %v5089 = vunpack.c.l.b16 %v5057
      %v5090 = vunpack.c.l.b16 %v5058
      %v5091 = vunpack.c.l.b16 %v5059
      %v5092 = vunpack.c.l.b16 %v5060
      %v5093 = vunpack.c.l.b16 %v5061
      %v5094 = vunpack.c.l.b16 %v5062
      %v5095 = vunpack.c.l.b16 %v5063
      %v5096 = vunpack.c.l.b16 %v5064
      %v5097 = vunpack.c.l.b16 %v5065
      %v5098 = vpack.c.b16 %v5083, %v5082
      %v5099 = vpack.c.b16 %v5085, %v5084
      %v5100 = vpack.c.b16 %v5087, %v5086
      %v5101 = vpack.c.b16 %v5089, %v5088
      %v5102 = vpack.c.b16 %v5091, %v5090
      %v5103 = vpack.c.b16 %v5093, %v5092
      %v5104 = vpack.c.b16 %v5095, %v5094
      %v5105 = vpack.c.b16 %v5097, %v5096
      %5114 = vmatprep.subr.bf16.mxu0 0
      %5115 = vmatpush1.bf16.msra.mxu0 %v5098
      %5116 = vmatprep.subr.bf16.mxu0 0
      %5117 = vmatpush1.bf16.msra.mxu0 %v5099
      %5118 = vmatprep.subr.bf16.mxu0 0
      %5119 = vmatpush1.bf16.msra.mxu0 %v5100
      %5120 = vmatprep.subr.bf16.mxu0 0
      %5121 = vmatpush1.bf16.msra.mxu0 %v5101
      %5122 = vmatprep.subr.bf16.mxu0 0
      %5123 = vmatpush1.bf16.msra.mxu0 %v5102
      %5124 = vmatprep.subr.bf16.mxu0 0
      %5125 = vmatpush1.bf16.msra.mxu0 %v5103
      %5126 = vmatprep.subr.bf16.mxu0 0
      %5127 = vmatpush1.bf16.msra.mxu0 %v5104
      %5128 = vmatprep.subr.bf16.mxu0 0
      %5129 = vmatpush1.bf16.msra.mxu0 %v5105
      %5130 = vmatprep.subr.bf16.mxu0 0
      %5131 = vmatpush1.bf16.msra.mxu0 0
      %5132 = vmatprep.subr.bf16.mxu0 0
      %5133 = vmatpush1.bf16.msra.mxu0 0
      %5134 = vmatprep.subr.bf16.mxu0 0
      %5135 = vmatpush1.bf16.msra.mxu0 0
      %5136 = vmatprep.subr.bf16.mxu0 0
      %5137 = vmatpush1.bf16.msra.mxu0 0
      %5138 = vmatprep.subr.bf16.mxu0 0
      %5139 = vmatpush1.bf16.msra.mxu0 0
      %5140 = vmatprep.subr.bf16.mxu0 0
      %5141 = vmatpush1.bf16.msra.mxu0 0
      %5142 = vmatprep.subr.bf16.mxu0 0
      %5143 = vmatpush1.bf16.msra.mxu0 0
      %5144 = vmatprep.subr.bf16.mxu0 0
      %5145 = vmatpush1.bf16.msra.mxu0 0
      %5146 = vmatprep.mubr.bf16.mxu0 0
      %5147 = vmatmul.mubr.bf16.gmra.mrb[0].mxu0 %v5033
      %v5148 = vpop.f32.mrb[0].mxu0
      %v5149 = vadd.f32 0.0, %v5148
      %v5150 = vpop.f32.mrb[0].mxu0
      %v5151 = vpop.f32.mrb[0].mxu0
      %v5152 = vadd.f32 0.0, %v5151
      %v5153 = vpop.f32.mrb[0].mxu0
      %5154 = vmatprep.mubr.bf16.mxu0 0
      %5155 = vmatmul.mubr.bf16.gmra.mrb[0].mxu0 %v5034
      %v5156 = vpop.f32.mrb[0].mxu0
      %v5157 = vadd.f32 0.0, %v5156
      %v5158 = vpop.f32.mrb[0].mxu0
      %v5159 = vpop.f32.mrb[0].mxu0
      %v5160 = vadd.f32 0.0, %v5159
      %v5161 = vpop.f32.mrb[0].mxu0
      %5162 = vmatprep.mubr.bf16.mxu0 0
      %5163 = vmatmul.mubr.bf16.gmra.mrb[0].mxu0 %v5035
      %v5164 = vpop.f32.mrb[0].mxu0
      %v5165 = vadd.f32 0.0, %v5164
      %v5166 = vpop.f32.mrb[0].mxu0
      %v5167 = vpop.f32.mrb[0].mxu0
      %v5168 = vadd.f32 0.0, %v5167
      %v5169 = vpop.f32.mrb[0].mxu0
      %5170 = vmatprep.mubr.bf16.mxu0 0
      %5171 = vmatmul.mubr.bf16.gmra.mrb[0].mxu0 %v5036
      %v5172 = vpop.f32.mrb[0].mxu0
      %v5173 = vadd.f32 0.0, %v5172
      %v5174 = vpop.f32.mrb[0].mxu0
      %v5175 = vpop.f32.mrb[0].mxu0
      %v5176 = vadd.f32 0.0, %v5175
      %v5177 = vpop.f32.mrb[0].mxu0
      %5178 = vmatprep.mubr.bf16.mxu0 0
      %5179 = vmatmul.mubr.bf16.gmra.mrb[0].mxu0 %v5037
      %v5180 = vpop.f32.mrb[0].mxu0
      %v5181 = vadd.f32 0.0, %v5180
      %v5182 = vpop.f32.mrb[0].mxu0
      %v5183 = vpop.f32.mrb[0].mxu0
      %v5184 = vadd.f32 0.0, %v5183
      %v5185 = vpop.f32.mrb[0].mxu0
      %5186 = vmatprep.mubr.bf16.mxu0 0
      %5187 = vmatmul.mubr.bf16.gmra.mrb[0].mxu0 %v5038
      %v5188 = vpop.f32.mrb[0].mxu0
      %v5189 = vadd.f32 0.0, %v5188
      %v5190 = vpop.f32.mrb[0].mxu0
      %v5191 = vpop.f32.mrb[0].mxu0
      %v5192 = vadd.f32 0.0, %v5191
      %v5193 = vpop.f32.mrb[0].mxu0
      %5194 = vmatprep.mubr.bf16.mxu0 0
      %5195 = vmatmul.mubr.bf16.gmra.mrb[0].mxu0 %v5039
      %v5196 = vpop.f32.mrb[0].mxu0
      %v5197 = vadd.f32 0.0, %v5196
      %v5198 = vpop.f32.mrb[0].mxu0
      %v5199 = vpop.f32.mrb[0].mxu0
      %v5200 = vadd.f32 0.0, %v5199
      %v5201 = vpop.f32.mrb[0].mxu0
      %5202 = vmatprep.mubr.bf16.mxu0 0
      %5203 = vmatmul.mubr.bf16.gmra.mrb[0].mxu0 %v5040
      %v5204 = vpop.f32.mrb[0].mxu0
      %v5205 = vadd.f32 0.0, %v5204
      %v5206 = vpop.f32.mrb[0].mxu0
      %v5207 = vpop.f32.mrb[0].mxu0
      %v5208 = vadd.f32 0.0, %v5207
      %v5209 = vpop.f32.mrb[0].mxu0
      %5210 = vmatprep.mubr.bf16.mxu0 0
      %5211 = vmatmul.mubr.bf16.gmra.mrb[0].mxu0 %v5041
      %v5212 = vpop.f32.mrb[0].mxu0
      %v5213 = vadd.f32 0.0, %v5212
      %v5214 = vpop.f32.mrb[0].mxu0
      %v5215 = vpop.f32.mrb[0].mxu0
      %v5216 = vadd.f32 0.0, %v5215
      %v5217 = vpop.f32.mrb[0].mxu0
      %5218 = vmatprep.mubr.bf16.mxu0 0
      %5219 = vmatmul.mubr.bf16.gmra.mrb[0].mxu0 %v5042
      %v5220 = vpop.f32.mrb[0].mxu0
      %v5221 = vadd.f32 0.0, %v5220
      %v5222 = vpop.f32.mrb[0].mxu0
      %v5223 = vpop.f32.mrb[0].mxu0
      %v5224 = vadd.f32 0.0, %v5223
      %v5225 = vpop.f32.mrb[0].mxu0
      %5226 = vmatprep.mubr.bf16.mxu0 0
      %5227 = vmatmul.mubr.bf16.gmra.mrb[0].mxu0 %v5043
      %v5228 = vpop.f32.mrb[0].mxu0
      %v5229 = vadd.f32 0.0, %v5228
      %v5230 = vpop.f32.mrb[0].mxu0
      %v5231 = vpop.f32.mrb[0].mxu0
      %v5232 = vadd.f32 0.0, %v5231
      %v5233 = vpop.f32.mrb[0].mxu0
      %5234 = vmatprep.mubr.bf16.mxu0 0
      %5235 = vmatmul.mubr.bf16.gmra.mrb[0].mxu0 %v5044
      %v5236 = vpop.f32.mrb[0].mxu0
      %v5237 = vadd.f32 0.0, %v5236
      %v5238 = vpop.f32.mrb[0].mxu0
      %v5239 = vpop.f32.mrb[0].mxu0
      %v5240 = vadd.f32 0.0, %v5239
      %v5241 = vpop.f32.mrb[0].mxu0
      %5242 = vmatprep.mubr.bf16.mxu0 0
      %5243 = vmatmul.mubr.bf16.gmra.mrb[0].mxu0 %v5045
      %v5244 = vpop.f32.mrb[0].mxu0
      %v5245 = vadd.f32 0.0, %v5244
      %v5246 = vpop.f32.mrb[0].mxu0
      %v5247 = vpop.f32.mrb[0].mxu0
      %v5248 = vadd.f32 0.0, %v5247
      %v5249 = vpop.f32.mrb[0].mxu0
      %5250 = vmatprep.mubr.bf16.mxu0 0
      %5251 = vmatmul.mubr.bf16.gmra.mrb[0].mxu0 %v5046
      %v5252 = vpop.f32.mrb[0].mxu0
      %v5253 = vadd.f32 0.0, %v5252
      %v5254 = vpop.f32.mrb[0].mxu0
      %v5255 = vpop.f32.mrb[0].mxu0
      %v5256 = vadd.f32 0.0, %v5255
      %v5257 = vpop.f32.mrb[0].mxu0
      %5258 = vmatprep.mubr.bf16.mxu0 0
      %5259 = vmatmul.mubr.bf16.gmra.mrb[0].mxu0 %v5047
      %v5260 = vpop.f32.mrb[0].mxu0
      %v5261 = vadd.f32 0.0, %v5260
      %v5262 = vpop.f32.mrb[0].mxu0
      %v5263 = vpop.f32.mrb[0].mxu0
      %v5264 = vadd.f32 0.0, %v5263
      %v5265 = vpop.f32.mrb[0].mxu0
      %5266 = vmatprep.mubr.bf16.mxu0 0
      %5267 = vmatmul.mubr.bf16.gmra.mrb[0].mxu0 %v5048
      %v5268 = vpop.f32.mrb[0].mxu0
      %v5269 = vadd.f32 0.0, %v5268
      %v5270 = vpop.f32.mrb[0].mxu0
      %v5271 = vpop.f32.mrb[0].mxu0
      %v5272 = vadd.f32 0.0, %v5271
      %v5273 = vpop.f32.mrb[0].mxu0
      %5274 = vdwg.mxu0
      %v5275 = vadd.f32 %v4968, %v5149
      %v5276 = vadd.f32 %v4969, %v5152
      %v5277 = vadd.f32 %v4970, %v5157
      %v5278 = vadd.f32 %v4971, %v5160
      %v5279 = vadd.f32 %v4972, %v5165
      %v5280 = vadd.f32 %v4973, %v5168
      %v5281 = vadd.f32 %v4974, %v5173
      %v5282 = vadd.f32 %v4975, %v5176
      %v5283 = vadd.f32 %v4976, %v5181
      %v5284 = vadd.f32 %v4977, %v5184
      %v5285 = vadd.f32 %v4978, %v5189
      %v5286 = vadd.f32 %v4979, %v5192
      %v5287 = vadd.f32 %v4980, %v5197
      %v5288 = vadd.f32 %v4981, %v5200
      %v5289 = vadd.f32 %v4982, %v5205
      %v5290 = vadd.f32 %v4983, %v5208
      %v5291 = vadd.f32 %v4984, %v5213
      %v5292 = vadd.f32 %v4985, %v5216
      %v5293 = vadd.f32 %v4986, %v5221
      %v5294 = vadd.f32 %v4987, %v5224
      %v5295 = vadd.f32 %v4988, %v5229
      %v5296 = vadd.f32 %v4989, %v5232
      %v5297 = vadd.f32 %v4990, %v5237
      %v5298 = vadd.f32 %v4991, %v5240
      %v5299 = vadd.f32 %v4992, %v5245
      %v5300 = vadd.f32 %v4993, %v5248
      %v5301 = vadd.f32 %v4994, %v5253
      %v5302 = vadd.f32 %v4995, %v5256
      %v5303 = vadd.f32 %v4996, %v5261
      %v5304 = vadd.f32 %v4997, %v5264
      %v5305 = vadd.f32 %v4998, %v5269
      %v5306 = vadd.f32 %v4999, %v5272
      %v5307 = vld [vmem:[%s5000 + $0x1] sm:$0xff]
      %v5308 = vld [vmem:[%s5000 + $0x9] sm:$0xff]
      %v5309 = vld [vmem:[%s5000 + $0x19] sm:$0xff]
      %v5310 = vld [vmem:[%s5000 + $0x21] sm:$0xff]
      %v5311 = vld [vmem:[%s5000 + $0x31] sm:$0xff]
      %v5312 = vld [vmem:[%s5000 + $0x39] sm:$0xff]
      %v5313 = vld [vmem:[%s5000 + $0x49] sm:$0xff]
      %v5314 = vld [vmem:[%s5000 + $0x51] sm:$0xff]
      %v5315 = vld [vmem:[%s5000 + $0x61] sm:$0xff]
      %v5316 = vld [vmem:[%s5000 + $0x69] sm:$0xff]
      %v5317 = vld [vmem:[%s5000 + $0x79] sm:$0xff]
      %v5318 = vld [vmem:[%s5000 + $0x81] sm:$0xff]
      %v5319 = vld [vmem:[%s5000 + $0x91] sm:$0xff]
      %v5320 = vld [vmem:[%s5000 + $0x99] sm:$0xff]
      %v5321 = vld [vmem:[%s5000 + $0xa9] sm:$0xff]
      %v5322 = vld [vmem:[%s5000 + $0xb1] sm:$0xff]
      %v5323 = vld [vmem:[%s5000 + $0xc1] sm:$0xff]
      %v5324 = vld [vmem:[%s5000 + $0xc9] sm:$0xff]
      %v5325 = vld [vmem:[%s5000 + $0xd9] sm:$0xff]
      %v5326 = vld [vmem:[%s5000 + $0xe1] sm:$0xff]
      %v5327 = vld [vmem:[%s5000 + $0xf1] sm:$0xff]
      %v5328 = vld [vmem:[%s5000 + $0xf9] sm:$0xff]
      %v5329 = vld [vmem:[%s5000 + $0x109] sm:$0xff]
      %v5330 = vld [vmem:[%s5000 + $0x111] sm:$0xff]
      %v5331 = vld [vmem:[%s5000 + $0x121] sm:$0xff]
      %v5332 = vld [vmem:[%s5000 + $0x129] sm:$0xff]
      %v5333 = vld [vmem:[%s5000 + $0x139] sm:$0xff]
      %v5334 = vld [vmem:[%s5000 + $0x141] sm:$0xff]
      %v5335 = vld [vmem:[%s5000 + $0x151] sm:$0xff]
      %v5336 = vld [vmem:[%s5000 + $0x159] sm:$0xff]
      %v5337 = vld [vmem:[%s5000 + $0x169] sm:$0xff]
      %v5338 = vld [vmem:[%s5000 + $0x171] sm:$0xff]
      %v5339 = vpack.c.bf16 %v5308, %v5307
      %v5340 = vpack.c.bf16 %v5310, %v5309
      %v5341 = vpack.c.bf16 %v5312, %v5311
      %v5342 = vpack.c.bf16 %v5314, %v5313
      %v5343 = vpack.c.bf16 %v5316, %v5315
      %v5344 = vpack.c.bf16 %v5318, %v5317
      %v5345 = vpack.c.bf16 %v5320, %v5319
      %v5346 = vpack.c.bf16 %v5322, %v5321
      %v5347 = vpack.c.bf16 %v5324, %v5323
      %v5348 = vpack.c.bf16 %v5326, %v5325
      %v5349 = vpack.c.bf16 %v5328, %v5327
      %v5350 = vpack.c.bf16 %v5330, %v5329
      %v5351 = vpack.c.bf16 %v5332, %v5331
      %v5352 = vpack.c.bf16 %v5334, %v5333
      %v5353 = vpack.c.bf16 %v5336, %v5335
      %v5354 = vpack.c.bf16 %v5338, %v5337
      %s5355 = scalar_lea.vmem %s3, 448
      %v5356 = vld [vmem:[%s5355] sm:$0xf]
      %v5357 = vld [vmem:[%s5355 + $0x4] sm:$0xf]
      %v5358 = vld [vmem:[%s5355 + $0x8] sm:$0xf]
      %v5359 = vld [vmem:[%s5355 + $0xc] sm:$0xf]
      %v5360 = vld [vmem:[%s5355 + $0x10] sm:$0xf]
      %v5361 = vld [vmem:[%s5355 + $0x14] sm:$0xf]
      %v5362 = vld [vmem:[%s5355 + $0x18] sm:$0xf]
      %v5363 = vld [vmem:[%s5355 + $0x1c] sm:$0xf]
      %v5364 = vld [vmem:[%s5355 + $0x20] sm:$0xf]
      %v5365 = vld [vmem:[%s5355 + $0x24] sm:$0xf]
      %v5366 = vld [vmem:[%s5355 + $0x28] sm:$0xf]
      %v5367 = vld [vmem:[%s5355 + $0x2c] sm:$0xf]
      %v5368 = vld [vmem:[%s5355 + $0x30] sm:$0xf]
      %v5369 = vld [vmem:[%s5355 + $0x34] sm:$0xf]
      %v5370 = vld [vmem:[%s5355 + $0x38] sm:$0xf]
      %v5371 = vld [vmem:[%s5355 + $0x3c] sm:$0xf]
      %v5388 = vunpack.c.l.b16 %v5356
      %v5389 = vunpack.c.l.b16 %v5357
      %v5390 = vunpack.c.l.b16 %v5358
      %v5391 = vunpack.c.l.b16 %v5359
      %v5392 = vunpack.c.l.b16 %v5360
      %v5393 = vunpack.c.l.b16 %v5361
      %v5394 = vunpack.c.l.b16 %v5362
      %v5395 = vunpack.c.l.b16 %v5363
      %v5396 = vunpack.c.l.b16 %v5364
      %v5397 = vunpack.c.l.b16 %v5365
      %v5398 = vunpack.c.l.b16 %v5366
      %v5399 = vunpack.c.l.b16 %v5367
      %v5400 = vunpack.c.l.b16 %v5368
      %v5401 = vunpack.c.l.b16 %v5369
      %v5402 = vunpack.c.l.b16 %v5370
      %v5403 = vunpack.c.l.b16 %v5371
      %v5404 = vpack.c.b16 %v5389, %v5388
      %v5405 = vpack.c.b16 %v5391, %v5390
      %v5406 = vpack.c.b16 %v5393, %v5392
      %v5407 = vpack.c.b16 %v5395, %v5394
      %v5408 = vpack.c.b16 %v5397, %v5396
      %v5409 = vpack.c.b16 %v5399, %v5398
      %v5410 = vpack.c.b16 %v5401, %v5400
      %v5411 = vpack.c.b16 %v5403, %v5402
      %5420 = vmatprep.subr.bf16.mxu0 0
      %5421 = vmatpush1.bf16.msra.mxu0 %v5404
      %5422 = vmatprep.subr.bf16.mxu0 0
      %5423 = vmatpush1.bf16.msra.mxu0 %v5405
      %5424 = vmatprep.subr.bf16.mxu0 0
      %5425 = vmatpush1.bf16.msra.mxu0 %v5406
      %5426 = vmatprep.subr.bf16.mxu0 0
      %5427 = vmatpush1.bf16.msra.mxu0 %v5407
      %5428 = vmatprep.subr.bf16.mxu0 0
      %5429 = vmatpush1.bf16.msra.mxu0 %v5408
      %5430 = vmatprep.subr.bf16.mxu0 0
      %5431 = vmatpush1.bf16.msra.mxu0 %v5409
      %5432 = vmatprep.subr.bf16.mxu0 0
      %5433 = vmatpush1.bf16.msra.mxu0 %v5410
      %5434 = vmatprep.subr.bf16.mxu0 0
      %5435 = vmatpush1.bf16.msra.mxu0 %v5411
      %5436 = vmatprep.subr.bf16.mxu0 0
      %5437 = vmatpush1.bf16.msra.mxu0 0
      %5438 = vmatprep.subr.bf16.mxu0 0
      %5439 = vmatpush1.bf16.msra.mxu0 0
      %5440 = vmatprep.subr.bf16.mxu0 0
      %5441 = vmatpush1.bf16.msra.mxu0 0
      %5442 = vmatprep.subr.bf16.mxu0 0
      %5443 = vmatpush1.bf16.msra.mxu0 0
      %5444 = vmatprep.subr.bf16.mxu0 0
      %5445 = vmatpush1.bf16.msra.mxu0 0
      %5446 = vmatprep.subr.bf16.mxu0 0
      %5447 = vmatpush1.bf16.msra.mxu0 0
      %5448 = vmatprep.subr.bf16.mxu0 0
      %5449 = vmatpush1.bf16.msra.mxu0 0
      %5450 = vmatprep.subr.bf16.mxu0 0
      %5451 = vmatpush1.bf16.msra.mxu0 0
      %5452 = vmatprep.mubr.bf16.mxu0 0
      %5453 = vmatmul.mubr.bf16.gmra.mrb[0].mxu0 %v5339
      %v5454 = vpop.f32.mrb[0].mxu0
      %v5455 = vadd.f32 0.0, %v5454
      %v5456 = vpop.f32.mrb[0].mxu0
      %v5457 = vpop.f32.mrb[0].mxu0
      %v5458 = vadd.f32 0.0, %v5457
      %v5459 = vpop.f32.mrb[0].mxu0
      %5460 = vmatprep.mubr.bf16.mxu0 0
      %5461 = vmatmul.mubr.bf16.gmra.mrb[0].mxu0 %v5340
      %v5462 = vpop.f32.mrb[0].mxu0
      %v5463 = vadd.f32 0.0, %v5462
      %v5464 = vpop.f32.mrb[0].mxu0
      %v5465 = vpop.f32.mrb[0].mxu0
      %v5466 = vadd.f32 0.0, %v5465
      %v5467 = vpop.f32.mrb[0].mxu0
      %5468 = vmatprep.mubr.bf16.mxu0 0
      %5469 = vmatmul.mubr.bf16.gmra.mrb[0].mxu0 %v5341
      %v5470 = vpop.f32.mrb[0].mxu0
      %v5471 = vadd.f32 0.0, %v5470
      %v5472 = vpop.f32.mrb[0].mxu0
      %v5473 = vpop.f32.mrb[0].mxu0
      %v5474 = vadd.f32 0.0, %v5473
      %v5475 = vpop.f32.mrb[0].mxu0
      %5476 = vmatprep.mubr.bf16.mxu0 0
      %5477 = vmatmul.mubr.bf16.gmra.mrb[0].mxu0 %v5342
      %v5478 = vpop.f32.mrb[0].mxu0
      %v5479 = vadd.f32 0.0, %v5478
      %v5480 = vpop.f32.mrb[0].mxu0
      %v5481 = vpop.f32.mrb[0].mxu0
      %v5482 = vadd.f32 0.0, %v5481
      %v5483 = vpop.f32.mrb[0].mxu0
      %5484 = vmatprep.mubr.bf16.mxu0 0
      %5485 = vmatmul.mubr.bf16.gmra.mrb[0].mxu0 %v5343
      %v5486 = vpop.f32.mrb[0].mxu0
      %v5487 = vadd.f32 0.0, %v5486
      %v5488 = vpop.f32.mrb[0].mxu0
      %v5489 = vpop.f32.mrb[0].mxu0
      %v5490 = vadd.f32 0.0, %v5489
      %v5491 = vpop.f32.mrb[0].mxu0
      %5492 = vmatprep.mubr.bf16.mxu0 0
      %5493 = vmatmul.mubr.bf16.gmra.mrb[0].mxu0 %v5344
      %v5494 = vpop.f32.mrb[0].mxu0
      %v5495 = vadd.f32 0.0, %v5494
      %v5496 = vpop.f32.mrb[0].mxu0
      %v5497 = vpop.f32.mrb[0].mxu0
      %v5498 = vadd.f32 0.0, %v5497
      %v5499 = vpop.f32.mrb[0].mxu0
      %5500 = vmatprep.mubr.bf16.mxu0 0
      %5501 = vmatmul.mubr.bf16.gmra.mrb[0].mxu0 %v5345
      %v5502 = vpop.f32.mrb[0].mxu0
      %v5503 = vadd.f32 0.0, %v5502
      %v5504 = vpop.f32.mrb[0].mxu0
      %v5505 = vpop.f32.mrb[0].mxu0
      %v5506 = vadd.f32 0.0, %v5505
      %v5507 = vpop.f32.mrb[0].mxu0
      %5508 = vmatprep.mubr.bf16.mxu0 0
      %5509 = vmatmul.mubr.bf16.gmra.mrb[0].mxu0 %v5346
      %v5510 = vpop.f32.mrb[0].mxu0
      %v5511 = vadd.f32 0.0, %v5510
      %v5512 = vpop.f32.mrb[0].mxu0
      %v5513 = vpop.f32.mrb[0].mxu0
      %v5514 = vadd.f32 0.0, %v5513
      %v5515 = vpop.f32.mrb[0].mxu0
      %5516 = vmatprep.mubr.bf16.mxu0 0
      %5517 = vmatmul.mubr.bf16.gmra.mrb[0].mxu0 %v5347
      %v5518 = vpop.f32.mrb[0].mxu0
      %v5519 = vadd.f32 0.0, %v5518
      %v5520 = vpop.f32.mrb[0].mxu0
      %v5521 = vpop.f32.mrb[0].mxu0
      %v5522 = vadd.f32 0.0, %v5521
      %v5523 = vpop.f32.mrb[0].mxu0
      %5524 = vmatprep.mubr.bf16.mxu0 0
      %5525 = vmatmul.mubr.bf16.gmra.mrb[0].mxu0 %v5348
      %v5526 = vpop.f32.mrb[0].mxu0
      %v5527 = vadd.f32 0.0, %v5526
      %v5528 = vpop.f32.mrb[0].mxu0
      %v5529 = vpop.f32.mrb[0].mxu0
      %v5530 = vadd.f32 0.0, %v5529
      %v5531 = vpop.f32.mrb[0].mxu0
      %5532 = vmatprep.mubr.bf16.mxu0 0
      %5533 = vmatmul.mubr.bf16.gmra.mrb[0].mxu0 %v5349
      %v5534 = vpop.f32.mrb[0].mxu0
      %v5535 = vadd.f32 0.0, %v5534
      %v5536 = vpop.f32.mrb[0].mxu0
      %v5537 = vpop.f32.mrb[0].mxu0
      %v5538 = vadd.f32 0.0, %v5537
      %v5539 = vpop.f32.mrb[0].mxu0
      %5540 = vmatprep.mubr.bf16.mxu0 0
      %5541 = vmatmul.mubr.bf16.gmra.mrb[0].mxu0 %v5350
      %v5542 = vpop.f32.mrb[0].mxu0
      %v5543 = vadd.f32 0.0, %v5542
      %v5544 = vpop.f32.mrb[0].mxu0
      %v5545 = vpop.f32.mrb[0].mxu0
      %v5546 = vadd.f32 0.0, %v5545
      %v5547 = vpop.f32.mrb[0].mxu0
      %5548 = vmatprep.mubr.bf16.mxu0 0
      %5549 = vmatmul.mubr.bf16.gmra.mrb[0].mxu0 %v5351
      %v5550 = vpop.f32.mrb[0].mxu0
      %v5551 = vadd.f32 0.0, %v5550
      %v5552 = vpop.f32.mrb[0].mxu0
      %v5553 = vpop.f32.mrb[0].mxu0
      %v5554 = vadd.f32 0.0, %v5553
      %v5555 = vpop.f32.mrb[0].mxu0
      %5556 = vmatprep.mubr.bf16.mxu0 0
      %5557 = vmatmul.mubr.bf16.gmra.mrb[0].mxu0 %v5352
      %v5558 = vpop.f32.mrb[0].mxu0
      %v5559 = vadd.f32 0.0, %v5558
      %v5560 = vpop.f32.mrb[0].mxu0
      %v5561 = vpop.f32.mrb[0].mxu0
      %v5562 = vadd.f32 0.0, %v5561
      %v5563 = vpop.f32.mrb[0].mxu0
      %5564 = vmatprep.mubr.bf16.mxu0 0
      %5565 = vmatmul.mubr.bf16.gmra.mrb[0].mxu0 %v5353
      %v5566 = vpop.f32.mrb[0].mxu0
      %v5567 = vadd.f32 0.0, %v5566
      %v5568 = vpop.f32.mrb[0].mxu0
      %v5569 = vpop.f32.mrb[0].mxu0
      %v5570 = vadd.f32 0.0, %v5569
      %v5571 = vpop.f32.mrb[0].mxu0
      %5572 = vmatprep.mubr.bf16.mxu0 0
      %5573 = vmatmul.mubr.bf16.gmra.mrb[0].mxu0 %v5354
      %v5574 = vpop.f32.mrb[0].mxu0
      %v5575 = vadd.f32 0.0, %v5574
      %v5576 = vpop.f32.mrb[0].mxu0
      %v5577 = vpop.f32.mrb[0].mxu0
      %v5578 = vadd.f32 0.0, %v5577
      %v5579 = vpop.f32.mrb[0].mxu0
      %5580 = vdwg.mxu0
      %v5581 = vadd.f32 %v5275, %v5455
      %v5582 = vadd.f32 %v5276, %v5458
      %v5583 = vadd.f32 %v5277, %v5463
      %v5584 = vadd.f32 %v5278, %v5466
      %v5585 = vadd.f32 %v5279, %v5471
      %v5586 = vadd.f32 %v5280, %v5474
      %v5587 = vadd.f32 %v5281, %v5479
      %v5588 = vadd.f32 %v5282, %v5482
      %v5589 = vadd.f32 %v5283, %v5487
      %v5590 = vadd.f32 %v5284, %v5490
      %v5591 = vadd.f32 %v5285, %v5495
      %v5592 = vadd.f32 %v5286, %v5498
      %v5593 = vadd.f32 %v5287, %v5503
      %v5594 = vadd.f32 %v5288, %v5506
      %v5595 = vadd.f32 %v5289, %v5511
      %v5596 = vadd.f32 %v5290, %v5514
      %v5597 = vadd.f32 %v5291, %v5519
      %v5598 = vadd.f32 %v5292, %v5522
      %v5599 = vadd.f32 %v5293, %v5527
      %v5600 = vadd.f32 %v5294, %v5530
      %v5601 = vadd.f32 %v5295, %v5535
      %v5602 = vadd.f32 %v5296, %v5538
      %v5603 = vadd.f32 %v5297, %v5543
      %v5604 = vadd.f32 %v5298, %v5546
      %v5605 = vadd.f32 %v5299, %v5551
      %v5606 = vadd.f32 %v5300, %v5554
      %v5607 = vadd.f32 %v5301, %v5559
      %v5608 = vadd.f32 %v5302, %v5562
      %v5609 = vadd.f32 %v5303, %v5567
      %v5610 = vadd.f32 %v5304, %v5570
      %v5611 = vadd.f32 %v5305, %v5575
      %v5612 = vadd.f32 %v5306, %v5578
      %v5613 = vld [vmem:[%s5000 + $0x2] sm:$0xff]
      %v5614 = vld [vmem:[%s5000 + $0xa] sm:$0xff]
      %v5615 = vld [vmem:[%s5000 + $0x1a] sm:$0xff]
      %v5616 = vld [vmem:[%s5000 + $0x22] sm:$0xff]
      %v5617 = vld [vmem:[%s5000 + $0x32] sm:$0xff]
      %v5618 = vld [vmem:[%s5000 + $0x3a] sm:$0xff]
      %v5619 = vld [vmem:[%s5000 + $0x4a] sm:$0xff]
      %v5620 = vld [vmem:[%s5000 + $0x52] sm:$0xff]
      %v5621 = vld [vmem:[%s5000 + $0x62] sm:$0xff]
      %v5622 = vld [vmem:[%s5000 + $0x6a] sm:$0xff]
      %v5623 = vld [vmem:[%s5000 + $0x7a] sm:$0xff]
      %v5624 = vld [vmem:[%s5000 + $0x82] sm:$0xff]
      %v5625 = vld [vmem:[%s5000 + $0x92] sm:$0xff]
      %v5626 = vld [vmem:[%s5000 + $0x9a] sm:$0xff]
      %v5627 = vld [vmem:[%s5000 + $0xaa] sm:$0xff]
      %v5628 = vld [vmem:[%s5000 + $0xb2] sm:$0xff]
      %v5629 = vld [vmem:[%s5000 + $0xc2] sm:$0xff]
      %v5630 = vld [vmem:[%s5000 + $0xca] sm:$0xff]
      %v5631 = vld [vmem:[%s5000 + $0xda] sm:$0xff]
      %v5632 = vld [vmem:[%s5000 + $0xe2] sm:$0xff]
      %v5633 = vld [vmem:[%s5000 + $0xf2] sm:$0xff]
      %v5634 = vld [vmem:[%s5000 + $0xfa] sm:$0xff]
      %v5635 = vld [vmem:[%s5000 + $0x10a] sm:$0xff]
      %v5636 = vld [vmem:[%s5000 + $0x112] sm:$0xff]
      %v5637 = vld [vmem:[%s5000 + $0x122] sm:$0xff]
      %v5638 = vld [vmem:[%s5000 + $0x12a] sm:$0xff]
      %v5639 = vld [vmem:[%s5000 + $0x13a] sm:$0xff]
      %v5640 = vld [vmem:[%s5000 + $0x142] sm:$0xff]
      %v5641 = vld [vmem:[%s5000 + $0x152] sm:$0xff]
      %v5642 = vld [vmem:[%s5000 + $0x15a] sm:$0xff]
      %v5643 = vld [vmem:[%s5000 + $0x16a] sm:$0xff]
      %v5644 = vld [vmem:[%s5000 + $0x172] sm:$0xff]
      %v5645 = vpack.c.bf16 %v5614, %v5613
      %v5646 = vpack.c.bf16 %v5616, %v5615
      %v5647 = vpack.c.bf16 %v5618, %v5617
      %v5648 = vpack.c.bf16 %v5620, %v5619
      %v5649 = vpack.c.bf16 %v5622, %v5621
      %v5650 = vpack.c.bf16 %v5624, %v5623
      %v5651 = vpack.c.bf16 %v5626, %v5625
      %v5652 = vpack.c.bf16 %v5628, %v5627
      %v5653 = vpack.c.bf16 %v5630, %v5629
      %v5654 = vpack.c.bf16 %v5632, %v5631
      %v5655 = vpack.c.bf16 %v5634, %v5633
      %v5656 = vpack.c.bf16 %v5636, %v5635
      %v5657 = vpack.c.bf16 %v5638, %v5637
      %v5658 = vpack.c.bf16 %v5640, %v5639
      %v5659 = vpack.c.bf16 %v5642, %v5641
      %v5660 = vpack.c.bf16 %v5644, %v5643
      %s5661 = scalar_lea.vmem %s3, 512
      %v5662 = vld [vmem:[%s5661] sm:$0xf]
      %v5663 = vld [vmem:[%s5661 + $0x4] sm:$0xf]
      %v5664 = vld [vmem:[%s5661 + $0x8] sm:$0xf]
      %v5665 = vld [vmem:[%s5661 + $0xc] sm:$0xf]
      %v5666 = vld [vmem:[%s5661 + $0x10] sm:$0xf]
      %v5667 = vld [vmem:[%s5661 + $0x14] sm:$0xf]
      %v5668 = vld [vmem:[%s5661 + $0x18] sm:$0xf]
      %v5669 = vld [vmem:[%s5661 + $0x1c] sm:$0xf]
      %v5670 = vld [vmem:[%s5661 + $0x20] sm:$0xf]
      %v5671 = vld [vmem:[%s5661 + $0x24] sm:$0xf]
      %v5672 = vld [vmem:[%s5661 + $0x28] sm:$0xf]
      %v5673 = vld [vmem:[%s5661 + $0x2c] sm:$0xf]
      %v5674 = vld [vmem:[%s5661 + $0x30] sm:$0xf]
      %v5675 = vld [vmem:[%s5661 + $0x34] sm:$0xf]
      %v5676 = vld [vmem:[%s5661 + $0x38] sm:$0xf]
      %v5677 = vld [vmem:[%s5661 + $0x3c] sm:$0xf]
      %v5694 = vunpack.c.l.b16 %v5662
      %v5695 = vunpack.c.l.b16 %v5663
      %v5696 = vunpack.c.l.b16 %v5664
      %v5697 = vunpack.c.l.b16 %v5665
      %v5698 = vunpack.c.l.b16 %v5666
      %v5699 = vunpack.c.l.b16 %v5667
      %v5700 = vunpack.c.l.b16 %v5668
      %v5701 = vunpack.c.l.b16 %v5669
      %v5702 = vunpack.c.l.b16 %v5670
      %v5703 = vunpack.c.l.b16 %v5671
      %v5704 = vunpack.c.l.b16 %v5672
      %v5705 = vunpack.c.l.b16 %v5673
      %v5706 = vunpack.c.l.b16 %v5674
      %v5707 = vunpack.c.l.b16 %v5675
      %v5708 = vunpack.c.l.b16 %v5676
      %v5709 = vunpack.c.l.b16 %v5677
      %v5710 = vpack.c.b16 %v5695, %v5694
      %v5711 = vpack.c.b16 %v5697, %v5696
      %v5712 = vpack.c.b16 %v5699, %v5698
      %v5713 = vpack.c.b16 %v5701, %v5700
      %v5714 = vpack.c.b16 %v5703, %v5702
      %v5715 = vpack.c.b16 %v5705, %v5704
      %v5716 = vpack.c.b16 %v5707, %v5706
      %v5717 = vpack.c.b16 %v5709, %v5708
      %5726 = vmatprep.subr.bf16.mxu0 0
      %5727 = vmatpush1.bf16.msra.mxu0 %v5710
      %5728 = vmatprep.subr.bf16.mxu0 0
      %5729 = vmatpush1.bf16.msra.mxu0 %v5711
      %5730 = vmatprep.subr.bf16.mxu0 0
      %5731 = vmatpush1.bf16.msra.mxu0 %v5712
      %5732 = vmatprep.subr.bf16.mxu0 0
      %5733 = vmatpush1.bf16.msra.mxu0 %v5713
      %5734 = vmatprep.subr.bf16.mxu0 0
      %5735 = vmatpush1.bf16.msra.mxu0 %v5714
      %5736 = vmatprep.subr.bf16.mxu0 0
      %5737 = vmatpush1.bf16.msra.mxu0 %v5715
      %5738 = vmatprep.subr.bf16.mxu0 0
      %5739 = vmatpush1.bf16.msra.mxu0 %v5716
      %5740 = vmatprep.subr.bf16.mxu0 0
      %5741 = vmatpush1.bf16.msra.mxu0 %v5717
      %5742 = vmatprep.subr.bf16.mxu0 0
      %5743 = vmatpush1.bf16.msra.mxu0 0
      %5744 = vmatprep.subr.bf16.mxu0 0
      %5745 = vmatpush1.bf16.msra.mxu0 0
      %5746 = vmatprep.subr.bf16.mxu0 0
      %5747 = vmatpush1.bf16.msra.mxu0 0
      %5748 = vmatprep.subr.bf16.mxu0 0
      %5749 = vmatpush1.bf16.msra.mxu0 0
      %5750 = vmatprep.subr.bf16.mxu0 0
      %5751 = vmatpush1.bf16.msra.mxu0 0
      %5752 = vmatprep.subr.bf16.mxu0 0
      %5753 = vmatpush1.bf16.msra.mxu0 0
      %5754 = vmatprep.subr.bf16.mxu0 0
      %5755 = vmatpush1.bf16.msra.mxu0 0
      %5756 = vmatprep.subr.bf16.mxu0 0
      %5757 = vmatpush1.bf16.msra.mxu0 0
      %5758 = vmatprep.mubr.bf16.mxu0 0
      %5759 = vmatmul.mubr.bf16.gmra.mrb[0].mxu0 %v5645
      %v5760 = vpop.f32.mrb[0].mxu0
      %v5761 = vadd.f32 0.0, %v5760
      %v5762 = vpop.f32.mrb[0].mxu0
      %v5763 = vpop.f32.mrb[0].mxu0
      %v5764 = vadd.f32 0.0, %v5763
      %v5765 = vpop.f32.mrb[0].mxu0
      %5766 = vmatprep.mubr.bf16.mxu0 0
      %5767 = vmatmul.mubr.bf16.gmra.mrb[0].mxu0 %v5646
      %v5768 = vpop.f32.mrb[0].mxu0
      %v5769 = vadd.f32 0.0, %v5768
      %v5770 = vpop.f32.mrb[0].mxu0
      %v5771 = vpop.f32.mrb[0].mxu0
      %v5772 = vadd.f32 0.0, %v5771
      %v5773 = vpop.f32.mrb[0].mxu0
      %5774 = vmatprep.mubr.bf16.mxu0 0
      %5775 = vmatmul.mubr.bf16.gmra.mrb[0].mxu0 %v5647
      %v5776 = vpop.f32.mrb[0].mxu0
      %v5777 = vadd.f32 0.0, %v5776
      %v5778 = vpop.f32.mrb[0].mxu0
      %v5779 = vpop.f32.mrb[0].mxu0
      %v5780 = vadd.f32 0.0, %v5779
      %v5781 = vpop.f32.mrb[0].mxu0
      %5782 = vmatprep.mubr.bf16.mxu0 0
      %5783 = vmatmul.mubr.bf16.gmra.mrb[0].mxu0 %v5648
      %v5784 = vpop.f32.mrb[0].mxu0
      %v5785 = vadd.f32 0.0, %v5784
      %v5786 = vpop.f32.mrb[0].mxu0
      %v5787 = vpop.f32.mrb[0].mxu0
      %v5788 = vadd.f32 0.0, %v5787
      %v5789 = vpop.f32.mrb[0].mxu0
      %5790 = vmatprep.mubr.bf16.mxu0 0
      %5791 = vmatmul.mubr.bf16.gmra.mrb[0].mxu0 %v5649
      %v5792 = vpop.f32.mrb[0].mxu0
      %v5793 = vadd.f32 0.0, %v5792
      %v5794 = vpop.f32.mrb[0].mxu0
      %v5795 = vpop.f32.mrb[0].mxu0
      %v5796 = vadd.f32 0.0, %v5795
      %v5797 = vpop.f32.mrb[0].mxu0
      %5798 = vmatprep.mubr.bf16.mxu0 0
      %5799 = vmatmul.mubr.bf16.gmra.mrb[0].mxu0 %v5650
      %v5800 = vpop.f32.mrb[0].mxu0
      %v5801 = vadd.f32 0.0, %v5800
      %v5802 = vpop.f32.mrb[0].mxu0
      %v5803 = vpop.f32.mrb[0].mxu0
      %v5804 = vadd.f32 0.0, %v5803
      %v5805 = vpop.f32.mrb[0].mxu0
      %5806 = vmatprep.mubr.bf16.mxu0 0
      %5807 = vmatmul.mubr.bf16.gmra.mrb[0].mxu0 %v5651
      %v5808 = vpop.f32.mrb[0].mxu0
      %v5809 = vadd.f32 0.0, %v5808
      %v5810 = vpop.f32.mrb[0].mxu0
      %v5811 = vpop.f32.mrb[0].mxu0
      %v5812 = vadd.f32 0.0, %v5811
      %v5813 = vpop.f32.mrb[0].mxu0
      %5814 = vmatprep.mubr.bf16.mxu0 0
      %5815 = vmatmul.mubr.bf16.gmra.mrb[0].mxu0 %v5652
      %v5816 = vpop.f32.mrb[0].mxu0
      %v5817 = vadd.f32 0.0, %v5816
      %v5818 = vpop.f32.mrb[0].mxu0
      %v5819 = vpop.f32.mrb[0].mxu0
      %v5820 = vadd.f32 0.0, %v5819
      %v5821 = vpop.f32.mrb[0].mxu0
      %5822 = vmatprep.mubr.bf16.mxu0 0
      %5823 = vmatmul.mubr.bf16.gmra.mrb[0].mxu0 %v5653
      %v5824 = vpop.f32.mrb[0].mxu0
      %v5825 = vadd.f32 0.0, %v5824
      %v5826 = vpop.f32.mrb[0].mxu0
      %v5827 = vpop.f32.mrb[0].mxu0
      %v5828 = vadd.f32 0.0, %v5827
      %v5829 = vpop.f32.mrb[0].mxu0
      %5830 = vmatprep.mubr.bf16.mxu0 0
      %5831 = vmatmul.mubr.bf16.gmra.mrb[0].mxu0 %v5654
      %v5832 = vpop.f32.mrb[0].mxu0
      %v5833 = vadd.f32 0.0, %v5832
      %v5834 = vpop.f32.mrb[0].mxu0
      %v5835 = vpop.f32.mrb[0].mxu0
      %v5836 = vadd.f32 0.0, %v5835
      %v5837 = vpop.f32.mrb[0].mxu0
      %5838 = vmatprep.mubr.bf16.mxu0 0
      %5839 = vmatmul.mubr.bf16.gmra.mrb[0].mxu0 %v5655
      %v5840 = vpop.f32.mrb[0].mxu0
      %v5841 = vadd.f32 0.0, %v5840
      %v5842 = vpop.f32.mrb[0].mxu0
      %v5843 = vpop.f32.mrb[0].mxu0
      %v5844 = vadd.f32 0.0, %v5843
      %v5845 = vpop.f32.mrb[0].mxu0
      %5846 = vmatprep.mubr.bf16.mxu0 0
      %5847 = vmatmul.mubr.bf16.gmra.mrb[0].mxu0 %v5656
      %v5848 = vpop.f32.mrb[0].mxu0
      %v5849 = vadd.f32 0.0, %v5848
      %v5850 = vpop.f32.mrb[0].mxu0
      %v5851 = vpop.f32.mrb[0].mxu0
      %v5852 = vadd.f32 0.0, %v5851
      %v5853 = vpop.f32.mrb[0].mxu0
      %5854 = vmatprep.mubr.bf16.mxu0 0
      %5855 = vmatmul.mubr.bf16.gmra.mrb[0].mxu0 %v5657
      %v5856 = vpop.f32.mrb[0].mxu0
      %v5857 = vadd.f32 0.0, %v5856
      %v5858 = vpop.f32.mrb[0].mxu0
      %v5859 = vpop.f32.mrb[0].mxu0
      %v5860 = vadd.f32 0.0, %v5859
      %v5861 = vpop.f32.mrb[0].mxu0
      %5862 = vmatprep.mubr.bf16.mxu0 0
      %5863 = vmatmul.mubr.bf16.gmra.mrb[0].mxu0 %v5658
      %v5864 = vpop.f32.mrb[0].mxu0
      %v5865 = vadd.f32 0.0, %v5864
      %v5866 = vpop.f32.mrb[0].mxu0
      %v5867 = vpop.f32.mrb[0].mxu0
      %v5868 = vadd.f32 0.0, %v5867
      %v5869 = vpop.f32.mrb[0].mxu0
      %5870 = vmatprep.mubr.bf16.mxu0 0
      %5871 = vmatmul.mubr.bf16.gmra.mrb[0].mxu0 %v5659
      %v5872 = vpop.f32.mrb[0].mxu0
      %v5873 = vadd.f32 0.0, %v5872
      %v5874 = vpop.f32.mrb[0].mxu0
      %v5875 = vpop.f32.mrb[0].mxu0
      %v5876 = vadd.f32 0.0, %v5875
      %v5877 = vpop.f32.mrb[0].mxu0
      %5878 = vmatprep.mubr.bf16.mxu0 0
      %5879 = vmatmul.mubr.bf16.gmra.mrb[0].mxu0 %v5660
      %v5880 = vpop.f32.mrb[0].mxu0
      %v5881 = vadd.f32 0.0, %v5880
      %v5882 = vpop.f32.mrb[0].mxu0
      %v5883 = vpop.f32.mrb[0].mxu0
      %v5884 = vadd.f32 0.0, %v5883
      %v5885 = vpop.f32.mrb[0].mxu0
      %5886 = vdwg.mxu0
      %v5887 = vadd.f32 %v5581, %v5761
      %v5888 = vadd.f32 %v5582, %v5764
      %v5889 = vadd.f32 %v5583, %v5769
      %v5890 = vadd.f32 %v5584, %v5772
      %v5891 = vadd.f32 %v5585, %v5777
      %v5892 = vadd.f32 %v5586, %v5780
      %v5893 = vadd.f32 %v5587, %v5785
      %v5894 = vadd.f32 %v5588, %v5788
      %v5895 = vadd.f32 %v5589, %v5793
      %v5896 = vadd.f32 %v5590, %v5796
      %v5897 = vadd.f32 %v5591, %v5801
      %v5898 = vadd.f32 %v5592, %v5804
      %v5899 = vadd.f32 %v5593, %v5809
      %v5900 = vadd.f32 %v5594, %v5812
      %v5901 = vadd.f32 %v5595, %v5817
      %v5902 = vadd.f32 %v5596, %v5820
      %v5903 = vadd.f32 %v5597, %v5825
      %v5904 = vadd.f32 %v5598, %v5828
      %v5905 = vadd.f32 %v5599, %v5833
      %v5906 = vadd.f32 %v5600, %v5836
      %v5907 = vadd.f32 %v5601, %v5841
      %v5908 = vadd.f32 %v5602, %v5844
      %v5909 = vadd.f32 %v5603, %v5849
      %v5910 = vadd.f32 %v5604, %v5852
      %v5911 = vadd.f32 %v5605, %v5857
      %v5912 = vadd.f32 %v5606, %v5860
      %v5913 = vadd.f32 %v5607, %v5865
      %v5914 = vadd.f32 %v5608, %v5868
      %v5915 = vadd.f32 %v5609, %v5873
      %v5916 = vadd.f32 %v5610, %v5876
      %v5917 = vadd.f32 %v5611, %v5881
      %v5918 = vadd.f32 %v5612, %v5884
      %v5919 = vld [vmem:[%s4] sm:$0x1]
      %v5921 = vlaneseq
      %v5922 = vshrl.u32 %v5921, 7
      %v5923 = vsub.s32 0, %v5922
      %v5924 = vrot.slane %v5919, %v5923
      %v5926 = vadd.f32 %v5887, %v5924
      %v5927 = vadd.f32 %v5888, %v5924
      %v5928 = vadd.f32 %v5889, %v5924
      %v5929 = vadd.f32 %v5890, %v5924
      %v5930 = vadd.f32 %v5891, %v5924
      %v5931 = vadd.f32 %v5892, %v5924
      %v5932 = vadd.f32 %v5893, %v5924
      %v5933 = vadd.f32 %v5894, %v5924
      %v5934 = vadd.f32 %v5895, %v5924
      %v5935 = vadd.f32 %v5896, %v5924
      %v5936 = vadd.f32 %v5897, %v5924
      %v5937 = vadd.f32 %v5898, %v5924
      %v5938 = vadd.f32 %v5899, %v5924
      %v5939 = vadd.f32 %v5900, %v5924
      %v5940 = vadd.f32 %v5901, %v5924
      %v5941 = vadd.f32 %v5902, %v5924
      %v5942 = vadd.f32 %v5903, %v5924
      %v5943 = vadd.f32 %v5904, %v5924
      %v5944 = vadd.f32 %v5905, %v5924
      %v5945 = vadd.f32 %v5906, %v5924
      %v5946 = vadd.f32 %v5907, %v5924
      %v5947 = vadd.f32 %v5908, %v5924
      %v5948 = vadd.f32 %v5909, %v5924
      %v5949 = vadd.f32 %v5910, %v5924
      %v5950 = vadd.f32 %v5911, %v5924
      %v5951 = vadd.f32 %v5912, %v5924
      %v5952 = vadd.f32 %v5913, %v5924
      %v5953 = vadd.f32 %v5914, %v5924
      %v5954 = vadd.f32 %v5915, %v5924
      %v5955 = vadd.f32 %v5916, %v5924
      %v5956 = vadd.f32 %v5917, %v5924
      %v5957 = vadd.f32 %v5918, %v5924
      %v5958 = vld [vmem:[%s402 + $0x1] sm:$0xff]
      %v5959 = vld [vmem:[%s402 + $0x9] sm:$0xff]
      %v5960 = vld [vmem:[%s402 + $0x19] sm:$0xff]
      %v5961 = vld [vmem:[%s402 + $0x21] sm:$0xff]
      %v5962 = vld [vmem:[%s402 + $0x31] sm:$0xff]
      %v5963 = vld [vmem:[%s402 + $0x39] sm:$0xff]
      %v5964 = vld [vmem:[%s402 + $0x49] sm:$0xff]
      %v5965 = vld [vmem:[%s402 + $0x51] sm:$0xff]
      %v5966 = vld [vmem:[%s402 + $0x61] sm:$0xff]
      %v5967 = vld [vmem:[%s402 + $0x69] sm:$0xff]
      %v5968 = vld [vmem:[%s402 + $0x79] sm:$0xff]
      %v5969 = vld [vmem:[%s402 + $0x81] sm:$0xff]
      %v5970 = vld [vmem:[%s402 + $0x91] sm:$0xff]
      %v5971 = vld [vmem:[%s402 + $0x99] sm:$0xff]
      %v5972 = vld [vmem:[%s402 + $0xa9] sm:$0xff]
      %v5973 = vld [vmem:[%s402 + $0xb1] sm:$0xff]
      %v5974 = vld [vmem:[%s402 + $0xc1] sm:$0xff]
      %v5975 = vld [vmem:[%s402 + $0xc9] sm:$0xff]
      %v5976 = vld [vmem:[%s402 + $0xd9] sm:$0xff]
      %v5977 = vld [vmem:[%s402 + $0xe1] sm:$0xff]
      %v5978 = vld [vmem:[%s402 + $0xf1] sm:$0xff]
      %v5979 = vld [vmem:[%s402 + $0xf9] sm:$0xff]
      %v5980 = vld [vmem:[%s402 + $0x109] sm:$0xff]
      %v5981 = vld [vmem:[%s402 + $0x111] sm:$0xff]
      %v5982 = vld [vmem:[%s402 + $0x121] sm:$0xff]
      %v5983 = vld [vmem:[%s402 + $0x129] sm:$0xff]
      %v5984 = vld [vmem:[%s402 + $0x139] sm:$0xff]
      %v5985 = vld [vmem:[%s402 + $0x141] sm:$0xff]
      %v5986 = vld [vmem:[%s402 + $0x151] sm:$0xff]
      %v5987 = vld [vmem:[%s402 + $0x159] sm:$0xff]
      %v5988 = vld [vmem:[%s402 + $0x169] sm:$0xff]
      %v5989 = vld [vmem:[%s402 + $0x171] sm:$0xff]
      %v5990 = vadd.f32 %v5926, %v5958
      %v5991 = vadd.f32 %v5927, %v5959
      %v5992 = vadd.f32 %v5928, %v5960
      %v5993 = vadd.f32 %v5929, %v5961
      %v5994 = vadd.f32 %v5930, %v5962
      %v5995 = vadd.f32 %v5931, %v5963
      %v5996 = vadd.f32 %v5932, %v5964
      %v5997 = vadd.f32 %v5933, %v5965
      %v5998 = vadd.f32 %v5934, %v5966
      %v5999 = vadd.f32 %v5935, %v5967
      %v6000 = vadd.f32 %v5936, %v5968
      %v6001 = vadd.f32 %v5937, %v5969
      %v6002 = vadd.f32 %v5938, %v5970
      %v6003 = vadd.f32 %v5939, %v5971
      %v6004 = vadd.f32 %v5940, %v5972
      %v6005 = vadd.f32 %v5941, %v5973
      %v6006 = vadd.f32 %v5942, %v5974
      %v6007 = vadd.f32 %v5943, %v5975
      %v6008 = vadd.f32 %v5944, %v5976
      %v6009 = vadd.f32 %v5945, %v5977
      %v6010 = vadd.f32 %v5946, %v5978
      %v6011 = vadd.f32 %v5947, %v5979
      %v6012 = vadd.f32 %v5948, %v5980
      %v6013 = vadd.f32 %v5949, %v5981
      %v6014 = vadd.f32 %v5950, %v5982
      %v6015 = vadd.f32 %v5951, %v5983
      %v6016 = vadd.f32 %v5952, %v5984
      %v6017 = vadd.f32 %v5953, %v5985
      %v6018 = vadd.f32 %v5954, %v5986
      %v6019 = vadd.f32 %v5955, %v5987
      %v6020 = vadd.f32 %v5956, %v5988
      %v6021 = vadd.f32 %v5957, %v5989
      %v6022 = vmax.f32 %v5990, 0.0
      %v6023 = vmax.f32 %v5991, 0.0
      %v6024 = vmax.f32 %v5992, 0.0
      %v6025 = vmax.f32 %v5993, 0.0
      %v6026 = vmax.f32 %v5994, 0.0
      %v6027 = vmax.f32 %v5995, 0.0
      %v6028 = vmax.f32 %v5996, 0.0
      %v6029 = vmax.f32 %v5997, 0.0
      %v6030 = vmax.f32 %v5998, 0.0
      %v6031 = vmax.f32 %v5999, 0.0
      %v6032 = vmax.f32 %v6000, 0.0
      %v6033 = vmax.f32 %v6001, 0.0
      %v6034 = vmax.f32 %v6002, 0.0
      %v6035 = vmax.f32 %v6003, 0.0
      %v6036 = vmax.f32 %v6004, 0.0
      %v6037 = vmax.f32 %v6005, 0.0
      %v6038 = vmax.f32 %v6006, 0.0
      %v6039 = vmax.f32 %v6007, 0.0
      %v6040 = vmax.f32 %v6008, 0.0
      %v6041 = vmax.f32 %v6009, 0.0
      %v6042 = vmax.f32 %v6010, 0.0
      %v6043 = vmax.f32 %v6011, 0.0
      %v6044 = vmax.f32 %v6012, 0.0
      %v6045 = vmax.f32 %v6013, 0.0
      %v6046 = vmax.f32 %v6014, 0.0
      %v6047 = vmax.f32 %v6015, 0.0
      %v6048 = vmax.f32 %v6016, 0.0
      %v6049 = vmax.f32 %v6017, 0.0
      %v6050 = vmax.f32 %v6018, 0.0
      %v6051 = vmax.f32 %v6019, 0.0
      %v6052 = vmax.f32 %v6020, 0.0
      %v6053 = vmax.f32 %v6021, 0.0
      %6054 = vst [vmem:[%s224] sm:$0xff] %v6022
      %6055 = vst [vmem:[%s224 + $0x8] sm:$0xff] %v6023
      %6056 = vst [vmem:[%s224 + $0x10] sm:$0xff] %v6024
      %6057 = vst [vmem:[%s224 + $0x18] sm:$0xff] %v6025
      %6058 = vst [vmem:[%s224 + $0x20] sm:$0xff] %v6026
      %6059 = vst [vmem:[%s224 + $0x28] sm:$0xff] %v6027
      %6060 = vst [vmem:[%s224 + $0x30] sm:$0xff] %v6028
      %6061 = vst [vmem:[%s224 + $0x38] sm:$0xff] %v6029
      %6062 = vst [vmem:[%s224 + $0x40] sm:$0xff] %v6030
      %6063 = vst [vmem:[%s224 + $0x48] sm:$0xff] %v6031
      %6064 = vst [vmem:[%s224 + $0x50] sm:$0xff] %v6032
      %6065 = vst [vmem:[%s224 + $0x58] sm:$0xff] %v6033
      %6066 = vst [vmem:[%s224 + $0x60] sm:$0xff] %v6034
      %6067 = vst [vmem:[%s224 + $0x68] sm:$0xff] %v6035
      %6068 = vst [vmem:[%s224 + $0x70] sm:$0xff] %v6036
      %6069 = vst [vmem:[%s224 + $0x78] sm:$0xff] %v6037
      %6070 = vst [vmem:[%s224 + $0x80] sm:$0xff] %v6038
      %6071 = vst [vmem:[%s224 + $0x88] sm:$0xff] %v6039
      %6072 = vst [vmem:[%s224 + $0x90] sm:$0xff] %v6040
      %6073 = vst [vmem:[%s224 + $0x98] sm:$0xff] %v6041
      %6074 = vst [vmem:[%s224 + $0xa0] sm:$0xff] %v6042
      %6075 = vst [vmem:[%s224 + $0xa8] sm:$0xff] %v6043
      %6076 = vst [vmem:[%s224 + $0xb0] sm:$0xff] %v6044
      %6077 = vst [vmem:[%s224 + $0xb8] sm:$0xff] %v6045
      %6078 = vst [vmem:[%s224 + $0xc0] sm:$0xff] %v6046
      %6079 = vst [vmem:[%s224 + $0xc8] sm:$0xff] %v6047
      %6080 = vst [vmem:[%s224 + $0xd0] sm:$0xff] %v6048
      %6081 = vst [vmem:[%s224 + $0xd8] sm:$0xff] %v6049
      %6082 = vst [vmem:[%s224 + $0xe0] sm:$0xff] %v6050
      %6083 = vst [vmem:[%s224 + $0xe8] sm:$0xff] %v6051
      %6084 = vst [vmem:[%s224 + $0xf0] sm:$0xff] %v6052
      %6085 = vst [vmem:[%s224 + $0xf8] sm:$0xff] %v6053
      %p6086 = scmp.lt.s32.totalorder %s16, 1
      %s6087 = scalar_select %p6086, %s16, 1
      %s6088 = smul.addr %s6087, 32
      %s6089 = smul.addr %s6088, 8
      %s6090 = scalar_lea.vmem %s5, %s6089
      // Predicated region
      $region45: #{basic_block_forward.1} parent=39 // pred_check
        %p6091 = pneg %p144
      $region46: #{basic_block_forward.1} parent=39 // pred_check_branch
        %6093 = sbr.rel (%p6091) target = $region48
      $region47: #{basic_block_forward.1} parent=39 // pred_region
        _
      $region48: #{basic_block_forward.1} parent=39 // pred_fallthru
        _
    $region40: #{basic_block_forward.1} parent=5 // pred_fallthru
      _
    %p6094 = scmp.le.s32.totalorder 2, %s11
    // Predicated region
    $region49: #{basic_block_forward.1} parent=5 // pred_check
      %p6095 = pneg %p6094
    $region50: #{basic_block_forward.1} parent=5 // pred_check_branch
      %6097 = sbr.rel (%p6095) target = $region52
    $region51: #{basic_block_forward.1} parent=5 // pred_region
      %s6098 = ssub.s32 %s11, 2
      // Predicated region
      $region53: #{basic_block_forward.1} parent=51 // pred_check
        %p6099 = pneg %p150
      $region54: #{basic_block_forward.1} parent=51 // pred_check_branch
        %6101 = sbr.rel (%p6099) target = $region56
      $region55: #{basic_block_forward.1} parent=51 // pred_region
        %p6102 = scmp.lt.s32.totalorder %s17, 1
        %s6103 = scalar_select %p6102, %s17, 1
        %s6104 = smul.addr %s6103, 32
        %s6105 = smul.addr %s6104, 8
        %s6106 = scalar_lea.vmem %s5, %s6105
      $region56: #{basic_block_forward.1} parent=51 // pred_fallthru
        _
    $region52: #{basic_block_forward.1} parent=5 // pred_fallthru
      _
  $region6: #{basic_block_forward.1} parent=0 // loop_footer
    %s15 = sadd.s32 1, %s11
  $region7: #{basic_block_forward.1} parent=0 // loop_footer_branch
    %10 = sbr.rel target = $region3
  $region8: #{basic_block_forward.1} parent=0 // loop_exit
    _

</llo_original>
